<compile_context>
chip_gen: v7x
topology: tpu7x:2x2x1
jax: 0.10.0
libtpu: 0.0.40
codegen_flags: <defaults>
</compile_context>

<pallas_src>
import functools

import jax
import jax.numpy as jnp
from jax.experimental import pallas as pl
from jax.experimental.pallas import tpu as pltpu


def _round_up(x, m):
    return (x + m - 1) // m * m


# ---------------------------------------------------------------------------
# Pallas kernels
# ---------------------------------------------------------------------------

def _pool_reduce_kernel(x_ref, o_ref):
    # x_ref: (p*p, tr, HW) -> elementwise max over the leading window axis.
    acc = x_ref[0]
    for i in range(1, x_ref.shape[0]):
        acc = jnp.maximum(acc, x_ref[i])
    o_ref[...] = acc


def _conv_relu_pool_kernel(a_ref, w_ref, b_ref, o_ref, *, pp):
    # a_ref: (pp, tm, K) bf16  -- pp pool-window offsets of im2col rows
    # w_ref: (K, 128) bf16, b_ref: (1, 128) f32
    # pool(relu(conv + b)) == relu(max_i(dot_i) + b)  (bias constant across the
    # window, ReLU monotone), so take the max of the raw matmuls first.
    acc = jnp.dot(a_ref[0], w_ref[...], preferred_element_type=jnp.float32)
    for i in range(1, pp):
        acc = jnp.maximum(
            acc, jnp.dot(a_ref[i], w_ref[...], preferred_element_type=jnp.float32))
    acc = jnp.maximum(acc + b_ref[...], 0.0)
    o_ref[...] = acc.astype(o_ref.dtype)


def _mlp_head_kernel(x_ref, w1_ref, b1_ref, w2_ref, b2_ref, w3_ref, b3_ref,
                     o_ref):
    # Fused fc1 -> ReLU -> fc2 -> ReLU -> fc3 ; intermediates stay on-chip.
    h = jnp.dot(x_ref[...], w1_ref[...], preferred_element_type=jnp.float32)
    h = jnp.maximum(h + b1_ref[...], 0.0)
    h = jnp.dot(h.astype(jnp.bfloat16), w2_ref[...],
                preferred_element_type=jnp.float32)
    h = jnp.maximum(h + b2_ref[...], 0.0)
    h = jnp.dot(h.astype(jnp.bfloat16), w3_ref[...],
                preferred_element_type=jnp.float32)
    o_ref[...] = (h + b3_ref[...]).astype(o_ref.dtype)


# ---------------------------------------------------------------------------
# Layer wrappers (all called from inside one jax.jit)
# ---------------------------------------------------------------------------

def maxpool2d(x, p):
    """nn.MaxPool2d(p, p) (floor mode): (N,C,H,W) -> (N,C,H//p,W//p).

    Lane-dense: the reduction operates on (p*p, N*C, Ho*Wo) so stores use full
    128-lane rows instead of narrow masked stores.
    """
    N, C, H, W = x.shape
    Ho, Wo = H // p, W // p
    x = x[:, :, :Ho * p, :Wo * p]
    views = jnp.stack(
        [x[:, :, di::p, dj::p] for di in range(p) for dj in range(p)], axis=0)
    views = views.reshape(p * p, N * C, Ho * Wo)

    R, HW = N * C, Ho * Wo
    tr = min(512, _round_up(R, 8))
    Rp = _round_up(R, tr)
    if Rp != R:
        views = jnp.pad(views, ((0, 0), (0, Rp - R), (0, 0)))

    out = pl.pallas_call(
        _pool_reduce_kernel,
        out_shape=jax.ShapeDtypeStruct((Rp, HW), x.dtype),
        grid=(Rp // tr,),
        in_specs=[pl.BlockSpec((p * p, tr, HW), lambda i: (0, i, 0))],
        out_specs=pl.BlockSpec((tr, HW), lambda i: (i, 0)),
        compiler_params=pltpu.CompilerParams(
            dimension_semantics=("parallel",)),
    )(views)
    return out[:R].reshape(N, C, Ho, Wo)


def conv_relu_pool(x, w_mat, b_row, *, k, p, cout):
    """Fused valid-conv(k) + bias + ReLU + maxpool(p) on an NHWC bf16 input.

    x: (N, H, W, Cin) bf16, w_mat: (k*k*Cin, 128) bf16 (pre-padded, (kh,kw,cin)
    row order), b_row: (1, 128) f32.  Returns (N, Hp, Wp, cout) bf16 (NHWC).
    """
    N, H, W, Cin = x.shape
    Ho, Wo = H - k + 1, W - k + 1
    Hp, Wp = Ho // p, Wo // p
    K = k * k * Cin
    Np = w_mat.shape[1]

    # im2col, column order (kh, kw, cin) matching the prepared weight matrix.
    cols = jnp.stack(
        [x[:, di:di + Ho, dj:dj + Wo, :] for di in range(k) for dj in range(k)],
        axis=3)                                    # (N, Ho, Wo, k*k, Cin)
    cols = cols.reshape(N, Ho, Wo, K)[:, :Hp * p, :Wp * p, :]
    # Group rows by pool-window offset: (p*p, N*Hp*Wp, K).
    cols = cols.reshape(N, Hp, p, Wp, p, K).transpose(2, 4, 0, 1, 3, 5)
    cols = cols.reshape(p * p, N * Hp * Wp, K)

    Mo = N * Hp * Wp
    tm = min(512, _round_up(Mo, 8))
    Mp = _round_up(Mo, tm)
    if Mp != Mo:
        cols = jnp.pad(cols, ((0, 0), (0, Mp - Mo), (0, 0)))

    out = pl.pallas_call(
        functools.partial(_conv_relu_pool_kernel, pp=p * p),
        out_shape=jax.ShapeDtypeStruct((Mp, Np), jnp.bfloat16),
        grid=(Mp // tm,),
        in_specs=[
            pl.BlockSpec((p * p, tm, K), lambda i: (0, i, 0)),
            pl.BlockSpec((K, Np), lambda i: (0, 0)),
            pl.BlockSpec((1, Np), lambda i: (0, 0)),
        ],
        out_specs=pl.BlockSpec((tm, Np), lambda i: (i, 0)),
        compiler_params=pltpu.CompilerParams(
            dimension_semantics=("parallel",)),
    )(cols, w_mat, b_row)

    out = out[:Mo].reshape(N, Hp, Wp, Np)
    return out[..., :cout]


def mlp_head(y, q):
    """Fused fc1/fc2/fc3 with ReLU between them.  y: (N, 1120) bf16."""
    N, F = y.shape
    Mb = _round_up(N, 8)
    if Mb != N:
        y = jnp.pad(y, ((0, Mb - N), (0, 0)))

    out = pl.pallas_call(
        _mlp_head_kernel,
        out_shape=jax.ShapeDtypeStruct((Mb, 128), jnp.float32),
        grid=(1,),
        in_specs=[
            pl.BlockSpec((Mb, F), lambda i: (0, 0)),
            pl.BlockSpec((F, 128), lambda i: (0, 0)),
            pl.BlockSpec((1, 128), lambda i: (0, 0)),
            pl.BlockSpec((128, 128), lambda i: (0, 0)),
            pl.BlockSpec((1, 128), lambda i: (0, 0)),
            pl.BlockSpec((128, 128), lambda i: (0, 0)),
            pl.BlockSpec((1, 128), lambda i: (0, 0)),
        ],
        out_specs=pl.BlockSpec((Mb, 128), lambda i: (0, 0)),
    )(y, q["fc1_w"], q["fc1_b"], q["fc2_w"], q["fc2_b"], q["fc3_w"], q["fc3_b"])
    return out[:N]


# ---------------------------------------------------------------------------
# Parameters
# ---------------------------------------------------------------------------

def init_params(n_classes=9):
    """Deterministic parameter init in PyTorch layout (fixed seed)."""
    key = jax.random.PRNGKey(0)

    def uinit(key, shape, fan_in):
        bound = 1.0 / jnp.sqrt(float(fan_in))
        return jax.random.uniform(key, shape, jnp.float32, -bound, bound)

    ks = jax.random.split(key, 12)
    p = {}
    p["conv1_w"] = uinit(ks[0], (20, 3, 5, 5), 3 * 5 * 5)
    p["conv1_b"] = uinit(ks[1], (20,), 3 * 5 * 5)
    p["conv2_w"] = uinit(ks[2], (50, 20, 3, 3), 20 * 3 * 3)
    p["conv2_b"] = uinit(ks[3], (50,), 20 * 3 * 3)
    p["conv3_w"] = uinit(ks[4], (70, 50, 3, 3), 50 * 3 * 3)
    p["conv3_b"] = uinit(ks[5], (70,), 50 * 3 * 3)
    p["fc1_w"] = uinit(ks[6], (120, 1120), 1120)
    p["fc1_b"] = uinit(ks[7], (120,), 1120)
    p["fc2_w"] = uinit(ks[8], (60, 120), 120)
    p["fc2_b"] = uinit(ks[9], (60,), 120)
    p["fc3_w"] = uinit(ks[10], (n_classes, 60), 60)
    p["fc3_b"] = uinit(ks[11], (n_classes,), 60)
    return p


def prepare_params(p):
    """One-time conversion to kernel layout: transpose, pad to lane-dense
    (out-dim 128) slabs, cast to bf16.  Hoisted out of the forward pass."""
    NP = 128

    def conv_wmat(w):
        cout, cin, k, _ = w.shape
        wm = w.transpose(2, 3, 1, 0).reshape(k * k * cin, cout)  # (kh,kw,cin) x Cout
        return jnp.zeros((k * k * cin, NP), jnp.bfloat16).at[:, :cout].set(
            wm.astype(jnp.bfloat16))

    def bias_row(b):
        return jnp.zeros((1, NP), jnp.float32).at[0, :b.shape[0]].set(b)

    def fc_wmat(w, in_pad):
        o, i = w.shape
        return jnp.zeros((in_pad, NP), jnp.bfloat16).at[:i, :o].set(
            w.T.astype(jnp.bfloat16))

    q = {
        "c1_w": conv_wmat(p["conv1_w"]), "c1_b": bias_row(p["conv1_b"]),
        "c2_w": conv_wmat(p["conv2_w"]), "c2_b": bias_row(p["conv2_b"]),
        "c3_w": conv_wmat(p["conv3_w"]), "c3_b": bias_row(p["conv3_b"]),
        "fc1_w": fc_wmat(p["fc1_w"], 1120), "fc1_b": bias_row(p["fc1_b"]),
        "fc2_w": fc_wmat(p["fc2_w"], 128), "fc2_b": bias_row(p["fc2_b"]),
        "fc3_w": fc_wmat(p["fc3_w"], 128), "fc3_b": bias_row(p["fc3_b"]),
    }
    return q


# ---------------------------------------------------------------------------
# Full forward pass (single jit)
# ---------------------------------------------------------------------------

@functools.partial(jax.jit, static_argnames=("n_classes", "softmax_out"))
def mynet_forward(q, x, n_classes=9, softmax_out=False):
    # bf16 activations end-to-end (f32 MXU accumulation inside the kernels).
    x = x.astype(jnp.bfloat16)

    # 1. MaxPool 4x4 (Pallas, lane-dense reduction).
    y = maxpool2d(x, 4)                       # (N, 3, 48, 48)
    y = y.transpose(0, 2, 3, 1)               # NHWC for the fused conv layers

    # 2-7. conv+bias+ReLU+pool fused, one Pallas kernel per layer.
    y = conv_relu_pool(y, q["c1_w"], q["c1_b"], k=5, p=2, cout=20)  # (N,22,22,20)
    y = conv_relu_pool(y, q["c2_w"], q["c2_b"], k=3, p=2, cout=50)  # (N,10,10,50)
    y = conv_relu_pool(y, q["c3_w"], q["c3_b"], k=3, p=2, cout=70)  # (N, 4, 4,70)

    # 8. flatten in torch NCHW order (matches .view(-1, 70*4*4)).
    N = y.shape[0]
    y = y.transpose(0, 3, 1, 2).reshape(N, 70 * 4 * 4)

    # TODO(synk): training-mode dropout (p=0.2) not implemented; identity here.

    # 9-11. fused fully-connected head (single Pallas kernel).
    logits = mlp_head(y, q)[:, :n_classes]
    if softmax_out:
        logits = jax.nn.softmax(logits, axis=-1)
    return logits


if __name__ == "__main__":
    key = jax.random.PRNGKey(0)
    # Smallest input consistent with the architecture's hard-coded 70*4*4 flatten.
    x = jax.random.normal(key, (2, 3, 192, 192), dtype=jnp.float32)

    params = prepare_params(init_params(n_classes=9))

    out = mynet_forward(params, x, n_classes=9)
    out = jax.block_until_ready(out)
    assert out.shape == (2, 9), out.shape
    print("KERNEL_OK")
</pallas_src>

<mosaic_0001>
module attributes {stable_mosaic.version = 11 : i64} {
  func.func @_pool_reduce_kernel(%arg0: i32, %arg1: memref<16x8x2304xbf16, #tpu.memory_space<vmem>>, %arg2: memref<8x2304xbf16, #tpu.memory_space<vmem>>) attributes {dimension_semantics = [#tpu.dimension_semantics<parallel>], iteration_bounds = array<i64: 1>, scalar_prefetch = 0 : i64, scratch_operands = 0 : i64, tpu.core_type = #tpu.core_type<tc>, window_params = [{transform_indices = @transform_0, window_bounds = array<i64: 16, 8, 2304>}, {transform_indices = @transform_1, window_bounds = array<i64: 8, 2304>}]} {
    %c0 = arith.constant 0 : index
    %c0_0 = arith.constant 0 : index
    %c0_1 = arith.constant 0 : index
    %0 = vector.load %arg1[%c0, %c0_0, %c0_1] : memref<16x8x2304xbf16, #tpu.memory_space<vmem>>, vector<1x8x2304xbf16>
    %1 = vector.shape_cast %0 : vector<1x8x2304xbf16> to vector<8x2304xbf16>
    %c1 = arith.constant 1 : index
    %c0_2 = arith.constant 0 : index
    %c0_3 = arith.constant 0 : index
    %2 = vector.load %arg1[%c1, %c0_2, %c0_3] : memref<16x8x2304xbf16, #tpu.memory_space<vmem>>, vector<1x8x2304xbf16>
    %3 = vector.shape_cast %2 : vector<1x8x2304xbf16> to vector<8x2304xbf16>
    %4 = arith.maximumf %1, %3 : vector<8x2304xbf16>
    %c2 = arith.constant 2 : index
    %c0_4 = arith.constant 0 : index
    %c0_5 = arith.constant 0 : index
    %5 = vector.load %arg1[%c2, %c0_4, %c0_5] : memref<16x8x2304xbf16, #tpu.memory_space<vmem>>, vector<1x8x2304xbf16>
    %6 = vector.shape_cast %5 : vector<1x8x2304xbf16> to vector<8x2304xbf16>
    %7 = arith.maximumf %4, %6 : vector<8x2304xbf16>
    %c3 = arith.constant 3 : index
    %c0_6 = arith.constant 0 : index
    %c0_7 = arith.constant 0 : index
    %8 = vector.load %arg1[%c3, %c0_6, %c0_7] : memref<16x8x2304xbf16, #tpu.memory_space<vmem>>, vector<1x8x2304xbf16>
    %9 = vector.shape_cast %8 : vector<1x8x2304xbf16> to vector<8x2304xbf16>
    %10 = arith.maximumf %7, %9 : vector<8x2304xbf16>
    %c4 = arith.constant 4 : index
    %c0_8 = arith.constant 0 : index
    %c0_9 = arith.constant 0 : index
    %11 = vector.load %arg1[%c4, %c0_8, %c0_9] : memref<16x8x2304xbf16, #tpu.memory_space<vmem>>, vector<1x8x2304xbf16>
    %12 = vector.shape_cast %11 : vector<1x8x2304xbf16> to vector<8x2304xbf16>
    %13 = arith.maximumf %10, %12 : vector<8x2304xbf16>
    %c5 = arith.constant 5 : index
    %c0_10 = arith.constant 0 : index
    %c0_11 = arith.constant 0 : index
    %14 = vector.load %arg1[%c5, %c0_10, %c0_11] : memref<16x8x2304xbf16, #tpu.memory_space<vmem>>, vector<1x8x2304xbf16>
    %15 = vector.shape_cast %14 : vector<1x8x2304xbf16> to vector<8x2304xbf16>
    %16 = arith.maximumf %13, %15 : vector<8x2304xbf16>
    %c6 = arith.constant 6 : index
    %c0_12 = arith.constant 0 : index
    %c0_13 = arith.constant 0 : index
    %17 = vector.load %arg1[%c6, %c0_12, %c0_13] : memref<16x8x2304xbf16, #tpu.memory_space<vmem>>, vector<1x8x2304xbf16>
    %18 = vector.shape_cast %17 : vector<1x8x2304xbf16> to vector<8x2304xbf16>
    %19 = arith.maximumf %16, %18 : vector<8x2304xbf16>
    %c7 = arith.constant 7 : index
    %c0_14 = arith.constant 0 : index
    %c0_15 = arith.constant 0 : index
    %20 = vector.load %arg1[%c7, %c0_14, %c0_15] : memref<16x8x2304xbf16, #tpu.memory_space<vmem>>, vector<1x8x2304xbf16>
    %21 = vector.shape_cast %20 : vector<1x8x2304xbf16> to vector<8x2304xbf16>
    %22 = arith.maximumf %19, %21 : vector<8x2304xbf16>
    %c8 = arith.constant 8 : index
    %c0_16 = arith.constant 0 : index
    %c0_17 = arith.constant 0 : index
    %23 = vector.load %arg1[%c8, %c0_16, %c0_17] : memref<16x8x2304xbf16, #tpu.memory_space<vmem>>, vector<1x8x2304xbf16>
    %24 = vector.shape_cast %23 : vector<1x8x2304xbf16> to vector<8x2304xbf16>
    %25 = arith.maximumf %22, %24 : vector<8x2304xbf16>
    %c9 = arith.constant 9 : index
    %c0_18 = arith.constant 0 : index
    %c0_19 = arith.constant 0 : index
    %26 = vector.load %arg1[%c9, %c0_18, %c0_19] : memref<16x8x2304xbf16, #tpu.memory_space<vmem>>, vector<1x8x2304xbf16>
    %27 = vector.shape_cast %26 : vector<1x8x2304xbf16> to vector<8x2304xbf16>
    %28 = arith.maximumf %25, %27 : vector<8x2304xbf16>
    %c10 = arith.constant 10 : index
    %c0_20 = arith.constant 0 : index
    %c0_21 = arith.constant 0 : index
    %29 = vector.load %arg1[%c10, %c0_20, %c0_21] : memref<16x8x2304xbf16, #tpu.memory_space<vmem>>, vector<1x8x2304xbf16>
    %30 = vector.shape_cast %29 : vector<1x8x2304xbf16> to vector<8x2304xbf16>
    %31 = arith.maximumf %28, %30 : vector<8x2304xbf16>
    %c11 = arith.constant 11 : index
    %c0_22 = arith.constant 0 : index
    %c0_23 = arith.constant 0 : index
    %32 = vector.load %arg1[%c11, %c0_22, %c0_23] : memref<16x8x2304xbf16, #tpu.memory_space<vmem>>, vector<1x8x2304xbf16>
    %33 = vector.shape_cast %32 : vector<1x8x2304xbf16> to vector<8x2304xbf16>
    %34 = arith.maximumf %31, %33 : vector<8x2304xbf16>
    %c12 = arith.constant 12 : index
    %c0_24 = arith.constant 0 : index
    %c0_25 = arith.constant 0 : index
    %35 = vector.load %arg1[%c12, %c0_24, %c0_25] : memref<16x8x2304xbf16, #tpu.memory_space<vmem>>, vector<1x8x2304xbf16>
    %36 = vector.shape_cast %35 : vector<1x8x2304xbf16> to vector<8x2304xbf16>
    %37 = arith.maximumf %34, %36 : vector<8x2304xbf16>
    %c13 = arith.constant 13 : index
    %c0_26 = arith.constant 0 : index
    %c0_27 = arith.constant 0 : index
    %38 = vector.load %arg1[%c13, %c0_26, %c0_27] : memref<16x8x2304xbf16, #tpu.memory_space<vmem>>, vector<1x8x2304xbf16>
    %39 = vector.shape_cast %38 : vector<1x8x2304xbf16> to vector<8x2304xbf16>
    %40 = arith.maximumf %37, %39 : vector<8x2304xbf16>
    %c14 = arith.constant 14 : index
    %c0_28 = arith.constant 0 : index
    %c0_29 = arith.constant 0 : index
    %41 = vector.load %arg1[%c14, %c0_28, %c0_29] : memref<16x8x2304xbf16, #tpu.memory_space<vmem>>, vector<1x8x2304xbf16>
    %42 = vector.shape_cast %41 : vector<1x8x2304xbf16> to vector<8x2304xbf16>
    %43 = arith.maximumf %40, %42 : vector<8x2304xbf16>
    %c15 = arith.constant 15 : index
    %c0_30 = arith.constant 0 : index
    %c0_31 = arith.constant 0 : index
    %44 = vector.load %arg1[%c15, %c0_30, %c0_31] : memref<16x8x2304xbf16, #tpu.memory_space<vmem>>, vector<1x8x2304xbf16>
    %45 = vector.shape_cast %44 : vector<1x8x2304xbf16> to vector<8x2304xbf16>
    %46 = arith.maximumf %43, %45 : vector<8x2304xbf16>
    %c0_32 = arith.constant 0 : index
    %c0_33 = arith.constant 0 : index
    %47 = vector.load %arg2[%c0_32, %c0_33] : memref<8x2304xbf16, #tpu.memory_space<vmem>>, vector<8x2304xbf16>
    tpu.vector_store %arg2[%c0_32, %c0_33], %46 {strides = array<i32>} : memref<8x2304xbf16, #tpu.memory_space<vmem>>, vector<8x2304xbf16>,
    return
  }
  func.func @transform_0(%arg0: i32) -> (i32, i32, i32) {
    %c0_i32 = arith.constant 0 : i32
    %c0_i32_0 = arith.constant 0 : i32
    %c0_i32_1 = arith.constant 0 : i32
    return %c0_i32, %arg0, %c0_i32_0 : i32, i32, i32
  }
  func.func @transform_1(%arg0: i32) -> (i32, i32) {
    %c0_i32 = arith.constant 0 : i32
    %c0_i32_0 = arith.constant 0 : i32
    return %arg0, %c0_i32 : i32, i32
  }
}

module attributes {stable_mosaic.version = 11 : i64} {
  func.func @_conv_relu_pool_kernel(%arg0: i32, %arg1: memref<4x512x75xbf16, #tpu.memory_space<vmem>>, %arg2: memref<75x128xbf16, #tpu.memory_space<vmem>>, %arg3: memref<1x128xf32, #tpu.memory_space<vmem>>, %arg4: memref<512x128xbf16, #tpu.memory_space<vmem>>) attributes {dimension_semantics = [#tpu.dimension_semantics<parallel>], iteration_bounds = array<i64: 2>, scalar_prefetch = 0 : i64, scratch_operands = 0 : i64, tpu.core_type = #tpu.core_type<tc>, window_params = [{transform_indices = @transform_0, window_bounds = array<i64: 4, 512, 75>}, {pipeline_mode = #tpu.pipeline_mode<synchronous>, transform_indices = @transform_1, window_bounds = array<i64: 75, 128>}, {pipeline_mode = #tpu.pipeline_mode<synchronous>, transform_indices = @transform_2, window_bounds = array<i64: 1, 128>}, {transform_indices = @transform_3, window_bounds = array<i64: 512, 128>}]} {
    %c0 = arith.constant 0 : index
    %c0_0 = arith.constant 0 : index
    %c0_1 = arith.constant 0 : index
    %0 = vector.load %arg1[%c0, %c0_0, %c0_1] : memref<4x512x75xbf16, #tpu.memory_space<vmem>>, vector<1x512x75xbf16>
    %1 = vector.shape_cast %0 : vector<1x512x75xbf16> to vector<512x75xbf16>
    %c0_2 = arith.constant 0 : index
    %c0_3 = arith.constant 0 : index
    %2 = vector.load %arg2[%c0_2, %c0_3] : memref<75x128xbf16, #tpu.memory_space<vmem>>, vector<75x128xbf16>
    %cst = arith.constant dense<0.000000e+00> : vector<512x128xf32>
    %3 = tpu.matmul %1, %2, %cst {dimension_numbers = #tpu.dot_dimension_numbers<[1], [0], [0], [1], [0, 0, 1, 1], [], []>} : vector<512x75xbf16>, vector<75x128xbf16>, vector<512x128xf32> -> vector<512x128xf32>
    %c1 = arith.constant 1 : index
    %c0_4 = arith.constant 0 : index
    %c0_5 = arith.constant 0 : index
    %4 = vector.load %arg1[%c1, %c0_4, %c0_5] : memref<4x512x75xbf16, #tpu.memory_space<vmem>>, vector<1x512x75xbf16>
    %5 = vector.shape_cast %4 : vector<1x512x75xbf16> to vector<512x75xbf16>
    %c0_6 = arith.constant 0 : index
    %c0_7 = arith.constant 0 : index
    %6 = vector.load %arg2[%c0_6, %c0_7] : memref<75x128xbf16, #tpu.memory_space<vmem>>, vector<75x128xbf16>
    %cst_8 = arith.constant dense<0.000000e+00> : vector<512x128xf32>
    %7 = tpu.matmul %5, %6, %cst_8 {dimension_numbers = #tpu.dot_dimension_numbers<[1], [0], [0], [1], [0, 0, 1, 1], [], []>} : vector<512x75xbf16>, vector<75x128xbf16>, vector<512x128xf32> -> vector<512x128xf32>
    %8 = arith.maximumf %3, %7 : vector<512x128xf32>
    %c2 = arith.constant 2 : index
    %c0_9 = arith.constant 0 : index
    %c0_10 = arith.constant 0 : index
    %9 = vector.load %arg1[%c2, %c0_9, %c0_10] : memref<4x512x75xbf16, #tpu.memory_space<vmem>>, vector<1x512x75xbf16>
    %10 = vector.shape_cast %9 : vector<1x512x75xbf16> to vector<512x75xbf16>
    %c0_11 = arith.constant 0 : index
    %c0_12 = arith.constant 0 : index
    %11 = vector.load %arg2[%c0_11, %c0_12] : memref<75x128xbf16, #tpu.memory_space<vmem>>, vector<75x128xbf16>
    %cst_13 = arith.constant dense<0.000000e+00> : vector<512x128xf32>
    %12 = tpu.matmul %10, %11, %cst_13 {dimension_numbers = #tpu.dot_dimension_numbers<[1], [0], [0], [1], [0, 0, 1, 1], [], []>} : vector<512x75xbf16>, vector<75x128xbf16>, vector<512x128xf32> -> vector<512x128xf32>
    %13 = arith.maximumf %8, %12 : vector<512x128xf32>
    %c3 = arith.constant 3 : index
    %c0_14 = arith.constant 0 : index
    %c0_15 = arith.constant 0 : index
    %14 = vector.load %arg1[%c3, %c0_14, %c0_15] : memref<4x512x75xbf16, #tpu.memory_space<vmem>>, vector<1x512x75xbf16>
    %15 = vector.shape_cast %14 : vector<1x512x75xbf16> to vector<512x75xbf16>
    %c0_16 = arith.constant 0 : index
    %c0_17 = arith.constant 0 : index
    %16 = vector.load %arg2[%c0_16, %c0_17] : memref<75x128xbf16, #tpu.memory_space<vmem>>, vector<75x128xbf16>
    %cst_18 = arith.constant dense<0.000000e+00> : vector<512x128xf32>
    %17 = tpu.matmul %15, %16, %cst_18 {dimension_numbers = #tpu.dot_dimension_numbers<[1], [0], [0], [1], [0, 0, 1, 1], [], []>} : vector<512x75xbf16>, vector<75x128xbf16>, vector<512x128xf32> -> vector<512x128xf32>
    %18 = arith.maximumf %13, %17 : vector<512x128xf32>
    %c0_19 = arith.constant 0 : index
    %c0_20 = arith.constant 0 : index
    %19 = vector.load %arg3[%c0_19, %c0_20] : memref<1x128xf32, #tpu.memory_space<vmem>>, vector<1x128xf32>
    %20 = vector.broadcast %19 : vector<1x128xf32> to vector<512x128xf32>
    %21 = arith.addf %18, %20 : vector<512x128xf32>
    %cst_21 = arith.constant 0.000000e+00 : f32
    %22 = vector.broadcast %cst_21 : f32 to vector<512x128xf32>
    %23 = arith.maximumf %21, %22 : vector<512x128xf32>
    %24 = arith.truncf %23 : vector<512x128xf32> to vector<512x128xbf16>
    %c0_22 = arith.constant 0 : index
    %c0_23 = arith.constant 0 : index
    %25 = vector.load %arg4[%c0_22, %c0_23] : memref<512x128xbf16, #tpu.memory_space<vmem>>, vector<512x128xbf16>
    tpu.vector_store %arg4[%c0_22, %c0_23], %24 {strides = array<i32>} : memref<512x128xbf16, #tpu.memory_space<vmem>>, vector<512x128xbf16>,
    return
  }
  func.func @transform_0(%arg0: i32) -> (i32, i32, i32) {
    %c0_i32 = arith.constant 0 : i32
    %c0_i32_0 = arith.constant 0 : i32
    %c0_i32_1 = arith.constant 0 : i32
    return %c0_i32, %arg0, %c0_i32_0 : i32, i32, i32
  }
  func.func @transform_1(%arg0: i32) -> (i32, i32) {
    %c0_i32 = arith.constant 0 : i32
    %c0_i32_0 = arith.constant 0 : i32
    %c0_i32_1 = arith.constant 0 : i32
    return %c0_i32, %c0_i32_0 : i32, i32
  }
  func.func @transform_2(%arg0: i32) -> (i32, i32) {
    %c0_i32 = arith.constant 0 : i32
    %c0_i32_0 = arith.constant 0 : i32
    %c0_i32_1 = arith.constant 0 : i32
    return %c0_i32, %c0_i32_0 : i32, i32
  }
  func.func @transform_3(%arg0: i32) -> (i32, i32) {
    %c0_i32 = arith.constant 0 : i32
    %c0_i32_0 = arith.constant 0 : i32
    return %arg0, %c0_i32 : i32, i32
  }
}

module attributes {stable_mosaic.version = 11 : i64} {
  func.func @_conv_relu_pool_kernel(%arg0: i32, %arg1: memref<4x200x180xbf16, #tpu.memory_space<vmem>>, %arg2: memref<180x128xbf16, #tpu.memory_space<vmem>>, %arg3: memref<1x128xf32, #tpu.memory_space<vmem>>, %arg4: memref<200x128xbf16, #tpu.memory_space<vmem>>) attributes {dimension_semantics = [#tpu.dimension_semantics<parallel>], iteration_bounds = array<i64: 1>, scalar_prefetch = 0 : i64, scratch_operands = 0 : i64, tpu.core_type = #tpu.core_type<tc>, window_params = [{transform_indices = @transform_0, window_bounds = array<i64: 4, 200, 180>}, {pipeline_mode = #tpu.pipeline_mode<synchronous>, transform_indices = @transform_1, window_bounds = array<i64: 180, 128>}, {pipeline_mode = #tpu.pipeline_mode<synchronous>, transform_indices = @transform_2, window_bounds = array<i64: 1, 128>}, {transform_indices = @transform_3, window_bounds = array<i64: 200, 128>}]} {
    %c0 = arith.constant 0 : index
    %c0_0 = arith.constant 0 : index
    %c0_1 = arith.constant 0 : index
    %0 = vector.load %arg1[%c0, %c0_0, %c0_1] : memref<4x200x180xbf16, #tpu.memory_space<vmem>>, vector<1x200x180xbf16>
    %1 = vector.shape_cast %0 : vector<1x200x180xbf16> to vector<200x180xbf16>
    %c0_2 = arith.constant 0 : index
    %c0_3 = arith.constant 0 : index
    %2 = vector.load %arg2[%c0_2, %c0_3] : memref<180x128xbf16, #tpu.memory_space<vmem>>, vector<180x128xbf16>
    %cst = arith.constant dense<0.000000e+00> : vector<200x128xf32>
    %3 = tpu.matmul %1, %2, %cst {dimension_numbers = #tpu.dot_dimension_numbers<[1], [0], [0], [1], [0, 0, 1, 1], [], []>} : vector<200x180xbf16>, vector<180x128xbf16>, vector<200x128xf32> -> vector<200x128xf32>
    %c1 = arith.constant 1 : index
    %c0_4 = arith.constant 0 : index
    %c0_5 = arith.constant 0 : index
    %4 = vector.load %arg1[%c1, %c0_4, %c0_5] : memref<4x200x180xbf16, #tpu.memory_space<vmem>>, vector<1x200x180xbf16>
    %5 = vector.shape_cast %4 : vector<1x200x180xbf16> to vector<200x180xbf16>
    %c0_6 = arith.constant 0 : index
    %c0_7 = arith.constant 0 : index
    %6 = vector.load %arg2[%c0_6, %c0_7] : memref<180x128xbf16, #tpu.memory_space<vmem>>, vector<180x128xbf16>
    %cst_8 = arith.constant dense<0.000000e+00> : vector<200x128xf32>
    %7 = tpu.matmul %5, %6, %cst_8 {dimension_numbers = #tpu.dot_dimension_numbers<[1], [0], [0], [1], [0, 0, 1, 1], [], []>} : vector<200x180xbf16>, vector<180x128xbf16>, vector<200x128xf32> -> vector<200x128xf32>
    %8 = arith.maximumf %3, %7 : vector<200x128xf32>
    %c2 = arith.constant 2 : index
    %c0_9 = arith.constant 0 : index
    %c0_10 = arith.constant 0 : index
    %9 = vector.load %arg1[%c2, %c0_9, %c0_10] : memref<4x200x180xbf16, #tpu.memory_space<vmem>>, vector<1x200x180xbf16>
    %10 = vector.shape_cast %9 : vector<1x200x180xbf16> to vector<200x180xbf16>
    %c0_11 = arith.constant 0 : index
    %c0_12 = arith.constant 0 : index
    %11 = vector.load %arg2[%c0_11, %c0_12] : memref<180x128xbf16, #tpu.memory_space<vmem>>, vector<180x128xbf16>
    %cst_13 = arith.constant dense<0.000000e+00> : vector<200x128xf32>
    %12 = tpu.matmul %10, %11, %cst_13 {dimension_numbers = #tpu.dot_dimension_numbers<[1], [0], [0], [1], [0, 0, 1, 1], [], []>} : vector<200x180xbf16>, vector<180x128xbf16>, vector<200x128xf32> -> vector<200x128xf32>
    %13 = arith.maximumf %8, %12 : vector<200x128xf32>
    %c3 = arith.constant 3 : index
    %c0_14 = arith.constant 0 : index
    %c0_15 = arith.constant 0 : index
    %14 = vector.load %arg1[%c3, %c0_14, %c0_15] : memref<4x200x180xbf16, #tpu.memory_space<vmem>>, vector<1x200x180xbf16>
    %15 = vector.shape_cast %14 : vector<1x200x180xbf16> to vector<200x180xbf16>
    %c0_16 = arith.constant 0 : index
    %c0_17 = arith.constant 0 : index
    %16 = vector.load %arg2[%c0_16, %c0_17] : memref<180x128xbf16, #tpu.memory_space<vmem>>, vector<180x128xbf16>
    %cst_18 = arith.constant dense<0.000000e+00> : vector<200x128xf32>
    %17 = tpu.matmul %15, %16, %cst_18 {dimension_numbers = #tpu.dot_dimension_numbers<[1], [0], [0], [1], [0, 0, 1, 1], [], []>} : vector<200x180xbf16>, vector<180x128xbf16>, vector<200x128xf32> -> vector<200x128xf32>
    %18 = arith.maximumf %13, %17 : vector<200x128xf32>
    %c0_19 = arith.constant 0 : index
    %c0_20 = arith.constant 0 : index
    %19 = vector.load %arg3[%c0_19, %c0_20] : memref<1x128xf32, #tpu.memory_space<vmem>>, vector<1x128xf32>
    %20 = vector.broadcast %19 : vector<1x128xf32> to vector<200x128xf32>
    %21 = arith.addf %18, %20 : vector<200x128xf32>
    %cst_21 = arith.constant 0.000000e+00 : f32
    %22 = vector.broadcast %cst_21 : f32 to vector<200x128xf32>
    %23 = arith.maximumf %21, %22 : vector<200x128xf32>
    %24 = arith.truncf %23 : vector<200x128xf32> to vector<200x128xbf16>
    %c0_22 = arith.constant 0 : index
    %c0_23 = arith.constant 0 : index
    %25 = vector.load %arg4[%c0_22, %c0_23] : memref<200x128xbf16, #tpu.memory_space<vmem>>, vector<200x128xbf16>
    tpu.vector_store %arg4[%c0_22, %c0_23], %24 {strides = array<i32>} : memref<200x128xbf16, #tpu.memory_space<vmem>>, vector<200x128xbf16>,
    return
  }
  func.func @transform_0(%arg0: i32) -> (i32, i32, i32) {
    %c0_i32 = arith.constant 0 : i32
    %c0_i32_0 = arith.constant 0 : i32
    %c0_i32_1 = arith.constant 0 : i32
    return %c0_i32, %arg0, %c0_i32_0 : i32, i32, i32
  }
  func.func @transform_1(%arg0: i32) -> (i32, i32) {
    %c0_i32 = arith.constant 0 : i32
    %c0_i32_0 = arith.constant 0 : i32
    %c0_i32_1 = arith.constant 0 : i32
    return %c0_i32, %c0_i32_0 : i32, i32
  }
  func.func @transform_2(%arg0: i32) -> (i32, i32) {
    %c0_i32 = arith.constant 0 : i32
    %c0_i32_0 = arith.constant 0 : i32
    %c0_i32_1 = arith.constant 0 : i32
    return %c0_i32, %c0_i32_0 : i32, i32
  }
  func.func @transform_3(%arg0: i32) -> (i32, i32) {
    %c0_i32 = arith.constant 0 : i32
    %c0_i32_0 = arith.constant 0 : i32
    return %arg0, %c0_i32 : i32, i32
  }
}

module attributes {stable_mosaic.version = 11 : i64} {
  func.func @_conv_relu_pool_kernel(%arg0: i32, %arg1: memref<4x32x450xbf16, #tpu.memory_space<vmem>>, %arg2: memref<450x128xbf16, #tpu.memory_space<vmem>>, %arg3: memref<1x128xf32, #tpu.memory_space<vmem>>, %arg4: memref<32x128xbf16, #tpu.memory_space<vmem>>) attributes {dimension_semantics = [#tpu.dimension_semantics<parallel>], iteration_bounds = array<i64: 1>, scalar_prefetch = 0 : i64, scratch_operands = 0 : i64, tpu.core_type = #tpu.core_type<tc>, window_params = [{transform_indices = @transform_0, window_bounds = array<i64: 4, 32, 450>}, {pipeline_mode = #tpu.pipeline_mode<synchronous>, transform_indices = @transform_1, window_bounds = array<i64: 450, 128>}, {pipeline_mode = #tpu.pipeline_mode<synchronous>, transform_indices = @transform_2, window_bounds = array<i64: 1, 128>}, {transform_indices = @transform_3, window_bounds = array<i64: 32, 128>}]} {
    %c0 = arith.constant 0 : index
    %c0_0 = arith.constant 0 : index
    %c0_1 = arith.constant 0 : index
    %0 = vector.load %arg1[%c0, %c0_0, %c0_1] : memref<4x32x450xbf16, #tpu.memory_space<vmem>>, vector<1x32x450xbf16>
    %1 = vector.shape_cast %0 : vector<1x32x450xbf16> to vector<32x450xbf16>
    %c0_2 = arith.constant 0 : index
    %c0_3 = arith.constant 0 : index
    %2 = vector.load %arg2[%c0_2, %c0_3] : memref<450x128xbf16, #tpu.memory_space<vmem>>, vector<450x128xbf16>
    %cst = arith.constant dense<0.000000e+00> : vector<32x128xf32>
    %3 = tpu.matmul %1, %2, %cst {dimension_numbers = #tpu.dot_dimension_numbers<[1], [0], [0], [1], [0, 0, 1, 1], [], []>} : vector<32x450xbf16>, vector<450x128xbf16>, vector<32x128xf32> -> vector<32x128xf32>
    %c1 = arith.constant 1 : index
    %c0_4 = arith.constant 0 : index
    %c0_5 = arith.constant 0 : index
    %4 = vector.load %arg1[%c1, %c0_4, %c0_5] : memref<4x32x450xbf16, #tpu.memory_space<vmem>>, vector<1x32x450xbf16>
    %5 = vector.shape_cast %4 : vector<1x32x450xbf16> to vector<32x450xbf16>
    %c0_6 = arith.constant 0 : index
    %c0_7 = arith.constant 0 : index
    %6 = vector.load %arg2[%c0_6, %c0_7] : memref<450x128xbf16, #tpu.memory_space<vmem>>, vector<450x128xbf16>
    %cst_8 = arith.constant dense<0.000000e+00> : vector<32x128xf32>
    %7 = tpu.matmul %5, %6, %cst_8 {dimension_numbers = #tpu.dot_dimension_numbers<[1], [0], [0], [1], [0, 0, 1, 1], [], []>} : vector<32x450xbf16>, vector<450x128xbf16>, vector<32x128xf32> -> vector<32x128xf32>
    %8 = arith.maximumf %3, %7 : vector<32x128xf32>
    %c2 = arith.constant 2 : index
    %c0_9 = arith.constant 0 : index
    %c0_10 = arith.constant 0 : index
    %9 = vector.load %arg1[%c2, %c0_9, %c0_10] : memref<4x32x450xbf16, #tpu.memory_space<vmem>>, vector<1x32x450xbf16>
    %10 = vector.shape_cast %9 : vector<1x32x450xbf16> to vector<32x450xbf16>
    %c0_11 = arith.constant 0 : index
    %c0_12 = arith.constant 0 : index
    %11 = vector.load %arg2[%c0_11, %c0_12] : memref<450x128xbf16, #tpu.memory_space<vmem>>, vector<450x128xbf16>
    %cst_13 = arith.constant dense<0.000000e+00> : vector<32x128xf32>
    %12 = tpu.matmul %10, %11, %cst_13 {dimension_numbers = #tpu.dot_dimension_numbers<[1], [0], [0], [1], [0, 0, 1, 1], [], []>} : vector<32x450xbf16>, vector<450x128xbf16>, vector<32x128xf32> -> vector<32x128xf32>
    %13 = arith.maximumf %8, %12 : vector<32x128xf32>
    %c3 = arith.constant 3 : index
    %c0_14 = arith.constant 0 : index
    %c0_15 = arith.constant 0 : index
    %14 = vector.load %arg1[%c3, %c0_14, %c0_15] : memref<4x32x450xbf16, #tpu.memory_space<vmem>>, vector<1x32x450xbf16>
    %15 = vector.shape_cast %14 : vector<1x32x450xbf16> to vector<32x450xbf16>
    %c0_16 = arith.constant 0 : index
    %c0_17 = arith.constant 0 : index
    %16 = vector.load %arg2[%c0_16, %c0_17] : memref<450x128xbf16, #tpu.memory_space<vmem>>, vector<450x128xbf16>
    %cst_18 = arith.constant dense<0.000000e+00> : vector<32x128xf32>
    %17 = tpu.matmul %15, %16, %cst_18 {dimension_numbers = #tpu.dot_dimension_numbers<[1], [0], [0], [1], [0, 0, 1, 1], [], []>} : vector<32x450xbf16>, vector<450x128xbf16>, vector<32x128xf32> -> vector<32x128xf32>
    %18 = arith.maximumf %13, %17 : vector<32x128xf32>
    %c0_19 = arith.constant 0 : index
    %c0_20 = arith.constant 0 : index
    %19 = vector.load %arg3[%c0_19, %c0_20] : memref<1x128xf32, #tpu.memory_space<vmem>>, vector<1x128xf32>
    %20 = vector.broadcast %19 : vector<1x128xf32> to vector<32x128xf32>
    %21 = arith.addf %18, %20 : vector<32x128xf32>
    %cst_21 = arith.constant 0.000000e+00 : f32
    %22 = vector.broadcast %cst_21 : f32 to vector<32x128xf32>
    %23 = arith.maximumf %21, %22 : vector<32x128xf32>
    %24 = arith.truncf %23 : vector<32x128xf32> to vector<32x128xbf16>
    %c0_22 = arith.constant 0 : index
    %c0_23 = arith.constant 0 : index
    %25 = vector.load %arg4[%c0_22, %c0_23] : memref<32x128xbf16, #tpu.memory_space<vmem>>, vector<32x128xbf16>
    tpu.vector_store %arg4[%c0_22, %c0_23], %24 {strides = array<i32>} : memref<32x128xbf16, #tpu.memory_space<vmem>>, vector<32x128xbf16>,
    return
  }
  func.func @transform_0(%arg0: i32) -> (i32, i32, i32) {
    %c0_i32 = arith.constant 0 : i32
    %c0_i32_0 = arith.constant 0 : i32
    %c0_i32_1 = arith.constant 0 : i32
    return %c0_i32, %arg0, %c0_i32_0 : i32, i32, i32
  }
  func.func @transform_1(%arg0: i32) -> (i32, i32) {
    %c0_i32 = arith.constant 0 : i32
    %c0_i32_0 = arith.constant 0 : i32
    %c0_i32_1 = arith.constant 0 : i32
    return %c0_i32, %c0_i32_0 : i32, i32
  }
  func.func @transform_2(%arg0: i32) -> (i32, i32) {
    %c0_i32 = arith.constant 0 : i32
    %c0_i32_0 = arith.constant 0 : i32
    %c0_i32_1 = arith.constant 0 : i32
    return %c0_i32, %c0_i32_0 : i32, i32
  }
  func.func @transform_3(%arg0: i32) -> (i32, i32) {
    %c0_i32 = arith.constant 0 : i32
    %c0_i32_0 = arith.constant 0 : i32
    return %arg0, %c0_i32 : i32, i32
  }
}

module attributes {stable_mosaic.version = 11 : i64} {
  func.func @_mlp_head_kernel(%arg0: i32, %arg1: memref<8x1120xbf16, #tpu.memory_space<vmem>>, %arg2: memref<1120x128xbf16, #tpu.memory_space<vmem>>, %arg3: memref<1x128xf32, #tpu.memory_space<vmem>>, %arg4: memref<128x128xbf16, #tpu.memory_space<vmem>>, %arg5: memref<1x128xf32, #tpu.memory_space<vmem>>, %arg6: memref<128x128xbf16, #tpu.memory_space<vmem>>, %arg7: memref<1x128xf32, #tpu.memory_space<vmem>>, %arg8: memref<8x128xf32, #tpu.memory_space<vmem>>) attributes {dimension_semantics = [#tpu.dimension_semantics<arbitrary>], iteration_bounds = array<i64: 1>, scalar_prefetch = 0 : i64, scratch_operands = 0 : i64, tpu.core_type = #tpu.core_type<tc>, window_params = [{pipeline_mode = #tpu.pipeline_mode<synchronous>, transform_indices = @transform_0, window_bounds = array<i64: 8, 1120>}, {pipeline_mode = #tpu.pipeline_mode<synchronous>, transform_indices = @transform_1, window_bounds = array<i64: 1120, 128>}, {pipeline_mode = #tpu.pipeline_mode<synchronous>, transform_indices = @transform_2, window_bounds = array<i64: 1, 128>}, {pipeline_mode = #tpu.pipeline_mode<synchronous>, transform_indices = @transform_3, window_bounds = array<i64: 128, 128>}, {pipeline_mode = #tpu.pipeline_mode<synchronous>, transform_indices = @transform_4, window_bounds = array<i64: 1, 128>}, {pipeline_mode = #tpu.pipeline_mode<synchronous>, transform_indices = @transform_5, window_bounds = array<i64: 128, 128>}, {pipeline_mode = #tpu.pipeline_mode<synchronous>, transform_indices = @transform_6, window_bounds = array<i64: 1, 128>}, {pipeline_mode = #tpu.pipeline_mode<synchronous>, transform_indices = @transform_7, window_bounds = array<i64: 8, 128>}]} {
    %c0 = arith.constant 0 : index
    %c0_0 = arith.constant 0 : index
    %0 = vector.load %arg1[%c0, %c0_0] : memref<8x1120xbf16, #tpu.memory_space<vmem>>, vector<8x1120xbf16>
    %c0_1 = arith.constant 0 : index
    %c0_2 = arith.constant 0 : index
    %1 = vector.load %arg2[%c0_1, %c0_2] : memref<1120x128xbf16, #tpu.memory_space<vmem>>, vector<1120x128xbf16>
    %cst = arith.constant dense<0.000000e+00> : vector<8x128xf32>
    %2 = tpu.matmul %0, %1, %cst {dimension_numbers = #tpu.dot_dimension_numbers<[1], [0], [0], [1], [0, 0, 1, 1], [], []>} : vector<8x1120xbf16>, vector<1120x128xbf16>, vector<8x128xf32> -> vector<8x128xf32>
    %c0_3 = arith.constant 0 : index
    %c0_4 = arith.constant 0 : index
    %3 = vector.load %arg3[%c0_3, %c0_4] : memref<1x128xf32, #tpu.memory_space<vmem>>, vector<1x128xf32>
    %4 = vector.broadcast %3 : vector<1x128xf32> to vector<8x128xf32>
    %5 = arith.addf %2, %4 : vector<8x128xf32>
    %cst_5 = arith.constant 0.000000e+00 : f32
    %6 = vector.broadcast %cst_5 : f32 to vector<8x128xf32>
    %7 = arith.maximumf %5, %6 : vector<8x128xf32>
    %8 = arith.truncf %7 : vector<8x128xf32> to vector<8x128xbf16>
    %c0_6 = arith.constant 0 : index
    %c0_7 = arith.constant 0 : index
    %9 = vector.load %arg4[%c0_6, %c0_7] : memref<128x128xbf16, #tpu.memory_space<vmem>>, vector<128x128xbf16>
    %cst_8 = arith.constant dense<0.000000e+00> : vector<8x128xf32>
    %10 = tpu.matmul %8, %9, %cst_8 {dimension_numbers = #tpu.dot_dimension_numbers<[1], [0], [0], [1], [0, 0, 1, 1], [], []>} : vector<8x128xbf16>, vector<128x128xbf16>, vector<8x128xf32> -> vector<8x128xf32>
    %c0_9 = arith.constant 0 : index
    %c0_10 = arith.constant 0 : index
    %11 = vector.load %arg5[%c0_9, %c0_10] : memref<1x128xf32, #tpu.memory_space<vmem>>, vector<1x128xf32>
    %12 = vector.broadcast %11 : vector<1x128xf32> to vector<8x128xf32>
    %13 = arith.addf %10, %12 : vector<8x128xf32>
    %cst_11 = arith.constant 0.000000e+00 : f32
    %14 = vector.broadcast %cst_11 : f32 to vector<8x128xf32>
    %15 = arith.maximumf %13, %14 : vector<8x128xf32>
    %16 = arith.truncf %15 : vector<8x128xf32> to vector<8x128xbf16>
    %c0_12 = arith.constant 0 : index
    %c0_13 = arith.constant 0 : index
    %17 = vector.load %arg6[%c0_12, %c0_13] : memref<128x128xbf16, #tpu.memory_space<vmem>>, vector<128x128xbf16>
    %cst_14 = arith.constant dense<0.000000e+00> : vector<8x128xf32>
    %18 = tpu.matmul %16, %17, %cst_14 {dimension_numbers = #tpu.dot_dimension_numbers<[1], [0], [0], [1], [0, 0, 1, 1], [], []>} : vector<8x128xbf16>, vector<128x128xbf16>, vector<8x128xf32> -> vector<8x128xf32>
    %c0_15 = arith.constant 0 : index
    %c0_16 = arith.constant 0 : index
    %19 = vector.load %arg7[%c0_15, %c0_16] : memref<1x128xf32, #tpu.memory_space<vmem>>, vector<1x128xf32>
    %20 = vector.broadcast %19 : vector<1x128xf32> to vector<8x128xf32>
    %21 = arith.addf %18, %20 : vector<8x128xf32>
    %c0_17 = arith.constant 0 : index
    %c0_18 = arith.constant 0 : index
    %22 = vector.load %arg8[%c0_17, %c0_18] : memref<8x128xf32, #tpu.memory_space<vmem>>, vector<8x128xf32>
    tpu.vector_store %arg8[%c0_17, %c0_18], %21 {strides = array<i32>} : memref<8x128xf32, #tpu.memory_space<vmem>>, vector<8x128xf32>,
    return
  }
  func.func @transform_0(%arg0: i32) -> (i32, i32) {
    %c0_i32 = arith.constant 0 : i32
    %c0_i32_0 = arith.constant 0 : i32
    %c0_i32_1 = arith.constant 0 : i32
    return %c0_i32, %c0_i32_0 : i32, i32
  }
  func.func @transform_1(%arg0: i32) -> (i32, i32) {
    %c0_i32 = arith.constant 0 : i32
    %c0_i32_0 = arith.constant 0 : i32
    %c0_i32_1 = arith.constant 0 : i32
    return %c0_i32, %c0_i32_0 : i32, i32
  }
  func.func @transform_2(%arg0: i32) -> (i32, i32) {
    %c0_i32 = arith.constant 0 : i32
    %c0_i32_0 = arith.constant 0 : i32
    %c0_i32_1 = arith.constant 0 : i32
    return %c0_i32, %c0_i32_0 : i32, i32
  }
  func.func @transform_3(%arg0: i32) -> (i32, i32) {
    %c0_i32 = arith.constant 0 : i32
    %c0_i32_0 = arith.constant 0 : i32
    %c0_i32_1 = arith.constant 0 : i32
    return %c0_i32, %c0_i32_0 : i32, i32
  }
  func.func @transform_4(%arg0: i32) -> (i32, i32) {
    %c0_i32 = arith.constant 0 : i32
    %c0_i32_0 = arith.constant 0 : i32
    %c0_i32_1 = arith.constant 0 : i32
    return %c0_i32, %c0_i32_0 : i32, i32
  }
  func.func @transform_5(%arg0: i32) -> (i32, i32) {
    %c0_i32 = arith.constant 0 : i32
    %c0_i32_0 = arith.constant 0 : i32
    %c0_i32_1 = arith.constant 0 : i32
    return %c0_i32, %c0_i32_0 : i32, i32
  }
  func.func @transform_6(%arg0: i32) -> (i32, i32) {
    %c0_i32 = arith.constant 0 : i32
    %c0_i32_0 = arith.constant 0 : i32
    %c0_i32_1 = arith.constant 0 : i32
    return %c0_i32, %c0_i32_0 : i32, i32
  }
  func.func @transform_7(%arg0: i32) -> (i32, i32) {
    %c0_i32 = arith.constant 0 : i32
    %c0_i32_0 = arith.constant 0 : i32
    %c0_i32_1 = arith.constant 0 : i32
    return %c0_i32, %c0_i32_0 : i32, i32
  }
}

</mosaic_0001>

<llo_original>
// kernel: mynet_forward.5
$region0: #{mynet_forward.5}
  #allocation0 [shape = 'u32[]', space=smem, size = 0x4, offset = 0x4, fixed_abs, tag = 'smem constant byte address 0x4 - core index']
  #allocation1 [shape = 'u32[144,128]{1,0:T(1,128)}', space=vmem, size = 0x12000, scoped, tag = 'internal scratch']
  %s0 = inlined_call_operand.vmem [shape: bf16[16,8,2304], index: 0, kind: input, shape index: {}]
  %s1 = inlined_call_operand.vmem [shape: bf16[8,2304], index: 1, kind: output, shape index: {}]
  %s2 = sld [smem:[#allocation0]]
  $region14: #{mynet_forward.5} parent=0
    _
  %s4 = ssub.s32 1, %s2
  %s5 = scalar_select 0, %s4, %s2
  // Predicated region
  $region2: #{mynet_forward.5} parent=0 // pred_check
    _
  $region3: #{mynet_forward.5} parent=0 // pred_check_branch
    %7 = sbr.rel (0) target = $region5
  $region4: #{mynet_forward.5} parent=0 // pred_region
    _
  $region5: #{mynet_forward.5} parent=0 // pred_fallthru
    _
  %v8 = vld [vmem:[%s0] sm:$0xff]
  %v9 = vld [vmem:[%s0 + $0x8] sm:$0xff]
  %v10 = vld [vmem:[%s0 + $0x10] sm:$0xff]
  %v11 = vld [vmem:[%s0 + $0x18] sm:$0xff]
  %v12 = vld [vmem:[%s0 + $0x20] sm:$0xff]
  %v13 = vld [vmem:[%s0 + $0x28] sm:$0xff]
  %v14 = vld [vmem:[%s0 + $0x30] sm:$0xff]
  %v15 = vld [vmem:[%s0 + $0x38] sm:$0xff]
  %v16 = vld [vmem:[%s0 + $0x40] sm:$0xff]
  %s17 = scalar_lea.vmem %s0, 72
  %v18 = vld [vmem:[%s17] sm:$0xff]
  %v19 = vld [vmem:[%s17 + $0x8] sm:$0xff]
  %v20 = vld [vmem:[%s17 + $0x10] sm:$0xff]
  %v21 = vld [vmem:[%s17 + $0x18] sm:$0xff]
  %v22 = vld [vmem:[%s17 + $0x20] sm:$0xff]
  %v23 = vld [vmem:[%s17 + $0x28] sm:$0xff]
  %v24 = vld [vmem:[%s17 + $0x30] sm:$0xff]
  %v25 = vld [vmem:[%s17 + $0x38] sm:$0xff]
  %v26 = vld [vmem:[%s17 + $0x40] sm:$0xff]
  %v27 = vmax.bf16 %v8, %v18
  %v28 = vmax.bf16 %v9, %v19
  %v29 = vmax.bf16 %v10, %v20
  %v30 = vmax.bf16 %v11, %v21
  %v31 = vmax.bf16 %v12, %v22
  %v32 = vmax.bf16 %v13, %v23
  %v33 = vmax.bf16 %v14, %v24
  %v34 = vmax.bf16 %v15, %v25
  %v35 = vmax.bf16 %v16, %v26
  %s36 = scalar_lea.vmem %s0, 144
  %v37 = vld [vmem:[%s36] sm:$0xff]
  %v38 = vld [vmem:[%s36 + $0x8] sm:$0xff]
  %v39 = vld [vmem:[%s36 + $0x10] sm:$0xff]
  %v40 = vld [vmem:[%s36 + $0x18] sm:$0xff]
  %v41 = vld [vmem:[%s36 + $0x20] sm:$0xff]
  %v42 = vld [vmem:[%s36 + $0x28] sm:$0xff]
  %v43 = vld [vmem:[%s36 + $0x30] sm:$0xff]
  %v44 = vld [vmem:[%s36 + $0x38] sm:$0xff]
  %v45 = vld [vmem:[%s36 + $0x40] sm:$0xff]
  %v46 = vmax.bf16 %v27, %v37
  %v47 = vmax.bf16 %v28, %v38
  %v48 = vmax.bf16 %v29, %v39
  %v49 = vmax.bf16 %v30, %v40
  %v50 = vmax.bf16 %v31, %v41
  %v51 = vmax.bf16 %v32, %v42
  %v52 = vmax.bf16 %v33, %v43
  %v53 = vmax.bf16 %v34, %v44
  %v54 = vmax.bf16 %v35, %v45
  %s55 = scalar_lea.vmem %s0, 216
  %v56 = vld [vmem:[%s55] sm:$0xff]
  %v57 = vld [vmem:[%s55 + $0x8] sm:$0xff]
  %v58 = vld [vmem:[%s55 + $0x10] sm:$0xff]
  %v59 = vld [vmem:[%s55 + $0x18] sm:$0xff]
  %v60 = vld [vmem:[%s55 + $0x20] sm:$0xff]
  %v61 = vld [vmem:[%s55 + $0x28] sm:$0xff]
  %v62 = vld [vmem:[%s55 + $0x30] sm:$0xff]
  %v63 = vld [vmem:[%s55 + $0x38] sm:$0xff]
  %v64 = vld [vmem:[%s55 + $0x40] sm:$0xff]
  %v65 = vmax.bf16 %v46, %v56
  %v66 = vmax.bf16 %v47, %v57
  %v67 = vmax.bf16 %v48, %v58
  %v68 = vmax.bf16 %v49, %v59
  %v69 = vmax.bf16 %v50, %v60
  %v70 = vmax.bf16 %v51, %v61
  %v71 = vmax.bf16 %v52, %v62
  %v72 = vmax.bf16 %v53, %v63
  %v73 = vmax.bf16 %v54, %v64
  %s74 = scalar_lea.vmem %s0, 288
  %v75 = vld [vmem:[%s74] sm:$0xff]
  %v76 = vld [vmem:[%s74 + $0x8] sm:$0xff]
  %v77 = vld [vmem:[%s74 + $0x10] sm:$0xff]
  %v78 = vld [vmem:[%s74 + $0x18] sm:$0xff]
  %v79 = vld [vmem:[%s74 + $0x20] sm:$0xff]
  %v80 = vld [vmem:[%s74 + $0x28] sm:$0xff]
  %v81 = vld [vmem:[%s74 + $0x30] sm:$0xff]
  %v82 = vld [vmem:[%s74 + $0x38] sm:$0xff]
  %v83 = vld [vmem:[%s74 + $0x40] sm:$0xff]
  %v84 = vmax.bf16 %v65, %v75
  %v85 = vmax.bf16 %v66, %v76
  %v86 = vmax.bf16 %v67, %v77
  %v87 = vmax.bf16 %v68, %v78
  %v88 = vmax.bf16 %v69, %v79
  %v89 = vmax.bf16 %v70, %v80
  %v90 = vmax.bf16 %v71, %v81
  %v91 = vmax.bf16 %v72, %v82
  %v92 = vmax.bf16 %v73, %v83
  %s93 = scalar_lea.vmem %s0, 360
  %v94 = vld [vmem:[%s93] sm:$0xff]
  %v95 = vld [vmem:[%s93 + $0x8] sm:$0xff]
  %v96 = vld [vmem:[%s93 + $0x10] sm:$0xff]
  %v97 = vld [vmem:[%s93 + $0x18] sm:$0xff]
  %v98 = vld [vmem:[%s93 + $0x20] sm:$0xff]
  %v99 = vld [vmem:[%s93 + $0x28] sm:$0xff]
  %v100 = vld [vmem:[%s93 + $0x30] sm:$0xff]
  %v101 = vld [vmem:[%s93 + $0x38] sm:$0xff]
  %v102 = vld [vmem:[%s93 + $0x40] sm:$0xff]
  %v103 = vmax.bf16 %v84, %v94
  %v104 = vmax.bf16 %v85, %v95
  %v105 = vmax.bf16 %v86, %v96
  %v106 = vmax.bf16 %v87, %v97
  %v107 = vmax.bf16 %v88, %v98
  %v108 = vmax.bf16 %v89, %v99
  %v109 = vmax.bf16 %v90, %v100
  %v110 = vmax.bf16 %v91, %v101
  %v111 = vmax.bf16 %v92, %v102
  %s112 = scalar_lea.vmem %s0, 432
  %v113 = vld [vmem:[%s112] sm:$0xff]
  %v114 = vld [vmem:[%s112 + $0x8] sm:$0xff]
  %v115 = vld [vmem:[%s112 + $0x10] sm:$0xff]
  %v116 = vld [vmem:[%s112 + $0x18] sm:$0xff]
  %v117 = vld [vmem:[%s112 + $0x20] sm:$0xff]
  %v118 = vld [vmem:[%s112 + $0x28] sm:$0xff]
  %v119 = vld [vmem:[%s112 + $0x30] sm:$0xff]
  %v120 = vld [vmem:[%s112 + $0x38] sm:$0xff]
  %v121 = vld [vmem:[%s112 + $0x40] sm:$0xff]
  %v122 = vmax.bf16 %v103, %v113
  %v123 = vmax.bf16 %v104, %v114
  %v124 = vmax.bf16 %v105, %v115
  %v125 = vmax.bf16 %v106, %v116
  %v126 = vmax.bf16 %v107, %v117
  %v127 = vmax.bf16 %v108, %v118
  %v128 = vmax.bf16 %v109, %v119
  %v129 = vmax.bf16 %v110, %v120
  %v130 = vmax.bf16 %v111, %v121
  %s131 = scalar_lea.vmem %s0, 504
  %v132 = vld [vmem:[%s131] sm:$0xff]
  %v133 = vld [vmem:[%s131 + $0x8] sm:$0xff]
  %v134 = vld [vmem:[%s131 + $0x10] sm:$0xff]
  %v135 = vld [vmem:[%s131 + $0x18] sm:$0xff]
  %v136 = vld [vmem:[%s131 + $0x20] sm:$0xff]
  %v137 = vld [vmem:[%s131 + $0x28] sm:$0xff]
  %v138 = vld [vmem:[%s131 + $0x30] sm:$0xff]
  %v139 = vld [vmem:[%s131 + $0x38] sm:$0xff]
  %v140 = vld [vmem:[%s131 + $0x40] sm:$0xff]
  %v141 = vmax.bf16 %v122, %v132
  %v142 = vmax.bf16 %v123, %v133
  %v143 = vmax.bf16 %v124, %v134
  %v144 = vmax.bf16 %v125, %v135
  %v145 = vmax.bf16 %v126, %v136
  %v146 = vmax.bf16 %v127, %v137
  %v147 = vmax.bf16 %v128, %v138
  %v148 = vmax.bf16 %v129, %v139
  %v149 = vmax.bf16 %v130, %v140
  %s150 = scalar_lea.vmem %s0, 576
  %v151 = vld [vmem:[%s150] sm:$0xff]
  %v152 = vld [vmem:[%s150 + $0x8] sm:$0xff]
  %v153 = vld [vmem:[%s150 + $0x10] sm:$0xff]
  %v154 = vld [vmem:[%s150 + $0x18] sm:$0xff]
  %v155 = vld [vmem:[%s150 + $0x20] sm:$0xff]
  %v156 = vld [vmem:[%s150 + $0x28] sm:$0xff]
  %v157 = vld [vmem:[%s150 + $0x30] sm:$0xff]
  %v158 = vld [vmem:[%s150 + $0x38] sm:$0xff]
  %v159 = vld [vmem:[%s150 + $0x40] sm:$0xff]
  %v160 = vmax.bf16 %v141, %v151
  %v161 = vmax.bf16 %v142, %v152
  %v162 = vmax.bf16 %v143, %v153
  %v163 = vmax.bf16 %v144, %v154
  %v164 = vmax.bf16 %v145, %v155
  %v165 = vmax.bf16 %v146, %v156
  %v166 = vmax.bf16 %v147, %v157
  %v167 = vmax.bf16 %v148, %v158
  %v168 = vmax.bf16 %v149, %v159
  %s169 = scalar_lea.vmem %s0, 648
  %v170 = vld [vmem:[%s169] sm:$0xff]
  %v171 = vld [vmem:[%s169 + $0x8] sm:$0xff]
  %v172 = vld [vmem:[%s169 + $0x10] sm:$0xff]
  %v173 = vld [vmem:[%s169 + $0x18] sm:$0xff]
  %v174 = vld [vmem:[%s169 + $0x20] sm:$0xff]
  %v175 = vld [vmem:[%s169 + $0x28] sm:$0xff]
  %v176 = vld [vmem:[%s169 + $0x30] sm:$0xff]
  %v177 = vld [vmem:[%s169 + $0x38] sm:$0xff]
  %v178 = vld [vmem:[%s169 + $0x40] sm:$0xff]
  %v179 = vmax.bf16 %v160, %v170
  %v180 = vmax.bf16 %v161, %v171
  %v181 = vmax.bf16 %v162, %v172
  %v182 = vmax.bf16 %v163, %v173
  %v183 = vmax.bf16 %v164, %v174
  %v184 = vmax.bf16 %v165, %v175
  %v185 = vmax.bf16 %v166, %v176
  %v186 = vmax.bf16 %v167, %v177
  %v187 = vmax.bf16 %v168, %v178
  %s188 = scalar_lea.vmem %s0, 720
  %v189 = vld [vmem:[%s188] sm:$0xff]
  %v190 = vld [vmem:[%s188 + $0x8] sm:$0xff]
  %v191 = vld [vmem:[%s188 + $0x10] sm:$0xff]
  %v192 = vld [vmem:[%s188 + $0x18] sm:$0xff]
  %v193 = vld [vmem:[%s188 + $0x20] sm:$0xff]
  %v194 = vld [vmem:[%s188 + $0x28] sm:$0xff]
  %v195 = vld [vmem:[%s188 + $0x30] sm:$0xff]
  %v196 = vld [vmem:[%s188 + $0x38] sm:$0xff]
  %v197 = vld [vmem:[%s188 + $0x40] sm:$0xff]
  %v198 = vmax.bf16 %v179, %v189
  %v199 = vmax.bf16 %v180, %v190
  %v200 = vmax.bf16 %v181, %v191
  %v201 = vmax.bf16 %v182, %v192
  %v202 = vmax.bf16 %v183, %v193
  %v203 = vmax.bf16 %v184, %v194
  %v204 = vmax.bf16 %v185, %v195
  %v205 = vmax.bf16 %v186, %v196
  %v206 = vmax.bf16 %v187, %v197
  %s207 = scalar_lea.vmem %s0, 792
  %v208 = vld [vmem:[%s207] sm:$0xff]
  %v209 = vld [vmem:[%s207 + $0x8] sm:$0xff]
  %v210 = vld [vmem:[%s207 + $0x10] sm:$0xff]
  %v211 = vld [vmem:[%s207 + $0x18] sm:$0xff]
  %v212 = vld [vmem:[%s207 + $0x20] sm:$0xff]
  %v213 = vld [vmem:[%s207 + $0x28] sm:$0xff]
  %v214 = vld [vmem:[%s207 + $0x30] sm:$0xff]
  %v215 = vld [vmem:[%s207 + $0x38] sm:$0xff]
  %v216 = vld [vmem:[%s207 + $0x40] sm:$0xff]
  %v217 = vmax.bf16 %v198, %v208
  %v218 = vmax.bf16 %v199, %v209
  %v219 = vmax.bf16 %v200, %v210
  %v220 = vmax.bf16 %v201, %v211
  %v221 = vmax.bf16 %v202, %v212
  %v222 = vmax.bf16 %v203, %v213
  %v223 = vmax.bf16 %v204, %v214
  %v224 = vmax.bf16 %v205, %v215
  %v225 = vmax.bf16 %v206, %v216
  %s226 = scalar_lea.vmem %s0, 864
  %v227 = vld [vmem:[%s226] sm:$0xff]
  %v228 = vld [vmem:[%s226 + $0x8] sm:$0xff]
  %v229 = vld [vmem:[%s226 + $0x10] sm:$0xff]
  %v230 = vld [vmem:[%s226 + $0x18] sm:$0xff]
  %v231 = vld [vmem:[%s226 + $0x20] sm:$0xff]
  %v232 = vld [vmem:[%s226 + $0x28] sm:$0xff]
  %v233 = vld [vmem:[%s226 + $0x30] sm:$0xff]
  %v234 = vld [vmem:[%s226 + $0x38] sm:$0xff]
  %v235 = vld [vmem:[%s226 + $0x40] sm:$0xff]
  %v236 = vmax.bf16 %v217, %v227
  %v237 = vmax.bf16 %v218, %v228
  %v238 = vmax.bf16 %v219, %v229
  %v239 = vmax.bf16 %v220, %v230
  %v240 = vmax.bf16 %v221, %v231
  %v241 = vmax.bf16 %v222, %v232
  %v242 = vmax.bf16 %v223, %v233
  %v243 = vmax.bf16 %v224, %v234
  %v244 = vmax.bf16 %v225, %v235
  %s245 = scalar_lea.vmem %s0, 936
  %v246 = vld [vmem:[%s245] sm:$0xff]
  %v247 = vld [vmem:[%s245 + $0x8] sm:$0xff]
  %v248 = vld [vmem:[%s245 + $0x10] sm:$0xff]
  %v249 = vld [vmem:[%s245 + $0x18] sm:$0xff]
  %v250 = vld [vmem:[%s245 + $0x20] sm:$0xff]
  %v251 = vld [vmem:[%s245 + $0x28] sm:$0xff]
  %v252 = vld [vmem:[%s245 + $0x30] sm:$0xff]
  %v253 = vld [vmem:[%s245 + $0x38] sm:$0xff]
  %v254 = vld [vmem:[%s245 + $0x40] sm:$0xff]
  %v255 = vmax.bf16 %v236, %v246
  %v256 = vmax.bf16 %v237, %v247
  %v257 = vmax.bf16 %v238, %v248
  %v258 = vmax.bf16 %v239, %v249
  %v259 = vmax.bf16 %v240, %v250
  %v260 = vmax.bf16 %v241, %v251
  %v261 = vmax.bf16 %v242, %v252
  %v262 = vmax.bf16 %v243, %v253
  %v263 = vmax.bf16 %v244, %v254
  %s264 = scalar_lea.vmem %s0, 1008
  %v265 = vld [vmem:[%s264] sm:$0xff]
  %v266 = vld [vmem:[%s264 + $0x8] sm:$0xff]
  %v267 = vld [vmem:[%s264 + $0x10] sm:$0xff]
  %v268 = vld [vmem:[%s264 + $0x18] sm:$0xff]
  %v269 = vld [vmem:[%s264 + $0x20] sm:$0xff]
  %v270 = vld [vmem:[%s264 + $0x28] sm:$0xff]
  %v271 = vld [vmem:[%s264 + $0x30] sm:$0xff]
  %v272 = vld [vmem:[%s264 + $0x38] sm:$0xff]
  %v273 = vld [vmem:[%s264 + $0x40] sm:$0xff]
  %v274 = vmax.bf16 %v255, %v265
  %v275 = vmax.bf16 %v256, %v266
  %v276 = vmax.bf16 %v257, %v267
  %v277 = vmax.bf16 %v258, %v268
  %v278 = vmax.bf16 %v259, %v269
  %v279 = vmax.bf16 %v260, %v270
  %v280 = vmax.bf16 %v261, %v271
  %v281 = vmax.bf16 %v262, %v272
  %v282 = vmax.bf16 %v263, %v273
  %s283 = scalar_lea.vmem %s0, 1080
  %v284 = vld [vmem:[%s283] sm:$0xff]
  %v285 = vld [vmem:[%s283 + $0x8] sm:$0xff]
  %v286 = vld [vmem:[%s283 + $0x10] sm:$0xff]
  %v287 = vld [vmem:[%s283 + $0x18] sm:$0xff]
  %v288 = vld [vmem:[%s283 + $0x20] sm:$0xff]
  %v289 = vld [vmem:[%s283 + $0x28] sm:$0xff]
  %v290 = vld [vmem:[%s283 + $0x30] sm:$0xff]
  %v291 = vld [vmem:[%s283 + $0x38] sm:$0xff]
  %v292 = vld [vmem:[%s283 + $0x40] sm:$0xff]
  %v293 = vmax.bf16 %v274, %v284
  %v294 = vmax.bf16 %v275, %v285
  %v295 = vmax.bf16 %v276, %v286
  %v296 = vmax.bf16 %v277, %v287
  %v297 = vmax.bf16 %v278, %v288
  %v298 = vmax.bf16 %v279, %v289
  %v299 = vmax.bf16 %v280, %v290
  %v300 = vmax.bf16 %v281, %v291
  %v301 = vmax.bf16 %v282, %v292
  %302 = vst [vmem:[%s1] sm:$0xff] %v293
  %303 = vst [vmem:[%s1 + $0x8] sm:$0xff] %v294
  %304 = vst [vmem:[%s1 + $0x10] sm:$0xff] %v295
  %305 = vst [vmem:[%s1 + $0x18] sm:$0xff] %v296
  %306 = vst [vmem:[%s1 + $0x20] sm:$0xff] %v297
  %307 = vst [vmem:[%s1 + $0x28] sm:$0xff] %v298
  %308 = vst [vmem:[%s1 + $0x30] sm:$0xff] %v299
  %309 = vst [vmem:[%s1 + $0x38] sm:$0xff] %v300
  %310 = vst [vmem:[%s1 + $0x40] sm:$0xff] %v301
  // Predicated region
  $region6: #{mynet_forward.5} parent=0 // pred_check
    _
  $region7: #{mynet_forward.5} parent=0 // pred_check_branch
    %312 = sbr.rel (0) target = $region9
  $region8: #{mynet_forward.5} parent=0 // pred_region
    _
  $region9: #{mynet_forward.5} parent=0 // pred_fallthru
    _
  // Predicated region
  $region10: #{mynet_forward.5} parent=0 // pred_check
    _
  $region11: #{mynet_forward.5} parent=0 // pred_check_branch
    %314 = sbr.rel (0) target = $region13
  $region12: #{mynet_forward.5} parent=0 // pred_region
    _
  $region13: #{mynet_forward.5} parent=0 // pred_fallthru
    _

// kernel: mynet_forward.6
$region0: #{mynet_forward.6}
  #allocation0 [shape = 'u32[]', space=smem, size = 0x4, offset = 0x4, fixed_abs, tag = 'smem constant byte address 0x4 - core index']
  #allocation1 [shape = 'u32[144,128]{1,0:T(1,128)}', space=vmem, size = 0x12000, scoped, tag = 'internal scratch']
  %s0 = inlined_call_operand.vmem [shape: bf16[4,1024,75], index: 0, kind: input, shape index: {}]
  %s1 = inlined_call_operand.vmem [shape: bf16[75,128], index: 1, kind: input, shape index: {}]
  %s2 = inlined_call_operand.vmem [shape: f32[1,128], index: 2, kind: input, shape index: {}]
  %s3 = inlined_call_operand.vmem [shape: bf16[1024,128], index: 3, kind: output, shape index: {}]
  %s4 = sld [smem:[#allocation0]]
  $region86: #{mynet_forward.6} parent=0
    _
  %s6 = ssub.s32 1, %s4
  %s7 = scalar_select 0, %s6, %s4
  $region1: #{mynet_forward.6} parent=0
    #allocation2 [shape = 'u8[1048576]{0}', space=vmem, size = 0x100000, scoped, tag = 'input window, operand 0']
    loop: start=0, step=1, limit=4
    $region2: #{mynet_forward.6} parent=1 // loop_pre_header
      _
    $region3: #{mynet_forward.6} parent=1 // loop_header
      %s9 = sphi 0, %s13
      %p10 = scmp.ge.s32.totalorder %s9, 4
      %s19 = sphi 0, %s21
      %s22 = sphi 0, %s19
      %s23 = sphi 0, %s22
      %s39 = sphi 0, %s23
      %s43 = sphi 0, %s43
      %s45 = sphi 0, %s43
      %s46 = sphi 0, %s45
      %s60 = sphi 0, %s46
      %s64 = sphi 0, %s64
      %s66 = sphi 0, %s64
      %s67 = sphi 0, %s66
      %s81 = sphi 0, %s67
      %s87 = sphi 0, %s89
      %s90 = sphi 0, %s87
      %s91 = sphi 0, %s90
      %s107 = sphi 0, %s91
    $region4: #{mynet_forward.6} parent=1 // loop_header_branch
      %12 = sbr.rel (%p10) target = $region8
    $region5: #{mynet_forward.6} parent=1 // loop_body
      %s14 = ssub.s32 %s9, 1
      %s15 = ssub.s32 %s9, 2
      %s16 = sadd.s32 %s9, 1
      %s17 = ssub.s32 %s9, %s16
      %p18 = scmp.eq.s32.totalorder %s17, 0
      %s20 = sadd.s32 %s19, 1
      %s21 = scalar_select %p18, %s19, %s20
      %p24 = pneg %p18
      %p25 = scmp.eq.s32.totalorder %s9, 1
      %p26 = por %p24, %p25
      %p27 = scmp.ne.s32.totalorder %s19, %s22
      %p28 = scmp.eq.s32.totalorder %s9, 0
      %p29 = por %p27, %p28
      %p30 = scmp.ne.s32.totalorder %s19, %s22
      %p31 = scmp.eq.s32.totalorder %s14, 1
      %p32 = por %p30, %p31
      %p33 = scmp.ne.s32.totalorder %s22, %s23
      %p34 = scmp.eq.s32.totalorder %s14, 0
      %p35 = por %p33, %p34
      %p36 = scmp.ne.s32.totalorder %s22, %s23
      %p37 = scmp.eq.s32.totalorder %s15, 1
      %p38 = por %p36, %p37
      %p40 = scmp.ne.s32.totalorder %s23, %s39
      %p41 = scmp.eq.s32.totalorder %s15, 0
      %p42 = por %p40, %p41
      %s44 = sadd.s32 %s43, 1
      %p47 = scmp.eq.s32.totalorder %s9, 1
      %p48 = scmp.ne.s32.totalorder %s43, %s45
      %p49 = scmp.eq.s32.totalorder %s9, 0
      %p50 = por %p48, %p49
      %p51 = scmp.ne.s32.totalorder %s43, %s45
      %p52 = scmp.eq.s32.totalorder %s14, 1
      %p53 = por %p51, %p52
      %p54 = scmp.ne.s32.totalorder %s45, %s46
      %p55 = scmp.eq.s32.totalorder %s14, 0
      %p56 = por %p54, %p55
      %p57 = scmp.ne.s32.totalorder %s45, %s46
      %p58 = scmp.eq.s32.totalorder %s15, 1
      %p59 = por %p57, %p58
      %p61 = scmp.ne.s32.totalorder %s46, %s60
      %p62 = scmp.eq.s32.totalorder %s15, 0
      %p63 = por %p61, %p62
      %s65 = sadd.s32 %s64, 1
      %p68 = scmp.eq.s32.totalorder %s9, 1
      %p69 = scmp.ne.s32.totalorder %s64, %s66
      %p70 = scmp.eq.s32.totalorder %s9, 0
      %p71 = por %p69, %p70
      %p72 = scmp.ne.s32.totalorder %s64, %s66
      %p73 = scmp.eq.s32.totalorder %s14, 1
      %p74 = por %p72, %p73
      %p75 = scmp.ne.s32.totalorder %s66, %s67
      %p76 = scmp.eq.s32.totalorder %s14, 0
      %p77 = por %p75, %p76
      %p78 = scmp.ne.s32.totalorder %s66, %s67
      %p79 = scmp.eq.s32.totalorder %s15, 1
      %p80 = por %p78, %p79
      %p82 = scmp.ne.s32.totalorder %s67, %s81
      %p83 = scmp.eq.s32.totalorder %s15, 0
      %p84 = por %p82, %p83
      %s85 = ssub.s32 %s9, %s16
      %p86 = scmp.eq.s32.totalorder %s85, 0
      %s88 = sadd.s32 %s87, 1
      %s89 = scalar_select %p86, %s87, %s88
      %p92 = pneg %p86
      %p93 = scmp.eq.s32.totalorder %s9, 1
      %p94 = por %p92, %p93
      %p95 = scmp.ne.s32.totalorder %s87, %s90
      %p96 = scmp.eq.s32.totalorder %s9, 0
      %p97 = por %p95, %p96
      %p98 = scmp.ne.s32.totalorder %s87, %s90
      %p99 = scmp.eq.s32.totalorder %s14, 1
      %p100 = por %p98, %p99
      %p101 = scmp.ne.s32.totalorder %s90, %s91
      %p102 = scmp.eq.s32.totalorder %s14, 0
      %p103 = por %p101, %p102
      %p104 = scmp.ne.s32.totalorder %s90, %s91
      %p105 = scmp.eq.s32.totalorder %s15, 1
      %p106 = por %p104, %p105
      %p108 = scmp.ne.s32.totalorder %s91, %s107
      %p109 = scmp.eq.s32.totalorder %s15, 0
      %p110 = por %p108, %p109
      %p111 = scmp.le.s32.totalorder 1, %s9
      %p112 = scmp.lt.s32.totalorder %s9, 3
      %p113 = pnand %p111, %p112
      %p114 = pneg %p113
      // Predicated region
      $region9: #{mynet_forward.6} parent=5 // pred_check
        _
      $region10: #{mynet_forward.6} parent=5 // pred_check_branch
        %116 = sbr.rel (%p113) target = $region12
      $region11: #{mynet_forward.6} parent=5 // pred_region
        %s117 = ssub.s32 %s9, 1
        // Predicated region
        $region13: #{mynet_forward.6} parent=11 // pred_check
          %p118 = pneg %p56
        $region14: #{mynet_forward.6} parent=11 // pred_check_branch
          %120 = sbr.rel (%p118) target = $region16
        $region15: #{mynet_forward.6} parent=11 // pred_region
          _
        $region16: #{mynet_forward.6} parent=11 // pred_fallthru
          _
        // Predicated region
        $region17: #{mynet_forward.6} parent=11 // pred_check
          %p121 = pneg %p77
        $region18: #{mynet_forward.6} parent=11 // pred_check_branch
          %123 = sbr.rel (%p121) target = $region20
        $region19: #{mynet_forward.6} parent=11 // pred_region
          _
        $region20: #{mynet_forward.6} parent=11 // pred_fallthru
          _
      $region12: #{mynet_forward.6} parent=5 // pred_fallthru
        _
      %p124 = scmp.lt.s32.totalorder %s9, 2
      // Predicated region
      $region21: #{mynet_forward.6} parent=5 // pred_check
        %p125 = pneg %p124
      $region22: #{mynet_forward.6} parent=5 // pred_check_branch
        %127 = sbr.rel (%p125) target = $region24
      $region23: #{mynet_forward.6} parent=5 // pred_region
        // Predicated region
        $region25: #{mynet_forward.6} parent=23 // pred_check
          %p128 = pneg %p29
        $region26: #{mynet_forward.6} parent=23 // pred_check_branch
          %130 = sbr.rel (%p128) target = $region28
        $region27: #{mynet_forward.6} parent=23 // pred_region
          %s131 = sand.u32 %s19, 1
          %s132 = sand.u32 %s19, 1
          %s133 = smul.addr %s132, 1024
          %s134 = scalar_lea.vmem [#allocation2], %s133
          %s135 = smul.u32 64, %s9
          %s136 = smul.addr %s135, 4
          %s137 = scalar_lea.vmem %s0, %s136
          // Predicated region
          $region29: #{mynet_forward.6} parent=27 // pred_check
            _
          $region30: #{mynet_forward.6} parent=27 // pred_check_branch
            %139 = sbr.rel (0) target = $region32
          $region31: #{mynet_forward.6} parent=27 // pred_region
            // Predicated region
            $region33: #{mynet_forward.6} parent=31 // pred_check
              _
            $region34: #{mynet_forward.6} parent=31 // pred_check_branch
              %141 = sbr.rel target = $region36
            $region35: #{mynet_forward.6} parent=31 // pred_region
              // Predicated region
              $region48: #{mynet_forward.6} parent=35 // pred_check
                _
              $region49: #{mynet_forward.6} parent=35 // pred_check_branch
                %666 = sbr.rel (0) target = $region51
              $region50: #{mynet_forward.6} parent=35 // pred_region
                loop: start=0, step=1, limit=1
                $region52: #{mynet_forward.6} parent=50 // loop_pre_header
                  _
                $region53: #{mynet_forward.6} parent=50 // loop_header
                  %s668 = sphi 0, %s672
                  %p669 = scmp.ge.s32.totalorder %s668, 1
                  %s673 = sphi %s137, %s137
                  %s674 = sphi %s134, %s134
                $region54: #{mynet_forward.6} parent=50 // loop_header_branch
                  %671 = sbr.rel (%p669) target = $region58
                $region55: #{mynet_forward.6} parent=50 // loop_body
                  _
                $region56: #{mynet_forward.6} parent=50 // loop_footer
                  %s672 = sadd.s32 1, %s668
                $region57: #{mynet_forward.6} parent=50 // loop_footer_branch
                  %667 = sbr.rel target = $region53
                $region58: #{mynet_forward.6} parent=50 // loop_exit
                  _
                loop: start=0, step=1, limit=1
                $region59: #{mynet_forward.6} parent=50 // loop_pre_header
                  _
                $region60: #{mynet_forward.6} parent=50 // loop_header
                  %s677 = sphi 0, %s681
                  %p678 = scmp.ge.s32.totalorder %s677, 1
                  %s682 = sphi %s137, %s137
                  %s683 = sphi %s134, %s134
                $region61: #{mynet_forward.6} parent=50 // loop_header_branch
                  %680 = sbr.rel (%p678) target = $region65
                $region62: #{mynet_forward.6} parent=50 // loop_body
                  %v684 = vld [vmem:[%s682] sm:$0xf]
                  %685 = vst [vmem:[%s683] sm:$0xf] %v684
                  %v686 = vld [vmem:[%s682 + $0x4] sm:$0xf]
                  %687 = vst [vmem:[%s683 + $0x4] sm:$0xf] %v686
                  %v688 = vld [vmem:[%s682 + $0x8] sm:$0xf]
                  %689 = vst [vmem:[%s683 + $0x8] sm:$0xf] %v688
                  %v690 = vld [vmem:[%s682 + $0xc] sm:$0xf]
                  %691 = vst [vmem:[%s683 + $0xc] sm:$0xf] %v690
                  %v692 = vld [vmem:[%s682 + $0x10] sm:$0xf]
                  %693 = vst [vmem:[%s683 + $0x10] sm:$0xf] %v692
                  %v694 = vld [vmem:[%s682 + $0x14] sm:$0xf]
                  %695 = vst [vmem:[%s683 + $0x14] sm:$0xf] %v694
                  %v696 = vld [vmem:[%s682 + $0x18] sm:$0xf]
                  %697 = vst [vmem:[%s683 + $0x18] sm:$0xf] %v696
                  %v698 = vld [vmem:[%s682 + $0x1c] sm:$0xf]
                  %699 = vst [vmem:[%s683 + $0x1c] sm:$0xf] %v698
                  %v700 = vld [vmem:[%s682 + $0x20] sm:$0xf]
                  %701 = vst [vmem:[%s683 + $0x20] sm:$0xf] %v700
                  %v702 = vld [vmem:[%s682 + $0x24] sm:$0xf]
                  %703 = vst [vmem:[%s683 + $0x24] sm:$0xf] %v702
                  %v704 = vld [vmem:[%s682 + $0x28] sm:$0xf]
                  %705 = vst [vmem:[%s683 + $0x28] sm:$0xf] %v704
                  %v706 = vld [vmem:[%s682 + $0x2c] sm:$0xf]
                  %707 = vst [vmem:[%s683 + $0x2c] sm:$0xf] %v706
                  %v708 = vld [vmem:[%s682 + $0x30] sm:$0xf]
                  %709 = vst [vmem:[%s683 + $0x30] sm:$0xf] %v708
                  %v710 = vld [vmem:[%s682 + $0x34] sm:$0xf]
                  %711 = vst [vmem:[%s683 + $0x34] sm:$0xf] %v710
                  %v712 = vld [vmem:[%s682 + $0x38] sm:$0xf]
                  %713 = vst [vmem:[%s683 + $0x38] sm:$0xf] %v712
                  %v714 = vld [vmem:[%s682 + $0x3c] sm:$0xf]
                  %715 = vst [vmem:[%s683 + $0x3c] sm:$0xf] %v714
                  %v716 = vld [vmem:[%s682 + $0x40] sm:$0xf]
                  %717 = vst [vmem:[%s683 + $0x40] sm:$0xf] %v716
                  %v718 = vld [vmem:[%s682 + $0x44] sm:$0xf]
                  %719 = vst [vmem:[%s683 + $0x44] sm:$0xf] %v718
                  %v720 = vld [vmem:[%s682 + $0x48] sm:$0xf]
                  %721 = vst [vmem:[%s683 + $0x48] sm:$0xf] %v720
                  %v722 = vld [vmem:[%s682 + $0x4c] sm:$0xf]
                  %723 = vst [vmem:[%s683 + $0x4c] sm:$0xf] %v722
                  %v724 = vld [vmem:[%s682 + $0x50] sm:$0xf]
                  %725 = vst [vmem:[%s683 + $0x50] sm:$0xf] %v724
                  %v726 = vld [vmem:[%s682 + $0x54] sm:$0xf]
                  %727 = vst [vmem:[%s683 + $0x54] sm:$0xf] %v726
                  %v728 = vld [vmem:[%s682 + $0x58] sm:$0xf]
                  %729 = vst [vmem:[%s683 + $0x58] sm:$0xf] %v728
                  %v730 = vld [vmem:[%s682 + $0x5c] sm:$0xf]
                  %731 = vst [vmem:[%s683 + $0x5c] sm:$0xf] %v730
                  %v732 = vld [vmem:[%s682 + $0x60] sm:$0xf]
                  %733 = vst [vmem:[%s683 + $0x60] sm:$0xf] %v732
                  %v734 = vld [vmem:[%s682 + $0x64] sm:$0xf]
                  %735 = vst [vmem:[%s683 + $0x64] sm:$0xf] %v734
                  %v736 = vld [vmem:[%s682 + $0x68] sm:$0xf]
                  %737 = vst [vmem:[%s683 + $0x68] sm:$0xf] %v736
                  %v738 = vld [vmem:[%s682 + $0x6c] sm:$0xf]
                  %739 = vst [vmem:[%s683 + $0x6c] sm:$0xf] %v738
                  %v740 = vld [vmem:[%s682 + $0x70] sm:$0xf]
                  %741 = vst [vmem:[%s683 + $0x70] sm:$0xf] %v740
                  %v742 = vld [vmem:[%s682 + $0x74] sm:$0xf]
                  %743 = vst [vmem:[%s683 + $0x74] sm:$0xf] %v742
                  %v744 = vld [vmem:[%s682 + $0x78] sm:$0xf]
                  %745 = vst [vmem:[%s683 + $0x78] sm:$0xf] %v744
                  %v746 = vld [vmem:[%s682 + $0x7c] sm:$0xf]
                  %747 = vst [vmem:[%s683 + $0x7c] sm:$0xf] %v746
                  %v748 = vld [vmem:[%s682 + $0x80] sm:$0xf]
                  %749 = vst [vmem:[%s683 + $0x80] sm:$0xf] %v748
                  %v750 = vld [vmem:[%s682 + $0x84] sm:$0xf]
                  %751 = vst [vmem:[%s683 + $0x84] sm:$0xf] %v750
                  %v752 = vld [vmem:[%s682 + $0x88] sm:$0xf]
                  %753 = vst [vmem:[%s683 + $0x88] sm:$0xf] %v752
                  %v754 = vld [vmem:[%s682 + $0x8c] sm:$0xf]
                  %755 = vst [vmem:[%s683 + $0x8c] sm:$0xf] %v754
                  %v756 = vld [vmem:[%s682 + $0x90] sm:$0xf]
                  %757 = vst [vmem:[%s683 + $0x90] sm:$0xf] %v756
                  %v758 = vld [vmem:[%s682 + $0x94] sm:$0xf]
                  %759 = vst [vmem:[%s683 + $0x94] sm:$0xf] %v758
                  %v760 = vld [vmem:[%s682 + $0x98] sm:$0xf]
                  %761 = vst [vmem:[%s683 + $0x98] sm:$0xf] %v760
                  %v762 = vld [vmem:[%s682 + $0x9c] sm:$0xf]
                  %763 = vst [vmem:[%s683 + $0x9c] sm:$0xf] %v762
                  %v764 = vld [vmem:[%s682 + $0xa0] sm:$0xf]
                  %765 = vst [vmem:[%s683 + $0xa0] sm:$0xf] %v764
                  %v766 = vld [vmem:[%s682 + $0xa4] sm:$0xf]
                  %767 = vst [vmem:[%s683 + $0xa4] sm:$0xf] %v766
                  %v768 = vld [vmem:[%s682 + $0xa8] sm:$0xf]
                  %769 = vst [vmem:[%s683 + $0xa8] sm:$0xf] %v768
                  %v770 = vld [vmem:[%s682 + $0xac] sm:$0xf]
                  %771 = vst [vmem:[%s683 + $0xac] sm:$0xf] %v770
                  %v772 = vld [vmem:[%s682 + $0xb0] sm:$0xf]
                  %773 = vst [vmem:[%s683 + $0xb0] sm:$0xf] %v772
                  %v774 = vld [vmem:[%s682 + $0xb4] sm:$0xf]
                  %775 = vst [vmem:[%s683 + $0xb4] sm:$0xf] %v774
                  %v776 = vld [vmem:[%s682 + $0xb8] sm:$0xf]
                  %777 = vst [vmem:[%s683 + $0xb8] sm:$0xf] %v776
                  %v778 = vld [vmem:[%s682 + $0xbc] sm:$0xf]
                  %779 = vst [vmem:[%s683 + $0xbc] sm:$0xf] %v778
                  %v780 = vld [vmem:[%s682 + $0xc0] sm:$0xf]
                  %781 = vst [vmem:[%s683 + $0xc0] sm:$0xf] %v780
                  %v782 = vld [vmem:[%s682 + $0xc4] sm:$0xf]
                  %783 = vst [vmem:[%s683 + $0xc4] sm:$0xf] %v782
                  %v784 = vld [vmem:[%s682 + $0xc8] sm:$0xf]
                  %785 = vst [vmem:[%s683 + $0xc8] sm:$0xf] %v784
                  %v786 = vld [vmem:[%s682 + $0xcc] sm:$0xf]
                  %787 = vst [vmem:[%s683 + $0xcc] sm:$0xf] %v786
                  %v788 = vld [vmem:[%s682 + $0xd0] sm:$0xf]
                  %789 = vst [vmem:[%s683 + $0xd0] sm:$0xf] %v788
                  %v790 = vld [vmem:[%s682 + $0xd4] sm:$0xf]
                  %791 = vst [vmem:[%s683 + $0xd4] sm:$0xf] %v790
                  %v792 = vld [vmem:[%s682 + $0xd8] sm:$0xf]
                  %793 = vst [vmem:[%s683 + $0xd8] sm:$0xf] %v792
                  %v794 = vld [vmem:[%s682 + $0xdc] sm:$0xf]
                  %795 = vst [vmem:[%s683 + $0xdc] sm:$0xf] %v794
                  %v796 = vld [vmem:[%s682 + $0xe0] sm:$0xf]
                  %797 = vst [vmem:[%s683 + $0xe0] sm:$0xf] %v796
                  %v798 = vld [vmem:[%s682 + $0xe4] sm:$0xf]
                  %799 = vst [vmem:[%s683 + $0xe4] sm:$0xf] %v798
                  %v800 = vld [vmem:[%s682 + $0xe8] sm:$0xf]
                  %801 = vst [vmem:[%s683 + $0xe8] sm:$0xf] %v800
                  %v802 = vld [vmem:[%s682 + $0xec] sm:$0xf]
                  %803 = vst [vmem:[%s683 + $0xec] sm:$0xf] %v802
                  %v804 = vld [vmem:[%s682 + $0xf0] sm:$0xf]
                  %805 = vst [vmem:[%s683 + $0xf0] sm:$0xf] %v804
                  %v806 = vld [vmem:[%s682 + $0xf4] sm:$0xf]
                  %807 = vst [vmem:[%s683 + $0xf4] sm:$0xf] %v806
                  %v808 = vld [vmem:[%s682 + $0xf8] sm:$0xf]
                  %809 = vst [vmem:[%s683 + $0xf8] sm:$0xf] %v808
                  %v810 = vld [vmem:[%s682 + $0xfc] sm:$0xf]
                  %811 = vst [vmem:[%s683 + $0xfc] sm:$0xf] %v810
                  %v812 = vld [vmem:[%s682 + $0x200] sm:$0xf]
                  %813 = vst [vmem:[%s683 + $0x100] sm:$0xf] %v812
                  %v814 = vld [vmem:[%s682 + $0x204] sm:$0xf]
                  %815 = vst [vmem:[%s683 + $0x104] sm:$0xf] %v814
                  %v816 = vld [vmem:[%s682 + $0x208] sm:$0xf]
                  %817 = vst [vmem:[%s683 + $0x108] sm:$0xf] %v816
                  %v818 = vld [vmem:[%s682 + $0x20c] sm:$0xf]
                  %819 = vst [vmem:[%s683 + $0x10c] sm:$0xf] %v818
                  %v820 = vld [vmem:[%s682 + $0x210] sm:$0xf]
                  %821 = vst [vmem:[%s683 + $0x110] sm:$0xf] %v820
                  %v822 = vld [vmem:[%s682 + $0x214] sm:$0xf]
                  %823 = vst [vmem:[%s683 + $0x114] sm:$0xf] %v822
                  %v824 = vld [vmem:[%s682 + $0x218] sm:$0xf]
                  %825 = vst [vmem:[%s683 + $0x118] sm:$0xf] %v824
                  %v826 = vld [vmem:[%s682 + $0x21c] sm:$0xf]
                  %827 = vst [vmem:[%s683 + $0x11c] sm:$0xf] %v826
                  %v828 = vld [vmem:[%s682 + $0x220] sm:$0xf]
                  %829 = vst [vmem:[%s683 + $0x120] sm:$0xf] %v828
                  %v830 = vld [vmem:[%s682 + $0x224] sm:$0xf]
                  %831 = vst [vmem:[%s683 + $0x124] sm:$0xf] %v830
                  %v832 = vld [vmem:[%s682 + $0x228] sm:$0xf]
                  %833 = vst [vmem:[%s683 + $0x128] sm:$0xf] %v832
                  %v834 = vld [vmem:[%s682 + $0x22c] sm:$0xf]
                  %835 = vst [vmem:[%s683 + $0x12c] sm:$0xf] %v834
                  %v836 = vld [vmem:[%s682 + $0x230] sm:$0xf]
                  %837 = vst [vmem:[%s683 + $0x130] sm:$0xf] %v836
                  %v838 = vld [vmem:[%s682 + $0x234] sm:$0xf]
                  %839 = vst [vmem:[%s683 + $0x134] sm:$0xf] %v838
                  %v840 = vld [vmem:[%s682 + $0x238] sm:$0xf]
                  %841 = vst [vmem:[%s683 + $0x138] sm:$0xf] %v840
                  %v842 = vld [vmem:[%s682 + $0x23c] sm:$0xf]
                  %843 = vst [vmem:[%s683 + $0x13c] sm:$0xf] %v842
                  %v844 = vld [vmem:[%s682 + $0x240] sm:$0xf]
                  %845 = vst [vmem:[%s683 + $0x140] sm:$0xf] %v844
                  %v846 = vld [vmem:[%s682 + $0x244] sm:$0xf]
                  %847 = vst [vmem:[%s683 + $0x144] sm:$0xf] %v846
                  %v848 = vld [vmem:[%s682 + $0x248] sm:$0xf]
                  %849 = vst [vmem:[%s683 + $0x148] sm:$0xf] %v848
                  %v850 = vld [vmem:[%s682 + $0x24c] sm:$0xf]
                  %851 = vst [vmem:[%s683 + $0x14c] sm:$0xf] %v850
                  %v852 = vld [vmem:[%s682 + $0x250] sm:$0xf]
                  %853 = vst [vmem:[%s683 + $0x150] sm:$0xf] %v852
                  %v854 = vld [vmem:[%s682 + $0x254] sm:$0xf]
                  %855 = vst [vmem:[%s683 + $0x154] sm:$0xf] %v854
                  %v856 = vld [vmem:[%s682 + $0x258] sm:$0xf]
                  %857 = vst [vmem:[%s683 + $0x158] sm:$0xf] %v856
                  %v858 = vld [vmem:[%s682 + $0x25c] sm:$0xf]
                  %859 = vst [vmem:[%s683 + $0x15c] sm:$0xf] %v858
                  %v860 = vld [vmem:[%s682 + $0x260] sm:$0xf]
                  %861 = vst [vmem:[%s683 + $0x160] sm:$0xf] %v860
                  %v862 = vld [vmem:[%s682 + $0x264] sm:$0xf]
                  %863 = vst [vmem:[%s683 + $0x164] sm:$0xf] %v862
                  %v864 = vld [vmem:[%s682 + $0x268] sm:$0xf]
                  %865 = vst [vmem:[%s683 + $0x168] sm:$0xf] %v864
                  %v866 = vld [vmem:[%s682 + $0x26c] sm:$0xf]
                  %867 = vst [vmem:[%s683 + $0x16c] sm:$0xf] %v866
                  %v868 = vld [vmem:[%s682 + $0x270] sm:$0xf]
                  %869 = vst [vmem:[%s683 + $0x170] sm:$0xf] %v868
                  %v870 = vld [vmem:[%s682 + $0x274] sm:$0xf]
                  %871 = vst [vmem:[%s683 + $0x174] sm:$0xf] %v870
                  %v872 = vld [vmem:[%s682 + $0x278] sm:$0xf]
                  %873 = vst [vmem:[%s683 + $0x178] sm:$0xf] %v872
                  %v874 = vld [vmem:[%s682 + $0x27c] sm:$0xf]
                  %875 = vst [vmem:[%s683 + $0x17c] sm:$0xf] %v874
                  %v876 = vld [vmem:[%s682 + $0x280] sm:$0xf]
                  %877 = vst [vmem:[%s683 + $0x180] sm:$0xf] %v876
                  %v878 = vld [vmem:[%s682 + $0x284] sm:$0xf]
                  %879 = vst [vmem:[%s683 + $0x184] sm:$0xf] %v878
                  %v880 = vld [vmem:[%s682 + $0x288] sm:$0xf]
                  %881 = vst [vmem:[%s683 + $0x188] sm:$0xf] %v880
                  %v882 = vld [vmem:[%s682 + $0x28c] sm:$0xf]
                  %883 = vst [vmem:[%s683 + $0x18c] sm:$0xf] %v882
                  %v884 = vld [vmem:[%s682 + $0x290] sm:$0xf]
                  %885 = vst [vmem:[%s683 + $0x190] sm:$0xf] %v884
                  %v886 = vld [vmem:[%s682 + $0x294] sm:$0xf]
                  %887 = vst [vmem:[%s683 + $0x194] sm:$0xf] %v886
                  %v888 = vld [vmem:[%s682 + $0x298] sm:$0xf]
                  %889 = vst [vmem:[%s683 + $0x198] sm:$0xf] %v888
                  %v890 = vld [vmem:[%s682 + $0x29c] sm:$0xf]
                  %891 = vst [vmem:[%s683 + $0x19c] sm:$0xf] %v890
                  %v892 = vld [vmem:[%s682 + $0x2a0] sm:$0xf]
                  %893 = vst [vmem:[%s683 + $0x1a0] sm:$0xf] %v892
                  %v894 = vld [vmem:[%s682 + $0x2a4] sm:$0xf]
                  %895 = vst [vmem:[%s683 + $0x1a4] sm:$0xf] %v894
                  %v896 = vld [vmem:[%s682 + $0x2a8] sm:$0xf]
                  %897 = vst [vmem:[%s683 + $0x1a8] sm:$0xf] %v896
                  %v898 = vld [vmem:[%s682 + $0x2ac] sm:$0xf]
                  %899 = vst [vmem:[%s683 + $0x1ac] sm:$0xf] %v898
                  %v900 = vld [vmem:[%s682 + $0x2b0] sm:$0xf]
                  %901 = vst [vmem:[%s683 + $0x1b0] sm:$0xf] %v900
                  %v902 = vld [vmem:[%s682 + $0x2b4] sm:$0xf]
                  %903 = vst [vmem:[%s683 + $0x1b4] sm:$0xf] %v902
                  %v904 = vld [vmem:[%s682 + $0x2b8] sm:$0xf]
                  %905 = vst [vmem:[%s683 + $0x1b8] sm:$0xf] %v904
                  %v906 = vld [vmem:[%s682 + $0x2bc] sm:$0xf]
                  %907 = vst [vmem:[%s683 + $0x1bc] sm:$0xf] %v906
                  %v908 = vld [vmem:[%s682 + $0x2c0] sm:$0xf]
                  %909 = vst [vmem:[%s683 + $0x1c0] sm:$0xf] %v908
                  %v910 = vld [vmem:[%s682 + $0x2c4] sm:$0xf]
                  %911 = vst [vmem:[%s683 + $0x1c4] sm:$0xf] %v910
                  %v912 = vld [vmem:[%s682 + $0x2c8] sm:$0xf]
                  %913 = vst [vmem:[%s683 + $0x1c8] sm:$0xf] %v912
                  %v914 = vld [vmem:[%s682 + $0x2cc] sm:$0xf]
                  %915 = vst [vmem:[%s683 + $0x1cc] sm:$0xf] %v914
                  %v916 = vld [vmem:[%s682 + $0x2d0] sm:$0xf]
                  %917 = vst [vmem:[%s683 + $0x1d0] sm:$0xf] %v916
                  %v918 = vld [vmem:[%s682 + $0x2d4] sm:$0xf]
                  %919 = vst [vmem:[%s683 + $0x1d4] sm:$0xf] %v918
                  %v920 = vld [vmem:[%s682 + $0x2d8] sm:$0xf]
                  %921 = vst [vmem:[%s683 + $0x1d8] sm:$0xf] %v920
                  %v922 = vld [vmem:[%s682 + $0x2dc] sm:$0xf]
                  %923 = vst [vmem:[%s683 + $0x1dc] sm:$0xf] %v922
                  %v924 = vld [vmem:[%s682 + $0x2e0] sm:$0xf]
                  %925 = vst [vmem:[%s683 + $0x1e0] sm:$0xf] %v924
                  %v926 = vld [vmem:[%s682 + $0x2e4] sm:$0xf]
                  %927 = vst [vmem:[%s683 + $0x1e4] sm:$0xf] %v926
                  %v928 = vld [vmem:[%s682 + $0x2e8] sm:$0xf]
                  %929 = vst [vmem:[%s683 + $0x1e8] sm:$0xf] %v928
                  %v930 = vld [vmem:[%s682 + $0x2ec] sm:$0xf]
                  %931 = vst [vmem:[%s683 + $0x1ec] sm:$0xf] %v930
                  %v932 = vld [vmem:[%s682 + $0x2f0] sm:$0xf]
                  %933 = vst [vmem:[%s683 + $0x1f0] sm:$0xf] %v932
                  %v934 = vld [vmem:[%s682 + $0x2f4] sm:$0xf]
                  %935 = vst [vmem:[%s683 + $0x1f4] sm:$0xf] %v934
                  %v936 = vld [vmem:[%s682 + $0x2f8] sm:$0xf]
                  %937 = vst [vmem:[%s683 + $0x1f8] sm:$0xf] %v936
                  %v938 = vld [vmem:[%s682 + $0x2fc] sm:$0xf]
                  %939 = vst [vmem:[%s683 + $0x1fc] sm:$0xf] %v938
                  %v940 = vld [vmem:[%s682 + $0x400] sm:$0xf]
                  %941 = vst [vmem:[%s683 + $0x200] sm:$0xf] %v940
                  %v942 = vld [vmem:[%s682 + $0x404] sm:$0xf]
                  %943 = vst [vmem:[%s683 + $0x204] sm:$0xf] %v942
                  %v944 = vld [vmem:[%s682 + $0x408] sm:$0xf]
                  %945 = vst [vmem:[%s683 + $0x208] sm:$0xf] %v944
                  %v946 = vld [vmem:[%s682 + $0x40c] sm:$0xf]
                  %947 = vst [vmem:[%s683 + $0x20c] sm:$0xf] %v946
                  %v948 = vld [vmem:[%s682 + $0x410] sm:$0xf]
                  %949 = vst [vmem:[%s683 + $0x210] sm:$0xf] %v948
                  %v950 = vld [vmem:[%s682 + $0x414] sm:$0xf]
                  %951 = vst [vmem:[%s683 + $0x214] sm:$0xf] %v950
                  %v952 = vld [vmem:[%s682 + $0x418] sm:$0xf]
                  %953 = vst [vmem:[%s683 + $0x218] sm:$0xf] %v952
                  %v954 = vld [vmem:[%s682 + $0x41c] sm:$0xf]
                  %955 = vst [vmem:[%s683 + $0x21c] sm:$0xf] %v954
                  %v956 = vld [vmem:[%s682 + $0x420] sm:$0xf]
                  %957 = vst [vmem:[%s683 + $0x220] sm:$0xf] %v956
                  %v958 = vld [vmem:[%s682 + $0x424] sm:$0xf]
                  %959 = vst [vmem:[%s683 + $0x224] sm:$0xf] %v958
                  %v960 = vld [vmem:[%s682 + $0x428] sm:$0xf]
                  %961 = vst [vmem:[%s683 + $0x228] sm:$0xf] %v960
                  %v962 = vld [vmem:[%s682 + $0x42c] sm:$0xf]
                  %963 = vst [vmem:[%s683 + $0x22c] sm:$0xf] %v962
                  %v964 = vld [vmem:[%s682 + $0x430] sm:$0xf]
                  %965 = vst [vmem:[%s683 + $0x230] sm:$0xf] %v964
                  %v966 = vld [vmem:[%s682 + $0x434] sm:$0xf]
                  %967 = vst [vmem:[%s683 + $0x234] sm:$0xf] %v966
                  %v968 = vld [vmem:[%s682 + $0x438] sm:$0xf]
                  %969 = vst [vmem:[%s683 + $0x238] sm:$0xf] %v968
                  %v970 = vld [vmem:[%s682 + $0x43c] sm:$0xf]
                  %971 = vst [vmem:[%s683 + $0x23c] sm:$0xf] %v970
                  %v972 = vld [vmem:[%s682 + $0x440] sm:$0xf]
                  %973 = vst [vmem:[%s683 + $0x240] sm:$0xf] %v972
                  %v974 = vld [vmem:[%s682 + $0x444] sm:$0xf]
                  %975 = vst [vmem:[%s683 + $0x244] sm:$0xf] %v974
                  %v976 = vld [vmem:[%s682 + $0x448] sm:$0xf]
                  %977 = vst [vmem:[%s683 + $0x248] sm:$0xf] %v976
                  %v978 = vld [vmem:[%s682 + $0x44c] sm:$0xf]
                  %979 = vst [vmem:[%s683 + $0x24c] sm:$0xf] %v978
                  %v980 = vld [vmem:[%s682 + $0x450] sm:$0xf]
                  %981 = vst [vmem:[%s683 + $0x250] sm:$0xf] %v980
                  %v982 = vld [vmem:[%s682 + $0x454] sm:$0xf]
                  %983 = vst [vmem:[%s683 + $0x254] sm:$0xf] %v982
                  %v984 = vld [vmem:[%s682 + $0x458] sm:$0xf]
                  %985 = vst [vmem:[%s683 + $0x258] sm:$0xf] %v984
                  %v986 = vld [vmem:[%s682 + $0x45c] sm:$0xf]
                  %987 = vst [vmem:[%s683 + $0x25c] sm:$0xf] %v986
                  %v988 = vld [vmem:[%s682 + $0x460] sm:$0xf]
                  %989 = vst [vmem:[%s683 + $0x260] sm:$0xf] %v988
                  %v990 = vld [vmem:[%s682 + $0x464] sm:$0xf]
                  %991 = vst [vmem:[%s683 + $0x264] sm:$0xf] %v990
                  %v992 = vld [vmem:[%s682 + $0x468] sm:$0xf]
                  %993 = vst [vmem:[%s683 + $0x268] sm:$0xf] %v992
                  %v994 = vld [vmem:[%s682 + $0x46c] sm:$0xf]
                  %995 = vst [vmem:[%s683 + $0x26c] sm:$0xf] %v994
                  %v996 = vld [vmem:[%s682 + $0x470] sm:$0xf]
                  %997 = vst [vmem:[%s683 + $0x270] sm:$0xf] %v996
                  %v998 = vld [vmem:[%s682 + $0x474] sm:$0xf]
                  %999 = vst [vmem:[%s683 + $0x274] sm:$0xf] %v998
                  %v1000 = vld [vmem:[%s682 + $0x478] sm:$0xf]
                  %1001 = vst [vmem:[%s683 + $0x278] sm:$0xf] %v1000
                  %v1002 = vld [vmem:[%s682 + $0x47c] sm:$0xf]
                  %1003 = vst [vmem:[%s683 + $0x27c] sm:$0xf] %v1002
                  %v1004 = vld [vmem:[%s682 + $0x480] sm:$0xf]
                  %1005 = vst [vmem:[%s683 + $0x280] sm:$0xf] %v1004
                  %v1006 = vld [vmem:[%s682 + $0x484] sm:$0xf]
                  %1007 = vst [vmem:[%s683 + $0x284] sm:$0xf] %v1006
                  %v1008 = vld [vmem:[%s682 + $0x488] sm:$0xf]
                  %1009 = vst [vmem:[%s683 + $0x288] sm:$0xf] %v1008
                  %v1010 = vld [vmem:[%s682 + $0x48c] sm:$0xf]
                  %1011 = vst [vmem:[%s683 + $0x28c] sm:$0xf] %v1010
                  %v1012 = vld [vmem:[%s682 + $0x490] sm:$0xf]
                  %1013 = vst [vmem:[%s683 + $0x290] sm:$0xf] %v1012
                  %v1014 = vld [vmem:[%s682 + $0x494] sm:$0xf]
                  %1015 = vst [vmem:[%s683 + $0x294] sm:$0xf] %v1014
                  %v1016 = vld [vmem:[%s682 + $0x498] sm:$0xf]
                  %1017 = vst [vmem:[%s683 + $0x298] sm:$0xf] %v1016
                  %v1018 = vld [vmem:[%s682 + $0x49c] sm:$0xf]
                  %1019 = vst [vmem:[%s683 + $0x29c] sm:$0xf] %v1018
                  %v1020 = vld [vmem:[%s682 + $0x4a0] sm:$0xf]
                  %1021 = vst [vmem:[%s683 + $0x2a0] sm:$0xf] %v1020
                  %v1022 = vld [vmem:[%s682 + $0x4a4] sm:$0xf]
                  %1023 = vst [vmem:[%s683 + $0x2a4] sm:$0xf] %v1022
                  %v1024 = vld [vmem:[%s682 + $0x4a8] sm:$0xf]
                  %1025 = vst [vmem:[%s683 + $0x2a8] sm:$0xf] %v1024
                  %v1026 = vld [vmem:[%s682 + $0x4ac] sm:$0xf]
                  %1027 = vst [vmem:[%s683 + $0x2ac] sm:$0xf] %v1026
                  %v1028 = vld [vmem:[%s682 + $0x4b0] sm:$0xf]
                  %1029 = vst [vmem:[%s683 + $0x2b0] sm:$0xf] %v1028
                  %v1030 = vld [vmem:[%s682 + $0x4b4] sm:$0xf]
                  %1031 = vst [vmem:[%s683 + $0x2b4] sm:$0xf] %v1030
                  %v1032 = vld [vmem:[%s682 + $0x4b8] sm:$0xf]
                  %1033 = vst [vmem:[%s683 + $0x2b8] sm:$0xf] %v1032
                  %v1034 = vld [vmem:[%s682 + $0x4bc] sm:$0xf]
                  %1035 = vst [vmem:[%s683 + $0x2bc] sm:$0xf] %v1034
                  %v1036 = vld [vmem:[%s682 + $0x4c0] sm:$0xf]
                  %1037 = vst [vmem:[%s683 + $0x2c0] sm:$0xf] %v1036
                  %v1038 = vld [vmem:[%s682 + $0x4c4] sm:$0xf]
                  %1039 = vst [vmem:[%s683 + $0x2c4] sm:$0xf] %v1038
                  %v1040 = vld [vmem:[%s682 + $0x4c8] sm:$0xf]
                  %1041 = vst [vmem:[%s683 + $0x2c8] sm:$0xf] %v1040
                  %v1042 = vld [vmem:[%s682 + $0x4cc] sm:$0xf]
                  %1043 = vst [vmem:[%s683 + $0x2cc] sm:$0xf] %v1042
                  %v1044 = vld [vmem:[%s682 + $0x4d0] sm:$0xf]
                  %1045 = vst [vmem:[%s683 + $0x2d0] sm:$0xf] %v1044
                  %v1046 = vld [vmem:[%s682 + $0x4d4] sm:$0xf]
                  %1047 = vst [vmem:[%s683 + $0x2d4] sm:$0xf] %v1046
                  %v1048 = vld [vmem:[%s682 + $0x4d8] sm:$0xf]
                  %1049 = vst [vmem:[%s683 + $0x2d8] sm:$0xf] %v1048
                  %v1050 = vld [vmem:[%s682 + $0x4dc] sm:$0xf]
                  %1051 = vst [vmem:[%s683 + $0x2dc] sm:$0xf] %v1050
                  %v1052 = vld [vmem:[%s682 + $0x4e0] sm:$0xf]
                  %1053 = vst [vmem:[%s683 + $0x2e0] sm:$0xf] %v1052
                  %v1054 = vld [vmem:[%s682 + $0x4e4] sm:$0xf]
                  %1055 = vst [vmem:[%s683 + $0x2e4] sm:$0xf] %v1054
                  %v1056 = vld [vmem:[%s682 + $0x4e8] sm:$0xf]
                  %1057 = vst [vmem:[%s683 + $0x2e8] sm:$0xf] %v1056
                  %v1058 = vld [vmem:[%s682 + $0x4ec] sm:$0xf]
                  %1059 = vst [vmem:[%s683 + $0x2ec] sm:$0xf] %v1058
                  %v1060 = vld [vmem:[%s682 + $0x4f0] sm:$0xf]
                  %1061 = vst [vmem:[%s683 + $0x2f0] sm:$0xf] %v1060
                  %v1062 = vld [vmem:[%s682 + $0x4f4] sm:$0xf]
                  %1063 = vst [vmem:[%s683 + $0x2f4] sm:$0xf] %v1062
                  %v1064 = vld [vmem:[%s682 + $0x4f8] sm:$0xf]
                  %1065 = vst [vmem:[%s683 + $0x2f8] sm:$0xf] %v1064
                  %v1066 = vld [vmem:[%s682 + $0x4fc] sm:$0xf]
                  %1067 = vst [vmem:[%s683 + $0x2fc] sm:$0xf] %v1066
                  %v1068 = vld [vmem:[%s682 + $0x600] sm:$0xf]
                  %1069 = vst [vmem:[%s683 + $0x300] sm:$0xf] %v1068
                  %v1070 = vld [vmem:[%s682 + $0x604] sm:$0xf]
                  %1071 = vst [vmem:[%s683 + $0x304] sm:$0xf] %v1070
                  %v1072 = vld [vmem:[%s682 + $0x608] sm:$0xf]
                  %1073 = vst [vmem:[%s683 + $0x308] sm:$0xf] %v1072
                  %v1074 = vld [vmem:[%s682 + $0x60c] sm:$0xf]
                  %1075 = vst [vmem:[%s683 + $0x30c] sm:$0xf] %v1074
                  %v1076 = vld [vmem:[%s682 + $0x610] sm:$0xf]
                  %1077 = vst [vmem:[%s683 + $0x310] sm:$0xf] %v1076
                  %v1078 = vld [vmem:[%s682 + $0x614] sm:$0xf]
                  %1079 = vst [vmem:[%s683 + $0x314] sm:$0xf] %v1078
                  %v1080 = vld [vmem:[%s682 + $0x618] sm:$0xf]
                  %1081 = vst [vmem:[%s683 + $0x318] sm:$0xf] %v1080
                  %v1082 = vld [vmem:[%s682 + $0x61c] sm:$0xf]
                  %1083 = vst [vmem:[%s683 + $0x31c] sm:$0xf] %v1082
                  %v1084 = vld [vmem:[%s682 + $0x620] sm:$0xf]
                  %1085 = vst [vmem:[%s683 + $0x320] sm:$0xf] %v1084
                  %v1086 = vld [vmem:[%s682 + $0x624] sm:$0xf]
                  %1087 = vst [vmem:[%s683 + $0x324] sm:$0xf] %v1086
                  %v1088 = vld [vmem:[%s682 + $0x628] sm:$0xf]
                  %1089 = vst [vmem:[%s683 + $0x328] sm:$0xf] %v1088
                  %v1090 = vld [vmem:[%s682 + $0x62c] sm:$0xf]
                  %1091 = vst [vmem:[%s683 + $0x32c] sm:$0xf] %v1090
                  %v1092 = vld [vmem:[%s682 + $0x630] sm:$0xf]
                  %1093 = vst [vmem:[%s683 + $0x330] sm:$0xf] %v1092
                  %v1094 = vld [vmem:[%s682 + $0x634] sm:$0xf]
                  %1095 = vst [vmem:[%s683 + $0x334] sm:$0xf] %v1094
                  %v1096 = vld [vmem:[%s682 + $0x638] sm:$0xf]
                  %1097 = vst [vmem:[%s683 + $0x338] sm:$0xf] %v1096
                  %v1098 = vld [vmem:[%s682 + $0x63c] sm:$0xf]
                  %1099 = vst [vmem:[%s683 + $0x33c] sm:$0xf] %v1098
                  %v1100 = vld [vmem:[%s682 + $0x640] sm:$0xf]
                  %1101 = vst [vmem:[%s683 + $0x340] sm:$0xf] %v1100
                  %v1102 = vld [vmem:[%s682 + $0x644] sm:$0xf]
                  %1103 = vst [vmem:[%s683 + $0x344] sm:$0xf] %v1102
                  %v1104 = vld [vmem:[%s682 + $0x648] sm:$0xf]
                  %1105 = vst [vmem:[%s683 + $0x348] sm:$0xf] %v1104
                  %v1106 = vld [vmem:[%s682 + $0x64c] sm:$0xf]
                  %1107 = vst [vmem:[%s683 + $0x34c] sm:$0xf] %v1106
                  %v1108 = vld [vmem:[%s682 + $0x650] sm:$0xf]
                  %1109 = vst [vmem:[%s683 + $0x350] sm:$0xf] %v1108
                  %v1110 = vld [vmem:[%s682 + $0x654] sm:$0xf]
                  %1111 = vst [vmem:[%s683 + $0x354] sm:$0xf] %v1110
                  %v1112 = vld [vmem:[%s682 + $0x658] sm:$0xf]
                  %1113 = vst [vmem:[%s683 + $0x358] sm:$0xf] %v1112
                  %v1114 = vld [vmem:[%s682 + $0x65c] sm:$0xf]
                  %1115 = vst [vmem:[%s683 + $0x35c] sm:$0xf] %v1114
                  %v1116 = vld [vmem:[%s682 + $0x660] sm:$0xf]
                  %1117 = vst [vmem:[%s683 + $0x360] sm:$0xf] %v1116
                  %v1118 = vld [vmem:[%s682 + $0x664] sm:$0xf]
                  %1119 = vst [vmem:[%s683 + $0x364] sm:$0xf] %v1118
                  %v1120 = vld [vmem:[%s682 + $0x668] sm:$0xf]
                  %1121 = vst [vmem:[%s683 + $0x368] sm:$0xf] %v1120
                  %v1122 = vld [vmem:[%s682 + $0x66c] sm:$0xf]
                  %1123 = vst [vmem:[%s683 + $0x36c] sm:$0xf] %v1122
                  %v1124 = vld [vmem:[%s682 + $0x670] sm:$0xf]
                  %1125 = vst [vmem:[%s683 + $0x370] sm:$0xf] %v1124
                  %v1126 = vld [vmem:[%s682 + $0x674] sm:$0xf]
                  %1127 = vst [vmem:[%s683 + $0x374] sm:$0xf] %v1126
                  %v1128 = vld [vmem:[%s682 + $0x678] sm:$0xf]
                  %1129 = vst [vmem:[%s683 + $0x378] sm:$0xf] %v1128
                  %v1130 = vld [vmem:[%s682 + $0x67c] sm:$0xf]
                  %1131 = vst [vmem:[%s683 + $0x37c] sm:$0xf] %v1130
                  %v1132 = vld [vmem:[%s682 + $0x680] sm:$0xf]
                  %1133 = vst [vmem:[%s683 + $0x380] sm:$0xf] %v1132
                  %v1134 = vld [vmem:[%s682 + $0x684] sm:$0xf]
                  %1135 = vst [vmem:[%s683 + $0x384] sm:$0xf] %v1134
                  %v1136 = vld [vmem:[%s682 + $0x688] sm:$0xf]
                  %1137 = vst [vmem:[%s683 + $0x388] sm:$0xf] %v1136
                  %v1138 = vld [vmem:[%s682 + $0x68c] sm:$0xf]
                  %1139 = vst [vmem:[%s683 + $0x38c] sm:$0xf] %v1138
                  %v1140 = vld [vmem:[%s682 + $0x690] sm:$0xf]
                  %1141 = vst [vmem:[%s683 + $0x390] sm:$0xf] %v1140
                  %v1142 = vld [vmem:[%s682 + $0x694] sm:$0xf]
                  %1143 = vst [vmem:[%s683 + $0x394] sm:$0xf] %v1142
                  %v1144 = vld [vmem:[%s682 + $0x698] sm:$0xf]
                  %1145 = vst [vmem:[%s683 + $0x398] sm:$0xf] %v1144
                  %v1146 = vld [vmem:[%s682 + $0x69c] sm:$0xf]
                  %1147 = vst [vmem:[%s683 + $0x39c] sm:$0xf] %v1146
                  %v1148 = vld [vmem:[%s682 + $0x6a0] sm:$0xf]
                  %1149 = vst [vmem:[%s683 + $0x3a0] sm:$0xf] %v1148
                  %v1150 = vld [vmem:[%s682 + $0x6a4] sm:$0xf]
                  %1151 = vst [vmem:[%s683 + $0x3a4] sm:$0xf] %v1150
                  %v1152 = vld [vmem:[%s682 + $0x6a8] sm:$0xf]
                  %1153 = vst [vmem:[%s683 + $0x3a8] sm:$0xf] %v1152
                  %v1154 = vld [vmem:[%s682 + $0x6ac] sm:$0xf]
                  %1155 = vst [vmem:[%s683 + $0x3ac] sm:$0xf] %v1154
                  %v1156 = vld [vmem:[%s682 + $0x6b0] sm:$0xf]
                  %1157 = vst [vmem:[%s683 + $0x3b0] sm:$0xf] %v1156
                  %v1158 = vld [vmem:[%s682 + $0x6b4] sm:$0xf]
                  %1159 = vst [vmem:[%s683 + $0x3b4] sm:$0xf] %v1158
                  %v1160 = vld [vmem:[%s682 + $0x6b8] sm:$0xf]
                  %1161 = vst [vmem:[%s683 + $0x3b8] sm:$0xf] %v1160
                  %v1162 = vld [vmem:[%s682 + $0x6bc] sm:$0xf]
                  %1163 = vst [vmem:[%s683 + $0x3bc] sm:$0xf] %v1162
                  %v1164 = vld [vmem:[%s682 + $0x6c0] sm:$0xf]
                  %1165 = vst [vmem:[%s683 + $0x3c0] sm:$0xf] %v1164
                  %v1166 = vld [vmem:[%s682 + $0x6c4] sm:$0xf]
                  %1167 = vst [vmem:[%s683 + $0x3c4] sm:$0xf] %v1166
                  %v1168 = vld [vmem:[%s682 + $0x6c8] sm:$0xf]
                  %1169 = vst [vmem:[%s683 + $0x3c8] sm:$0xf] %v1168
                  %v1170 = vld [vmem:[%s682 + $0x6cc] sm:$0xf]
                  %1171 = vst [vmem:[%s683 + $0x3cc] sm:$0xf] %v1170
                  %v1172 = vld [vmem:[%s682 + $0x6d0] sm:$0xf]
                  %1173 = vst [vmem:[%s683 + $0x3d0] sm:$0xf] %v1172
                  %v1174 = vld [vmem:[%s682 + $0x6d4] sm:$0xf]
                  %1175 = vst [vmem:[%s683 + $0x3d4] sm:$0xf] %v1174
                  %v1176 = vld [vmem:[%s682 + $0x6d8] sm:$0xf]
                  %1177 = vst [vmem:[%s683 + $0x3d8] sm:$0xf] %v1176
                  %v1178 = vld [vmem:[%s682 + $0x6dc] sm:$0xf]
                  %1179 = vst [vmem:[%s683 + $0x3dc] sm:$0xf] %v1178
                  %v1180 = vld [vmem:[%s682 + $0x6e0] sm:$0xf]
                  %1181 = vst [vmem:[%s683 + $0x3e0] sm:$0xf] %v1180
                  %v1182 = vld [vmem:[%s682 + $0x6e4] sm:$0xf]
                  %1183 = vst [vmem:[%s683 + $0x3e4] sm:$0xf] %v1182
                  %v1184 = vld [vmem:[%s682 + $0x6e8] sm:$0xf]
                  %1185 = vst [vmem:[%s683 + $0x3e8] sm:$0xf] %v1184
                  %v1186 = vld [vmem:[%s682 + $0x6ec] sm:$0xf]
                  %1187 = vst [vmem:[%s683 + $0x3ec] sm:$0xf] %v1186
                  %v1188 = vld [vmem:[%s682 + $0x6f0] sm:$0xf]
                  %1189 = vst [vmem:[%s683 + $0x3f0] sm:$0xf] %v1188
                  %v1190 = vld [vmem:[%s682 + $0x6f4] sm:$0xf]
                  %1191 = vst [vmem:[%s683 + $0x3f4] sm:$0xf] %v1190
                  %v1192 = vld [vmem:[%s682 + $0x6f8] sm:$0xf]
                  %1193 = vst [vmem:[%s683 + $0x3f8] sm:$0xf] %v1192
                  %v1194 = vld [vmem:[%s682 + $0x6fc] sm:$0xf]
                  %1195 = vst [vmem:[%s683 + $0x3fc] sm:$0xf] %v1194
                $region63: #{mynet_forward.6} parent=50 // loop_footer
                  %s681 = sadd.s32 1, %s677
                $region64: #{mynet_forward.6} parent=50 // loop_footer_branch
                  %676 = sbr.rel target = $region60
                $region65: #{mynet_forward.6} parent=50 // loop_exit
                  _
              $region51: #{mynet_forward.6} parent=35 // pred_fallthru
                _
            $region36: #{mynet_forward.6} parent=31 // pred_fallthru
              _
            // Predicated region
            $region37: #{mynet_forward.6} parent=31 // pred_check
              _
            $region38: #{mynet_forward.6} parent=31 // pred_check_branch
              %143 = sbr.rel (0) target = $region40
            $region39: #{mynet_forward.6} parent=31 // pred_region
              loop: start=0, step=1, limit=1
              $region41: #{mynet_forward.6} parent=39 // loop_pre_header
                _
              $region42: #{mynet_forward.6} parent=39 // loop_header
                %s146 = sphi 0, %s150
                %p147 = scmp.ge.s32.totalorder %s146, 1
                %s151 = sphi %s137, %s137
                %s152 = sphi %s134, %s134
              $region43: #{mynet_forward.6} parent=39 // loop_header_branch
                %149 = sbr.rel (%p147) target = $region47
              $region44: #{mynet_forward.6} parent=39 // loop_body
                %v153 = vld [vmem:[%s151] sm:$0xf]
                %154 = vst [vmem:[%s152] sm:$0xf] %v153
                %v155 = vld [vmem:[%s151 + $0x4] sm:$0xf]
                %156 = vst [vmem:[%s152 + $0x4] sm:$0xf] %v155
                %v157 = vld [vmem:[%s151 + $0x8] sm:$0xf]
                %158 = vst [vmem:[%s152 + $0x8] sm:$0xf] %v157
                %v159 = vld [vmem:[%s151 + $0xc] sm:$0xf]
                %160 = vst [vmem:[%s152 + $0xc] sm:$0xf] %v159
                %v161 = vld [vmem:[%s151 + $0x10] sm:$0xf]
                %162 = vst [vmem:[%s152 + $0x10] sm:$0xf] %v161
                %v163 = vld [vmem:[%s151 + $0x14] sm:$0xf]
                %164 = vst [vmem:[%s152 + $0x14] sm:$0xf] %v163
                %v165 = vld [vmem:[%s151 + $0x18] sm:$0xf]
                %166 = vst [vmem:[%s152 + $0x18] sm:$0xf] %v165
                %v167 = vld [vmem:[%s151 + $0x1c] sm:$0xf]
                %168 = vst [vmem:[%s152 + $0x1c] sm:$0xf] %v167
                %v169 = vld [vmem:[%s151 + $0x20] sm:$0xf]
                %170 = vst [vmem:[%s152 + $0x20] sm:$0xf] %v169
                %v171 = vld [vmem:[%s151 + $0x24] sm:$0xf]
                %172 = vst [vmem:[%s152 + $0x24] sm:$0xf] %v171
                %v173 = vld [vmem:[%s151 + $0x28] sm:$0xf]
                %174 = vst [vmem:[%s152 + $0x28] sm:$0xf] %v173
                %v175 = vld [vmem:[%s151 + $0x2c] sm:$0xf]
                %176 = vst [vmem:[%s152 + $0x2c] sm:$0xf] %v175
                %v177 = vld [vmem:[%s151 + $0x30] sm:$0xf]
                %178 = vst [vmem:[%s152 + $0x30] sm:$0xf] %v177
                %v179 = vld [vmem:[%s151 + $0x34] sm:$0xf]
                %180 = vst [vmem:[%s152 + $0x34] sm:$0xf] %v179
                %v181 = vld [vmem:[%s151 + $0x38] sm:$0xf]
                %182 = vst [vmem:[%s152 + $0x38] sm:$0xf] %v181
                %v183 = vld [vmem:[%s151 + $0x3c] sm:$0xf]
                %184 = vst [vmem:[%s152 + $0x3c] sm:$0xf] %v183
                %v185 = vld [vmem:[%s151 + $0x40] sm:$0xf]
                %186 = vst [vmem:[%s152 + $0x40] sm:$0xf] %v185
                %v187 = vld [vmem:[%s151 + $0x44] sm:$0xf]
                %188 = vst [vmem:[%s152 + $0x44] sm:$0xf] %v187
                %v189 = vld [vmem:[%s151 + $0x48] sm:$0xf]
                %190 = vst [vmem:[%s152 + $0x48] sm:$0xf] %v189
                %v191 = vld [vmem:[%s151 + $0x4c] sm:$0xf]
                %192 = vst [vmem:[%s152 + $0x4c] sm:$0xf] %v191
                %v193 = vld [vmem:[%s151 + $0x50] sm:$0xf]
                %194 = vst [vmem:[%s152 + $0x50] sm:$0xf] %v193
                %v195 = vld [vmem:[%s151 + $0x54] sm:$0xf]
                %196 = vst [vmem:[%s152 + $0x54] sm:$0xf] %v195
                %v197 = vld [vmem:[%s151 + $0x58] sm:$0xf]
                %198 = vst [vmem:[%s152 + $0x58] sm:$0xf] %v197
                %v199 = vld [vmem:[%s151 + $0x5c] sm:$0xf]
                %200 = vst [vmem:[%s152 + $0x5c] sm:$0xf] %v199
                %v201 = vld [vmem:[%s151 + $0x60] sm:$0xf]
                %202 = vst [vmem:[%s152 + $0x60] sm:$0xf] %v201
                %v203 = vld [vmem:[%s151 + $0x64] sm:$0xf]
                %204 = vst [vmem:[%s152 + $0x64] sm:$0xf] %v203
                %v205 = vld [vmem:[%s151 + $0x68] sm:$0xf]
                %206 = vst [vmem:[%s152 + $0x68] sm:$0xf] %v205
                %v207 = vld [vmem:[%s151 + $0x6c] sm:$0xf]
                %208 = vst [vmem:[%s152 + $0x6c] sm:$0xf] %v207
                %v209 = vld [vmem:[%s151 + $0x70] sm:$0xf]
                %210 = vst [vmem:[%s152 + $0x70] sm:$0xf] %v209
                %v211 = vld [vmem:[%s151 + $0x74] sm:$0xf]
                %212 = vst [vmem:[%s152 + $0x74] sm:$0xf] %v211
                %v213 = vld [vmem:[%s151 + $0x78] sm:$0xf]
                %214 = vst [vmem:[%s152 + $0x78] sm:$0xf] %v213
                %v215 = vld [vmem:[%s151 + $0x7c] sm:$0xf]
                %216 = vst [vmem:[%s152 + $0x7c] sm:$0xf] %v215
                %v217 = vld [vmem:[%s151 + $0x80] sm:$0xf]
                %218 = vst [vmem:[%s152 + $0x80] sm:$0xf] %v217
                %v219 = vld [vmem:[%s151 + $0x84] sm:$0xf]
                %220 = vst [vmem:[%s152 + $0x84] sm:$0xf] %v219
                %v221 = vld [vmem:[%s151 + $0x88] sm:$0xf]
                %222 = vst [vmem:[%s152 + $0x88] sm:$0xf] %v221
                %v223 = vld [vmem:[%s151 + $0x8c] sm:$0xf]
                %224 = vst [vmem:[%s152 + $0x8c] sm:$0xf] %v223
                %v225 = vld [vmem:[%s151 + $0x90] sm:$0xf]
                %226 = vst [vmem:[%s152 + $0x90] sm:$0xf] %v225
                %v227 = vld [vmem:[%s151 + $0x94] sm:$0xf]
                %228 = vst [vmem:[%s152 + $0x94] sm:$0xf] %v227
                %v229 = vld [vmem:[%s151 + $0x98] sm:$0xf]
                %230 = vst [vmem:[%s152 + $0x98] sm:$0xf] %v229
                %v231 = vld [vmem:[%s151 + $0x9c] sm:$0xf]
                %232 = vst [vmem:[%s152 + $0x9c] sm:$0xf] %v231
                %v233 = vld [vmem:[%s151 + $0xa0] sm:$0xf]
                %234 = vst [vmem:[%s152 + $0xa0] sm:$0xf] %v233
                %v235 = vld [vmem:[%s151 + $0xa4] sm:$0xf]
                %236 = vst [vmem:[%s152 + $0xa4] sm:$0xf] %v235
                %v237 = vld [vmem:[%s151 + $0xa8] sm:$0xf]
                %238 = vst [vmem:[%s152 + $0xa8] sm:$0xf] %v237
                %v239 = vld [vmem:[%s151 + $0xac] sm:$0xf]
                %240 = vst [vmem:[%s152 + $0xac] sm:$0xf] %v239
                %v241 = vld [vmem:[%s151 + $0xb0] sm:$0xf]
                %242 = vst [vmem:[%s152 + $0xb0] sm:$0xf] %v241
                %v243 = vld [vmem:[%s151 + $0xb4] sm:$0xf]
                %244 = vst [vmem:[%s152 + $0xb4] sm:$0xf] %v243
                %v245 = vld [vmem:[%s151 + $0xb8] sm:$0xf]
                %246 = vst [vmem:[%s152 + $0xb8] sm:$0xf] %v245
                %v247 = vld [vmem:[%s151 + $0xbc] sm:$0xf]
                %248 = vst [vmem:[%s152 + $0xbc] sm:$0xf] %v247
                %v249 = vld [vmem:[%s151 + $0xc0] sm:$0xf]
                %250 = vst [vmem:[%s152 + $0xc0] sm:$0xf] %v249
                %v251 = vld [vmem:[%s151 + $0xc4] sm:$0xf]
                %252 = vst [vmem:[%s152 + $0xc4] sm:$0xf] %v251
                %v253 = vld [vmem:[%s151 + $0xc8] sm:$0xf]
                %254 = vst [vmem:[%s152 + $0xc8] sm:$0xf] %v253
                %v255 = vld [vmem:[%s151 + $0xcc] sm:$0xf]
                %256 = vst [vmem:[%s152 + $0xcc] sm:$0xf] %v255
                %v257 = vld [vmem:[%s151 + $0xd0] sm:$0xf]
                %258 = vst [vmem:[%s152 + $0xd0] sm:$0xf] %v257
                %v259 = vld [vmem:[%s151 + $0xd4] sm:$0xf]
                %260 = vst [vmem:[%s152 + $0xd4] sm:$0xf] %v259
                %v261 = vld [vmem:[%s151 + $0xd8] sm:$0xf]
                %262 = vst [vmem:[%s152 + $0xd8] sm:$0xf] %v261
                %v263 = vld [vmem:[%s151 + $0xdc] sm:$0xf]
                %264 = vst [vmem:[%s152 + $0xdc] sm:$0xf] %v263
                %v265 = vld [vmem:[%s151 + $0xe0] sm:$0xf]
                %266 = vst [vmem:[%s152 + $0xe0] sm:$0xf] %v265
                %v267 = vld [vmem:[%s151 + $0xe4] sm:$0xf]
                %268 = vst [vmem:[%s152 + $0xe4] sm:$0xf] %v267
                %v269 = vld [vmem:[%s151 + $0xe8] sm:$0xf]
                %270 = vst [vmem:[%s152 + $0xe8] sm:$0xf] %v269
                %v271 = vld [vmem:[%s151 + $0xec] sm:$0xf]
                %272 = vst [vmem:[%s152 + $0xec] sm:$0xf] %v271
                %v273 = vld [vmem:[%s151 + $0xf0] sm:$0xf]
                %274 = vst [vmem:[%s152 + $0xf0] sm:$0xf] %v273
                %v275 = vld [vmem:[%s151 + $0xf4] sm:$0xf]
                %276 = vst [vmem:[%s152 + $0xf4] sm:$0xf] %v275
                %v277 = vld [vmem:[%s151 + $0xf8] sm:$0xf]
                %278 = vst [vmem:[%s152 + $0xf8] sm:$0xf] %v277
                %v279 = vld [vmem:[%s151 + $0xfc] sm:$0xf]
                %280 = vst [vmem:[%s152 + $0xfc] sm:$0xf] %v279
                %v281 = vld [vmem:[%s151 + $0x200] sm:$0xf]
                %282 = vst [vmem:[%s152 + $0x100] sm:$0xf] %v281
                %v283 = vld [vmem:[%s151 + $0x204] sm:$0xf]
                %284 = vst [vmem:[%s152 + $0x104] sm:$0xf] %v283
                %v285 = vld [vmem:[%s151 + $0x208] sm:$0xf]
                %286 = vst [vmem:[%s152 + $0x108] sm:$0xf] %v285
                %v287 = vld [vmem:[%s151 + $0x20c] sm:$0xf]
                %288 = vst [vmem:[%s152 + $0x10c] sm:$0xf] %v287
                %v289 = vld [vmem:[%s151 + $0x210] sm:$0xf]
                %290 = vst [vmem:[%s152 + $0x110] sm:$0xf] %v289
                %v291 = vld [vmem:[%s151 + $0x214] sm:$0xf]
                %292 = vst [vmem:[%s152 + $0x114] sm:$0xf] %v291
                %v293 = vld [vmem:[%s151 + $0x218] sm:$0xf]
                %294 = vst [vmem:[%s152 + $0x118] sm:$0xf] %v293
                %v295 = vld [vmem:[%s151 + $0x21c] sm:$0xf]
                %296 = vst [vmem:[%s152 + $0x11c] sm:$0xf] %v295
                %v297 = vld [vmem:[%s151 + $0x220] sm:$0xf]
                %298 = vst [vmem:[%s152 + $0x120] sm:$0xf] %v297
                %v299 = vld [vmem:[%s151 + $0x224] sm:$0xf]
                %300 = vst [vmem:[%s152 + $0x124] sm:$0xf] %v299
                %v301 = vld [vmem:[%s151 + $0x228] sm:$0xf]
                %302 = vst [vmem:[%s152 + $0x128] sm:$0xf] %v301
                %v303 = vld [vmem:[%s151 + $0x22c] sm:$0xf]
                %304 = vst [vmem:[%s152 + $0x12c] sm:$0xf] %v303
                %v305 = vld [vmem:[%s151 + $0x230] sm:$0xf]
                %306 = vst [vmem:[%s152 + $0x130] sm:$0xf] %v305
                %v307 = vld [vmem:[%s151 + $0x234] sm:$0xf]
                %308 = vst [vmem:[%s152 + $0x134] sm:$0xf] %v307
                %v309 = vld [vmem:[%s151 + $0x238] sm:$0xf]
                %310 = vst [vmem:[%s152 + $0x138] sm:$0xf] %v309
                %v311 = vld [vmem:[%s151 + $0x23c] sm:$0xf]
                %312 = vst [vmem:[%s152 + $0x13c] sm:$0xf] %v311
                %v313 = vld [vmem:[%s151 + $0x240] sm:$0xf]
                %314 = vst [vmem:[%s152 + $0x140] sm:$0xf] %v313
                %v315 = vld [vmem:[%s151 + $0x244] sm:$0xf]
                %316 = vst [vmem:[%s152 + $0x144] sm:$0xf] %v315
                %v317 = vld [vmem:[%s151 + $0x248] sm:$0xf]
                %318 = vst [vmem:[%s152 + $0x148] sm:$0xf] %v317
                %v319 = vld [vmem:[%s151 + $0x24c] sm:$0xf]
                %320 = vst [vmem:[%s152 + $0x14c] sm:$0xf] %v319
                %v321 = vld [vmem:[%s151 + $0x250] sm:$0xf]
                %322 = vst [vmem:[%s152 + $0x150] sm:$0xf] %v321
                %v323 = vld [vmem:[%s151 + $0x254] sm:$0xf]
                %324 = vst [vmem:[%s152 + $0x154] sm:$0xf] %v323
                %v325 = vld [vmem:[%s151 + $0x258] sm:$0xf]
                %326 = vst [vmem:[%s152 + $0x158] sm:$0xf] %v325
                %v327 = vld [vmem:[%s151 + $0x25c] sm:$0xf]
                %328 = vst [vmem:[%s152 + $0x15c] sm:$0xf] %v327
                %v329 = vld [vmem:[%s151 + $0x260] sm:$0xf]
                %330 = vst [vmem:[%s152 + $0x160] sm:$0xf] %v329
                %v331 = vld [vmem:[%s151 + $0x264] sm:$0xf]
                %332 = vst [vmem:[%s152 + $0x164] sm:$0xf] %v331
                %v333 = vld [vmem:[%s151 + $0x268] sm:$0xf]
                %334 = vst [vmem:[%s152 + $0x168] sm:$0xf] %v333
                %v335 = vld [vmem:[%s151 + $0x26c] sm:$0xf]
                %336 = vst [vmem:[%s152 + $0x16c] sm:$0xf] %v335
                %v337 = vld [vmem:[%s151 + $0x270] sm:$0xf]
                %338 = vst [vmem:[%s152 + $0x170] sm:$0xf] %v337
                %v339 = vld [vmem:[%s151 + $0x274] sm:$0xf]
                %340 = vst [vmem:[%s152 + $0x174] sm:$0xf] %v339
                %v341 = vld [vmem:[%s151 + $0x278] sm:$0xf]
                %342 = vst [vmem:[%s152 + $0x178] sm:$0xf] %v341
                %v343 = vld [vmem:[%s151 + $0x27c] sm:$0xf]
                %344 = vst [vmem:[%s152 + $0x17c] sm:$0xf] %v343
                %v345 = vld [vmem:[%s151 + $0x280] sm:$0xf]
                %346 = vst [vmem:[%s152 + $0x180] sm:$0xf] %v345
                %v347 = vld [vmem:[%s151 + $0x284] sm:$0xf]
                %348 = vst [vmem:[%s152 + $0x184] sm:$0xf] %v347
                %v349 = vld [vmem:[%s151 + $0x288] sm:$0xf]
                %350 = vst [vmem:[%s152 + $0x188] sm:$0xf] %v349
                %v351 = vld [vmem:[%s151 + $0x28c] sm:$0xf]
                %352 = vst [vmem:[%s152 + $0x18c] sm:$0xf] %v351
                %v353 = vld [vmem:[%s151 + $0x290] sm:$0xf]
                %354 = vst [vmem:[%s152 + $0x190] sm:$0xf] %v353
                %v355 = vld [vmem:[%s151 + $0x294] sm:$0xf]
                %356 = vst [vmem:[%s152 + $0x194] sm:$0xf] %v355
                %v357 = vld [vmem:[%s151 + $0x298] sm:$0xf]
                %358 = vst [vmem:[%s152 + $0x198] sm:$0xf] %v357
                %v359 = vld [vmem:[%s151 + $0x29c] sm:$0xf]
                %360 = vst [vmem:[%s152 + $0x19c] sm:$0xf] %v359
                %v361 = vld [vmem:[%s151 + $0x2a0] sm:$0xf]
                %362 = vst [vmem:[%s152 + $0x1a0] sm:$0xf] %v361
                %v363 = vld [vmem:[%s151 + $0x2a4] sm:$0xf]
                %364 = vst [vmem:[%s152 + $0x1a4] sm:$0xf] %v363
                %v365 = vld [vmem:[%s151 + $0x2a8] sm:$0xf]
                %366 = vst [vmem:[%s152 + $0x1a8] sm:$0xf] %v365
                %v367 = vld [vmem:[%s151 + $0x2ac] sm:$0xf]
                %368 = vst [vmem:[%s152 + $0x1ac] sm:$0xf] %v367
                %v369 = vld [vmem:[%s151 + $0x2b0] sm:$0xf]
                %370 = vst [vmem:[%s152 + $0x1b0] sm:$0xf] %v369
                %v371 = vld [vmem:[%s151 + $0x2b4] sm:$0xf]
                %372 = vst [vmem:[%s152 + $0x1b4] sm:$0xf] %v371
                %v373 = vld [vmem:[%s151 + $0x2b8] sm:$0xf]
                %374 = vst [vmem:[%s152 + $0x1b8] sm:$0xf] %v373
                %v375 = vld [vmem:[%s151 + $0x2bc] sm:$0xf]
                %376 = vst [vmem:[%s152 + $0x1bc] sm:$0xf] %v375
                %v377 = vld [vmem:[%s151 + $0x2c0] sm:$0xf]
                %378 = vst [vmem:[%s152 + $0x1c0] sm:$0xf] %v377
                %v379 = vld [vmem:[%s151 + $0x2c4] sm:$0xf]
                %380 = vst [vmem:[%s152 + $0x1c4] sm:$0xf] %v379
                %v381 = vld [vmem:[%s151 + $0x2c8] sm:$0xf]
                %382 = vst [vmem:[%s152 + $0x1c8] sm:$0xf] %v381
                %v383 = vld [vmem:[%s151 + $0x2cc] sm:$0xf]
                %384 = vst [vmem:[%s152 + $0x1cc] sm:$0xf] %v383
                %v385 = vld [vmem:[%s151 + $0x2d0] sm:$0xf]
                %386 = vst [vmem:[%s152 + $0x1d0] sm:$0xf] %v385
                %v387 = vld [vmem:[%s151 + $0x2d4] sm:$0xf]
                %388 = vst [vmem:[%s152 + $0x1d4] sm:$0xf] %v387
                %v389 = vld [vmem:[%s151 + $0x2d8] sm:$0xf]
                %390 = vst [vmem:[%s152 + $0x1d8] sm:$0xf] %v389
                %v391 = vld [vmem:[%s151 + $0x2dc] sm:$0xf]
                %392 = vst [vmem:[%s152 + $0x1dc] sm:$0xf] %v391
                %v393 = vld [vmem:[%s151 + $0x2e0] sm:$0xf]
                %394 = vst [vmem:[%s152 + $0x1e0] sm:$0xf] %v393
                %v395 = vld [vmem:[%s151 + $0x2e4] sm:$0xf]
                %396 = vst [vmem:[%s152 + $0x1e4] sm:$0xf] %v395
                %v397 = vld [vmem:[%s151 + $0x2e8] sm:$0xf]
                %398 = vst [vmem:[%s152 + $0x1e8] sm:$0xf] %v397
                %v399 = vld [vmem:[%s151 + $0x2ec] sm:$0xf]
                %400 = vst [vmem:[%s152 + $0x1ec] sm:$0xf] %v399
                %v401 = vld [vmem:[%s151 + $0x2f0] sm:$0xf]
                %402 = vst [vmem:[%s152 + $0x1f0] sm:$0xf] %v401
                %v403 = vld [vmem:[%s151 + $0x2f4] sm:$0xf]
                %404 = vst [vmem:[%s152 + $0x1f4] sm:$0xf] %v403
                %v405 = vld [vmem:[%s151 + $0x2f8] sm:$0xf]
                %406 = vst [vmem:[%s152 + $0x1f8] sm:$0xf] %v405
                %v407 = vld [vmem:[%s151 + $0x2fc] sm:$0xf]
                %408 = vst [vmem:[%s152 + $0x1fc] sm:$0xf] %v407
                %v409 = vld [vmem:[%s151 + $0x400] sm:$0xf]
                %410 = vst [vmem:[%s152 + $0x200] sm:$0xf] %v409
                %v411 = vld [vmem:[%s151 + $0x404] sm:$0xf]
                %412 = vst [vmem:[%s152 + $0x204] sm:$0xf] %v411
                %v413 = vld [vmem:[%s151 + $0x408] sm:$0xf]
                %414 = vst [vmem:[%s152 + $0x208] sm:$0xf] %v413
                %v415 = vld [vmem:[%s151 + $0x40c] sm:$0xf]
                %416 = vst [vmem:[%s152 + $0x20c] sm:$0xf] %v415
                %v417 = vld [vmem:[%s151 + $0x410] sm:$0xf]
                %418 = vst [vmem:[%s152 + $0x210] sm:$0xf] %v417
                %v419 = vld [vmem:[%s151 + $0x414] sm:$0xf]
                %420 = vst [vmem:[%s152 + $0x214] sm:$0xf] %v419
                %v421 = vld [vmem:[%s151 + $0x418] sm:$0xf]
                %422 = vst [vmem:[%s152 + $0x218] sm:$0xf] %v421
                %v423 = vld [vmem:[%s151 + $0x41c] sm:$0xf]
                %424 = vst [vmem:[%s152 + $0x21c] sm:$0xf] %v423
                %v425 = vld [vmem:[%s151 + $0x420] sm:$0xf]
                %426 = vst [vmem:[%s152 + $0x220] sm:$0xf] %v425
                %v427 = vld [vmem:[%s151 + $0x424] sm:$0xf]
                %428 = vst [vmem:[%s152 + $0x224] sm:$0xf] %v427
                %v429 = vld [vmem:[%s151 + $0x428] sm:$0xf]
                %430 = vst [vmem:[%s152 + $0x228] sm:$0xf] %v429
                %v431 = vld [vmem:[%s151 + $0x42c] sm:$0xf]
                %432 = vst [vmem:[%s152 + $0x22c] sm:$0xf] %v431
                %v433 = vld [vmem:[%s151 + $0x430] sm:$0xf]
                %434 = vst [vmem:[%s152 + $0x230] sm:$0xf] %v433
                %v435 = vld [vmem:[%s151 + $0x434] sm:$0xf]
                %436 = vst [vmem:[%s152 + $0x234] sm:$0xf] %v435
                %v437 = vld [vmem:[%s151 + $0x438] sm:$0xf]
                %438 = vst [vmem:[%s152 + $0x238] sm:$0xf] %v437
                %v439 = vld [vmem:[%s151 + $0x43c] sm:$0xf]
                %440 = vst [vmem:[%s152 + $0x23c] sm:$0xf] %v439
                %v441 = vld [vmem:[%s151 + $0x440] sm:$0xf]
                %442 = vst [vmem:[%s152 + $0x240] sm:$0xf] %v441
                %v443 = vld [vmem:[%s151 + $0x444] sm:$0xf]
                %444 = vst [vmem:[%s152 + $0x244] sm:$0xf] %v443
                %v445 = vld [vmem:[%s151 + $0x448] sm:$0xf]
                %446 = vst [vmem:[%s152 + $0x248] sm:$0xf] %v445
                %v447 = vld [vmem:[%s151 + $0x44c] sm:$0xf]
                %448 = vst [vmem:[%s152 + $0x24c] sm:$0xf] %v447
                %v449 = vld [vmem:[%s151 + $0x450] sm:$0xf]
                %450 = vst [vmem:[%s152 + $0x250] sm:$0xf] %v449
                %v451 = vld [vmem:[%s151 + $0x454] sm:$0xf]
                %452 = vst [vmem:[%s152 + $0x254] sm:$0xf] %v451
                %v453 = vld [vmem:[%s151 + $0x458] sm:$0xf]
                %454 = vst [vmem:[%s152 + $0x258] sm:$0xf] %v453
                %v455 = vld [vmem:[%s151 + $0x45c] sm:$0xf]
                %456 = vst [vmem:[%s152 + $0x25c] sm:$0xf] %v455
                %v457 = vld [vmem:[%s151 + $0x460] sm:$0xf]
                %458 = vst [vmem:[%s152 + $0x260] sm:$0xf] %v457
                %v459 = vld [vmem:[%s151 + $0x464] sm:$0xf]
                %460 = vst [vmem:[%s152 + $0x264] sm:$0xf] %v459
                %v461 = vld [vmem:[%s151 + $0x468] sm:$0xf]
                %462 = vst [vmem:[%s152 + $0x268] sm:$0xf] %v461
                %v463 = vld [vmem:[%s151 + $0x46c] sm:$0xf]
                %464 = vst [vmem:[%s152 + $0x26c] sm:$0xf] %v463
                %v465 = vld [vmem:[%s151 + $0x470] sm:$0xf]
                %466 = vst [vmem:[%s152 + $0x270] sm:$0xf] %v465
                %v467 = vld [vmem:[%s151 + $0x474] sm:$0xf]
                %468 = vst [vmem:[%s152 + $0x274] sm:$0xf] %v467
                %v469 = vld [vmem:[%s151 + $0x478] sm:$0xf]
                %470 = vst [vmem:[%s152 + $0x278] sm:$0xf] %v469
                %v471 = vld [vmem:[%s151 + $0x47c] sm:$0xf]
                %472 = vst [vmem:[%s152 + $0x27c] sm:$0xf] %v471
                %v473 = vld [vmem:[%s151 + $0x480] sm:$0xf]
                %474 = vst [vmem:[%s152 + $0x280] sm:$0xf] %v473
                %v475 = vld [vmem:[%s151 + $0x484] sm:$0xf]
                %476 = vst [vmem:[%s152 + $0x284] sm:$0xf] %v475
                %v477 = vld [vmem:[%s151 + $0x488] sm:$0xf]
                %478 = vst [vmem:[%s152 + $0x288] sm:$0xf] %v477
                %v479 = vld [vmem:[%s151 + $0x48c] sm:$0xf]
                %480 = vst [vmem:[%s152 + $0x28c] sm:$0xf] %v479
                %v481 = vld [vmem:[%s151 + $0x490] sm:$0xf]
                %482 = vst [vmem:[%s152 + $0x290] sm:$0xf] %v481
                %v483 = vld [vmem:[%s151 + $0x494] sm:$0xf]
                %484 = vst [vmem:[%s152 + $0x294] sm:$0xf] %v483
                %v485 = vld [vmem:[%s151 + $0x498] sm:$0xf]
                %486 = vst [vmem:[%s152 + $0x298] sm:$0xf] %v485
                %v487 = vld [vmem:[%s151 + $0x49c] sm:$0xf]
                %488 = vst [vmem:[%s152 + $0x29c] sm:$0xf] %v487
                %v489 = vld [vmem:[%s151 + $0x4a0] sm:$0xf]
                %490 = vst [vmem:[%s152 + $0x2a0] sm:$0xf] %v489
                %v491 = vld [vmem:[%s151 + $0x4a4] sm:$0xf]
                %492 = vst [vmem:[%s152 + $0x2a4] sm:$0xf] %v491
                %v493 = vld [vmem:[%s151 + $0x4a8] sm:$0xf]
                %494 = vst [vmem:[%s152 + $0x2a8] sm:$0xf] %v493
                %v495 = vld [vmem:[%s151 + $0x4ac] sm:$0xf]
                %496 = vst [vmem:[%s152 + $0x2ac] sm:$0xf] %v495
                %v497 = vld [vmem:[%s151 + $0x4b0] sm:$0xf]
                %498 = vst [vmem:[%s152 + $0x2b0] sm:$0xf] %v497
                %v499 = vld [vmem:[%s151 + $0x4b4] sm:$0xf]
                %500 = vst [vmem:[%s152 + $0x2b4] sm:$0xf] %v499
                %v501 = vld [vmem:[%s151 + $0x4b8] sm:$0xf]
                %502 = vst [vmem:[%s152 + $0x2b8] sm:$0xf] %v501
                %v503 = vld [vmem:[%s151 + $0x4bc] sm:$0xf]
                %504 = vst [vmem:[%s152 + $0x2bc] sm:$0xf] %v503
                %v505 = vld [vmem:[%s151 + $0x4c0] sm:$0xf]
                %506 = vst [vmem:[%s152 + $0x2c0] sm:$0xf] %v505
                %v507 = vld [vmem:[%s151 + $0x4c4] sm:$0xf]
                %508 = vst [vmem:[%s152 + $0x2c4] sm:$0xf] %v507
                %v509 = vld [vmem:[%s151 + $0x4c8] sm:$0xf]
                %510 = vst [vmem:[%s152 + $0x2c8] sm:$0xf] %v509
                %v511 = vld [vmem:[%s151 + $0x4cc] sm:$0xf]
                %512 = vst [vmem:[%s152 + $0x2cc] sm:$0xf] %v511
                %v513 = vld [vmem:[%s151 + $0x4d0] sm:$0xf]
                %514 = vst [vmem:[%s152 + $0x2d0] sm:$0xf] %v513
                %v515 = vld [vmem:[%s151 + $0x4d4] sm:$0xf]
                %516 = vst [vmem:[%s152 + $0x2d4] sm:$0xf] %v515
                %v517 = vld [vmem:[%s151 + $0x4d8] sm:$0xf]
                %518 = vst [vmem:[%s152 + $0x2d8] sm:$0xf] %v517
                %v519 = vld [vmem:[%s151 + $0x4dc] sm:$0xf]
                %520 = vst [vmem:[%s152 + $0x2dc] sm:$0xf] %v519
                %v521 = vld [vmem:[%s151 + $0x4e0] sm:$0xf]
                %522 = vst [vmem:[%s152 + $0x2e0] sm:$0xf] %v521
                %v523 = vld [vmem:[%s151 + $0x4e4] sm:$0xf]
                %524 = vst [vmem:[%s152 + $0x2e4] sm:$0xf] %v523
                %v525 = vld [vmem:[%s151 + $0x4e8] sm:$0xf]
                %526 = vst [vmem:[%s152 + $0x2e8] sm:$0xf] %v525
                %v527 = vld [vmem:[%s151 + $0x4ec] sm:$0xf]
                %528 = vst [vmem:[%s152 + $0x2ec] sm:$0xf] %v527
                %v529 = vld [vmem:[%s151 + $0x4f0] sm:$0xf]
                %530 = vst [vmem:[%s152 + $0x2f0] sm:$0xf] %v529
                %v531 = vld [vmem:[%s151 + $0x4f4] sm:$0xf]
                %532 = vst [vmem:[%s152 + $0x2f4] sm:$0xf] %v531
                %v533 = vld [vmem:[%s151 + $0x4f8] sm:$0xf]
                %534 = vst [vmem:[%s152 + $0x2f8] sm:$0xf] %v533
                %v535 = vld [vmem:[%s151 + $0x4fc] sm:$0xf]
                %536 = vst [vmem:[%s152 + $0x2fc] sm:$0xf] %v535
                %v537 = vld [vmem:[%s151 + $0x600] sm:$0xf]
                %538 = vst [vmem:[%s152 + $0x300] sm:$0xf] %v537
                %v539 = vld [vmem:[%s151 + $0x604] sm:$0xf]
                %540 = vst [vmem:[%s152 + $0x304] sm:$0xf] %v539
                %v541 = vld [vmem:[%s151 + $0x608] sm:$0xf]
                %542 = vst [vmem:[%s152 + $0x308] sm:$0xf] %v541
                %v543 = vld [vmem:[%s151 + $0x60c] sm:$0xf]
                %544 = vst [vmem:[%s152 + $0x30c] sm:$0xf] %v543
                %v545 = vld [vmem:[%s151 + $0x610] sm:$0xf]
                %546 = vst [vmem:[%s152 + $0x310] sm:$0xf] %v545
                %v547 = vld [vmem:[%s151 + $0x614] sm:$0xf]
                %548 = vst [vmem:[%s152 + $0x314] sm:$0xf] %v547
                %v549 = vld [vmem:[%s151 + $0x618] sm:$0xf]
                %550 = vst [vmem:[%s152 + $0x318] sm:$0xf] %v549
                %v551 = vld [vmem:[%s151 + $0x61c] sm:$0xf]
                %552 = vst [vmem:[%s152 + $0x31c] sm:$0xf] %v551
                %v553 = vld [vmem:[%s151 + $0x620] sm:$0xf]
                %554 = vst [vmem:[%s152 + $0x320] sm:$0xf] %v553
                %v555 = vld [vmem:[%s151 + $0x624] sm:$0xf]
                %556 = vst [vmem:[%s152 + $0x324] sm:$0xf] %v555
                %v557 = vld [vmem:[%s151 + $0x628] sm:$0xf]
                %558 = vst [vmem:[%s152 + $0x328] sm:$0xf] %v557
                %v559 = vld [vmem:[%s151 + $0x62c] sm:$0xf]
                %560 = vst [vmem:[%s152 + $0x32c] sm:$0xf] %v559
                %v561 = vld [vmem:[%s151 + $0x630] sm:$0xf]
                %562 = vst [vmem:[%s152 + $0x330] sm:$0xf] %v561
                %v563 = vld [vmem:[%s151 + $0x634] sm:$0xf]
                %564 = vst [vmem:[%s152 + $0x334] sm:$0xf] %v563
                %v565 = vld [vmem:[%s151 + $0x638] sm:$0xf]
                %566 = vst [vmem:[%s152 + $0x338] sm:$0xf] %v565
                %v567 = vld [vmem:[%s151 + $0x63c] sm:$0xf]
                %568 = vst [vmem:[%s152 + $0x33c] sm:$0xf] %v567
                %v569 = vld [vmem:[%s151 + $0x640] sm:$0xf]
                %570 = vst [vmem:[%s152 + $0x340] sm:$0xf] %v569
                %v571 = vld [vmem:[%s151 + $0x644] sm:$0xf]
                %572 = vst [vmem:[%s152 + $0x344] sm:$0xf] %v571
                %v573 = vld [vmem:[%s151 + $0x648] sm:$0xf]
                %574 = vst [vmem:[%s152 + $0x348] sm:$0xf] %v573
                %v575 = vld [vmem:[%s151 + $0x64c] sm:$0xf]
                %576 = vst [vmem:[%s152 + $0x34c] sm:$0xf] %v575
                %v577 = vld [vmem:[%s151 + $0x650] sm:$0xf]
                %578 = vst [vmem:[%s152 + $0x350] sm:$0xf] %v577
                %v579 = vld [vmem:[%s151 + $0x654] sm:$0xf]
                %580 = vst [vmem:[%s152 + $0x354] sm:$0xf] %v579
                %v581 = vld [vmem:[%s151 + $0x658] sm:$0xf]
                %582 = vst [vmem:[%s152 + $0x358] sm:$0xf] %v581
                %v583 = vld [vmem:[%s151 + $0x65c] sm:$0xf]
                %584 = vst [vmem:[%s152 + $0x35c] sm:$0xf] %v583
                %v585 = vld [vmem:[%s151 + $0x660] sm:$0xf]
                %586 = vst [vmem:[%s152 + $0x360] sm:$0xf] %v585
                %v587 = vld [vmem:[%s151 + $0x664] sm:$0xf]
                %588 = vst [vmem:[%s152 + $0x364] sm:$0xf] %v587
                %v589 = vld [vmem:[%s151 + $0x668] sm:$0xf]
                %590 = vst [vmem:[%s152 + $0x368] sm:$0xf] %v589
                %v591 = vld [vmem:[%s151 + $0x66c] sm:$0xf]
                %592 = vst [vmem:[%s152 + $0x36c] sm:$0xf] %v591
                %v593 = vld [vmem:[%s151 + $0x670] sm:$0xf]
                %594 = vst [vmem:[%s152 + $0x370] sm:$0xf] %v593
                %v595 = vld [vmem:[%s151 + $0x674] sm:$0xf]
                %596 = vst [vmem:[%s152 + $0x374] sm:$0xf] %v595
                %v597 = vld [vmem:[%s151 + $0x678] sm:$0xf]
                %598 = vst [vmem:[%s152 + $0x378] sm:$0xf] %v597
                %v599 = vld [vmem:[%s151 + $0x67c] sm:$0xf]
                %600 = vst [vmem:[%s152 + $0x37c] sm:$0xf] %v599
                %v601 = vld [vmem:[%s151 + $0x680] sm:$0xf]
                %602 = vst [vmem:[%s152 + $0x380] sm:$0xf] %v601
                %v603 = vld [vmem:[%s151 + $0x684] sm:$0xf]
                %604 = vst [vmem:[%s152 + $0x384] sm:$0xf] %v603
                %v605 = vld [vmem:[%s151 + $0x688] sm:$0xf]
                %606 = vst [vmem:[%s152 + $0x388] sm:$0xf] %v605
                %v607 = vld [vmem:[%s151 + $0x68c] sm:$0xf]
                %608 = vst [vmem:[%s152 + $0x38c] sm:$0xf] %v607
                %v609 = vld [vmem:[%s151 + $0x690] sm:$0xf]
                %610 = vst [vmem:[%s152 + $0x390] sm:$0xf] %v609
                %v611 = vld [vmem:[%s151 + $0x694] sm:$0xf]
                %612 = vst [vmem:[%s152 + $0x394] sm:$0xf] %v611
                %v613 = vld [vmem:[%s151 + $0x698] sm:$0xf]
                %614 = vst [vmem:[%s152 + $0x398] sm:$0xf] %v613
                %v615 = vld [vmem:[%s151 + $0x69c] sm:$0xf]
                %616 = vst [vmem:[%s152 + $0x39c] sm:$0xf] %v615
                %v617 = vld [vmem:[%s151 + $0x6a0] sm:$0xf]
                %618 = vst [vmem:[%s152 + $0x3a0] sm:$0xf] %v617
                %v619 = vld [vmem:[%s151 + $0x6a4] sm:$0xf]
                %620 = vst [vmem:[%s152 + $0x3a4] sm:$0xf] %v619
                %v621 = vld [vmem:[%s151 + $0x6a8] sm:$0xf]
                %622 = vst [vmem:[%s152 + $0x3a8] sm:$0xf] %v621
                %v623 = vld [vmem:[%s151 + $0x6ac] sm:$0xf]
                %624 = vst [vmem:[%s152 + $0x3ac] sm:$0xf] %v623
                %v625 = vld [vmem:[%s151 + $0x6b0] sm:$0xf]
                %626 = vst [vmem:[%s152 + $0x3b0] sm:$0xf] %v625
                %v627 = vld [vmem:[%s151 + $0x6b4] sm:$0xf]
                %628 = vst [vmem:[%s152 + $0x3b4] sm:$0xf] %v627
                %v629 = vld [vmem:[%s151 + $0x6b8] sm:$0xf]
                %630 = vst [vmem:[%s152 + $0x3b8] sm:$0xf] %v629
                %v631 = vld [vmem:[%s151 + $0x6bc] sm:$0xf]
                %632 = vst [vmem:[%s152 + $0x3bc] sm:$0xf] %v631
                %v633 = vld [vmem:[%s151 + $0x6c0] sm:$0xf]
                %634 = vst [vmem:[%s152 + $0x3c0] sm:$0xf] %v633
                %v635 = vld [vmem:[%s151 + $0x6c4] sm:$0xf]
                %636 = vst [vmem:[%s152 + $0x3c4] sm:$0xf] %v635
                %v637 = vld [vmem:[%s151 + $0x6c8] sm:$0xf]
                %638 = vst [vmem:[%s152 + $0x3c8] sm:$0xf] %v637
                %v639 = vld [vmem:[%s151 + $0x6cc] sm:$0xf]
                %640 = vst [vmem:[%s152 + $0x3cc] sm:$0xf] %v639
                %v641 = vld [vmem:[%s151 + $0x6d0] sm:$0xf]
                %642 = vst [vmem:[%s152 + $0x3d0] sm:$0xf] %v641
                %v643 = vld [vmem:[%s151 + $0x6d4] sm:$0xf]
                %644 = vst [vmem:[%s152 + $0x3d4] sm:$0xf] %v643
                %v645 = vld [vmem:[%s151 + $0x6d8] sm:$0xf]
                %646 = vst [vmem:[%s152 + $0x3d8] sm:$0xf] %v645
                %v647 = vld [vmem:[%s151 + $0x6dc] sm:$0xf]
                %648 = vst [vmem:[%s152 + $0x3dc] sm:$0xf] %v647
                %v649 = vld [vmem:[%s151 + $0x6e0] sm:$0xf]
                %650 = vst [vmem:[%s152 + $0x3e0] sm:$0xf] %v649
                %v651 = vld [vmem:[%s151 + $0x6e4] sm:$0xf]
                %652 = vst [vmem:[%s152 + $0x3e4] sm:$0xf] %v651
                %v653 = vld [vmem:[%s151 + $0x6e8] sm:$0xf]
                %654 = vst [vmem:[%s152 + $0x3e8] sm:$0xf] %v653
                %v655 = vld [vmem:[%s151 + $0x6ec] sm:$0xf]
                %656 = vst [vmem:[%s152 + $0x3ec] sm:$0xf] %v655
                %v657 = vld [vmem:[%s151 + $0x6f0] sm:$0xf]
                %658 = vst [vmem:[%s152 + $0x3f0] sm:$0xf] %v657
                %v659 = vld [vmem:[%s151 + $0x6f4] sm:$0xf]
                %660 = vst [vmem:[%s152 + $0x3f4] sm:$0xf] %v659
                %v661 = vld [vmem:[%s151 + $0x6f8] sm:$0xf]
                %662 = vst [vmem:[%s152 + $0x3f8] sm:$0xf] %v661
                %v663 = vld [vmem:[%s151 + $0x6fc] sm:$0xf]
                %664 = vst [vmem:[%s152 + $0x3fc] sm:$0xf] %v663
              $region45: #{mynet_forward.6} parent=39 // loop_footer
                %s150 = sadd.s32 1, %s146
              $region46: #{mynet_forward.6} parent=39 // loop_footer_branch
                %145 = sbr.rel target = $region42
              $region47: #{mynet_forward.6} parent=39 // loop_exit
                _
            $region40: #{mynet_forward.6} parent=31 // pred_fallthru
              _
          $region32: #{mynet_forward.6} parent=27 // pred_fallthru
            _
          %1196 = vnop
        $region28: #{mynet_forward.6} parent=23 // pred_fallthru
          _
      $region24: #{mynet_forward.6} parent=5 // pred_fallthru
        _
      %p1197 = scmp.le.s32.totalorder 1, %s9
      %p1198 = scmp.lt.s32.totalorder %s9, 3
      %p1199 = pnand %p1197, %p1198
      %p1200 = pneg %p1199
      // Predicated region
      $region66: #{mynet_forward.6} parent=5 // pred_check
        _
      $region67: #{mynet_forward.6} parent=5 // pred_check_branch
        %1202 = sbr.rel (%p1199) target = $region69
      $region68: #{mynet_forward.6} parent=5 // pred_region
        %s1203 = ssub.s32 %s9, 1
        %s1204 = sand.u32 %s22, 1
        %s1205 = sand.u32 %s22, 1
        %s1206 = smul.addr %s1205, 1024
        %s1207 = scalar_lea.vmem [#allocation2], %s1206
        // Predicated region
        $region70: #{mynet_forward.6} parent=68 // pred_check
          %p1208 = pneg %p35
        $region71: #{mynet_forward.6} parent=68 // pred_check_branch
          %1210 = sbr.rel (%p1208) target = $region73
        $region72: #{mynet_forward.6} parent=68 // pred_region
          _
        $region73: #{mynet_forward.6} parent=68 // pred_fallthru
          _
        %s1211 = sand.u32 %s22, 1
        %s1212 = sand.u32 %s22, 1
        %s1213 = smul.addr %s1212, 1024
        %s1214 = scalar_lea.vmem [#allocation2], %s1213
        %p1215 = pneg %p35
        %p1216 = pneg %p32
        %p1217 = pneg %p56
        %p1218 = pneg %p53
        %p1219 = pneg %p77
        %p1220 = pneg %p74
        %p1221 = pneg %p103
        %p1222 = pneg %p100
        %s1223 = smul.u32 64, %s14
        %p1224 = scmp.lt.s32.totalorder %s1223, 127
        %s1225 = scalar_select %p1224, %s1223, 127
        %s1226 = smul.addr %s1225, 4
        %s1227 = scalar_lea.vmem %s3, %s1226
        %s1228 = smul.u32 64, %s14
        %s1229 = smul.u32 64, %s14
        %p1230 = scmp.lt.s32.totalorder %s1229, 127
        %s1231 = scalar_select %p1230, %s1229, 127
        %s1232 = smul.addr %s1231, 4
        %s1233 = scalar_lea.vmem %s3, %s1232
        %s1234 = smul.u32 64, %s14
        %v1236 = vld [vmem:[%s1207] sm:$0xf]
        %v1237 = vld [vmem:[%s1207 + $0x4] sm:$0xf]
        %v1238 = vld [vmem:[%s1207 + $0x8] sm:$0xf]
        %v1239 = vld [vmem:[%s1207 + $0xc] sm:$0xf]
        %v1240 = vld [vmem:[%s1207 + $0x10] sm:$0xf]
        %v1241 = vld [vmem:[%s1207 + $0x14] sm:$0xf]
        %v1242 = vld [vmem:[%s1207 + $0x18] sm:$0xf]
        %v1243 = vld [vmem:[%s1207 + $0x1c] sm:$0xf]
        %v1244 = vld [vmem:[%s1207 + $0x20] sm:$0xf]
        %v1245 = vld [vmem:[%s1207 + $0x24] sm:$0xf]
        %v1246 = vld [vmem:[%s1207 + $0x28] sm:$0xf]
        %v1247 = vld [vmem:[%s1207 + $0x2c] sm:$0xf]
        %v1248 = vld [vmem:[%s1207 + $0x30] sm:$0xf]
        %v1249 = vld [vmem:[%s1207 + $0x34] sm:$0xf]
        %v1250 = vld [vmem:[%s1207 + $0x38] sm:$0xf]
        %v1251 = vld [vmem:[%s1207 + $0x3c] sm:$0xf]
        %v1252 = vld [vmem:[%s1207 + $0x40] sm:$0xf]
        %v1253 = vld [vmem:[%s1207 + $0x44] sm:$0xf]
        %v1254 = vld [vmem:[%s1207 + $0x48] sm:$0xf]
        %v1255 = vld [vmem:[%s1207 + $0x4c] sm:$0xf]
        %v1256 = vld [vmem:[%s1207 + $0x50] sm:$0xf]
        %v1257 = vld [vmem:[%s1207 + $0x54] sm:$0xf]
        %v1258 = vld [vmem:[%s1207 + $0x58] sm:$0xf]
        %v1259 = vld [vmem:[%s1207 + $0x5c] sm:$0xf]
        %v1260 = vld [vmem:[%s1207 + $0x60] sm:$0xf]
        %v1261 = vld [vmem:[%s1207 + $0x64] sm:$0xf]
        %v1262 = vld [vmem:[%s1207 + $0x68] sm:$0xf]
        %v1263 = vld [vmem:[%s1207 + $0x6c] sm:$0xf]
        %v1264 = vld [vmem:[%s1207 + $0x70] sm:$0xf]
        %v1265 = vld [vmem:[%s1207 + $0x74] sm:$0xf]
        %v1266 = vld [vmem:[%s1207 + $0x78] sm:$0xf]
        %v1267 = vld [vmem:[%s1207 + $0x7c] sm:$0xf]
        %v1268 = vld [vmem:[%s1207 + $0x80] sm:$0xf]
        %v1269 = vld [vmem:[%s1207 + $0x84] sm:$0xf]
        %v1270 = vld [vmem:[%s1207 + $0x88] sm:$0xf]
        %v1271 = vld [vmem:[%s1207 + $0x8c] sm:$0xf]
        %v1272 = vld [vmem:[%s1207 + $0x90] sm:$0xf]
        %v1273 = vld [vmem:[%s1207 + $0x94] sm:$0xf]
        %v1274 = vld [vmem:[%s1207 + $0x98] sm:$0xf]
        %v1275 = vld [vmem:[%s1207 + $0x9c] sm:$0xf]
        %v1276 = vld [vmem:[%s1207 + $0xa0] sm:$0xf]
        %v1277 = vld [vmem:[%s1207 + $0xa4] sm:$0xf]
        %v1278 = vld [vmem:[%s1207 + $0xa8] sm:$0xf]
        %v1279 = vld [vmem:[%s1207 + $0xac] sm:$0xf]
        %v1280 = vld [vmem:[%s1207 + $0xb0] sm:$0xf]
        %v1281 = vld [vmem:[%s1207 + $0xb4] sm:$0xf]
        %v1282 = vld [vmem:[%s1207 + $0xb8] sm:$0xf]
        %v1283 = vld [vmem:[%s1207 + $0xbc] sm:$0xf]
        %v1284 = vld [vmem:[%s1207 + $0xc0] sm:$0xf]
        %v1285 = vld [vmem:[%s1207 + $0xc4] sm:$0xf]
        %v1286 = vld [vmem:[%s1207 + $0xc8] sm:$0xf]
        %v1287 = vld [vmem:[%s1207 + $0xcc] sm:$0xf]
        %v1288 = vld [vmem:[%s1207 + $0xd0] sm:$0xf]
        %v1289 = vld [vmem:[%s1207 + $0xd4] sm:$0xf]
        %v1290 = vld [vmem:[%s1207 + $0xd8] sm:$0xf]
        %v1291 = vld [vmem:[%s1207 + $0xdc] sm:$0xf]
        %v1292 = vld [vmem:[%s1207 + $0xe0] sm:$0xf]
        %v1293 = vld [vmem:[%s1207 + $0xe4] sm:$0xf]
        %v1294 = vld [vmem:[%s1207 + $0xe8] sm:$0xf]
        %v1295 = vld [vmem:[%s1207 + $0xec] sm:$0xf]
        %v1296 = vld [vmem:[%s1207 + $0xf0] sm:$0xf]
        %v1297 = vld [vmem:[%s1207 + $0xf4] sm:$0xf]
        %v1298 = vld [vmem:[%s1207 + $0xf8] sm:$0xf]
        %v1299 = vld [vmem:[%s1207 + $0xfc] sm:$0xf]
        %v1300 = vld [vmem:[%s1] sm:$0xf]
        %v1301 = vld [vmem:[%s1 + $0x4] sm:$0xf]
        %v1302 = vld [vmem:[%s1 + $0x8] sm:$0xf]
        %v1303 = vld [vmem:[%s1 + $0xc] sm:$0xf]
        %v1304 = vld [vmem:[%s1 + $0x10] sm:$0xf]
        %v1305 = vld [vmem:[%s1 + $0x14] sm:$0xf]
        %v1306 = vld [vmem:[%s1 + $0x18] sm:$0xf]
        %v1307 = vld [vmem:[%s1 + $0x1c] sm:$0xf]
        %v1308 = vld [vmem:[%s1 + $0x20] sm:$0xf]
        %v1309 = vld [vmem:[%s1 + $0x24] sm:$0x3]
        %v1374 = vunpack.c.l.b16 %v1236
        %v1375 = vunpack.c.l.b16 %v1237
        %v1376 = vunpack.c.l.b16 %v1238
        %v1377 = vunpack.c.l.b16 %v1239
        %v1378 = vunpack.c.l.b16 %v1240
        %v1379 = vunpack.c.l.b16 %v1241
        %v1380 = vunpack.c.l.b16 %v1242
        %v1381 = vunpack.c.l.b16 %v1243
        %v1382 = vunpack.c.l.b16 %v1244
        %v1383 = vunpack.c.l.b16 %v1245
        %v1384 = vunpack.c.l.b16 %v1246
        %v1385 = vunpack.c.l.b16 %v1247
        %v1386 = vunpack.c.l.b16 %v1248
        %v1387 = vunpack.c.l.b16 %v1249
        %v1388 = vunpack.c.l.b16 %v1250
        %v1389 = vunpack.c.l.b16 %v1251
        %v1390 = vunpack.c.l.b16 %v1252
        %v1391 = vunpack.c.l.b16 %v1253
        %v1392 = vunpack.c.l.b16 %v1254
        %v1393 = vunpack.c.l.b16 %v1255
        %v1394 = vunpack.c.l.b16 %v1256
        %v1395 = vunpack.c.l.b16 %v1257
        %v1396 = vunpack.c.l.b16 %v1258
        %v1397 = vunpack.c.l.b16 %v1259
        %v1398 = vunpack.c.l.b16 %v1260
        %v1399 = vunpack.c.l.b16 %v1261
        %v1400 = vunpack.c.l.b16 %v1262
        %v1401 = vunpack.c.l.b16 %v1263
        %v1402 = vunpack.c.l.b16 %v1264
        %v1403 = vunpack.c.l.b16 %v1265
        %v1404 = vunpack.c.l.b16 %v1266
        %v1405 = vunpack.c.l.b16 %v1267
        %v1406 = vunpack.c.l.b16 %v1268
        %v1407 = vunpack.c.l.b16 %v1269
        %v1408 = vunpack.c.l.b16 %v1270
        %v1409 = vunpack.c.l.b16 %v1271
        %v1410 = vunpack.c.l.b16 %v1272
        %v1411 = vunpack.c.l.b16 %v1273
        %v1412 = vunpack.c.l.b16 %v1274
        %v1413 = vunpack.c.l.b16 %v1275
        %v1414 = vunpack.c.l.b16 %v1276
        %v1415 = vunpack.c.l.b16 %v1277
        %v1416 = vunpack.c.l.b16 %v1278
        %v1417 = vunpack.c.l.b16 %v1279
        %v1418 = vunpack.c.l.b16 %v1280
        %v1419 = vunpack.c.l.b16 %v1281
        %v1420 = vunpack.c.l.b16 %v1282
        %v1421 = vunpack.c.l.b16 %v1283
        %v1422 = vunpack.c.l.b16 %v1284
        %v1423 = vunpack.c.l.b16 %v1285
        %v1424 = vunpack.c.l.b16 %v1286
        %v1425 = vunpack.c.l.b16 %v1287
        %v1426 = vunpack.c.l.b16 %v1288
        %v1427 = vunpack.c.l.b16 %v1289
        %v1428 = vunpack.c.l.b16 %v1290
        %v1429 = vunpack.c.l.b16 %v1291
        %v1430 = vunpack.c.l.b16 %v1292
        %v1431 = vunpack.c.l.b16 %v1293
        %v1432 = vunpack.c.l.b16 %v1294
        %v1433 = vunpack.c.l.b16 %v1295
        %v1434 = vunpack.c.l.b16 %v1296
        %v1435 = vunpack.c.l.b16 %v1297
        %v1436 = vunpack.c.l.b16 %v1298
        %v1437 = vunpack.c.l.b16 %v1299
        %v1438 = vpack.c.b16 %v1375, %v1374
        %v1439 = vpack.c.b16 %v1377, %v1376
        %v1440 = vpack.c.b16 %v1379, %v1378
        %v1441 = vpack.c.b16 %v1381, %v1380
        %v1442 = vpack.c.b16 %v1383, %v1382
        %v1443 = vpack.c.b16 %v1385, %v1384
        %v1444 = vpack.c.b16 %v1387, %v1386
        %v1445 = vpack.c.b16 %v1389, %v1388
        %v1446 = vpack.c.b16 %v1391, %v1390
        %v1447 = vpack.c.b16 %v1393, %v1392
        %v1448 = vpack.c.b16 %v1395, %v1394
        %v1449 = vpack.c.b16 %v1397, %v1396
        %v1450 = vpack.c.b16 %v1399, %v1398
        %v1451 = vpack.c.b16 %v1401, %v1400
        %v1452 = vpack.c.b16 %v1403, %v1402
        %v1453 = vpack.c.b16 %v1405, %v1404
        %v1454 = vpack.c.b16 %v1407, %v1406
        %v1455 = vpack.c.b16 %v1409, %v1408
        %v1456 = vpack.c.b16 %v1411, %v1410
        %v1457 = vpack.c.b16 %v1413, %v1412
        %v1458 = vpack.c.b16 %v1415, %v1414
        %v1459 = vpack.c.b16 %v1417, %v1416
        %v1460 = vpack.c.b16 %v1419, %v1418
        %v1461 = vpack.c.b16 %v1421, %v1420
        %v1462 = vpack.c.b16 %v1423, %v1422
        %v1463 = vpack.c.b16 %v1425, %v1424
        %v1464 = vpack.c.b16 %v1427, %v1426
        %v1465 = vpack.c.b16 %v1429, %v1428
        %v1466 = vpack.c.b16 %v1431, %v1430
        %v1467 = vpack.c.b16 %v1433, %v1432
        %v1468 = vpack.c.b16 %v1435, %v1434
        %v1469 = vpack.c.b16 %v1437, %v1436
        %v1480 = vunpack.c.l.b16 %v1300
        %v1481 = vunpack.c.l.b16 %v1301
        %v1482 = vunpack.c.l.b16 %v1302
        %v1483 = vunpack.c.l.b16 %v1303
        %v1484 = vunpack.c.l.b16 %v1304
        %v1485 = vunpack.c.l.b16 %v1305
        %v1486 = vunpack.c.l.b16 %v1306
        %v1487 = vunpack.c.l.b16 %v1307
        %v1488 = vunpack.c.l.b16 %v1308
        %v1489 = vunpack.c.l.b16 %v1309
        %v1490 = vpack.c.b16 %v1481, %v1480
        %v1491 = vpack.c.b16 %v1483, %v1482
        %v1492 = vpack.c.b16 %v1485, %v1484
        %v1493 = vpack.c.b16 %v1487, %v1486
        %v1494 = vpack.c.b16 %v1489, %v1488
        %vm1499 = vcmask 613376
        %v1501 = vsel %vm1499, %v1438, 0
        %v1504 = vsel %vm1499, %v1439, 0
        %v1507 = vsel %vm1499, %v1440, 0
        %v1510 = vsel %vm1499, %v1441, 0
        %v1513 = vsel %vm1499, %v1442, 0
        %v1516 = vsel %vm1499, %v1443, 0
        %v1519 = vsel %vm1499, %v1444, 0
        %v1522 = vsel %vm1499, %v1445, 0
        %v1525 = vsel %vm1499, %v1446, 0
        %v1528 = vsel %vm1499, %v1447, 0
        %v1531 = vsel %vm1499, %v1448, 0
        %v1534 = vsel %vm1499, %v1449, 0
        %v1537 = vsel %vm1499, %v1450, 0
        %v1540 = vsel %vm1499, %v1451, 0
        %v1543 = vsel %vm1499, %v1452, 0
        %v1546 = vsel %vm1499, %v1453, 0
        %v1549 = vsel %vm1499, %v1454, 0
        %v1552 = vsel %vm1499, %v1455, 0
        %v1555 = vsel %vm1499, %v1456, 0
        %v1558 = vsel %vm1499, %v1457, 0
        %v1561 = vsel %vm1499, %v1458, 0
        %v1564 = vsel %vm1499, %v1459, 0
        %v1567 = vsel %vm1499, %v1460, 0
        %v1570 = vsel %vm1499, %v1461, 0
        %v1573 = vsel %vm1499, %v1462, 0
        %v1576 = vsel %vm1499, %v1463, 0
        %v1579 = vsel %vm1499, %v1464, 0
        %v1582 = vsel %vm1499, %v1465, 0
        %v1585 = vsel %vm1499, %v1466, 0
        %v1588 = vsel %vm1499, %v1467, 0
        %v1591 = vsel %vm1499, %v1468, 0
        %v1594 = vsel %vm1499, %v1469, 0
        %vm1596 = vcmask 1044480
        %vm1597 = vcmask 1045504
        %v1598 = vsel %vm1596, 4294967295, 65535
        %v1599 = vsel %vm1597, %v1598, 0
        %v1601 = vand.u32 %v1494, %v1599
        %1603 = vmatprep.subr.bf16.mxu0 0
        %1604 = vmatpush1.bf16.msra.mxu0 %v1490
        %1605 = vmatprep.subr.bf16.mxu0 0
        %1606 = vmatpush1.bf16.msra.mxu0 %v1491
        %1607 = vmatprep.subr.bf16.mxu0 0
        %1608 = vmatpush1.bf16.msra.mxu0 %v1492
        %1609 = vmatprep.subr.bf16.mxu0 0
        %1610 = vmatpush1.bf16.msra.mxu0 %v1493
        %1611 = vmatprep.subr.bf16.mxu0 0
        %1612 = vmatpush1.bf16.msra.mxu0 %v1601
        %1613 = vmatprep.subr.bf16.mxu0 0
        %1614 = vmatpush1.bf16.msra.mxu0 0
        %1615 = vmatprep.subr.bf16.mxu0 0
        %1616 = vmatpush1.bf16.msra.mxu0 0
        %1617 = vmatprep.subr.bf16.mxu0 0
        %1618 = vmatpush1.bf16.msra.mxu0 0
        %1619 = vmatprep.subr.bf16.mxu0 0
        %1620 = vmatpush1.bf16.msra.mxu0 0
        %1621 = vmatprep.subr.bf16.mxu0 0
        %1622 = vmatpush1.bf16.msra.mxu0 0
        %1623 = vmatprep.subr.bf16.mxu0 0
        %1624 = vmatpush1.bf16.msra.mxu0 0
        %1625 = vmatprep.subr.bf16.mxu0 0
        %1626 = vmatpush1.bf16.msra.mxu0 0
        %1627 = vmatprep.subr.bf16.mxu0 0
        %1628 = vmatpush1.bf16.msra.mxu0 0
        %1629 = vmatprep.subr.bf16.mxu0 0
        %1630 = vmatpush1.bf16.msra.mxu0 0
        %1631 = vmatprep.subr.bf16.mxu0 0
        %1632 = vmatpush1.bf16.msra.mxu0 0
        %1633 = vmatprep.subr.bf16.mxu0 0
        %1634 = vmatpush1.bf16.msra.mxu0 0
        %1635 = vmatprep.mubr.bf16.mxu0 0
        %1636 = vmatmul.mubr.bf16.gmra.mrb[0].mxu0 %v1501
        %v1637 = vpop.f32.mrb[0].mxu0
        %v1638 = vadd.f32 0.0, %v1637
        %v1639 = vpop.f32.mrb[0].mxu0
        %v1640 = vpop.f32.mrb[0].mxu0
        %v1641 = vadd.f32 0.0, %v1640
        %v1642 = vpop.f32.mrb[0].mxu0
        %1643 = vmatprep.mubr.bf16.mxu0 0
        %1644 = vmatmul.mubr.bf16.gmra.mrb[0].mxu0 %v1504
        %v1645 = vpop.f32.mrb[0].mxu0
        %v1646 = vadd.f32 0.0, %v1645
        %v1647 = vpop.f32.mrb[0].mxu0
        %v1648 = vpop.f32.mrb[0].mxu0
        %v1649 = vadd.f32 0.0, %v1648
        %v1650 = vpop.f32.mrb[0].mxu0
        %1651 = vmatprep.mubr.bf16.mxu0 0
        %1652 = vmatmul.mubr.bf16.gmra.mrb[0].mxu0 %v1507
        %v1653 = vpop.f32.mrb[0].mxu0
        %v1654 = vadd.f32 0.0, %v1653
        %v1655 = vpop.f32.mrb[0].mxu0
        %v1656 = vpop.f32.mrb[0].mxu0
        %v1657 = vadd.f32 0.0, %v1656
        %v1658 = vpop.f32.mrb[0].mxu0
        %1659 = vmatprep.mubr.bf16.mxu0 0
        %1660 = vmatmul.mubr.bf16.gmra.mrb[0].mxu0 %v1510
        %v1661 = vpop.f32.mrb[0].mxu0
        %v1662 = vadd.f32 0.0, %v1661
        %v1663 = vpop.f32.mrb[0].mxu0
        %v1664 = vpop.f32.mrb[0].mxu0
        %v1665 = vadd.f32 0.0, %v1664
        %v1666 = vpop.f32.mrb[0].mxu0
        %1667 = vmatprep.mubr.bf16.mxu0 0
        %1668 = vmatmul.mubr.bf16.gmra.mrb[0].mxu0 %v1513
        %v1669 = vpop.f32.mrb[0].mxu0
        %v1670 = vadd.f32 0.0, %v1669
        %v1671 = vpop.f32.mrb[0].mxu0
        %v1672 = vpop.f32.mrb[0].mxu0
        %v1673 = vadd.f32 0.0, %v1672
        %v1674 = vpop.f32.mrb[0].mxu0
        %1675 = vmatprep.mubr.bf16.mxu0 0
        %1676 = vmatmul.mubr.bf16.gmra.mrb[0].mxu0 %v1516
        %v1677 = vpop.f32.mrb[0].mxu0
        %v1678 = vadd.f32 0.0, %v1677
        %v1679 = vpop.f32.mrb[0].mxu0
        %v1680 = vpop.f32.mrb[0].mxu0
        %v1681 = vadd.f32 0.0, %v1680
        %v1682 = vpop.f32.mrb[0].mxu0
        %1683 = vmatprep.mubr.bf16.mxu0 0
        %1684 = vmatmul.mubr.bf16.gmra.mrb[0].mxu0 %v1519
        %v1685 = vpop.f32.mrb[0].mxu0
        %v1686 = vadd.f32 0.0, %v1685
        %v1687 = vpop.f32.mrb[0].mxu0
        %v1688 = vpop.f32.mrb[0].mxu0
        %v1689 = vadd.f32 0.0, %v1688
        %v1690 = vpop.f32.mrb[0].mxu0
        %1691 = vmatprep.mubr.bf16.mxu0 0
        %1692 = vmatmul.mubr.bf16.gmra.mrb[0].mxu0 %v1522
        %v1693 = vpop.f32.mrb[0].mxu0
        %v1694 = vadd.f32 0.0, %v1693
        %v1695 = vpop.f32.mrb[0].mxu0
        %v1696 = vpop.f32.mrb[0].mxu0
        %v1697 = vadd.f32 0.0, %v1696
        %v1698 = vpop.f32.mrb[0].mxu0
        %1699 = vmatprep.mubr.bf16.mxu0 0
        %1700 = vmatmul.mubr.bf16.gmra.mrb[0].mxu0 %v1525
        %v1701 = vpop.f32.mrb[0].mxu0
        %v1702 = vadd.f32 0.0, %v1701
        %v1703 = vpop.f32.mrb[0].mxu0
        %v1704 = vpop.f32.mrb[0].mxu0
        %v1705 = vadd.f32 0.0, %v1704
        %v1706 = vpop.f32.mrb[0].mxu0
        %1707 = vmatprep.mubr.bf16.mxu0 0
        %1708 = vmatmul.mubr.bf16.gmra.mrb[0].mxu0 %v1528
        %v1709 = vpop.f32.mrb[0].mxu0
        %v1710 = vadd.f32 0.0, %v1709
        %v1711 = vpop.f32.mrb[0].mxu0
        %v1712 = vpop.f32.mrb[0].mxu0
        %v1713 = vadd.f32 0.0, %v1712
        %v1714 = vpop.f32.mrb[0].mxu0
        %1715 = vmatprep.mubr.bf16.mxu0 0
        %1716 = vmatmul.mubr.bf16.gmra.mrb[0].mxu0 %v1531
        %v1717 = vpop.f32.mrb[0].mxu0
        %v1718 = vadd.f32 0.0, %v1717
        %v1719 = vpop.f32.mrb[0].mxu0
        %v1720 = vpop.f32.mrb[0].mxu0
        %v1721 = vadd.f32 0.0, %v1720
        %v1722 = vpop.f32.mrb[0].mxu0
        %1723 = vmatprep.mubr.bf16.mxu0 0
        %1724 = vmatmul.mubr.bf16.gmra.mrb[0].mxu0 %v1534
        %v1725 = vpop.f32.mrb[0].mxu0
        %v1726 = vadd.f32 0.0, %v1725
        %v1727 = vpop.f32.mrb[0].mxu0
        %v1728 = vpop.f32.mrb[0].mxu0
        %v1729 = vadd.f32 0.0, %v1728
        %v1730 = vpop.f32.mrb[0].mxu0
        %1731 = vmatprep.mubr.bf16.mxu0 0
        %1732 = vmatmul.mubr.bf16.gmra.mrb[0].mxu0 %v1537
        %v1733 = vpop.f32.mrb[0].mxu0
        %v1734 = vadd.f32 0.0, %v1733
        %v1735 = vpop.f32.mrb[0].mxu0
        %v1736 = vpop.f32.mrb[0].mxu0
        %v1737 = vadd.f32 0.0, %v1736
        %v1738 = vpop.f32.mrb[0].mxu0
        %1739 = vmatprep.mubr.bf16.mxu0 0
        %1740 = vmatmul.mubr.bf16.gmra.mrb[0].mxu0 %v1540
        %v1741 = vpop.f32.mrb[0].mxu0
        %v1742 = vadd.f32 0.0, %v1741
        %v1743 = vpop.f32.mrb[0].mxu0
        %v1744 = vpop.f32.mrb[0].mxu0
        %v1745 = vadd.f32 0.0, %v1744
        %v1746 = vpop.f32.mrb[0].mxu0
        %1747 = vmatprep.mubr.bf16.mxu0 0
        %1748 = vmatmul.mubr.bf16.gmra.mrb[0].mxu0 %v1543
        %v1749 = vpop.f32.mrb[0].mxu0
        %v1750 = vadd.f32 0.0, %v1749
        %v1751 = vpop.f32.mrb[0].mxu0
        %v1752 = vpop.f32.mrb[0].mxu0
        %v1753 = vadd.f32 0.0, %v1752
        %v1754 = vpop.f32.mrb[0].mxu0
        %1755 = vmatprep.mubr.bf16.mxu0 0
        %1756 = vmatmul.mubr.bf16.gmra.mrb[0].mxu0 %v1546
        %v1757 = vpop.f32.mrb[0].mxu0
        %v1758 = vadd.f32 0.0, %v1757
        %v1759 = vpop.f32.mrb[0].mxu0
        %v1760 = vpop.f32.mrb[0].mxu0
        %v1761 = vadd.f32 0.0, %v1760
        %v1762 = vpop.f32.mrb[0].mxu0
        %1763 = vmatprep.mubr.bf16.mxu0 0
        %1764 = vmatmul.mubr.bf16.gmra.mrb[0].mxu0 %v1549
        %v1765 = vpop.f32.mrb[0].mxu0
        %v1766 = vadd.f32 0.0, %v1765
        %v1767 = vpop.f32.mrb[0].mxu0
        %v1768 = vpop.f32.mrb[0].mxu0
        %v1769 = vadd.f32 0.0, %v1768
        %v1770 = vpop.f32.mrb[0].mxu0
        %1771 = vmatprep.mubr.bf16.mxu0 0
        %1772 = vmatmul.mubr.bf16.gmra.mrb[0].mxu0 %v1552
        %v1773 = vpop.f32.mrb[0].mxu0
        %v1774 = vadd.f32 0.0, %v1773
        %v1775 = vpop.f32.mrb[0].mxu0
        %v1776 = vpop.f32.mrb[0].mxu0
        %v1777 = vadd.f32 0.0, %v1776
        %v1778 = vpop.f32.mrb[0].mxu0
        %1779 = vmatprep.mubr.bf16.mxu0 0
        %1780 = vmatmul.mubr.bf16.gmra.mrb[0].mxu0 %v1555
        %v1781 = vpop.f32.mrb[0].mxu0
        %v1782 = vadd.f32 0.0, %v1781
        %v1783 = vpop.f32.mrb[0].mxu0
        %v1784 = vpop.f32.mrb[0].mxu0
        %v1785 = vadd.f32 0.0, %v1784
        %v1786 = vpop.f32.mrb[0].mxu0
        %1787 = vmatprep.mubr.bf16.mxu0 0
        %1788 = vmatmul.mubr.bf16.gmra.mrb[0].mxu0 %v1558
        %v1789 = vpop.f32.mrb[0].mxu0
        %v1790 = vadd.f32 0.0, %v1789
        %v1791 = vpop.f32.mrb[0].mxu0
        %v1792 = vpop.f32.mrb[0].mxu0
        %v1793 = vadd.f32 0.0, %v1792
        %v1794 = vpop.f32.mrb[0].mxu0
        %1795 = vmatprep.mubr.bf16.mxu0 0
        %1796 = vmatmul.mubr.bf16.gmra.mrb[0].mxu0 %v1561
        %v1797 = vpop.f32.mrb[0].mxu0
        %v1798 = vadd.f32 0.0, %v1797
        %v1799 = vpop.f32.mrb[0].mxu0
        %v1800 = vpop.f32.mrb[0].mxu0
        %v1801 = vadd.f32 0.0, %v1800
        %v1802 = vpop.f32.mrb[0].mxu0
        %1803 = vmatprep.mubr.bf16.mxu0 0
        %1804 = vmatmul.mubr.bf16.gmra.mrb[0].mxu0 %v1564
        %v1805 = vpop.f32.mrb[0].mxu0
        %v1806 = vadd.f32 0.0, %v1805
        %v1807 = vpop.f32.mrb[0].mxu0
        %v1808 = vpop.f32.mrb[0].mxu0
        %v1809 = vadd.f32 0.0, %v1808
        %v1810 = vpop.f32.mrb[0].mxu0
        %1811 = vmatprep.mubr.bf16.mxu0 0
        %1812 = vmatmul.mubr.bf16.gmra.mrb[0].mxu0 %v1567
        %v1813 = vpop.f32.mrb[0].mxu0
        %v1814 = vadd.f32 0.0, %v1813
        %v1815 = vpop.f32.mrb[0].mxu0
        %v1816 = vpop.f32.mrb[0].mxu0
        %v1817 = vadd.f32 0.0, %v1816
        %v1818 = vpop.f32.mrb[0].mxu0
        %1819 = vmatprep.mubr.bf16.mxu0 0
        %1820 = vmatmul.mubr.bf16.gmra.mrb[0].mxu0 %v1570
        %v1821 = vpop.f32.mrb[0].mxu0
        %v1822 = vadd.f32 0.0, %v1821
        %v1823 = vpop.f32.mrb[0].mxu0
        %v1824 = vpop.f32.mrb[0].mxu0
        %v1825 = vadd.f32 0.0, %v1824
        %v1826 = vpop.f32.mrb[0].mxu0
        %1827 = vmatprep.mubr.bf16.mxu0 0
        %1828 = vmatmul.mubr.bf16.gmra.mrb[0].mxu0 %v1573
        %v1829 = vpop.f32.mrb[0].mxu0
        %v1830 = vadd.f32 0.0, %v1829
        %v1831 = vpop.f32.mrb[0].mxu0
        %v1832 = vpop.f32.mrb[0].mxu0
        %v1833 = vadd.f32 0.0, %v1832
        %v1834 = vpop.f32.mrb[0].mxu0
        %1835 = vmatprep.mubr.bf16.mxu0 0
        %1836 = vmatmul.mubr.bf16.gmra.mrb[0].mxu0 %v1576
        %v1837 = vpop.f32.mrb[0].mxu0
        %v1838 = vadd.f32 0.0, %v1837
        %v1839 = vpop.f32.mrb[0].mxu0
        %v1840 = vpop.f32.mrb[0].mxu0
        %v1841 = vadd.f32 0.0, %v1840
        %v1842 = vpop.f32.mrb[0].mxu0
        %1843 = vmatprep.mubr.bf16.mxu0 0
        %1844 = vmatmul.mubr.bf16.gmra.mrb[0].mxu0 %v1579
        %v1845 = vpop.f32.mrb[0].mxu0
        %v1846 = vadd.f32 0.0, %v1845
        %v1847 = vpop.f32.mrb[0].mxu0
        %v1848 = vpop.f32.mrb[0].mxu0
        %v1849 = vadd.f32 0.0, %v1848
        %v1850 = vpop.f32.mrb[0].mxu0
        %1851 = vmatprep.mubr.bf16.mxu0 0
        %1852 = vmatmul.mubr.bf16.gmra.mrb[0].mxu0 %v1582
        %v1853 = vpop.f32.mrb[0].mxu0
        %v1854 = vadd.f32 0.0, %v1853
        %v1855 = vpop.f32.mrb[0].mxu0
        %v1856 = vpop.f32.mrb[0].mxu0
        %v1857 = vadd.f32 0.0, %v1856
        %v1858 = vpop.f32.mrb[0].mxu0
        %1859 = vmatprep.mubr.bf16.mxu0 0
        %1860 = vmatmul.mubr.bf16.gmra.mrb[0].mxu0 %v1585
        %v1861 = vpop.f32.mrb[0].mxu0
        %v1862 = vadd.f32 0.0, %v1861
        %v1863 = vpop.f32.mrb[0].mxu0
        %v1864 = vpop.f32.mrb[0].mxu0
        %v1865 = vadd.f32 0.0, %v1864
        %v1866 = vpop.f32.mrb[0].mxu0
        %1867 = vmatprep.mubr.bf16.mxu0 0
        %1868 = vmatmul.mubr.bf16.gmra.mrb[0].mxu0 %v1588
        %v1869 = vpop.f32.mrb[0].mxu0
        %v1870 = vadd.f32 0.0, %v1869
        %v1871 = vpop.f32.mrb[0].mxu0
        %v1872 = vpop.f32.mrb[0].mxu0
        %v1873 = vadd.f32 0.0, %v1872
        %v1874 = vpop.f32.mrb[0].mxu0
        %1875 = vmatprep.mubr.bf16.mxu0 0
        %1876 = vmatmul.mubr.bf16.gmra.mrb[0].mxu0 %v1591
        %v1877 = vpop.f32.mrb[0].mxu0
        %v1878 = vadd.f32 0.0, %v1877
        %v1879 = vpop.f32.mrb[0].mxu0
        %v1880 = vpop.f32.mrb[0].mxu0
        %v1881 = vadd.f32 0.0, %v1880
        %v1882 = vpop.f32.mrb[0].mxu0
        %1883 = vmatprep.mubr.bf16.mxu0 0
        %1884 = vmatmul.mubr.bf16.gmra.mrb[0].mxu0 %v1594
        %v1885 = vpop.f32.mrb[0].mxu0
        %v1886 = vadd.f32 0.0, %v1885
        %v1887 = vpop.f32.mrb[0].mxu0
        %v1888 = vpop.f32.mrb[0].mxu0
        %v1889 = vadd.f32 0.0, %v1888
        %v1890 = vpop.f32.mrb[0].mxu0
        %1891 = vdwg.mxu0
        %s1892 = scalar_lea.vmem %s1207, 256 [#allocation2]
        %v1893 = vld [vmem:[%s1892] sm:$0xf]
        %v1894 = vld [vmem:[%s1892 + $0x4] sm:$0xf]
        %v1895 = vld [vmem:[%s1892 + $0x8] sm:$0xf]
        %v1896 = vld [vmem:[%s1892 + $0xc] sm:$0xf]
        %v1897 = vld [vmem:[%s1892 + $0x10] sm:$0xf]
        %v1898 = vld [vmem:[%s1892 + $0x14] sm:$0xf]
        %v1899 = vld [vmem:[%s1892 + $0x18] sm:$0xf]
        %v1900 = vld [vmem:[%s1892 + $0x1c] sm:$0xf]
        %v1901 = vld [vmem:[%s1892 + $0x20] sm:$0xf]
        %v1902 = vld [vmem:[%s1892 + $0x24] sm:$0xf]
        %v1903 = vld [vmem:[%s1892 + $0x28] sm:$0xf]
        %v1904 = vld [vmem:[%s1892 + $0x2c] sm:$0xf]
        %v1905 = vld [vmem:[%s1892 + $0x30] sm:$0xf]
        %v1906 = vld [vmem:[%s1892 + $0x34] sm:$0xf]
        %v1907 = vld [vmem:[%s1892 + $0x38] sm:$0xf]
        %v1908 = vld [vmem:[%s1892 + $0x3c] sm:$0xf]
        %v1909 = vld [vmem:[%s1892 + $0x40] sm:$0xf]
        %v1910 = vld [vmem:[%s1892 + $0x44] sm:$0xf]
        %v1911 = vld [vmem:[%s1892 + $0x48] sm:$0xf]
        %v1912 = vld [vmem:[%s1892 + $0x4c] sm:$0xf]
        %v1913 = vld [vmem:[%s1892 + $0x50] sm:$0xf]
        %v1914 = vld [vmem:[%s1892 + $0x54] sm:$0xf]
        %v1915 = vld [vmem:[%s1892 + $0x58] sm:$0xf]
        %v1916 = vld [vmem:[%s1892 + $0x5c] sm:$0xf]
        %v1917 = vld [vmem:[%s1892 + $0x60] sm:$0xf]
        %v1918 = vld [vmem:[%s1892 + $0x64] sm:$0xf]
        %v1919 = vld [vmem:[%s1892 + $0x68] sm:$0xf]
        %v1920 = vld [vmem:[%s1892 + $0x6c] sm:$0xf]
        %v1921 = vld [vmem:[%s1892 + $0x70] sm:$0xf]
        %v1922 = vld [vmem:[%s1892 + $0x74] sm:$0xf]
        %v1923 = vld [vmem:[%s1892 + $0x78] sm:$0xf]
        %v1924 = vld [vmem:[%s1892 + $0x7c] sm:$0xf]
        %v1925 = vld [vmem:[%s1892 + $0x80] sm:$0xf]
        %v1926 = vld [vmem:[%s1892 + $0x84] sm:$0xf]
        %v1927 = vld [vmem:[%s1892 + $0x88] sm:$0xf]
        %v1928 = vld [vmem:[%s1892 + $0x8c] sm:$0xf]
        %v1929 = vld [vmem:[%s1892 + $0x90] sm:$0xf]
        %v1930 = vld [vmem:[%s1892 + $0x94] sm:$0xf]
        %v1931 = vld [vmem:[%s1892 + $0x98] sm:$0xf]
        %v1932 = vld [vmem:[%s1892 + $0x9c] sm:$0xf]
        %v1933 = vld [vmem:[%s1892 + $0xa0] sm:$0xf]
        %v1934 = vld [vmem:[%s1892 + $0xa4] sm:$0xf]
        %v1935 = vld [vmem:[%s1892 + $0xa8] sm:$0xf]
        %v1936 = vld [vmem:[%s1892 + $0xac] sm:$0xf]
        %v1937 = vld [vmem:[%s1892 + $0xb0] sm:$0xf]
        %v1938 = vld [vmem:[%s1892 + $0xb4] sm:$0xf]
        %v1939 = vld [vmem:[%s1892 + $0xb8] sm:$0xf]
        %v1940 = vld [vmem:[%s1892 + $0xbc] sm:$0xf]
        %v1941 = vld [vmem:[%s1892 + $0xc0] sm:$0xf]
        %v1942 = vld [vmem:[%s1892 + $0xc4] sm:$0xf]
        %v1943 = vld [vmem:[%s1892 + $0xc8] sm:$0xf]
        %v1944 = vld [vmem:[%s1892 + $0xcc] sm:$0xf]
        %v1945 = vld [vmem:[%s1892 + $0xd0] sm:$0xf]
        %v1946 = vld [vmem:[%s1892 + $0xd4] sm:$0xf]
        %v1947 = vld [vmem:[%s1892 + $0xd8] sm:$0xf]
        %v1948 = vld [vmem:[%s1892 + $0xdc] sm:$0xf]
        %v1949 = vld [vmem:[%s1892 + $0xe0] sm:$0xf]
        %v1950 = vld [vmem:[%s1892 + $0xe4] sm:$0xf]
        %v1951 = vld [vmem:[%s1892 + $0xe8] sm:$0xf]
        %v1952 = vld [vmem:[%s1892 + $0xec] sm:$0xf]
        %v1953 = vld [vmem:[%s1892 + $0xf0] sm:$0xf]
        %v1954 = vld [vmem:[%s1892 + $0xf4] sm:$0xf]
        %v1955 = vld [vmem:[%s1892 + $0xf8] sm:$0xf]
        %v1956 = vld [vmem:[%s1892 + $0xfc] sm:$0xf]
        %v2021 = vunpack.c.l.b16 %v1893
        %v2022 = vunpack.c.l.b16 %v1894
        %v2023 = vunpack.c.l.b16 %v1895
        %v2024 = vunpack.c.l.b16 %v1896
        %v2025 = vunpack.c.l.b16 %v1897
        %v2026 = vunpack.c.l.b16 %v1898
        %v2027 = vunpack.c.l.b16 %v1899
        %v2028 = vunpack.c.l.b16 %v1900
        %v2029 = vunpack.c.l.b16 %v1901
        %v2030 = vunpack.c.l.b16 %v1902
        %v2031 = vunpack.c.l.b16 %v1903
        %v2032 = vunpack.c.l.b16 %v1904
        %v2033 = vunpack.c.l.b16 %v1905
        %v2034 = vunpack.c.l.b16 %v1906
        %v2035 = vunpack.c.l.b16 %v1907
        %v2036 = vunpack.c.l.b16 %v1908
        %v2037 = vunpack.c.l.b16 %v1909
        %v2038 = vunpack.c.l.b16 %v1910
        %v2039 = vunpack.c.l.b16 %v1911
        %v2040 = vunpack.c.l.b16 %v1912
        %v2041 = vunpack.c.l.b16 %v1913
        %v2042 = vunpack.c.l.b16 %v1914
        %v2043 = vunpack.c.l.b16 %v1915
        %v2044 = vunpack.c.l.b16 %v1916
        %v2045 = vunpack.c.l.b16 %v1917
        %v2046 = vunpack.c.l.b16 %v1918
        %v2047 = vunpack.c.l.b16 %v1919
        %v2048 = vunpack.c.l.b16 %v1920
        %v2049 = vunpack.c.l.b16 %v1921
        %v2050 = vunpack.c.l.b16 %v1922
        %v2051 = vunpack.c.l.b16 %v1923
        %v2052 = vunpack.c.l.b16 %v1924
        %v2053 = vunpack.c.l.b16 %v1925
        %v2054 = vunpack.c.l.b16 %v1926
        %v2055 = vunpack.c.l.b16 %v1927
        %v2056 = vunpack.c.l.b16 %v1928
        %v2057 = vunpack.c.l.b16 %v1929
        %v2058 = vunpack.c.l.b16 %v1930
        %v2059 = vunpack.c.l.b16 %v1931
        %v2060 = vunpack.c.l.b16 %v1932
        %v2061 = vunpack.c.l.b16 %v1933
        %v2062 = vunpack.c.l.b16 %v1934
        %v2063 = vunpack.c.l.b16 %v1935
        %v2064 = vunpack.c.l.b16 %v1936
        %v2065 = vunpack.c.l.b16 %v1937
        %v2066 = vunpack.c.l.b16 %v1938
        %v2067 = vunpack.c.l.b16 %v1939
        %v2068 = vunpack.c.l.b16 %v1940
        %v2069 = vunpack.c.l.b16 %v1941
        %v2070 = vunpack.c.l.b16 %v1942
        %v2071 = vunpack.c.l.b16 %v1943
        %v2072 = vunpack.c.l.b16 %v1944
        %v2073 = vunpack.c.l.b16 %v1945
        %v2074 = vunpack.c.l.b16 %v1946
        %v2075 = vunpack.c.l.b16 %v1947
        %v2076 = vunpack.c.l.b16 %v1948
        %v2077 = vunpack.c.l.b16 %v1949
        %v2078 = vunpack.c.l.b16 %v1950
        %v2079 = vunpack.c.l.b16 %v1951
        %v2080 = vunpack.c.l.b16 %v1952
        %v2081 = vunpack.c.l.b16 %v1953
        %v2082 = vunpack.c.l.b16 %v1954
        %v2083 = vunpack.c.l.b16 %v1955
        %v2084 = vunpack.c.l.b16 %v1956
        %v2085 = vpack.c.b16 %v2022, %v2021
        %v2086 = vpack.c.b16 %v2024, %v2023
        %v2087 = vpack.c.b16 %v2026, %v2025
        %v2088 = vpack.c.b16 %v2028, %v2027
        %v2089 = vpack.c.b16 %v2030, %v2029
        %v2090 = vpack.c.b16 %v2032, %v2031
        %v2091 = vpack.c.b16 %v2034, %v2033
        %v2092 = vpack.c.b16 %v2036, %v2035
        %v2093 = vpack.c.b16 %v2038, %v2037
        %v2094 = vpack.c.b16 %v2040, %v2039
        %v2095 = vpack.c.b16 %v2042, %v2041
        %v2096 = vpack.c.b16 %v2044, %v2043
        %v2097 = vpack.c.b16 %v2046, %v2045
        %v2098 = vpack.c.b16 %v2048, %v2047
        %v2099 = vpack.c.b16 %v2050, %v2049
        %v2100 = vpack.c.b16 %v2052, %v2051
        %v2101 = vpack.c.b16 %v2054, %v2053
        %v2102 = vpack.c.b16 %v2056, %v2055
        %v2103 = vpack.c.b16 %v2058, %v2057
        %v2104 = vpack.c.b16 %v2060, %v2059
        %v2105 = vpack.c.b16 %v2062, %v2061
        %v2106 = vpack.c.b16 %v2064, %v2063
        %v2107 = vpack.c.b16 %v2066, %v2065
        %v2108 = vpack.c.b16 %v2068, %v2067
        %v2109 = vpack.c.b16 %v2070, %v2069
        %v2110 = vpack.c.b16 %v2072, %v2071
        %v2111 = vpack.c.b16 %v2074, %v2073
        %v2112 = vpack.c.b16 %v2076, %v2075
        %v2113 = vpack.c.b16 %v2078, %v2077
        %v2114 = vpack.c.b16 %v2080, %v2079
        %v2115 = vpack.c.b16 %v2082, %v2081
        %v2116 = vpack.c.b16 %v2084, %v2083
        %v2118 = vsel %vm1499, %v2085, 0
        %v2121 = vsel %vm1499, %v2086, 0
        %v2124 = vsel %vm1499, %v2087, 0
        %v2127 = vsel %vm1499, %v2088, 0
        %v2130 = vsel %vm1499, %v2089, 0
        %v2133 = vsel %vm1499, %v2090, 0
        %v2136 = vsel %vm1499, %v2091, 0
        %v2139 = vsel %vm1499, %v2092, 0
        %v2142 = vsel %vm1499, %v2093, 0
        %v2145 = vsel %vm1499, %v2094, 0
        %v2148 = vsel %vm1499, %v2095, 0
        %v2151 = vsel %vm1499, %v2096, 0
        %v2154 = vsel %vm1499, %v2097, 0
        %v2157 = vsel %vm1499, %v2098, 0
        %v2160 = vsel %vm1499, %v2099, 0
        %v2163 = vsel %vm1499, %v2100, 0
        %v2166 = vsel %vm1499, %v2101, 0
        %v2169 = vsel %vm1499, %v2102, 0
        %v2172 = vsel %vm1499, %v2103, 0
        %v2175 = vsel %vm1499, %v2104, 0
        %v2178 = vsel %vm1499, %v2105, 0
        %v2181 = vsel %vm1499, %v2106, 0
        %v2184 = vsel %vm1499, %v2107, 0
        %v2187 = vsel %vm1499, %v2108, 0
        %v2190 = vsel %vm1499, %v2109, 0
        %v2193 = vsel %vm1499, %v2110, 0
        %v2196 = vsel %vm1499, %v2111, 0
        %v2199 = vsel %vm1499, %v2112, 0
        %v2202 = vsel %vm1499, %v2113, 0
        %v2205 = vsel %vm1499, %v2114, 0
        %v2208 = vsel %vm1499, %v2115, 0
        %v2211 = vsel %vm1499, %v2116, 0
        %2213 = vmatprep.subr.bf16.mxu0 0
        %2214 = vmatpush1.bf16.msra.mxu0 %v1490
        %2215 = vmatprep.subr.bf16.mxu0 0
        %2216 = vmatpush1.bf16.msra.mxu0 %v1491
        %2217 = vmatprep.subr.bf16.mxu0 0
        %2218 = vmatpush1.bf16.msra.mxu0 %v1492
        %2219 = vmatprep.subr.bf16.mxu0 0
        %2220 = vmatpush1.bf16.msra.mxu0 %v1493
        %2221 = vmatprep.subr.bf16.mxu0 0
        %2222 = vmatpush1.bf16.msra.mxu0 %v1601
        %2223 = vmatprep.subr.bf16.mxu0 0
        %2224 = vmatpush1.bf16.msra.mxu0 0
        %2225 = vmatprep.subr.bf16.mxu0 0
        %2226 = vmatpush1.bf16.msra.mxu0 0
        %2227 = vmatprep.subr.bf16.mxu0 0
        %2228 = vmatpush1.bf16.msra.mxu0 0
        %2229 = vmatprep.subr.bf16.mxu0 0
        %2230 = vmatpush1.bf16.msra.mxu0 0
        %2231 = vmatprep.subr.bf16.mxu0 0
        %2232 = vmatpush1.bf16.msra.mxu0 0
        %2233 = vmatprep.subr.bf16.mxu0 0
        %2234 = vmatpush1.bf16.msra.mxu0 0
        %2235 = vmatprep.subr.bf16.mxu0 0
        %2236 = vmatpush1.bf16.msra.mxu0 0
        %2237 = vmatprep.subr.bf16.mxu0 0
        %2238 = vmatpush1.bf16.msra.mxu0 0
        %2239 = vmatprep.subr.bf16.mxu0 0
        %2240 = vmatpush1.bf16.msra.mxu0 0
        %2241 = vmatprep.subr.bf16.mxu0 0
        %2242 = vmatpush1.bf16.msra.mxu0 0
        %2243 = vmatprep.subr.bf16.mxu0 0
        %2244 = vmatpush1.bf16.msra.mxu0 0
        %2245 = vmatprep.mubr.bf16.mxu0 0
        %2246 = vmatmul.mubr.bf16.gmra.mrb[0].mxu0 %v2118
        %v2247 = vpop.f32.mrb[0].mxu0
        %v2248 = vadd.f32 0.0, %v2247
        %v2249 = vpop.f32.mrb[0].mxu0
        %v2250 = vpop.f32.mrb[0].mxu0
        %v2251 = vadd.f32 0.0, %v2250
        %v2252 = vpop.f32.mrb[0].mxu0
        %2253 = vmatprep.mubr.bf16.mxu0 0
        %2254 = vmatmul.mubr.bf16.gmra.mrb[0].mxu0 %v2121
        %v2255 = vpop.f32.mrb[0].mxu0
        %v2256 = vadd.f32 0.0, %v2255
        %v2257 = vpop.f32.mrb[0].mxu0
        %v2258 = vpop.f32.mrb[0].mxu0
        %v2259 = vadd.f32 0.0, %v2258
        %v2260 = vpop.f32.mrb[0].mxu0
        %2261 = vmatprep.mubr.bf16.mxu0 0
        %2262 = vmatmul.mubr.bf16.gmra.mrb[0].mxu0 %v2124
        %v2263 = vpop.f32.mrb[0].mxu0
        %v2264 = vadd.f32 0.0, %v2263
        %v2265 = vpop.f32.mrb[0].mxu0
        %v2266 = vpop.f32.mrb[0].mxu0
        %v2267 = vadd.f32 0.0, %v2266
        %v2268 = vpop.f32.mrb[0].mxu0
        %2269 = vmatprep.mubr.bf16.mxu0 0
        %2270 = vmatmul.mubr.bf16.gmra.mrb[0].mxu0 %v2127
        %v2271 = vpop.f32.mrb[0].mxu0
        %v2272 = vadd.f32 0.0, %v2271
        %v2273 = vpop.f32.mrb[0].mxu0
        %v2274 = vpop.f32.mrb[0].mxu0
        %v2275 = vadd.f32 0.0, %v2274
        %v2276 = vpop.f32.mrb[0].mxu0
        %2277 = vmatprep.mubr.bf16.mxu0 0
        %2278 = vmatmul.mubr.bf16.gmra.mrb[0].mxu0 %v2130
        %v2279 = vpop.f32.mrb[0].mxu0
        %v2280 = vadd.f32 0.0, %v2279
        %v2281 = vpop.f32.mrb[0].mxu0
        %v2282 = vpop.f32.mrb[0].mxu0
        %v2283 = vadd.f32 0.0, %v2282
        %v2284 = vpop.f32.mrb[0].mxu0
        %2285 = vmatprep.mubr.bf16.mxu0 0
        %2286 = vmatmul.mubr.bf16.gmra.mrb[0].mxu0 %v2133
        %v2287 = vpop.f32.mrb[0].mxu0
        %v2288 = vadd.f32 0.0, %v2287
        %v2289 = vpop.f32.mrb[0].mxu0
        %v2290 = vpop.f32.mrb[0].mxu0
        %v2291 = vadd.f32 0.0, %v2290
        %v2292 = vpop.f32.mrb[0].mxu0
        %2293 = vmatprep.mubr.bf16.mxu0 0
        %2294 = vmatmul.mubr.bf16.gmra.mrb[0].mxu0 %v2136
        %v2295 = vpop.f32.mrb[0].mxu0
        %v2296 = vadd.f32 0.0, %v2295
        %v2297 = vpop.f32.mrb[0].mxu0
        %v2298 = vpop.f32.mrb[0].mxu0
        %v2299 = vadd.f32 0.0, %v2298
        %v2300 = vpop.f32.mrb[0].mxu0
        %2301 = vmatprep.mubr.bf16.mxu0 0
        %2302 = vmatmul.mubr.bf16.gmra.mrb[0].mxu0 %v2139
        %v2303 = vpop.f32.mrb[0].mxu0
        %v2304 = vadd.f32 0.0, %v2303
        %v2305 = vpop.f32.mrb[0].mxu0
        %v2306 = vpop.f32.mrb[0].mxu0
        %v2307 = vadd.f32 0.0, %v2306
        %v2308 = vpop.f32.mrb[0].mxu0
        %2309 = vmatprep.mubr.bf16.mxu0 0
        %2310 = vmatmul.mubr.bf16.gmra.mrb[0].mxu0 %v2142
        %v2311 = vpop.f32.mrb[0].mxu0
        %v2312 = vadd.f32 0.0, %v2311
        %v2313 = vpop.f32.mrb[0].mxu0
        %v2314 = vpop.f32.mrb[0].mxu0
        %v2315 = vadd.f32 0.0, %v2314
        %v2316 = vpop.f32.mrb[0].mxu0
        %2317 = vmatprep.mubr.bf16.mxu0 0
        %2318 = vmatmul.mubr.bf16.gmra.mrb[0].mxu0 %v2145
        %v2319 = vpop.f32.mrb[0].mxu0
        %v2320 = vadd.f32 0.0, %v2319
        %v2321 = vpop.f32.mrb[0].mxu0
        %v2322 = vpop.f32.mrb[0].mxu0
        %v2323 = vadd.f32 0.0, %v2322
        %v2324 = vpop.f32.mrb[0].mxu0
        %2325 = vmatprep.mubr.bf16.mxu0 0
        %2326 = vmatmul.mubr.bf16.gmra.mrb[0].mxu0 %v2148
        %v2327 = vpop.f32.mrb[0].mxu0
        %v2328 = vadd.f32 0.0, %v2327
        %v2329 = vpop.f32.mrb[0].mxu0
        %v2330 = vpop.f32.mrb[0].mxu0
        %v2331 = vadd.f32 0.0, %v2330
        %v2332 = vpop.f32.mrb[0].mxu0
        %2333 = vmatprep.mubr.bf16.mxu0 0
        %2334 = vmatmul.mubr.bf16.gmra.mrb[0].mxu0 %v2151
        %v2335 = vpop.f32.mrb[0].mxu0
        %v2336 = vadd.f32 0.0, %v2335
        %v2337 = vpop.f32.mrb[0].mxu0
        %v2338 = vpop.f32.mrb[0].mxu0
        %v2339 = vadd.f32 0.0, %v2338
        %v2340 = vpop.f32.mrb[0].mxu0
        %2341 = vmatprep.mubr.bf16.mxu0 0
        %2342 = vmatmul.mubr.bf16.gmra.mrb[0].mxu0 %v2154
        %v2343 = vpop.f32.mrb[0].mxu0
        %v2344 = vadd.f32 0.0, %v2343
        %v2345 = vpop.f32.mrb[0].mxu0
        %v2346 = vpop.f32.mrb[0].mxu0
        %v2347 = vadd.f32 0.0, %v2346
        %v2348 = vpop.f32.mrb[0].mxu0
        %2349 = vmatprep.mubr.bf16.mxu0 0
        %2350 = vmatmul.mubr.bf16.gmra.mrb[0].mxu0 %v2157
        %v2351 = vpop.f32.mrb[0].mxu0
        %v2352 = vadd.f32 0.0, %v2351
        %v2353 = vpop.f32.mrb[0].mxu0
        %v2354 = vpop.f32.mrb[0].mxu0
        %v2355 = vadd.f32 0.0, %v2354
        %v2356 = vpop.f32.mrb[0].mxu0
        %2357 = vmatprep.mubr.bf16.mxu0 0
        %2358 = vmatmul.mubr.bf16.gmra.mrb[0].mxu0 %v2160
        %v2359 = vpop.f32.mrb[0].mxu0
        %v2360 = vadd.f32 0.0, %v2359
        %v2361 = vpop.f32.mrb[0].mxu0
        %v2362 = vpop.f32.mrb[0].mxu0
        %v2363 = vadd.f32 0.0, %v2362
        %v2364 = vpop.f32.mrb[0].mxu0
        %2365 = vmatprep.mubr.bf16.mxu0 0
        %2366 = vmatmul.mubr.bf16.gmra.mrb[0].mxu0 %v2163
        %v2367 = vpop.f32.mrb[0].mxu0
        %v2368 = vadd.f32 0.0, %v2367
        %v2369 = vpop.f32.mrb[0].mxu0
        %v2370 = vpop.f32.mrb[0].mxu0
        %v2371 = vadd.f32 0.0, %v2370
        %v2372 = vpop.f32.mrb[0].mxu0
        %2373 = vmatprep.mubr.bf16.mxu0 0
        %2374 = vmatmul.mubr.bf16.gmra.mrb[0].mxu0 %v2166
        %v2375 = vpop.f32.mrb[0].mxu0
        %v2376 = vadd.f32 0.0, %v2375
        %v2377 = vpop.f32.mrb[0].mxu0
        %v2378 = vpop.f32.mrb[0].mxu0
        %v2379 = vadd.f32 0.0, %v2378
        %v2380 = vpop.f32.mrb[0].mxu0
        %2381 = vmatprep.mubr.bf16.mxu0 0
        %2382 = vmatmul.mubr.bf16.gmra.mrb[0].mxu0 %v2169
        %v2383 = vpop.f32.mrb[0].mxu0
        %v2384 = vadd.f32 0.0, %v2383
        %v2385 = vpop.f32.mrb[0].mxu0
        %v2386 = vpop.f32.mrb[0].mxu0
        %v2387 = vadd.f32 0.0, %v2386
        %v2388 = vpop.f32.mrb[0].mxu0
        %2389 = vmatprep.mubr.bf16.mxu0 0
        %2390 = vmatmul.mubr.bf16.gmra.mrb[0].mxu0 %v2172
        %v2391 = vpop.f32.mrb[0].mxu0
        %v2392 = vadd.f32 0.0, %v2391
        %v2393 = vpop.f32.mrb[0].mxu0
        %v2394 = vpop.f32.mrb[0].mxu0
        %v2395 = vadd.f32 0.0, %v2394
        %v2396 = vpop.f32.mrb[0].mxu0
        %2397 = vmatprep.mubr.bf16.mxu0 0
        %2398 = vmatmul.mubr.bf16.gmra.mrb[0].mxu0 %v2175
        %v2399 = vpop.f32.mrb[0].mxu0
        %v2400 = vadd.f32 0.0, %v2399
        %v2401 = vpop.f32.mrb[0].mxu0
        %v2402 = vpop.f32.mrb[0].mxu0
        %v2403 = vadd.f32 0.0, %v2402
        %v2404 = vpop.f32.mrb[0].mxu0
        %2405 = vmatprep.mubr.bf16.mxu0 0
        %2406 = vmatmul.mubr.bf16.gmra.mrb[0].mxu0 %v2178
        %v2407 = vpop.f32.mrb[0].mxu0
        %v2408 = vadd.f32 0.0, %v2407
        %v2409 = vpop.f32.mrb[0].mxu0
        %v2410 = vpop.f32.mrb[0].mxu0
        %v2411 = vadd.f32 0.0, %v2410
        %v2412 = vpop.f32.mrb[0].mxu0
        %2413 = vmatprep.mubr.bf16.mxu0 0
        %2414 = vmatmul.mubr.bf16.gmra.mrb[0].mxu0 %v2181
        %v2415 = vpop.f32.mrb[0].mxu0
        %v2416 = vadd.f32 0.0, %v2415
        %v2417 = vpop.f32.mrb[0].mxu0
        %v2418 = vpop.f32.mrb[0].mxu0
        %v2419 = vadd.f32 0.0, %v2418
        %v2420 = vpop.f32.mrb[0].mxu0
        %2421 = vmatprep.mubr.bf16.mxu0 0
        %2422 = vmatmul.mubr.bf16.gmra.mrb[0].mxu0 %v2184
        %v2423 = vpop.f32.mrb[0].mxu0
        %v2424 = vadd.f32 0.0, %v2423
        %v2425 = vpop.f32.mrb[0].mxu0
        %v2426 = vpop.f32.mrb[0].mxu0
        %v2427 = vadd.f32 0.0, %v2426
        %v2428 = vpop.f32.mrb[0].mxu0
        %2429 = vmatprep.mubr.bf16.mxu0 0
        %2430 = vmatmul.mubr.bf16.gmra.mrb[0].mxu0 %v2187
        %v2431 = vpop.f32.mrb[0].mxu0
        %v2432 = vadd.f32 0.0, %v2431
        %v2433 = vpop.f32.mrb[0].mxu0
        %v2434 = vpop.f32.mrb[0].mxu0
        %v2435 = vadd.f32 0.0, %v2434
        %v2436 = vpop.f32.mrb[0].mxu0
        %2437 = vmatprep.mubr.bf16.mxu0 0
        %2438 = vmatmul.mubr.bf16.gmra.mrb[0].mxu0 %v2190
        %v2439 = vpop.f32.mrb[0].mxu0
        %v2440 = vadd.f32 0.0, %v2439
        %v2441 = vpop.f32.mrb[0].mxu0
        %v2442 = vpop.f32.mrb[0].mxu0
        %v2443 = vadd.f32 0.0, %v2442
        %v2444 = vpop.f32.mrb[0].mxu0
        %2445 = vmatprep.mubr.bf16.mxu0 0
        %2446 = vmatmul.mubr.bf16.gmra.mrb[0].mxu0 %v2193
        %v2447 = vpop.f32.mrb[0].mxu0
        %v2448 = vadd.f32 0.0, %v2447
        %v2449 = vpop.f32.mrb[0].mxu0
        %v2450 = vpop.f32.mrb[0].mxu0
        %v2451 = vadd.f32 0.0, %v2450
        %v2452 = vpop.f32.mrb[0].mxu0
        %2453 = vmatprep.mubr.bf16.mxu0 0
        %2454 = vmatmul.mubr.bf16.gmra.mrb[0].mxu0 %v2196
        %v2455 = vpop.f32.mrb[0].mxu0
        %v2456 = vadd.f32 0.0, %v2455
        %v2457 = vpop.f32.mrb[0].mxu0
        %v2458 = vpop.f32.mrb[0].mxu0
        %v2459 = vadd.f32 0.0, %v2458
        %v2460 = vpop.f32.mrb[0].mxu0
        %2461 = vmatprep.mubr.bf16.mxu0 0
        %2462 = vmatmul.mubr.bf16.gmra.mrb[0].mxu0 %v2199
        %v2463 = vpop.f32.mrb[0].mxu0
        %v2464 = vadd.f32 0.0, %v2463
        %v2465 = vpop.f32.mrb[0].mxu0
        %v2466 = vpop.f32.mrb[0].mxu0
        %v2467 = vadd.f32 0.0, %v2466
        %v2468 = vpop.f32.mrb[0].mxu0
        %2469 = vmatprep.mubr.bf16.mxu0 0
        %2470 = vmatmul.mubr.bf16.gmra.mrb[0].mxu0 %v2202
        %v2471 = vpop.f32.mrb[0].mxu0
        %v2472 = vadd.f32 0.0, %v2471
        %v2473 = vpop.f32.mrb[0].mxu0
        %v2474 = vpop.f32.mrb[0].mxu0
        %v2475 = vadd.f32 0.0, %v2474
        %v2476 = vpop.f32.mrb[0].mxu0
        %2477 = vmatprep.mubr.bf16.mxu0 0
        %2478 = vmatmul.mubr.bf16.gmra.mrb[0].mxu0 %v2205
        %v2479 = vpop.f32.mrb[0].mxu0
        %v2480 = vadd.f32 0.0, %v2479
        %v2481 = vpop.f32.mrb[0].mxu0
        %v2482 = vpop.f32.mrb[0].mxu0
        %v2483 = vadd.f32 0.0, %v2482
        %v2484 = vpop.f32.mrb[0].mxu0
        %2485 = vmatprep.mubr.bf16.mxu0 0
        %2486 = vmatmul.mubr.bf16.gmra.mrb[0].mxu0 %v2208
        %v2487 = vpop.f32.mrb[0].mxu0
        %v2488 = vadd.f32 0.0, %v2487
        %v2489 = vpop.f32.mrb[0].mxu0
        %v2490 = vpop.f32.mrb[0].mxu0
        %v2491 = vadd.f32 0.0, %v2490
        %v2492 = vpop.f32.mrb[0].mxu0
        %2493 = vmatprep.mubr.bf16.mxu0 0
        %2494 = vmatmul.mubr.bf16.gmra.mrb[0].mxu0 %v2211
        %v2495 = vpop.f32.mrb[0].mxu0
        %v2496 = vadd.f32 0.0, %v2495
        %v2497 = vpop.f32.mrb[0].mxu0
        %v2498 = vpop.f32.mrb[0].mxu0
        %v2499 = vadd.f32 0.0, %v2498
        %v2500 = vpop.f32.mrb[0].mxu0
        %2501 = vdwg.mxu0
        %v2502 = vmax.f32 %v1638, %v2248
        %v2503 = vmax.f32 %v1641, %v2251
        %v2504 = vmax.f32 %v1646, %v2256
        %v2505 = vmax.f32 %v1649, %v2259
        %v2506 = vmax.f32 %v1654, %v2264
        %v2507 = vmax.f32 %v1657, %v2267
        %v2508 = vmax.f32 %v1662, %v2272
        %v2509 = vmax.f32 %v1665, %v2275
        %v2510 = vmax.f32 %v1670, %v2280
        %v2511 = vmax.f32 %v1673, %v2283
        %v2512 = vmax.f32 %v1678, %v2288
        %v2513 = vmax.f32 %v1681, %v2291
        %v2514 = vmax.f32 %v1686, %v2296
        %v2515 = vmax.f32 %v1689, %v2299
        %v2516 = vmax.f32 %v1694, %v2304
        %v2517 = vmax.f32 %v1697, %v2307
        %v2518 = vmax.f32 %v1702, %v2312
        %v2519 = vmax.f32 %v1705, %v2315
        %v2520 = vmax.f32 %v1710, %v2320
        %v2521 = vmax.f32 %v1713, %v2323
        %v2522 = vmax.f32 %v1718, %v2328
        %v2523 = vmax.f32 %v1721, %v2331
        %v2524 = vmax.f32 %v1726, %v2336
        %v2525 = vmax.f32 %v1729, %v2339
        %v2526 = vmax.f32 %v1734, %v2344
        %v2527 = vmax.f32 %v1737, %v2347
        %v2528 = vmax.f32 %v1742, %v2352
        %v2529 = vmax.f32 %v1745, %v2355
        %v2530 = vmax.f32 %v1750, %v2360
        %v2531 = vmax.f32 %v1753, %v2363
        %v2532 = vmax.f32 %v1758, %v2368
        %v2533 = vmax.f32 %v1761, %v2371
        %v2534 = vmax.f32 %v1766, %v2376
        %v2535 = vmax.f32 %v1769, %v2379
        %v2536 = vmax.f32 %v1774, %v2384
        %v2537 = vmax.f32 %v1777, %v2387
        %v2538 = vmax.f32 %v1782, %v2392
        %v2539 = vmax.f32 %v1785, %v2395
        %v2540 = vmax.f32 %v1790, %v2400
        %v2541 = vmax.f32 %v1793, %v2403
        %v2542 = vmax.f32 %v1798, %v2408
        %v2543 = vmax.f32 %v1801, %v2411
        %v2544 = vmax.f32 %v1806, %v2416
        %v2545 = vmax.f32 %v1809, %v2419
        %v2546 = vmax.f32 %v1814, %v2424
        %v2547 = vmax.f32 %v1817, %v2427
        %v2548 = vmax.f32 %v1822, %v2432
        %v2549 = vmax.f32 %v1825, %v2435
        %v2550 = vmax.f32 %v1830, %v2440
        %v2551 = vmax.f32 %v1833, %v2443
        %v2552 = vmax.f32 %v1838, %v2448
        %v2553 = vmax.f32 %v1841, %v2451
        %v2554 = vmax.f32 %v1846, %v2456
        %v2555 = vmax.f32 %v1849, %v2459
        %v2556 = vmax.f32 %v1854, %v2464
        %v2557 = vmax.f32 %v1857, %v2467
        %v2558 = vmax.f32 %v1862, %v2472
        %v2559 = vmax.f32 %v1865, %v2475
        %v2560 = vmax.f32 %v1870, %v2480
        %v2561 = vmax.f32 %v1873, %v2483
        %v2562 = vmax.f32 %v1878, %v2488
        %v2563 = vmax.f32 %v1881, %v2491
        %v2564 = vmax.f32 %v1886, %v2496
        %v2565 = vmax.f32 %v1889, %v2499
        %s2566 = scalar_lea.vmem %s1207, 512 [#allocation2]
        %v2567 = vld [vmem:[%s2566] sm:$0xf]
        %v2568 = vld [vmem:[%s2566 + $0x4] sm:$0xf]
        %v2569 = vld [vmem:[%s2566 + $0x8] sm:$0xf]
        %v2570 = vld [vmem:[%s2566 + $0xc] sm:$0xf]
        %v2571 = vld [vmem:[%s2566 + $0x10] sm:$0xf]
        %v2572 = vld [vmem:[%s2566 + $0x14] sm:$0xf]
        %v2573 = vld [vmem:[%s2566 + $0x18] sm:$0xf]
        %v2574 = vld [vmem:[%s2566 + $0x1c] sm:$0xf]
        %v2575 = vld [vmem:[%s2566 + $0x20] sm:$0xf]
        %v2576 = vld [vmem:[%s2566 + $0x24] sm:$0xf]
        %v2577 = vld [vmem:[%s2566 + $0x28] sm:$0xf]
        %v2578 = vld [vmem:[%s2566 + $0x2c] sm:$0xf]
        %v2579 = vld [vmem:[%s2566 + $0x30] sm:$0xf]
        %v2580 = vld [vmem:[%s2566 + $0x34] sm:$0xf]
        %v2581 = vld [vmem:[%s2566 + $0x38] sm:$0xf]
        %v2582 = vld [vmem:[%s2566 + $0x3c] sm:$0xf]
        %v2583 = vld [vmem:[%s2566 + $0x40] sm:$0xf]
        %v2584 = vld [vmem:[%s2566 + $0x44] sm:$0xf]
        %v2585 = vld [vmem:[%s2566 + $0x48] sm:$0xf]
        %v2586 = vld [vmem:[%s2566 + $0x4c] sm:$0xf]
        %v2587 = vld [vmem:[%s2566 + $0x50] sm:$0xf]
        %v2588 = vld [vmem:[%s2566 + $0x54] sm:$0xf]
        %v2589 = vld [vmem:[%s2566 + $0x58] sm:$0xf]
        %v2590 = vld [vmem:[%s2566 + $0x5c] sm:$0xf]
        %v2591 = vld [vmem:[%s2566 + $0x60] sm:$0xf]
        %v2592 = vld [vmem:[%s2566 + $0x64] sm:$0xf]
        %v2593 = vld [vmem:[%s2566 + $0x68] sm:$0xf]
        %v2594 = vld [vmem:[%s2566 + $0x6c] sm:$0xf]
        %v2595 = vld [vmem:[%s2566 + $0x70] sm:$0xf]
        %v2596 = vld [vmem:[%s2566 + $0x74] sm:$0xf]
        %v2597 = vld [vmem:[%s2566 + $0x78] sm:$0xf]
        %v2598 = vld [vmem:[%s2566 + $0x7c] sm:$0xf]
        %v2599 = vld [vmem:[%s2566 + $0x80] sm:$0xf]
        %v2600 = vld [vmem:[%s2566 + $0x84] sm:$0xf]
        %v2601 = vld [vmem:[%s2566 + $0x88] sm:$0xf]
        %v2602 = vld [vmem:[%s2566 + $0x8c] sm:$0xf]
        %v2603 = vld [vmem:[%s2566 + $0x90] sm:$0xf]
        %v2604 = vld [vmem:[%s2566 + $0x94] sm:$0xf]
        %v2605 = vld [vmem:[%s2566 + $0x98] sm:$0xf]
        %v2606 = vld [vmem:[%s2566 + $0x9c] sm:$0xf]
        %v2607 = vld [vmem:[%s2566 + $0xa0] sm:$0xf]
        %v2608 = vld [vmem:[%s2566 + $0xa4] sm:$0xf]
        %v2609 = vld [vmem:[%s2566 + $0xa8] sm:$0xf]
        %v2610 = vld [vmem:[%s2566 + $0xac] sm:$0xf]
        %v2611 = vld [vmem:[%s2566 + $0xb0] sm:$0xf]
        %v2612 = vld [vmem:[%s2566 + $0xb4] sm:$0xf]
        %v2613 = vld [vmem:[%s2566 + $0xb8] sm:$0xf]
        %v2614 = vld [vmem:[%s2566 + $0xbc] sm:$0xf]
        %v2615 = vld [vmem:[%s2566 + $0xc0] sm:$0xf]
        %v2616 = vld [vmem:[%s2566 + $0xc4] sm:$0xf]
        %v2617 = vld [vmem:[%s2566 + $0xc8] sm:$0xf]
        %v2618 = vld [vmem:[%s2566 + $0xcc] sm:$0xf]
        %v2619 = vld [vmem:[%s2566 + $0xd0] sm:$0xf]
        %v2620 = vld [vmem:[%s2566 + $0xd4] sm:$0xf]
        %v2621 = vld [vmem:[%s2566 + $0xd8] sm:$0xf]
        %v2622 = vld [vmem:[%s2566 + $0xdc] sm:$0xf]
        %v2623 = vld [vmem:[%s2566 + $0xe0] sm:$0xf]
        %v2624 = vld [vmem:[%s2566 + $0xe4] sm:$0xf]
        %v2625 = vld [vmem:[%s2566 + $0xe8] sm:$0xf]
        %v2626 = vld [vmem:[%s2566 + $0xec] sm:$0xf]
        %v2627 = vld [vmem:[%s2566 + $0xf0] sm:$0xf]
        %v2628 = vld [vmem:[%s2566 + $0xf4] sm:$0xf]
        %v2629 = vld [vmem:[%s2566 + $0xf8] sm:$0xf]
        %v2630 = vld [vmem:[%s2566 + $0xfc] sm:$0xf]
        %v2695 = vunpack.c.l.b16 %v2567
        %v2696 = vunpack.c.l.b16 %v2568
        %v2697 = vunpack.c.l.b16 %v2569
        %v2698 = vunpack.c.l.b16 %v2570
        %v2699 = vunpack.c.l.b16 %v2571
        %v2700 = vunpack.c.l.b16 %v2572
        %v2701 = vunpack.c.l.b16 %v2573
        %v2702 = vunpack.c.l.b16 %v2574
        %v2703 = vunpack.c.l.b16 %v2575
        %v2704 = vunpack.c.l.b16 %v2576
        %v2705 = vunpack.c.l.b16 %v2577
        %v2706 = vunpack.c.l.b16 %v2578
        %v2707 = vunpack.c.l.b16 %v2579
        %v2708 = vunpack.c.l.b16 %v2580
        %v2709 = vunpack.c.l.b16 %v2581
        %v2710 = vunpack.c.l.b16 %v2582
        %v2711 = vunpack.c.l.b16 %v2583
        %v2712 = vunpack.c.l.b16 %v2584
        %v2713 = vunpack.c.l.b16 %v2585
        %v2714 = vunpack.c.l.b16 %v2586
        %v2715 = vunpack.c.l.b16 %v2587
        %v2716 = vunpack.c.l.b16 %v2588
        %v2717 = vunpack.c.l.b16 %v2589
        %v2718 = vunpack.c.l.b16 %v2590
        %v2719 = vunpack.c.l.b16 %v2591
        %v2720 = vunpack.c.l.b16 %v2592
        %v2721 = vunpack.c.l.b16 %v2593
        %v2722 = vunpack.c.l.b16 %v2594
        %v2723 = vunpack.c.l.b16 %v2595
        %v2724 = vunpack.c.l.b16 %v2596
        %v2725 = vunpack.c.l.b16 %v2597
        %v2726 = vunpack.c.l.b16 %v2598
        %v2727 = vunpack.c.l.b16 %v2599
        %v2728 = vunpack.c.l.b16 %v2600
        %v2729 = vunpack.c.l.b16 %v2601
        %v2730 = vunpack.c.l.b16 %v2602
        %v2731 = vunpack.c.l.b16 %v2603
        %v2732 = vunpack.c.l.b16 %v2604
        %v2733 = vunpack.c.l.b16 %v2605
        %v2734 = vunpack.c.l.b16 %v2606
        %v2735 = vunpack.c.l.b16 %v2607
        %v2736 = vunpack.c.l.b16 %v2608
        %v2737 = vunpack.c.l.b16 %v2609
        %v2738 = vunpack.c.l.b16 %v2610
        %v2739 = vunpack.c.l.b16 %v2611
        %v2740 = vunpack.c.l.b16 %v2612
        %v2741 = vunpack.c.l.b16 %v2613
        %v2742 = vunpack.c.l.b16 %v2614
        %v2743 = vunpack.c.l.b16 %v2615
        %v2744 = vunpack.c.l.b16 %v2616
        %v2745 = vunpack.c.l.b16 %v2617
        %v2746 = vunpack.c.l.b16 %v2618
        %v2747 = vunpack.c.l.b16 %v2619
        %v2748 = vunpack.c.l.b16 %v2620
        %v2749 = vunpack.c.l.b16 %v2621
        %v2750 = vunpack.c.l.b16 %v2622
        %v2751 = vunpack.c.l.b16 %v2623
        %v2752 = vunpack.c.l.b16 %v2624
        %v2753 = vunpack.c.l.b16 %v2625
        %v2754 = vunpack.c.l.b16 %v2626
        %v2755 = vunpack.c.l.b16 %v2627
        %v2756 = vunpack.c.l.b16 %v2628
        %v2757 = vunpack.c.l.b16 %v2629
        %v2758 = vunpack.c.l.b16 %v2630
        %v2759 = vpack.c.b16 %v2696, %v2695
        %v2760 = vpack.c.b16 %v2698, %v2697
        %v2761 = vpack.c.b16 %v2700, %v2699
        %v2762 = vpack.c.b16 %v2702, %v2701
        %v2763 = vpack.c.b16 %v2704, %v2703
        %v2764 = vpack.c.b16 %v2706, %v2705
        %v2765 = vpack.c.b16 %v2708, %v2707
        %v2766 = vpack.c.b16 %v2710, %v2709
        %v2767 = vpack.c.b16 %v2712, %v2711
        %v2768 = vpack.c.b16 %v2714, %v2713
        %v2769 = vpack.c.b16 %v2716, %v2715
        %v2770 = vpack.c.b16 %v2718, %v2717
        %v2771 = vpack.c.b16 %v2720, %v2719
        %v2772 = vpack.c.b16 %v2722, %v2721
        %v2773 = vpack.c.b16 %v2724, %v2723
        %v2774 = vpack.c.b16 %v2726, %v2725
        %v2775 = vpack.c.b16 %v2728, %v2727
        %v2776 = vpack.c.b16 %v2730, %v2729
        %v2777 = vpack.c.b16 %v2732, %v2731
        %v2778 = vpack.c.b16 %v2734, %v2733
        %v2779 = vpack.c.b16 %v2736, %v2735
        %v2780 = vpack.c.b16 %v2738, %v2737
        %v2781 = vpack.c.b16 %v2740, %v2739
        %v2782 = vpack.c.b16 %v2742, %v2741
        %v2783 = vpack.c.b16 %v2744, %v2743
        %v2784 = vpack.c.b16 %v2746, %v2745
        %v2785 = vpack.c.b16 %v2748, %v2747
        %v2786 = vpack.c.b16 %v2750, %v2749
        %v2787 = vpack.c.b16 %v2752, %v2751
        %v2788 = vpack.c.b16 %v2754, %v2753
        %v2789 = vpack.c.b16 %v2756, %v2755
        %v2790 = vpack.c.b16 %v2758, %v2757
        %v2792 = vsel %vm1499, %v2759, 0
        %v2795 = vsel %vm1499, %v2760, 0
        %v2798 = vsel %vm1499, %v2761, 0
        %v2801 = vsel %vm1499, %v2762, 0
        %v2804 = vsel %vm1499, %v2763, 0
        %v2807 = vsel %vm1499, %v2764, 0
        %v2810 = vsel %vm1499, %v2765, 0
        %v2813 = vsel %vm1499, %v2766, 0
        %v2816 = vsel %vm1499, %v2767, 0
        %v2819 = vsel %vm1499, %v2768, 0
        %v2822 = vsel %vm1499, %v2769, 0
        %v2825 = vsel %vm1499, %v2770, 0
        %v2828 = vsel %vm1499, %v2771, 0
        %v2831 = vsel %vm1499, %v2772, 0
        %v2834 = vsel %vm1499, %v2773, 0
        %v2837 = vsel %vm1499, %v2774, 0
        %v2840 = vsel %vm1499, %v2775, 0
        %v2843 = vsel %vm1499, %v2776, 0
        %v2846 = vsel %vm1499, %v2777, 0
        %v2849 = vsel %vm1499, %v2778, 0
        %v2852 = vsel %vm1499, %v2779, 0
        %v2855 = vsel %vm1499, %v2780, 0
        %v2858 = vsel %vm1499, %v2781, 0
        %v2861 = vsel %vm1499, %v2782, 0
        %v2864 = vsel %vm1499, %v2783, 0
        %v2867 = vsel %vm1499, %v2784, 0
        %v2870 = vsel %vm1499, %v2785, 0
        %v2873 = vsel %vm1499, %v2786, 0
        %v2876 = vsel %vm1499, %v2787, 0
        %v2879 = vsel %vm1499, %v2788, 0
        %v2882 = vsel %vm1499, %v2789, 0
        %v2885 = vsel %vm1499, %v2790, 0
        %2887 = vmatprep.subr.bf16.mxu0 0
        %2888 = vmatpush1.bf16.msra.mxu0 %v1490
        %2889 = vmatprep.subr.bf16.mxu0 0
        %2890 = vmatpush1.bf16.msra.mxu0 %v1491
        %2891 = vmatprep.subr.bf16.mxu0 0
        %2892 = vmatpush1.bf16.msra.mxu0 %v1492
        %2893 = vmatprep.subr.bf16.mxu0 0
        %2894 = vmatpush1.bf16.msra.mxu0 %v1493
        %2895 = vmatprep.subr.bf16.mxu0 0
        %2896 = vmatpush1.bf16.msra.mxu0 %v1601
        %2897 = vmatprep.subr.bf16.mxu0 0
        %2898 = vmatpush1.bf16.msra.mxu0 0
        %2899 = vmatprep.subr.bf16.mxu0 0
        %2900 = vmatpush1.bf16.msra.mxu0 0
        %2901 = vmatprep.subr.bf16.mxu0 0
        %2902 = vmatpush1.bf16.msra.mxu0 0
        %2903 = vmatprep.subr.bf16.mxu0 0
        %2904 = vmatpush1.bf16.msra.mxu0 0
        %2905 = vmatprep.subr.bf16.mxu0 0
        %2906 = vmatpush1.bf16.msra.mxu0 0
        %2907 = vmatprep.subr.bf16.mxu0 0
        %2908 = vmatpush1.bf16.msra.mxu0 0
        %2909 = vmatprep.subr.bf16.mxu0 0
        %2910 = vmatpush1.bf16.msra.mxu0 0
        %2911 = vmatprep.subr.bf16.mxu0 0
        %2912 = vmatpush1.bf16.msra.mxu0 0
        %2913 = vmatprep.subr.bf16.mxu0 0
        %2914 = vmatpush1.bf16.msra.mxu0 0
        %2915 = vmatprep.subr.bf16.mxu0 0
        %2916 = vmatpush1.bf16.msra.mxu0 0
        %2917 = vmatprep.subr.bf16.mxu0 0
        %2918 = vmatpush1.bf16.msra.mxu0 0
        %2919 = vmatprep.mubr.bf16.mxu0 0
        %2920 = vmatmul.mubr.bf16.gmra.mrb[0].mxu0 %v2792
        %v2921 = vpop.f32.mrb[0].mxu0
        %v2922 = vadd.f32 0.0, %v2921
        %v2923 = vpop.f32.mrb[0].mxu0
        %v2924 = vpop.f32.mrb[0].mxu0
        %v2925 = vadd.f32 0.0, %v2924
        %v2926 = vpop.f32.mrb[0].mxu0
        %2927 = vmatprep.mubr.bf16.mxu0 0
        %2928 = vmatmul.mubr.bf16.gmra.mrb[0].mxu0 %v2795
        %v2929 = vpop.f32.mrb[0].mxu0
        %v2930 = vadd.f32 0.0, %v2929
        %v2931 = vpop.f32.mrb[0].mxu0
        %v2932 = vpop.f32.mrb[0].mxu0
        %v2933 = vadd.f32 0.0, %v2932
        %v2934 = vpop.f32.mrb[0].mxu0
        %2935 = vmatprep.mubr.bf16.mxu0 0
        %2936 = vmatmul.mubr.bf16.gmra.mrb[0].mxu0 %v2798
        %v2937 = vpop.f32.mrb[0].mxu0
        %v2938 = vadd.f32 0.0, %v2937
        %v2939 = vpop.f32.mrb[0].mxu0
        %v2940 = vpop.f32.mrb[0].mxu0
        %v2941 = vadd.f32 0.0, %v2940
        %v2942 = vpop.f32.mrb[0].mxu0
        %2943 = vmatprep.mubr.bf16.mxu0 0
        %2944 = vmatmul.mubr.bf16.gmra.mrb[0].mxu0 %v2801
        %v2945 = vpop.f32.mrb[0].mxu0
        %v2946 = vadd.f32 0.0, %v2945
        %v2947 = vpop.f32.mrb[0].mxu0
        %v2948 = vpop.f32.mrb[0].mxu0
        %v2949 = vadd.f32 0.0, %v2948
        %v2950 = vpop.f32.mrb[0].mxu0
        %2951 = vmatprep.mubr.bf16.mxu0 0
        %2952 = vmatmul.mubr.bf16.gmra.mrb[0].mxu0 %v2804
        %v2953 = vpop.f32.mrb[0].mxu0
        %v2954 = vadd.f32 0.0, %v2953
        %v2955 = vpop.f32.mrb[0].mxu0
        %v2956 = vpop.f32.mrb[0].mxu0
        %v2957 = vadd.f32 0.0, %v2956
        %v2958 = vpop.f32.mrb[0].mxu0
        %2959 = vmatprep.mubr.bf16.mxu0 0
        %2960 = vmatmul.mubr.bf16.gmra.mrb[0].mxu0 %v2807
        %v2961 = vpop.f32.mrb[0].mxu0
        %v2962 = vadd.f32 0.0, %v2961
        %v2963 = vpop.f32.mrb[0].mxu0
        %v2964 = vpop.f32.mrb[0].mxu0
        %v2965 = vadd.f32 0.0, %v2964
        %v2966 = vpop.f32.mrb[0].mxu0
        %2967 = vmatprep.mubr.bf16.mxu0 0
        %2968 = vmatmul.mubr.bf16.gmra.mrb[0].mxu0 %v2810
        %v2969 = vpop.f32.mrb[0].mxu0
        %v2970 = vadd.f32 0.0, %v2969
        %v2971 = vpop.f32.mrb[0].mxu0
        %v2972 = vpop.f32.mrb[0].mxu0
        %v2973 = vadd.f32 0.0, %v2972
        %v2974 = vpop.f32.mrb[0].mxu0
        %2975 = vmatprep.mubr.bf16.mxu0 0
        %2976 = vmatmul.mubr.bf16.gmra.mrb[0].mxu0 %v2813
        %v2977 = vpop.f32.mrb[0].mxu0
        %v2978 = vadd.f32 0.0, %v2977
        %v2979 = vpop.f32.mrb[0].mxu0
        %v2980 = vpop.f32.mrb[0].mxu0
        %v2981 = vadd.f32 0.0, %v2980
        %v2982 = vpop.f32.mrb[0].mxu0
        %2983 = vmatprep.mubr.bf16.mxu0 0
        %2984 = vmatmul.mubr.bf16.gmra.mrb[0].mxu0 %v2816
        %v2985 = vpop.f32.mrb[0].mxu0
        %v2986 = vadd.f32 0.0, %v2985
        %v2987 = vpop.f32.mrb[0].mxu0
        %v2988 = vpop.f32.mrb[0].mxu0
        %v2989 = vadd.f32 0.0, %v2988
        %v2990 = vpop.f32.mrb[0].mxu0
        %2991 = vmatprep.mubr.bf16.mxu0 0
        %2992 = vmatmul.mubr.bf16.gmra.mrb[0].mxu0 %v2819
        %v2993 = vpop.f32.mrb[0].mxu0
        %v2994 = vadd.f32 0.0, %v2993
        %v2995 = vpop.f32.mrb[0].mxu0
        %v2996 = vpop.f32.mrb[0].mxu0
        %v2997 = vadd.f32 0.0, %v2996
        %v2998 = vpop.f32.mrb[0].mxu0
        %2999 = vmatprep.mubr.bf16.mxu0 0
        %3000 = vmatmul.mubr.bf16.gmra.mrb[0].mxu0 %v2822
        %v3001 = vpop.f32.mrb[0].mxu0
        %v3002 = vadd.f32 0.0, %v3001
        %v3003 = vpop.f32.mrb[0].mxu0
        %v3004 = vpop.f32.mrb[0].mxu0
        %v3005 = vadd.f32 0.0, %v3004
        %v3006 = vpop.f32.mrb[0].mxu0
        %3007 = vmatprep.mubr.bf16.mxu0 0
        %3008 = vmatmul.mubr.bf16.gmra.mrb[0].mxu0 %v2825
        %v3009 = vpop.f32.mrb[0].mxu0
        %v3010 = vadd.f32 0.0, %v3009
        %v3011 = vpop.f32.mrb[0].mxu0
        %v3012 = vpop.f32.mrb[0].mxu0
        %v3013 = vadd.f32 0.0, %v3012
        %v3014 = vpop.f32.mrb[0].mxu0
        %3015 = vmatprep.mubr.bf16.mxu0 0
        %3016 = vmatmul.mubr.bf16.gmra.mrb[0].mxu0 %v2828
        %v3017 = vpop.f32.mrb[0].mxu0
        %v3018 = vadd.f32 0.0, %v3017
        %v3019 = vpop.f32.mrb[0].mxu0
        %v3020 = vpop.f32.mrb[0].mxu0
        %v3021 = vadd.f32 0.0, %v3020
        %v3022 = vpop.f32.mrb[0].mxu0
        %3023 = vmatprep.mubr.bf16.mxu0 0
        %3024 = vmatmul.mubr.bf16.gmra.mrb[0].mxu0 %v2831
        %v3025 = vpop.f32.mrb[0].mxu0
        %v3026 = vadd.f32 0.0, %v3025
        %v3027 = vpop.f32.mrb[0].mxu0
        %v3028 = vpop.f32.mrb[0].mxu0
        %v3029 = vadd.f32 0.0, %v3028
        %v3030 = vpop.f32.mrb[0].mxu0
        %3031 = vmatprep.mubr.bf16.mxu0 0
        %3032 = vmatmul.mubr.bf16.gmra.mrb[0].mxu0 %v2834
        %v3033 = vpop.f32.mrb[0].mxu0
        %v3034 = vadd.f32 0.0, %v3033
        %v3035 = vpop.f32.mrb[0].mxu0
        %v3036 = vpop.f32.mrb[0].mxu0
        %v3037 = vadd.f32 0.0, %v3036
        %v3038 = vpop.f32.mrb[0].mxu0
        %3039 = vmatprep.mubr.bf16.mxu0 0
        %3040 = vmatmul.mubr.bf16.gmra.mrb[0].mxu0 %v2837
        %v3041 = vpop.f32.mrb[0].mxu0
        %v3042 = vadd.f32 0.0, %v3041
        %v3043 = vpop.f32.mrb[0].mxu0
        %v3044 = vpop.f32.mrb[0].mxu0
        %v3045 = vadd.f32 0.0, %v3044
        %v3046 = vpop.f32.mrb[0].mxu0
        %3047 = vmatprep.mubr.bf16.mxu0 0
        %3048 = vmatmul.mubr.bf16.gmra.mrb[0].mxu0 %v2840
        %v3049 = vpop.f32.mrb[0].mxu0
        %v3050 = vadd.f32 0.0, %v3049
        %v3051 = vpop.f32.mrb[0].mxu0
        %v3052 = vpop.f32.mrb[0].mxu0
        %v3053 = vadd.f32 0.0, %v3052
        %v3054 = vpop.f32.mrb[0].mxu0
        %3055 = vmatprep.mubr.bf16.mxu0 0
        %3056 = vmatmul.mubr.bf16.gmra.mrb[0].mxu0 %v2843
        %v3057 = vpop.f32.mrb[0].mxu0
        %v3058 = vadd.f32 0.0, %v3057
        %v3059 = vpop.f32.mrb[0].mxu0
        %v3060 = vpop.f32.mrb[0].mxu0
        %v3061 = vadd.f32 0.0, %v3060
        %v3062 = vpop.f32.mrb[0].mxu0
        %3063 = vmatprep.mubr.bf16.mxu0 0
        %3064 = vmatmul.mubr.bf16.gmra.mrb[0].mxu0 %v2846
        %v3065 = vpop.f32.mrb[0].mxu0
        %v3066 = vadd.f32 0.0, %v3065
        %v3067 = vpop.f32.mrb[0].mxu0
        %v3068 = vpop.f32.mrb[0].mxu0
        %v3069 = vadd.f32 0.0, %v3068
        %v3070 = vpop.f32.mrb[0].mxu0
        %3071 = vmatprep.mubr.bf16.mxu0 0
        %3072 = vmatmul.mubr.bf16.gmra.mrb[0].mxu0 %v2849
        %v3073 = vpop.f32.mrb[0].mxu0
        %v3074 = vadd.f32 0.0, %v3073
        %v3075 = vpop.f32.mrb[0].mxu0
        %v3076 = vpop.f32.mrb[0].mxu0
        %v3077 = vadd.f32 0.0, %v3076
        %v3078 = vpop.f32.mrb[0].mxu0
        %3079 = vmatprep.mubr.bf16.mxu0 0
        %3080 = vmatmul.mubr.bf16.gmra.mrb[0].mxu0 %v2852
        %v3081 = vpop.f32.mrb[0].mxu0
        %v3082 = vadd.f32 0.0, %v3081
        %v3083 = vpop.f32.mrb[0].mxu0
        %v3084 = vpop.f32.mrb[0].mxu0
        %v3085 = vadd.f32 0.0, %v3084
        %v3086 = vpop.f32.mrb[0].mxu0
        %3087 = vmatprep.mubr.bf16.mxu0 0
        %3088 = vmatmul.mubr.bf16.gmra.mrb[0].mxu0 %v2855
        %v3089 = vpop.f32.mrb[0].mxu0
        %v3090 = vadd.f32 0.0, %v3089
        %v3091 = vpop.f32.mrb[0].mxu0
        %v3092 = vpop.f32.mrb[0].mxu0
        %v3093 = vadd.f32 0.0, %v3092
        %v3094 = vpop.f32.mrb[0].mxu0
        %3095 = vmatprep.mubr.bf16.mxu0 0
        %3096 = vmatmul.mubr.bf16.gmra.mrb[0].mxu0 %v2858
        %v3097 = vpop.f32.mrb[0].mxu0
        %v3098 = vadd.f32 0.0, %v3097
        %v3099 = vpop.f32.mrb[0].mxu0
        %v3100 = vpop.f32.mrb[0].mxu0
        %v3101 = vadd.f32 0.0, %v3100
        %v3102 = vpop.f32.mrb[0].mxu0
        %3103 = vmatprep.mubr.bf16.mxu0 0
        %3104 = vmatmul.mubr.bf16.gmra.mrb[0].mxu0 %v2861
        %v3105 = vpop.f32.mrb[0].mxu0
        %v3106 = vadd.f32 0.0, %v3105
        %v3107 = vpop.f32.mrb[0].mxu0
        %v3108 = vpop.f32.mrb[0].mxu0
        %v3109 = vadd.f32 0.0, %v3108
        %v3110 = vpop.f32.mrb[0].mxu0
        %3111 = vmatprep.mubr.bf16.mxu0 0
        %3112 = vmatmul.mubr.bf16.gmra.mrb[0].mxu0 %v2864
        %v3113 = vpop.f32.mrb[0].mxu0
        %v3114 = vadd.f32 0.0, %v3113
        %v3115 = vpop.f32.mrb[0].mxu0
        %v3116 = vpop.f32.mrb[0].mxu0
        %v3117 = vadd.f32 0.0, %v3116
        %v3118 = vpop.f32.mrb[0].mxu0
        %3119 = vmatprep.mubr.bf16.mxu0 0
        %3120 = vmatmul.mubr.bf16.gmra.mrb[0].mxu0 %v2867
        %v3121 = vpop.f32.mrb[0].mxu0
        %v3122 = vadd.f32 0.0, %v3121
        %v3123 = vpop.f32.mrb[0].mxu0
        %v3124 = vpop.f32.mrb[0].mxu0
        %v3125 = vadd.f32 0.0, %v3124
        %v3126 = vpop.f32.mrb[0].mxu0
        %3127 = vmatprep.mubr.bf16.mxu0 0
        %3128 = vmatmul.mubr.bf16.gmra.mrb[0].mxu0 %v2870
        %v3129 = vpop.f32.mrb[0].mxu0
        %v3130 = vadd.f32 0.0, %v3129
        %v3131 = vpop.f32.mrb[0].mxu0
        %v3132 = vpop.f32.mrb[0].mxu0
        %v3133 = vadd.f32 0.0, %v3132
        %v3134 = vpop.f32.mrb[0].mxu0
        %3135 = vmatprep.mubr.bf16.mxu0 0
        %3136 = vmatmul.mubr.bf16.gmra.mrb[0].mxu0 %v2873
        %v3137 = vpop.f32.mrb[0].mxu0
        %v3138 = vadd.f32 0.0, %v3137
        %v3139 = vpop.f32.mrb[0].mxu0
        %v3140 = vpop.f32.mrb[0].mxu0
        %v3141 = vadd.f32 0.0, %v3140
        %v3142 = vpop.f32.mrb[0].mxu0
        %3143 = vmatprep.mubr.bf16.mxu0 0
        %3144 = vmatmul.mubr.bf16.gmra.mrb[0].mxu0 %v2876
        %v3145 = vpop.f32.mrb[0].mxu0
        %v3146 = vadd.f32 0.0, %v3145
        %v3147 = vpop.f32.mrb[0].mxu0
        %v3148 = vpop.f32.mrb[0].mxu0
        %v3149 = vadd.f32 0.0, %v3148
        %v3150 = vpop.f32.mrb[0].mxu0
        %3151 = vmatprep.mubr.bf16.mxu0 0
        %3152 = vmatmul.mubr.bf16.gmra.mrb[0].mxu0 %v2879
        %v3153 = vpop.f32.mrb[0].mxu0
        %v3154 = vadd.f32 0.0, %v3153
        %v3155 = vpop.f32.mrb[0].mxu0
        %v3156 = vpop.f32.mrb[0].mxu0
        %v3157 = vadd.f32 0.0, %v3156
        %v3158 = vpop.f32.mrb[0].mxu0
        %3159 = vmatprep.mubr.bf16.mxu0 0
        %3160 = vmatmul.mubr.bf16.gmra.mrb[0].mxu0 %v2882
        %v3161 = vpop.f32.mrb[0].mxu0
        %v3162 = vadd.f32 0.0, %v3161
        %v3163 = vpop.f32.mrb[0].mxu0
        %v3164 = vpop.f32.mrb[0].mxu0
        %v3165 = vadd.f32 0.0, %v3164
        %v3166 = vpop.f32.mrb[0].mxu0
        %3167 = vmatprep.mubr.bf16.mxu0 0
        %3168 = vmatmul.mubr.bf16.gmra.mrb[0].mxu0 %v2885
        %v3169 = vpop.f32.mrb[0].mxu0
        %v3170 = vadd.f32 0.0, %v3169
        %v3171 = vpop.f32.mrb[0].mxu0
        %v3172 = vpop.f32.mrb[0].mxu0
        %v3173 = vadd.f32 0.0, %v3172
        %v3174 = vpop.f32.mrb[0].mxu0
        %3175 = vdwg.mxu0
        %v3176 = vmax.f32 %v2502, %v2922
        %v3177 = vmax.f32 %v2503, %v2925
        %v3178 = vmax.f32 %v2504, %v2930
        %v3179 = vmax.f32 %v2505, %v2933
        %v3180 = vmax.f32 %v2506, %v2938
        %v3181 = vmax.f32 %v2507, %v2941
        %v3182 = vmax.f32 %v2508, %v2946
        %v3183 = vmax.f32 %v2509, %v2949
        %v3184 = vmax.f32 %v2510, %v2954
        %v3185 = vmax.f32 %v2511, %v2957
        %v3186 = vmax.f32 %v2512, %v2962
        %v3187 = vmax.f32 %v2513, %v2965
        %v3188 = vmax.f32 %v2514, %v2970
        %v3189 = vmax.f32 %v2515, %v2973
        %v3190 = vmax.f32 %v2516, %v2978
        %v3191 = vmax.f32 %v2517, %v2981
        %v3192 = vmax.f32 %v2518, %v2986
        %v3193 = vmax.f32 %v2519, %v2989
        %v3194 = vmax.f32 %v2520, %v2994
        %v3195 = vmax.f32 %v2521, %v2997
        %v3196 = vmax.f32 %v2522, %v3002
        %v3197 = vmax.f32 %v2523, %v3005
        %v3198 = vmax.f32 %v2524, %v3010
        %v3199 = vmax.f32 %v2525, %v3013
        %v3200 = vmax.f32 %v2526, %v3018
        %v3201 = vmax.f32 %v2527, %v3021
        %v3202 = vmax.f32 %v2528, %v3026
        %v3203 = vmax.f32 %v2529, %v3029
        %v3204 = vmax.f32 %v2530, %v3034
        %v3205 = vmax.f32 %v2531, %v3037
        %v3206 = vmax.f32 %v2532, %v3042
        %v3207 = vmax.f32 %v2533, %v3045
        %v3208 = vmax.f32 %v2534, %v3050
        %v3209 = vmax.f32 %v2535, %v3053
        %v3210 = vmax.f32 %v2536, %v3058
        %v3211 = vmax.f32 %v2537, %v3061
        %v3212 = vmax.f32 %v2538, %v3066
        %v3213 = vmax.f32 %v2539, %v3069
        %v3214 = vmax.f32 %v2540, %v3074
        %v3215 = vmax.f32 %v2541, %v3077
        %v3216 = vmax.f32 %v2542, %v3082
        %v3217 = vmax.f32 %v2543, %v3085
        %v3218 = vmax.f32 %v2544, %v3090
        %v3219 = vmax.f32 %v2545, %v3093
        %v3220 = vmax.f32 %v2546, %v3098
        %v3221 = vmax.f32 %v2547, %v3101
        %v3222 = vmax.f32 %v2548, %v3106
        %v3223 = vmax.f32 %v2549, %v3109
        %v3224 = vmax.f32 %v2550, %v3114
        %v3225 = vmax.f32 %v2551, %v3117
        %v3226 = vmax.f32 %v2552, %v3122
        %v3227 = vmax.f32 %v2553, %v3125
        %v3228 = vmax.f32 %v2554, %v3130
        %v3229 = vmax.f32 %v2555, %v3133
        %v3230 = vmax.f32 %v2556, %v3138
        %v3231 = vmax.f32 %v2557, %v3141
        %v3232 = vmax.f32 %v2558, %v3146
        %v3233 = vmax.f32 %v2559, %v3149
        %v3234 = vmax.f32 %v2560, %v3154
        %v3235 = vmax.f32 %v2561, %v3157
        %v3236 = vmax.f32 %v2562, %v3162
        %v3237 = vmax.f32 %v2563, %v3165
        %v3238 = vmax.f32 %v2564, %v3170
        %v3239 = vmax.f32 %v2565, %v3173
        %s3240 = scalar_lea.vmem %s1207, 768 [#allocation2]
        %v3241 = vld [vmem:[%s3240] sm:$0xf]
        %v3242 = vld [vmem:[%s3240 + $0x4] sm:$0xf]
        %v3243 = vld [vmem:[%s3240 + $0x8] sm:$0xf]
        %v3244 = vld [vmem:[%s3240 + $0xc] sm:$0xf]
        %v3245 = vld [vmem:[%s3240 + $0x10] sm:$0xf]
        %v3246 = vld [vmem:[%s3240 + $0x14] sm:$0xf]
        %v3247 = vld [vmem:[%s3240 + $0x18] sm:$0xf]
        %v3248 = vld [vmem:[%s3240 + $0x1c] sm:$0xf]
        %v3249 = vld [vmem:[%s3240 + $0x20] sm:$0xf]
        %v3250 = vld [vmem:[%s3240 + $0x24] sm:$0xf]
        %v3251 = vld [vmem:[%s3240 + $0x28] sm:$0xf]
        %v3252 = vld [vmem:[%s3240 + $0x2c] sm:$0xf]
        %v3253 = vld [vmem:[%s3240 + $0x30] sm:$0xf]
        %v3254 = vld [vmem:[%s3240 + $0x34] sm:$0xf]
        %v3255 = vld [vmem:[%s3240 + $0x38] sm:$0xf]
        %v3256 = vld [vmem:[%s3240 + $0x3c] sm:$0xf]
        %v3257 = vld [vmem:[%s3240 + $0x40] sm:$0xf]
        %v3258 = vld [vmem:[%s3240 + $0x44] sm:$0xf]
        %v3259 = vld [vmem:[%s3240 + $0x48] sm:$0xf]
        %v3260 = vld [vmem:[%s3240 + $0x4c] sm:$0xf]
        %v3261 = vld [vmem:[%s3240 + $0x50] sm:$0xf]
        %v3262 = vld [vmem:[%s3240 + $0x54] sm:$0xf]
        %v3263 = vld [vmem:[%s3240 + $0x58] sm:$0xf]
        %v3264 = vld [vmem:[%s3240 + $0x5c] sm:$0xf]
        %v3265 = vld [vmem:[%s3240 + $0x60] sm:$0xf]
        %v3266 = vld [vmem:[%s3240 + $0x64] sm:$0xf]
        %v3267 = vld [vmem:[%s3240 + $0x68] sm:$0xf]
        %v3268 = vld [vmem:[%s3240 + $0x6c] sm:$0xf]
        %v3269 = vld [vmem:[%s3240 + $0x70] sm:$0xf]
        %v3270 = vld [vmem:[%s3240 + $0x74] sm:$0xf]
        %v3271 = vld [vmem:[%s3240 + $0x78] sm:$0xf]
        %v3272 = vld [vmem:[%s3240 + $0x7c] sm:$0xf]
        %v3273 = vld [vmem:[%s3240 + $0x80] sm:$0xf]
        %v3274 = vld [vmem:[%s3240 + $0x84] sm:$0xf]
        %v3275 = vld [vmem:[%s3240 + $0x88] sm:$0xf]
        %v3276 = vld [vmem:[%s3240 + $0x8c] sm:$0xf]
        %v3277 = vld [vmem:[%s3240 + $0x90] sm:$0xf]
        %v3278 = vld [vmem:[%s3240 + $0x94] sm:$0xf]
        %v3279 = vld [vmem:[%s3240 + $0x98] sm:$0xf]
        %v3280 = vld [vmem:[%s3240 + $0x9c] sm:$0xf]
        %v3281 = vld [vmem:[%s3240 + $0xa0] sm:$0xf]
        %v3282 = vld [vmem:[%s3240 + $0xa4] sm:$0xf]
        %v3283 = vld [vmem:[%s3240 + $0xa8] sm:$0xf]
        %v3284 = vld [vmem:[%s3240 + $0xac] sm:$0xf]
        %v3285 = vld [vmem:[%s3240 + $0xb0] sm:$0xf]
        %v3286 = vld [vmem:[%s3240 + $0xb4] sm:$0xf]
        %v3287 = vld [vmem:[%s3240 + $0xb8] sm:$0xf]
        %v3288 = vld [vmem:[%s3240 + $0xbc] sm:$0xf]
        %v3289 = vld [vmem:[%s3240 + $0xc0] sm:$0xf]
        %v3290 = vld [vmem:[%s3240 + $0xc4] sm:$0xf]
        %v3291 = vld [vmem:[%s3240 + $0xc8] sm:$0xf]
        %v3292 = vld [vmem:[%s3240 + $0xcc] sm:$0xf]
        %v3293 = vld [vmem:[%s3240 + $0xd0] sm:$0xf]
        %v3294 = vld [vmem:[%s3240 + $0xd4] sm:$0xf]
        %v3295 = vld [vmem:[%s3240 + $0xd8] sm:$0xf]
        %v3296 = vld [vmem:[%s3240 + $0xdc] sm:$0xf]
        %v3297 = vld [vmem:[%s3240 + $0xe0] sm:$0xf]
        %v3298 = vld [vmem:[%s3240 + $0xe4] sm:$0xf]
        %v3299 = vld [vmem:[%s3240 + $0xe8] sm:$0xf]
        %v3300 = vld [vmem:[%s3240 + $0xec] sm:$0xf]
        %v3301 = vld [vmem:[%s3240 + $0xf0] sm:$0xf]
        %v3302 = vld [vmem:[%s3240 + $0xf4] sm:$0xf]
        %v3303 = vld [vmem:[%s3240 + $0xf8] sm:$0xf]
        %v3304 = vld [vmem:[%s3240 + $0xfc] sm:$0xf]
        %v3369 = vunpack.c.l.b16 %v3241
        %v3370 = vunpack.c.l.b16 %v3242
        %v3371 = vunpack.c.l.b16 %v3243
        %v3372 = vunpack.c.l.b16 %v3244
        %v3373 = vunpack.c.l.b16 %v3245
        %v3374 = vunpack.c.l.b16 %v3246
        %v3375 = vunpack.c.l.b16 %v3247
        %v3376 = vunpack.c.l.b16 %v3248
        %v3377 = vunpack.c.l.b16 %v3249
        %v3378 = vunpack.c.l.b16 %v3250
        %v3379 = vunpack.c.l.b16 %v3251
        %v3380 = vunpack.c.l.b16 %v3252
        %v3381 = vunpack.c.l.b16 %v3253
        %v3382 = vunpack.c.l.b16 %v3254
        %v3383 = vunpack.c.l.b16 %v3255
        %v3384 = vunpack.c.l.b16 %v3256
        %v3385 = vunpack.c.l.b16 %v3257
        %v3386 = vunpack.c.l.b16 %v3258
        %v3387 = vunpack.c.l.b16 %v3259
        %v3388 = vunpack.c.l.b16 %v3260
        %v3389 = vunpack.c.l.b16 %v3261
        %v3390 = vunpack.c.l.b16 %v3262
        %v3391 = vunpack.c.l.b16 %v3263
        %v3392 = vunpack.c.l.b16 %v3264
        %v3393 = vunpack.c.l.b16 %v3265
        %v3394 = vunpack.c.l.b16 %v3266
        %v3395 = vunpack.c.l.b16 %v3267
        %v3396 = vunpack.c.l.b16 %v3268
        %v3397 = vunpack.c.l.b16 %v3269
        %v3398 = vunpack.c.l.b16 %v3270
        %v3399 = vunpack.c.l.b16 %v3271
        %v3400 = vunpack.c.l.b16 %v3272
        %v3401 = vunpack.c.l.b16 %v3273
        %v3402 = vunpack.c.l.b16 %v3274
        %v3403 = vunpack.c.l.b16 %v3275
        %v3404 = vunpack.c.l.b16 %v3276
        %v3405 = vunpack.c.l.b16 %v3277
        %v3406 = vunpack.c.l.b16 %v3278
        %v3407 = vunpack.c.l.b16 %v3279
        %v3408 = vunpack.c.l.b16 %v3280
        %v3409 = vunpack.c.l.b16 %v3281
        %v3410 = vunpack.c.l.b16 %v3282
        %v3411 = vunpack.c.l.b16 %v3283
        %v3412 = vunpack.c.l.b16 %v3284
        %v3413 = vunpack.c.l.b16 %v3285
        %v3414 = vunpack.c.l.b16 %v3286
        %v3415 = vunpack.c.l.b16 %v3287
        %v3416 = vunpack.c.l.b16 %v3288
        %v3417 = vunpack.c.l.b16 %v3289
        %v3418 = vunpack.c.l.b16 %v3290
        %v3419 = vunpack.c.l.b16 %v3291
        %v3420 = vunpack.c.l.b16 %v3292
        %v3421 = vunpack.c.l.b16 %v3293
        %v3422 = vunpack.c.l.b16 %v3294
        %v3423 = vunpack.c.l.b16 %v3295
        %v3424 = vunpack.c.l.b16 %v3296
        %v3425 = vunpack.c.l.b16 %v3297
        %v3426 = vunpack.c.l.b16 %v3298
        %v3427 = vunpack.c.l.b16 %v3299
        %v3428 = vunpack.c.l.b16 %v3300
        %v3429 = vunpack.c.l.b16 %v3301
        %v3430 = vunpack.c.l.b16 %v3302
        %v3431 = vunpack.c.l.b16 %v3303
        %v3432 = vunpack.c.l.b16 %v3304
        %v3433 = vpack.c.b16 %v3370, %v3369
        %v3434 = vpack.c.b16 %v3372, %v3371
        %v3435 = vpack.c.b16 %v3374, %v3373
        %v3436 = vpack.c.b16 %v3376, %v3375
        %v3437 = vpack.c.b16 %v3378, %v3377
        %v3438 = vpack.c.b16 %v3380, %v3379
        %v3439 = vpack.c.b16 %v3382, %v3381
        %v3440 = vpack.c.b16 %v3384, %v3383
        %v3441 = vpack.c.b16 %v3386, %v3385
        %v3442 = vpack.c.b16 %v3388, %v3387
        %v3443 = vpack.c.b16 %v3390, %v3389
        %v3444 = vpack.c.b16 %v3392, %v3391
        %v3445 = vpack.c.b16 %v3394, %v3393
        %v3446 = vpack.c.b16 %v3396, %v3395
        %v3447 = vpack.c.b16 %v3398, %v3397
        %v3448 = vpack.c.b16 %v3400, %v3399
        %v3449 = vpack.c.b16 %v3402, %v3401
        %v3450 = vpack.c.b16 %v3404, %v3403
        %v3451 = vpack.c.b16 %v3406, %v3405
        %v3452 = vpack.c.b16 %v3408, %v3407
        %v3453 = vpack.c.b16 %v3410, %v3409
        %v3454 = vpack.c.b16 %v3412, %v3411
        %v3455 = vpack.c.b16 %v3414, %v3413
        %v3456 = vpack.c.b16 %v3416, %v3415
        %v3457 = vpack.c.b16 %v3418, %v3417
        %v3458 = vpack.c.b16 %v3420, %v3419
        %v3459 = vpack.c.b16 %v3422, %v3421
        %v3460 = vpack.c.b16 %v3424, %v3423
        %v3461 = vpack.c.b16 %v3426, %v3425
        %v3462 = vpack.c.b16 %v3428, %v3427
        %v3463 = vpack.c.b16 %v3430, %v3429
        %v3464 = vpack.c.b16 %v3432, %v3431
        %v3466 = vsel %vm1499, %v3433, 0
        %v3469 = vsel %vm1499, %v3434, 0
        %v3472 = vsel %vm1499, %v3435, 0
        %v3475 = vsel %vm1499, %v3436, 0
        %v3478 = vsel %vm1499, %v3437, 0
        %v3481 = vsel %vm1499, %v3438, 0
        %v3484 = vsel %vm1499, %v3439, 0
        %v3487 = vsel %vm1499, %v3440, 0
        %v3490 = vsel %vm1499, %v3441, 0
        %v3493 = vsel %vm1499, %v3442, 0
        %v3496 = vsel %vm1499, %v3443, 0
        %v3499 = vsel %vm1499, %v3444, 0
        %v3502 = vsel %vm1499, %v3445, 0
        %v3505 = vsel %vm1499, %v3446, 0
        %v3508 = vsel %vm1499, %v3447, 0
        %v3511 = vsel %vm1499, %v3448, 0
        %v3514 = vsel %vm1499, %v3449, 0
        %v3517 = vsel %vm1499, %v3450, 0
        %v3520 = vsel %vm1499, %v3451, 0
        %v3523 = vsel %vm1499, %v3452, 0
        %v3526 = vsel %vm1499, %v3453, 0
        %v3529 = vsel %vm1499, %v3454, 0
        %v3532 = vsel %vm1499, %v3455, 0
        %v3535 = vsel %vm1499, %v3456, 0
        %v3538 = vsel %vm1499, %v3457, 0
        %v3541 = vsel %vm1499, %v3458, 0
        %v3544 = vsel %vm1499, %v3459, 0
        %v3547 = vsel %vm1499, %v3460, 0
        %v3550 = vsel %vm1499, %v3461, 0
        %v3553 = vsel %vm1499, %v3462, 0
        %v3556 = vsel %vm1499, %v3463, 0
        %v3559 = vsel %vm1499, %v3464, 0
        %3561 = vmatprep.subr.bf16.mxu0 0
        %3562 = vmatpush1.bf16.msra.mxu0 %v1490
        %3563 = vmatprep.subr.bf16.mxu0 0
        %3564 = vmatpush1.bf16.msra.mxu0 %v1491
        %3565 = vmatprep.subr.bf16.mxu0 0
        %3566 = vmatpush1.bf16.msra.mxu0 %v1492
        %3567 = vmatprep.subr.bf16.mxu0 0
        %3568 = vmatpush1.bf16.msra.mxu0 %v1493
        %3569 = vmatprep.subr.bf16.mxu0 0
        %3570 = vmatpush1.bf16.msra.mxu0 %v1601
        %3571 = vmatprep.subr.bf16.mxu0 0
        %3572 = vmatpush1.bf16.msra.mxu0 0
        %3573 = vmatprep.subr.bf16.mxu0 0
        %3574 = vmatpush1.bf16.msra.mxu0 0
        %3575 = vmatprep.subr.bf16.mxu0 0
        %3576 = vmatpush1.bf16.msra.mxu0 0
        %3577 = vmatprep.subr.bf16.mxu0 0
        %3578 = vmatpush1.bf16.msra.mxu0 0
        %3579 = vmatprep.subr.bf16.mxu0 0
        %3580 = vmatpush1.bf16.msra.mxu0 0
        %3581 = vmatprep.subr.bf16.mxu0 0
        %3582 = vmatpush1.bf16.msra.mxu0 0
        %3583 = vmatprep.subr.bf16.mxu0 0
        %3584 = vmatpush1.bf16.msra.mxu0 0
        %3585 = vmatprep.subr.bf16.mxu0 0
        %3586 = vmatpush1.bf16.msra.mxu0 0
        %3587 = vmatprep.subr.bf16.mxu0 0
        %3588 = vmatpush1.bf16.msra.mxu0 0
        %3589 = vmatprep.subr.bf16.mxu0 0
        %3590 = vmatpush1.bf16.msra.mxu0 0
        %3591 = vmatprep.subr.bf16.mxu0 0
        %3592 = vmatpush1.bf16.msra.mxu0 0
        %3593 = vmatprep.mubr.bf16.mxu0 0
        %3594 = vmatmul.mubr.bf16.gmra.mrb[0].mxu0 %v3466
        %v3595 = vpop.f32.mrb[0].mxu0
        %v3596 = vadd.f32 0.0, %v3595
        %v3597 = vpop.f32.mrb[0].mxu0
        %v3598 = vpop.f32.mrb[0].mxu0
        %v3599 = vadd.f32 0.0, %v3598
        %v3600 = vpop.f32.mrb[0].mxu0
        %3601 = vmatprep.mubr.bf16.mxu0 0
        %3602 = vmatmul.mubr.bf16.gmra.mrb[0].mxu0 %v3469
        %v3603 = vpop.f32.mrb[0].mxu0
        %v3604 = vadd.f32 0.0, %v3603
        %v3605 = vpop.f32.mrb[0].mxu0
        %v3606 = vpop.f32.mrb[0].mxu0
        %v3607 = vadd.f32 0.0, %v3606
        %v3608 = vpop.f32.mrb[0].mxu0
        %3609 = vmatprep.mubr.bf16.mxu0 0
        %3610 = vmatmul.mubr.bf16.gmra.mrb[0].mxu0 %v3472
        %v3611 = vpop.f32.mrb[0].mxu0
        %v3612 = vadd.f32 0.0, %v3611
        %v3613 = vpop.f32.mrb[0].mxu0
        %v3614 = vpop.f32.mrb[0].mxu0
        %v3615 = vadd.f32 0.0, %v3614
        %v3616 = vpop.f32.mrb[0].mxu0
        %3617 = vmatprep.mubr.bf16.mxu0 0
        %3618 = vmatmul.mubr.bf16.gmra.mrb[0].mxu0 %v3475
        %v3619 = vpop.f32.mrb[0].mxu0
        %v3620 = vadd.f32 0.0, %v3619
        %v3621 = vpop.f32.mrb[0].mxu0
        %v3622 = vpop.f32.mrb[0].mxu0
        %v3623 = vadd.f32 0.0, %v3622
        %v3624 = vpop.f32.mrb[0].mxu0
        %3625 = vmatprep.mubr.bf16.mxu0 0
        %3626 = vmatmul.mubr.bf16.gmra.mrb[0].mxu0 %v3478
        %v3627 = vpop.f32.mrb[0].mxu0
        %v3628 = vadd.f32 0.0, %v3627
        %v3629 = vpop.f32.mrb[0].mxu0
        %v3630 = vpop.f32.mrb[0].mxu0
        %v3631 = vadd.f32 0.0, %v3630
        %v3632 = vpop.f32.mrb[0].mxu0
        %3633 = vmatprep.mubr.bf16.mxu0 0
        %3634 = vmatmul.mubr.bf16.gmra.mrb[0].mxu0 %v3481
        %v3635 = vpop.f32.mrb[0].mxu0
        %v3636 = vadd.f32 0.0, %v3635
        %v3637 = vpop.f32.mrb[0].mxu0
        %v3638 = vpop.f32.mrb[0].mxu0
        %v3639 = vadd.f32 0.0, %v3638
        %v3640 = vpop.f32.mrb[0].mxu0
        %3641 = vmatprep.mubr.bf16.mxu0 0
        %3642 = vmatmul.mubr.bf16.gmra.mrb[0].mxu0 %v3484
        %v3643 = vpop.f32.mrb[0].mxu0
        %v3644 = vadd.f32 0.0, %v3643
        %v3645 = vpop.f32.mrb[0].mxu0
        %v3646 = vpop.f32.mrb[0].mxu0
        %v3647 = vadd.f32 0.0, %v3646
        %v3648 = vpop.f32.mrb[0].mxu0
        %3649 = vmatprep.mubr.bf16.mxu0 0
        %3650 = vmatmul.mubr.bf16.gmra.mrb[0].mxu0 %v3487
        %v3651 = vpop.f32.mrb[0].mxu0
        %v3652 = vadd.f32 0.0, %v3651
        %v3653 = vpop.f32.mrb[0].mxu0
        %v3654 = vpop.f32.mrb[0].mxu0
        %v3655 = vadd.f32 0.0, %v3654
        %v3656 = vpop.f32.mrb[0].mxu0
        %3657 = vmatprep.mubr.bf16.mxu0 0
        %3658 = vmatmul.mubr.bf16.gmra.mrb[0].mxu0 %v3490
        %v3659 = vpop.f32.mrb[0].mxu0
        %v3660 = vadd.f32 0.0, %v3659
        %v3661 = vpop.f32.mrb[0].mxu0
        %v3662 = vpop.f32.mrb[0].mxu0
        %v3663 = vadd.f32 0.0, %v3662
        %v3664 = vpop.f32.mrb[0].mxu0
        %3665 = vmatprep.mubr.bf16.mxu0 0
        %3666 = vmatmul.mubr.bf16.gmra.mrb[0].mxu0 %v3493
        %v3667 = vpop.f32.mrb[0].mxu0
        %v3668 = vadd.f32 0.0, %v3667
        %v3669 = vpop.f32.mrb[0].mxu0
        %v3670 = vpop.f32.mrb[0].mxu0
        %v3671 = vadd.f32 0.0, %v3670
        %v3672 = vpop.f32.mrb[0].mxu0
        %3673 = vmatprep.mubr.bf16.mxu0 0
        %3674 = vmatmul.mubr.bf16.gmra.mrb[0].mxu0 %v3496
        %v3675 = vpop.f32.mrb[0].mxu0
        %v3676 = vadd.f32 0.0, %v3675
        %v3677 = vpop.f32.mrb[0].mxu0
        %v3678 = vpop.f32.mrb[0].mxu0
        %v3679 = vadd.f32 0.0, %v3678
        %v3680 = vpop.f32.mrb[0].mxu0
        %3681 = vmatprep.mubr.bf16.mxu0 0
        %3682 = vmatmul.mubr.bf16.gmra.mrb[0].mxu0 %v3499
        %v3683 = vpop.f32.mrb[0].mxu0
        %v3684 = vadd.f32 0.0, %v3683
        %v3685 = vpop.f32.mrb[0].mxu0
        %v3686 = vpop.f32.mrb[0].mxu0
        %v3687 = vadd.f32 0.0, %v3686
        %v3688 = vpop.f32.mrb[0].mxu0
        %3689 = vmatprep.mubr.bf16.mxu0 0
        %3690 = vmatmul.mubr.bf16.gmra.mrb[0].mxu0 %v3502
        %v3691 = vpop.f32.mrb[0].mxu0
        %v3692 = vadd.f32 0.0, %v3691
        %v3693 = vpop.f32.mrb[0].mxu0
        %v3694 = vpop.f32.mrb[0].mxu0
        %v3695 = vadd.f32 0.0, %v3694
        %v3696 = vpop.f32.mrb[0].mxu0
        %3697 = vmatprep.mubr.bf16.mxu0 0
        %3698 = vmatmul.mubr.bf16.gmra.mrb[0].mxu0 %v3505
        %v3699 = vpop.f32.mrb[0].mxu0
        %v3700 = vadd.f32 0.0, %v3699
        %v3701 = vpop.f32.mrb[0].mxu0
        %v3702 = vpop.f32.mrb[0].mxu0
        %v3703 = vadd.f32 0.0, %v3702
        %v3704 = vpop.f32.mrb[0].mxu0
        %3705 = vmatprep.mubr.bf16.mxu0 0
        %3706 = vmatmul.mubr.bf16.gmra.mrb[0].mxu0 %v3508
        %v3707 = vpop.f32.mrb[0].mxu0
        %v3708 = vadd.f32 0.0, %v3707
        %v3709 = vpop.f32.mrb[0].mxu0
        %v3710 = vpop.f32.mrb[0].mxu0
        %v3711 = vadd.f32 0.0, %v3710
        %v3712 = vpop.f32.mrb[0].mxu0
        %3713 = vmatprep.mubr.bf16.mxu0 0
        %3714 = vmatmul.mubr.bf16.gmra.mrb[0].mxu0 %v3511
        %v3715 = vpop.f32.mrb[0].mxu0
        %v3716 = vadd.f32 0.0, %v3715
        %v3717 = vpop.f32.mrb[0].mxu0
        %v3718 = vpop.f32.mrb[0].mxu0
        %v3719 = vadd.f32 0.0, %v3718
        %v3720 = vpop.f32.mrb[0].mxu0
        %3721 = vmatprep.mubr.bf16.mxu0 0
        %3722 = vmatmul.mubr.bf16.gmra.mrb[0].mxu0 %v3514
        %v3723 = vpop.f32.mrb[0].mxu0
        %v3724 = vadd.f32 0.0, %v3723
        %v3725 = vpop.f32.mrb[0].mxu0
        %v3726 = vpop.f32.mrb[0].mxu0
        %v3727 = vadd.f32 0.0, %v3726
        %v3728 = vpop.f32.mrb[0].mxu0
        %3729 = vmatprep.mubr.bf16.mxu0 0
        %3730 = vmatmul.mubr.bf16.gmra.mrb[0].mxu0 %v3517
        %v3731 = vpop.f32.mrb[0].mxu0
        %v3732 = vadd.f32 0.0, %v3731
        %v3733 = vpop.f32.mrb[0].mxu0
        %v3734 = vpop.f32.mrb[0].mxu0
        %v3735 = vadd.f32 0.0, %v3734
        %v3736 = vpop.f32.mrb[0].mxu0
        %3737 = vmatprep.mubr.bf16.mxu0 0
        %3738 = vmatmul.mubr.bf16.gmra.mrb[0].mxu0 %v3520
        %v3739 = vpop.f32.mrb[0].mxu0
        %v3740 = vadd.f32 0.0, %v3739
        %v3741 = vpop.f32.mrb[0].mxu0
        %v3742 = vpop.f32.mrb[0].mxu0
        %v3743 = vadd.f32 0.0, %v3742
        %v3744 = vpop.f32.mrb[0].mxu0
        %3745 = vmatprep.mubr.bf16.mxu0 0
        %3746 = vmatmul.mubr.bf16.gmra.mrb[0].mxu0 %v3523
        %v3747 = vpop.f32.mrb[0].mxu0
        %v3748 = vadd.f32 0.0, %v3747
        %v3749 = vpop.f32.mrb[0].mxu0
        %v3750 = vpop.f32.mrb[0].mxu0
        %v3751 = vadd.f32 0.0, %v3750
        %v3752 = vpop.f32.mrb[0].mxu0
        %3753 = vmatprep.mubr.bf16.mxu0 0
        %3754 = vmatmul.mubr.bf16.gmra.mrb[0].mxu0 %v3526
        %v3755 = vpop.f32.mrb[0].mxu0
        %v3756 = vadd.f32 0.0, %v3755
        %v3757 = vpop.f32.mrb[0].mxu0
        %v3758 = vpop.f32.mrb[0].mxu0
        %v3759 = vadd.f32 0.0, %v3758
        %v3760 = vpop.f32.mrb[0].mxu0
        %3761 = vmatprep.mubr.bf16.mxu0 0
        %3762 = vmatmul.mubr.bf16.gmra.mrb[0].mxu0 %v3529
        %v3763 = vpop.f32.mrb[0].mxu0
        %v3764 = vadd.f32 0.0, %v3763
        %v3765 = vpop.f32.mrb[0].mxu0
        %v3766 = vpop.f32.mrb[0].mxu0
        %v3767 = vadd.f32 0.0, %v3766
        %v3768 = vpop.f32.mrb[0].mxu0
        %3769 = vmatprep.mubr.bf16.mxu0 0
        %3770 = vmatmul.mubr.bf16.gmra.mrb[0].mxu0 %v3532
        %v3771 = vpop.f32.mrb[0].mxu0
        %v3772 = vadd.f32 0.0, %v3771
        %v3773 = vpop.f32.mrb[0].mxu0
        %v3774 = vpop.f32.mrb[0].mxu0
        %v3775 = vadd.f32 0.0, %v3774
        %v3776 = vpop.f32.mrb[0].mxu0
        %3777 = vmatprep.mubr.bf16.mxu0 0
        %3778 = vmatmul.mubr.bf16.gmra.mrb[0].mxu0 %v3535
        %v3779 = vpop.f32.mrb[0].mxu0
        %v3780 = vadd.f32 0.0, %v3779
        %v3781 = vpop.f32.mrb[0].mxu0
        %v3782 = vpop.f32.mrb[0].mxu0
        %v3783 = vadd.f32 0.0, %v3782
        %v3784 = vpop.f32.mrb[0].mxu0
        %3785 = vmatprep.mubr.bf16.mxu0 0
        %3786 = vmatmul.mubr.bf16.gmra.mrb[0].mxu0 %v3538
        %v3787 = vpop.f32.mrb[0].mxu0
        %v3788 = vadd.f32 0.0, %v3787
        %v3789 = vpop.f32.mrb[0].mxu0
        %v3790 = vpop.f32.mrb[0].mxu0
        %v3791 = vadd.f32 0.0, %v3790
        %v3792 = vpop.f32.mrb[0].mxu0
        %3793 = vmatprep.mubr.bf16.mxu0 0
        %3794 = vmatmul.mubr.bf16.gmra.mrb[0].mxu0 %v3541
        %v3795 = vpop.f32.mrb[0].mxu0
        %v3796 = vadd.f32 0.0, %v3795
        %v3797 = vpop.f32.mrb[0].mxu0
        %v3798 = vpop.f32.mrb[0].mxu0
        %v3799 = vadd.f32 0.0, %v3798
        %v3800 = vpop.f32.mrb[0].mxu0
        %3801 = vmatprep.mubr.bf16.mxu0 0
        %3802 = vmatmul.mubr.bf16.gmra.mrb[0].mxu0 %v3544
        %v3803 = vpop.f32.mrb[0].mxu0
        %v3804 = vadd.f32 0.0, %v3803
        %v3805 = vpop.f32.mrb[0].mxu0
        %v3806 = vpop.f32.mrb[0].mxu0
        %v3807 = vadd.f32 0.0, %v3806
        %v3808 = vpop.f32.mrb[0].mxu0
        %3809 = vmatprep.mubr.bf16.mxu0 0
        %3810 = vmatmul.mubr.bf16.gmra.mrb[0].mxu0 %v3547
        %v3811 = vpop.f32.mrb[0].mxu0
        %v3812 = vadd.f32 0.0, %v3811
        %v3813 = vpop.f32.mrb[0].mxu0
        %v3814 = vpop.f32.mrb[0].mxu0
        %v3815 = vadd.f32 0.0, %v3814
        %v3816 = vpop.f32.mrb[0].mxu0
        %3817 = vmatprep.mubr.bf16.mxu0 0
        %3818 = vmatmul.mubr.bf16.gmra.mrb[0].mxu0 %v3550
        %v3819 = vpop.f32.mrb[0].mxu0
        %v3820 = vadd.f32 0.0, %v3819
        %v3821 = vpop.f32.mrb[0].mxu0
        %v3822 = vpop.f32.mrb[0].mxu0
        %v3823 = vadd.f32 0.0, %v3822
        %v3824 = vpop.f32.mrb[0].mxu0
        %3825 = vmatprep.mubr.bf16.mxu0 0
        %3826 = vmatmul.mubr.bf16.gmra.mrb[0].mxu0 %v3553
        %v3827 = vpop.f32.mrb[0].mxu0
        %v3828 = vadd.f32 0.0, %v3827
        %v3829 = vpop.f32.mrb[0].mxu0
        %v3830 = vpop.f32.mrb[0].mxu0
        %v3831 = vadd.f32 0.0, %v3830
        %v3832 = vpop.f32.mrb[0].mxu0
        %3833 = vmatprep.mubr.bf16.mxu0 0
        %3834 = vmatmul.mubr.bf16.gmra.mrb[0].mxu0 %v3556
        %v3835 = vpop.f32.mrb[0].mxu0
        %v3836 = vadd.f32 0.0, %v3835
        %v3837 = vpop.f32.mrb[0].mxu0
        %v3838 = vpop.f32.mrb[0].mxu0
        %v3839 = vadd.f32 0.0, %v3838
        %v3840 = vpop.f32.mrb[0].mxu0
        %3841 = vmatprep.mubr.bf16.mxu0 0
        %3842 = vmatmul.mubr.bf16.gmra.mrb[0].mxu0 %v3559
        %v3843 = vpop.f32.mrb[0].mxu0
        %v3844 = vadd.f32 0.0, %v3843
        %v3845 = vpop.f32.mrb[0].mxu0
        %v3846 = vpop.f32.mrb[0].mxu0
        %v3847 = vadd.f32 0.0, %v3846
        %v3848 = vpop.f32.mrb[0].mxu0
        %3849 = vdwg.mxu0
        %v3850 = vmax.f32 %v3176, %v3596
        %v3851 = vmax.f32 %v3177, %v3599
        %v3852 = vmax.f32 %v3178, %v3604
        %v3853 = vmax.f32 %v3179, %v3607
        %v3854 = vmax.f32 %v3180, %v3612
        %v3855 = vmax.f32 %v3181, %v3615
        %v3856 = vmax.f32 %v3182, %v3620
        %v3857 = vmax.f32 %v3183, %v3623
        %v3858 = vmax.f32 %v3184, %v3628
        %v3859 = vmax.f32 %v3185, %v3631
        %v3860 = vmax.f32 %v3186, %v3636
        %v3861 = vmax.f32 %v3187, %v3639
        %v3862 = vmax.f32 %v3188, %v3644
        %v3863 = vmax.f32 %v3189, %v3647
        %v3864 = vmax.f32 %v3190, %v3652
        %v3865 = vmax.f32 %v3191, %v3655
        %v3866 = vmax.f32 %v3192, %v3660
        %v3867 = vmax.f32 %v3193, %v3663
        %v3868 = vmax.f32 %v3194, %v3668
        %v3869 = vmax.f32 %v3195, %v3671
        %v3870 = vmax.f32 %v3196, %v3676
        %v3871 = vmax.f32 %v3197, %v3679
        %v3872 = vmax.f32 %v3198, %v3684
        %v3873 = vmax.f32 %v3199, %v3687
        %v3874 = vmax.f32 %v3200, %v3692
        %v3875 = vmax.f32 %v3201, %v3695
        %v3876 = vmax.f32 %v3202, %v3700
        %v3877 = vmax.f32 %v3203, %v3703
        %v3878 = vmax.f32 %v3204, %v3708
        %v3879 = vmax.f32 %v3205, %v3711
        %v3880 = vmax.f32 %v3206, %v3716
        %v3881 = vmax.f32 %v3207, %v3719
        %v3882 = vmax.f32 %v3208, %v3724
        %v3883 = vmax.f32 %v3209, %v3727
        %v3884 = vmax.f32 %v3210, %v3732
        %v3885 = vmax.f32 %v3211, %v3735
        %v3886 = vmax.f32 %v3212, %v3740
        %v3887 = vmax.f32 %v3213, %v3743
        %v3888 = vmax.f32 %v3214, %v3748
        %v3889 = vmax.f32 %v3215, %v3751
        %v3890 = vmax.f32 %v3216, %v3756
        %v3891 = vmax.f32 %v3217, %v3759
        %v3892 = vmax.f32 %v3218, %v3764
        %v3893 = vmax.f32 %v3219, %v3767
        %v3894 = vmax.f32 %v3220, %v3772
        %v3895 = vmax.f32 %v3221, %v3775
        %v3896 = vmax.f32 %v3222, %v3780
        %v3897 = vmax.f32 %v3223, %v3783
        %v3898 = vmax.f32 %v3224, %v3788
        %v3899 = vmax.f32 %v3225, %v3791
        %v3900 = vmax.f32 %v3226, %v3796
        %v3901 = vmax.f32 %v3227, %v3799
        %v3902 = vmax.f32 %v3228, %v3804
        %v3903 = vmax.f32 %v3229, %v3807
        %v3904 = vmax.f32 %v3230, %v3812
        %v3905 = vmax.f32 %v3231, %v3815
        %v3906 = vmax.f32 %v3232, %v3820
        %v3907 = vmax.f32 %v3233, %v3823
        %v3908 = vmax.f32 %v3234, %v3828
        %v3909 = vmax.f32 %v3235, %v3831
        %v3910 = vmax.f32 %v3236, %v3836
        %v3911 = vmax.f32 %v3237, %v3839
        %v3912 = vmax.f32 %v3238, %v3844
        %v3913 = vmax.f32 %v3239, %v3847
        %v3914 = vld [vmem:[%s2] sm:$0x1]
        %v3916 = vlaneseq
        %v3917 = vshrl.u32 %v3916, 7
        %v3918 = vsub.s32 0, %v3917
        %v3919 = vrot.slane %v3914, %v3918
        %v3921 = vadd.f32 %v3850, %v3919
        %v3922 = vadd.f32 %v3851, %v3919
        %v3923 = vadd.f32 %v3852, %v3919
        %v3924 = vadd.f32 %v3853, %v3919
        %v3925 = vadd.f32 %v3854, %v3919
        %v3926 = vadd.f32 %v3855, %v3919
        %v3927 = vadd.f32 %v3856, %v3919
        %v3928 = vadd.f32 %v3857, %v3919
        %v3929 = vadd.f32 %v3858, %v3919
        %v3930 = vadd.f32 %v3859, %v3919
        %v3931 = vadd.f32 %v3860, %v3919
        %v3932 = vadd.f32 %v3861, %v3919
        %v3933 = vadd.f32 %v3862, %v3919
        %v3934 = vadd.f32 %v3863, %v3919
        %v3935 = vadd.f32 %v3864, %v3919
        %v3936 = vadd.f32 %v3865, %v3919
        %v3937 = vadd.f32 %v3866, %v3919
        %v3938 = vadd.f32 %v3867, %v3919
        %v3939 = vadd.f32 %v3868, %v3919
        %v3940 = vadd.f32 %v3869, %v3919
        %v3941 = vadd.f32 %v3870, %v3919
        %v3942 = vadd.f32 %v3871, %v3919
        %v3943 = vadd.f32 %v3872, %v3919
        %v3944 = vadd.f32 %v3873, %v3919
        %v3945 = vadd.f32 %v3874, %v3919
        %v3946 = vadd.f32 %v3875, %v3919
        %v3947 = vadd.f32 %v3876, %v3919
        %v3948 = vadd.f32 %v3877, %v3919
        %v3949 = vadd.f32 %v3878, %v3919
        %v3950 = vadd.f32 %v3879, %v3919
        %v3951 = vadd.f32 %v3880, %v3919
        %v3952 = vadd.f32 %v3881, %v3919
        %v3953 = vadd.f32 %v3882, %v3919
        %v3954 = vadd.f32 %v3883, %v3919
        %v3955 = vadd.f32 %v3884, %v3919
        %v3956 = vadd.f32 %v3885, %v3919
        %v3957 = vadd.f32 %v3886, %v3919
        %v3958 = vadd.f32 %v3887, %v3919
        %v3959 = vadd.f32 %v3888, %v3919
        %v3960 = vadd.f32 %v3889, %v3919
        %v3961 = vadd.f32 %v3890, %v3919
        %v3962 = vadd.f32 %v3891, %v3919
        %v3963 = vadd.f32 %v3892, %v3919
        %v3964 = vadd.f32 %v3893, %v3919
        %v3965 = vadd.f32 %v3894, %v3919
        %v3966 = vadd.f32 %v3895, %v3919
        %v3967 = vadd.f32 %v3896, %v3919
        %v3968 = vadd.f32 %v3897, %v3919
        %v3969 = vadd.f32 %v3898, %v3919
        %v3970 = vadd.f32 %v3899, %v3919
        %v3971 = vadd.f32 %v3900, %v3919
        %v3972 = vadd.f32 %v3901, %v3919
        %v3973 = vadd.f32 %v3902, %v3919
        %v3974 = vadd.f32 %v3903, %v3919
        %v3975 = vadd.f32 %v3904, %v3919
        %v3976 = vadd.f32 %v3905, %v3919
        %v3977 = vadd.f32 %v3906, %v3919
        %v3978 = vadd.f32 %v3907, %v3919
        %v3979 = vadd.f32 %v3908, %v3919
        %v3980 = vadd.f32 %v3909, %v3919
        %v3981 = vadd.f32 %v3910, %v3919
        %v3982 = vadd.f32 %v3911, %v3919
        %v3983 = vadd.f32 %v3912, %v3919
        %v3984 = vadd.f32 %v3913, %v3919
        %v3985 = vmax.f32 %v3921, 0.0
        %v3986 = vmax.f32 %v3922, 0.0
        %v3987 = vmax.f32 %v3923, 0.0
        %v3988 = vmax.f32 %v3924, 0.0
        %v3989 = vmax.f32 %v3925, 0.0
        %v3990 = vmax.f32 %v3926, 0.0
        %v3991 = vmax.f32 %v3927, 0.0
        %v3992 = vmax.f32 %v3928, 0.0
        %v3993 = vmax.f32 %v3929, 0.0
        %v3994 = vmax.f32 %v3930, 0.0
        %v3995 = vmax.f32 %v3931, 0.0
        %v3996 = vmax.f32 %v3932, 0.0
        %v3997 = vmax.f32 %v3933, 0.0
        %v3998 = vmax.f32 %v3934, 0.0
        %v3999 = vmax.f32 %v3935, 0.0
        %v4000 = vmax.f32 %v3936, 0.0
        %v4001 = vmax.f32 %v3937, 0.0
        %v4002 = vmax.f32 %v3938, 0.0
        %v4003 = vmax.f32 %v3939, 0.0
        %v4004 = vmax.f32 %v3940, 0.0
        %v4005 = vmax.f32 %v3941, 0.0
        %v4006 = vmax.f32 %v3942, 0.0
        %v4007 = vmax.f32 %v3943, 0.0
        %v4008 = vmax.f32 %v3944, 0.0
        %v4009 = vmax.f32 %v3945, 0.0
        %v4010 = vmax.f32 %v3946, 0.0
        %v4011 = vmax.f32 %v3947, 0.0
        %v4012 = vmax.f32 %v3948, 0.0
        %v4013 = vmax.f32 %v3949, 0.0
        %v4014 = vmax.f32 %v3950, 0.0
        %v4015 = vmax.f32 %v3951, 0.0
        %v4016 = vmax.f32 %v3952, 0.0
        %v4017 = vmax.f32 %v3953, 0.0
        %v4018 = vmax.f32 %v3954, 0.0
        %v4019 = vmax.f32 %v3955, 0.0
        %v4020 = vmax.f32 %v3956, 0.0
        %v4021 = vmax.f32 %v3957, 0.0
        %v4022 = vmax.f32 %v3958, 0.0
        %v4023 = vmax.f32 %v3959, 0.0
        %v4024 = vmax.f32 %v3960, 0.0
        %v4025 = vmax.f32 %v3961, 0.0
        %v4026 = vmax.f32 %v3962, 0.0
        %v4027 = vmax.f32 %v3963, 0.0
        %v4028 = vmax.f32 %v3964, 0.0
        %v4029 = vmax.f32 %v3965, 0.0
        %v4030 = vmax.f32 %v3966, 0.0
        %v4031 = vmax.f32 %v3967, 0.0
        %v4032 = vmax.f32 %v3968, 0.0
        %v4033 = vmax.f32 %v3969, 0.0
        %v4034 = vmax.f32 %v3970, 0.0
        %v4035 = vmax.f32 %v3971, 0.0
        %v4036 = vmax.f32 %v3972, 0.0
        %v4037 = vmax.f32 %v3973, 0.0
        %v4038 = vmax.f32 %v3974, 0.0
        %v4039 = vmax.f32 %v3975, 0.0
        %v4040 = vmax.f32 %v3976, 0.0
        %v4041 = vmax.f32 %v3977, 0.0
        %v4042 = vmax.f32 %v3978, 0.0
        %v4043 = vmax.f32 %v3979, 0.0
        %v4044 = vmax.f32 %v3980, 0.0
        %v4045 = vmax.f32 %v3981, 0.0
        %v4046 = vmax.f32 %v3982, 0.0
        %v4047 = vmax.f32 %v3983, 0.0
        %v4048 = vmax.f32 %v3984, 0.0
        %v4049 = vpack.c.bf16 %v3986, %v3985
        %v4050 = vpack.c.bf16 %v3988, %v3987
        %v4051 = vpack.c.bf16 %v3990, %v3989
        %v4052 = vpack.c.bf16 %v3992, %v3991
        %v4053 = vpack.c.bf16 %v3994, %v3993
        %v4054 = vpack.c.bf16 %v3996, %v3995
        %v4055 = vpack.c.bf16 %v3998, %v3997
        %v4056 = vpack.c.bf16 %v4000, %v3999
        %v4057 = vpack.c.bf16 %v4002, %v4001
        %v4058 = vpack.c.bf16 %v4004, %v4003
        %v4059 = vpack.c.bf16 %v4006, %v4005
        %v4060 = vpack.c.bf16 %v4008, %v4007
        %v4061 = vpack.c.bf16 %v4010, %v4009
        %v4062 = vpack.c.bf16 %v4012, %v4011
        %v4063 = vpack.c.bf16 %v4014, %v4013
        %v4064 = vpack.c.bf16 %v4016, %v4015
        %v4065 = vpack.c.bf16 %v4018, %v4017
        %v4066 = vpack.c.bf16 %v4020, %v4019
        %v4067 = vpack.c.bf16 %v4022, %v4021
        %v4068 = vpack.c.bf16 %v4024, %v4023
        %v4069 = vpack.c.bf16 %v4026, %v4025
        %v4070 = vpack.c.bf16 %v4028, %v4027
        %v4071 = vpack.c.bf16 %v4030, %v4029
        %v4072 = vpack.c.bf16 %v4032, %v4031
        %v4073 = vpack.c.bf16 %v4034, %v4033
        %v4074 = vpack.c.bf16 %v4036, %v4035
        %v4075 = vpack.c.bf16 %v4038, %v4037
        %v4076 = vpack.c.bf16 %v4040, %v4039
        %v4077 = vpack.c.bf16 %v4042, %v4041
        %v4078 = vpack.c.bf16 %v4044, %v4043
        %v4079 = vpack.c.bf16 %v4046, %v4045
        %v4080 = vpack.c.bf16 %v4048, %v4047
        %v4113 = vunpack.c.l.b16 %v4049
        %v4114 = vunpack.c.h.b16 %v4049
        %v4115 = vunpack.c.l.b16 %v4050
        %v4116 = vunpack.c.h.b16 %v4050
        %v4117 = vunpack.c.l.b16 %v4051
        %v4118 = vunpack.c.h.b16 %v4051
        %v4119 = vunpack.c.l.b16 %v4052
        %v4120 = vunpack.c.h.b16 %v4052
        %v4121 = vunpack.c.l.b16 %v4053
        %v4122 = vunpack.c.h.b16 %v4053
        %v4123 = vunpack.c.l.b16 %v4054
        %v4124 = vunpack.c.h.b16 %v4054
        %v4125 = vunpack.c.l.b16 %v4055
        %v4126 = vunpack.c.h.b16 %v4055
        %v4127 = vunpack.c.l.b16 %v4056
        %v4128 = vunpack.c.h.b16 %v4056
        %v4129 = vunpack.c.l.b16 %v4057
        %v4130 = vunpack.c.h.b16 %v4057
        %v4131 = vunpack.c.l.b16 %v4058
        %v4132 = vunpack.c.h.b16 %v4058
        %v4133 = vunpack.c.l.b16 %v4059
        %v4134 = vunpack.c.h.b16 %v4059
        %v4135 = vunpack.c.l.b16 %v4060
        %v4136 = vunpack.c.h.b16 %v4060
        %v4137 = vunpack.c.l.b16 %v4061
        %v4138 = vunpack.c.h.b16 %v4061
        %v4139 = vunpack.c.l.b16 %v4062
        %v4140 = vunpack.c.h.b16 %v4062
        %v4141 = vunpack.c.l.b16 %v4063
        %v4142 = vunpack.c.h.b16 %v4063
        %v4143 = vunpack.c.l.b16 %v4064
        %v4144 = vunpack.c.h.b16 %v4064
        %v4145 = vunpack.c.l.b16 %v4065
        %v4146 = vunpack.c.h.b16 %v4065
        %v4147 = vunpack.c.l.b16 %v4066
        %v4148 = vunpack.c.h.b16 %v4066
        %v4149 = vunpack.c.l.b16 %v4067
        %v4150 = vunpack.c.h.b16 %v4067
        %v4151 = vunpack.c.l.b16 %v4068
        %v4152 = vunpack.c.h.b16 %v4068
        %v4153 = vunpack.c.l.b16 %v4069
        %v4154 = vunpack.c.h.b16 %v4069
        %v4155 = vunpack.c.l.b16 %v4070
        %v4156 = vunpack.c.h.b16 %v4070
        %v4157 = vunpack.c.l.b16 %v4071
        %v4158 = vunpack.c.h.b16 %v4071
        %v4159 = vunpack.c.l.b16 %v4072
        %v4160 = vunpack.c.h.b16 %v4072
        %v4161 = vunpack.c.l.b16 %v4073
        %v4162 = vunpack.c.h.b16 %v4073
        %v4163 = vunpack.c.l.b16 %v4074
        %v4164 = vunpack.c.h.b16 %v4074
        %v4165 = vunpack.c.l.b16 %v4075
        %v4166 = vunpack.c.h.b16 %v4075
        %v4167 = vunpack.c.l.b16 %v4076
        %v4168 = vunpack.c.h.b16 %v4076
        %v4169 = vunpack.c.l.b16 %v4077
        %v4170 = vunpack.c.h.b16 %v4077
        %v4171 = vunpack.c.l.b16 %v4078
        %v4172 = vunpack.c.h.b16 %v4078
        %v4173 = vunpack.c.l.b16 %v4079
        %v4174 = vunpack.c.h.b16 %v4079
        %v4175 = vunpack.c.l.b16 %v4080
        %v4176 = vunpack.c.h.b16 %v4080
        %v4177 = vpack.c.b16 %v4113, %v4113
        %v4178 = vpack.c.b16 %v4114, %v4114
        %v4179 = vpack.c.b16 %v4115, %v4115
        %v4180 = vpack.c.b16 %v4116, %v4116
        %v4181 = vpack.c.b16 %v4117, %v4117
        %v4182 = vpack.c.b16 %v4118, %v4118
        %v4183 = vpack.c.b16 %v4119, %v4119
        %v4184 = vpack.c.b16 %v4120, %v4120
        %v4185 = vpack.c.b16 %v4121, %v4121
        %v4186 = vpack.c.b16 %v4122, %v4122
        %v4187 = vpack.c.b16 %v4123, %v4123
        %v4188 = vpack.c.b16 %v4124, %v4124
        %v4189 = vpack.c.b16 %v4125, %v4125
        %v4190 = vpack.c.b16 %v4126, %v4126
        %v4191 = vpack.c.b16 %v4127, %v4127
        %v4192 = vpack.c.b16 %v4128, %v4128
        %v4193 = vpack.c.b16 %v4129, %v4129
        %v4194 = vpack.c.b16 %v4130, %v4130
        %v4195 = vpack.c.b16 %v4131, %v4131
        %v4196 = vpack.c.b16 %v4132, %v4132
        %v4197 = vpack.c.b16 %v4133, %v4133
        %v4198 = vpack.c.b16 %v4134, %v4134
        %v4199 = vpack.c.b16 %v4135, %v4135
        %v4200 = vpack.c.b16 %v4136, %v4136
        %v4201 = vpack.c.b16 %v4137, %v4137
        %v4202 = vpack.c.b16 %v4138, %v4138
        %v4203 = vpack.c.b16 %v4139, %v4139
        %v4204 = vpack.c.b16 %v4140, %v4140
        %v4205 = vpack.c.b16 %v4141, %v4141
        %v4206 = vpack.c.b16 %v4142, %v4142
        %v4207 = vpack.c.b16 %v4143, %v4143
        %v4208 = vpack.c.b16 %v4144, %v4144
        %v4209 = vpack.c.b16 %v4145, %v4145
        %v4210 = vpack.c.b16 %v4146, %v4146
        %v4211 = vpack.c.b16 %v4147, %v4147
        %v4212 = vpack.c.b16 %v4148, %v4148
        %v4213 = vpack.c.b16 %v4149, %v4149
        %v4214 = vpack.c.b16 %v4150, %v4150
        %v4215 = vpack.c.b16 %v4151, %v4151
        %v4216 = vpack.c.b16 %v4152, %v4152
        %v4217 = vpack.c.b16 %v4153, %v4153
        %v4218 = vpack.c.b16 %v4154, %v4154
        %v4219 = vpack.c.b16 %v4155, %v4155
        %v4220 = vpack.c.b16 %v4156, %v4156
        %v4221 = vpack.c.b16 %v4157, %v4157
        %v4222 = vpack.c.b16 %v4158, %v4158
        %v4223 = vpack.c.b16 %v4159, %v4159
        %v4224 = vpack.c.b16 %v4160, %v4160
        %v4225 = vpack.c.b16 %v4161, %v4161
        %v4226 = vpack.c.b16 %v4162, %v4162
        %v4227 = vpack.c.b16 %v4163, %v4163
        %v4228 = vpack.c.b16 %v4164, %v4164
        %v4229 = vpack.c.b16 %v4165, %v4165
        %v4230 = vpack.c.b16 %v4166, %v4166
        %v4231 = vpack.c.b16 %v4167, %v4167
        %v4232 = vpack.c.b16 %v4168, %v4168
        %v4233 = vpack.c.b16 %v4169, %v4169
        %v4234 = vpack.c.b16 %v4170, %v4170
        %v4235 = vpack.c.b16 %v4171, %v4171
        %v4236 = vpack.c.b16 %v4172, %v4172
        %v4237 = vpack.c.b16 %v4173, %v4173
        %v4238 = vpack.c.b16 %v4174, %v4174
        %v4239 = vpack.c.b16 %v4175, %v4175
        %v4240 = vpack.c.b16 %v4176, %v4176
        %4305 = vst [vmem:[%s1233] sm:$0xf] %v4177
        %4306 = vst [vmem:[%s1233 + $0x4] sm:$0xf] %v4178
        %4307 = vst [vmem:[%s1233 + $0x8] sm:$0xf] %v4179
        %4308 = vst [vmem:[%s1233 + $0xc] sm:$0xf] %v4180
        %4309 = vst [vmem:[%s1233 + $0x10] sm:$0xf] %v4181
        %4310 = vst [vmem:[%s1233 + $0x14] sm:$0xf] %v4182
        %4311 = vst [vmem:[%s1233 + $0x18] sm:$0xf] %v4183
        %4312 = vst [vmem:[%s1233 + $0x1c] sm:$0xf] %v4184
        %4313 = vst [vmem:[%s1233 + $0x20] sm:$0xf] %v4185
        %4314 = vst [vmem:[%s1233 + $0x24] sm:$0xf] %v4186
        %4315 = vst [vmem:[%s1233 + $0x28] sm:$0xf] %v4187
        %4316 = vst [vmem:[%s1233 + $0x2c] sm:$0xf] %v4188
        %4317 = vst [vmem:[%s1233 + $0x30] sm:$0xf] %v4189
        %4318 = vst [vmem:[%s1233 + $0x34] sm:$0xf] %v4190
        %4319 = vst [vmem:[%s1233 + $0x38] sm:$0xf] %v4191
        %4320 = vst [vmem:[%s1233 + $0x3c] sm:$0xf] %v4192
        %4321 = vst [vmem:[%s1233 + $0x40] sm:$0xf] %v4193
        %4322 = vst [vmem:[%s1233 + $0x44] sm:$0xf] %v4194
        %4323 = vst [vmem:[%s1233 + $0x48] sm:$0xf] %v4195
        %4324 = vst [vmem:[%s1233 + $0x4c] sm:$0xf] %v4196
        %4325 = vst [vmem:[%s1233 + $0x50] sm:$0xf] %v4197
        %4326 = vst [vmem:[%s1233 + $0x54] sm:$0xf] %v4198
        %4327 = vst [vmem:[%s1233 + $0x58] sm:$0xf] %v4199
        %4328 = vst [vmem:[%s1233 + $0x5c] sm:$0xf] %v4200
        %4329 = vst [vmem:[%s1233 + $0x60] sm:$0xf] %v4201
        %4330 = vst [vmem:[%s1233 + $0x64] sm:$0xf] %v4202
        %4331 = vst [vmem:[%s1233 + $0x68] sm:$0xf] %v4203
        %4332 = vst [vmem:[%s1233 + $0x6c] sm:$0xf] %v4204
        %4333 = vst [vmem:[%s1233 + $0x70] sm:$0xf] %v4205
        %4334 = vst [vmem:[%s1233 + $0x74] sm:$0xf] %v4206
        %4335 = vst [vmem:[%s1233 + $0x78] sm:$0xf] %v4207
        %4336 = vst [vmem:[%s1233 + $0x7c] sm:$0xf] %v4208
        %4337 = vst [vmem:[%s1233 + $0x80] sm:$0xf] %v4209
        %4338 = vst [vmem:[%s1233 + $0x84] sm:$0xf] %v4210
        %4339 = vst [vmem:[%s1233 + $0x88] sm:$0xf] %v4211
        %4340 = vst [vmem:[%s1233 + $0x8c] sm:$0xf] %v4212
        %4341 = vst [vmem:[%s1233 + $0x90] sm:$0xf] %v4213
        %4342 = vst [vmem:[%s1233 + $0x94] sm:$0xf] %v4214
        %4343 = vst [vmem:[%s1233 + $0x98] sm:$0xf] %v4215
        %4344 = vst [vmem:[%s1233 + $0x9c] sm:$0xf] %v4216
        %4345 = vst [vmem:[%s1233 + $0xa0] sm:$0xf] %v4217
        %4346 = vst [vmem:[%s1233 + $0xa4] sm:$0xf] %v4218
        %4347 = vst [vmem:[%s1233 + $0xa8] sm:$0xf] %v4219
        %4348 = vst [vmem:[%s1233 + $0xac] sm:$0xf] %v4220
        %4349 = vst [vmem:[%s1233 + $0xb0] sm:$0xf] %v4221
        %4350 = vst [vmem:[%s1233 + $0xb4] sm:$0xf] %v4222
        %4351 = vst [vmem:[%s1233 + $0xb8] sm:$0xf] %v4223
        %4352 = vst [vmem:[%s1233 + $0xbc] sm:$0xf] %v4224
        %4353 = vst [vmem:[%s1233 + $0xc0] sm:$0xf] %v4225
        %4354 = vst [vmem:[%s1233 + $0xc4] sm:$0xf] %v4226
        %4355 = vst [vmem:[%s1233 + $0xc8] sm:$0xf] %v4227
        %4356 = vst [vmem:[%s1233 + $0xcc] sm:$0xf] %v4228
        %4357 = vst [vmem:[%s1233 + $0xd0] sm:$0xf] %v4229
        %4358 = vst [vmem:[%s1233 + $0xd4] sm:$0xf] %v4230
        %4359 = vst [vmem:[%s1233 + $0xd8] sm:$0xf] %v4231
        %4360 = vst [vmem:[%s1233 + $0xdc] sm:$0xf] %v4232
        %4361 = vst [vmem:[%s1233 + $0xe0] sm:$0xf] %v4233
        %4362 = vst [vmem:[%s1233 + $0xe4] sm:$0xf] %v4234
        %4363 = vst [vmem:[%s1233 + $0xe8] sm:$0xf] %v4235
        %4364 = vst [vmem:[%s1233 + $0xec] sm:$0xf] %v4236
        %4365 = vst [vmem:[%s1233 + $0xf0] sm:$0xf] %v4237
        %4366 = vst [vmem:[%s1233 + $0xf4] sm:$0xf] %v4238
        %4367 = vst [vmem:[%s1233 + $0xf8] sm:$0xf] %v4239
        %4368 = vst [vmem:[%s1233 + $0xfc] sm:$0xf] %v4240
        %s4369 = smul.u32 64, %s14
        %p4370 = scmp.lt.s32.totalorder %s4369, 127
        %s4371 = scalar_select %p4370, %s4369, 127
        %s4372 = smul.addr %s4371, 4
        %s4373 = scalar_lea.vmem %s3, %s4372
        // Predicated region
        $region74: #{mynet_forward.6} parent=68 // pred_check
          %p4374 = pneg %p100
        $region75: #{mynet_forward.6} parent=68 // pred_check_branch
          %4376 = sbr.rel (%p4374) target = $region77
        $region76: #{mynet_forward.6} parent=68 // pred_region
          %s4377 = smul.u32 64, %s14
        $region77: #{mynet_forward.6} parent=68 // pred_fallthru
          _
      $region69: #{mynet_forward.6} parent=5 // pred_fallthru
        _
      %p4378 = scmp.le.s32.totalorder 2, %s9
      // Predicated region
      $region78: #{mynet_forward.6} parent=5 // pred_check
        %p4379 = pneg %p4378
      $region79: #{mynet_forward.6} parent=5 // pred_check_branch
        %4381 = sbr.rel (%p4379) target = $region81
      $region80: #{mynet_forward.6} parent=5 // pred_region
        %s4382 = ssub.s32 %s9, 2
        // Predicated region
        $region82: #{mynet_forward.6} parent=80 // pred_check
          %p4383 = pneg %p106
        $region83: #{mynet_forward.6} parent=80 // pred_check_branch
          %4385 = sbr.rel (%p4383) target = $region85
        $region84: #{mynet_forward.6} parent=80 // pred_region
          %s4386 = smul.u32 64, %s15
          %p4387 = scmp.lt.s32.totalorder %s4386, 127
          %s4388 = scalar_select %p4387, %s4386, 127
          %s4389 = smul.addr %s4388, 4
          %s4390 = scalar_lea.vmem %s3, %s4389
        $region85: #{mynet_forward.6} parent=80 // pred_fallthru
          _
      $region81: #{mynet_forward.6} parent=5 // pred_fallthru
        _
    $region6: #{mynet_forward.6} parent=1 // loop_footer
      %s13 = sadd.s32 1, %s9
    $region7: #{mynet_forward.6} parent=1 // loop_footer_branch
      %8 = sbr.rel target = $region3
    $region8: #{mynet_forward.6} parent=1 // loop_exit
      _

// kernel: mynet_forward.7
$region0: #{mynet_forward.7}
  #allocation0 [shape = 'u32[]', space=smem, size = 0x4, offset = 0x4, fixed_abs, tag = 'smem constant byte address 0x4 - core index']
  #allocation1 [shape = 'u32[144,128]{1,0:T(1,128)}', space=vmem, size = 0x12000, scoped, tag = 'internal scratch']
  %s0 = inlined_call_operand.vmem [shape: bf16[4,200,180], index: 0, kind: input, shape index: {}]
  %s1 = inlined_call_operand.vmem [shape: bf16[180,128], index: 1, kind: input, shape index: {}]
  %s2 = inlined_call_operand.vmem [shape: f32[1,128], index: 2, kind: input, shape index: {}]
  %s3 = inlined_call_operand.vmem [shape: bf16[200,128], index: 3, kind: output, shape index: {}]
  %s4 = sld [smem:[#allocation0]]
  $region22: #{mynet_forward.7} parent=0
    _
  %s6 = ssub.s32 1, %s4
  %s7 = scalar_select 0, %s6, %s4
  // Predicated region
  $region2: #{mynet_forward.7} parent=0 // pred_check
    _
  $region3: #{mynet_forward.7} parent=0 // pred_check_branch
    %9 = sbr.rel (0) target = $region5
  $region4: #{mynet_forward.7} parent=0 // pred_region
    _
  $region5: #{mynet_forward.7} parent=0 // pred_fallthru
    _
  // Predicated region
  $region6: #{mynet_forward.7} parent=0 // pred_check
    _
  $region7: #{mynet_forward.7} parent=0 // pred_check_branch
    %11 = sbr.rel (0) target = $region9
  $region8: #{mynet_forward.7} parent=0 // pred_region
    _
  $region9: #{mynet_forward.7} parent=0 // pred_fallthru
    _
  // Predicated region
  $region10: #{mynet_forward.7} parent=0 // pred_check
    _
  $region11: #{mynet_forward.7} parent=0 // pred_check_branch
    %13 = sbr.rel (0) target = $region13
  $region12: #{mynet_forward.7} parent=0 // pred_region
    _
  $region13: #{mynet_forward.7} parent=0 // pred_fallthru
    _
  %v15 = vld [vmem:[%s0] sm:$0xff]
  %v16 = vld [vmem:[%s0 + $0x8] sm:$0xff]
  %v17 = vld [vmem:[%s0 + $0x10] sm:$0xff]
  %v18 = vld [vmem:[%s0 + $0x18] sm:$0xff]
  %v19 = vld [vmem:[%s0 + $0x20] sm:$0xff]
  %v20 = vld [vmem:[%s0 + $0x28] sm:$0xff]
  %v21 = vld [vmem:[%s0 + $0x30] sm:$0xff]
  %v22 = vld [vmem:[%s0 + $0x38] sm:$0xff]
  %v23 = vld [vmem:[%s0 + $0x40] sm:$0xff]
  %v24 = vld [vmem:[%s0 + $0x48] sm:$0xff]
  %v25 = vld [vmem:[%s0 + $0x50] sm:$0xff]
  %v26 = vld [vmem:[%s0 + $0x58] sm:$0xff]
  %v27 = vld [vmem:[%s0 + $0x60] sm:$0xff]
  %v28 = vld [vmem:[%s0 + $0x68] sm:$0xff]
  %v29 = vld [vmem:[%s0 + $0x70] sm:$0xff]
  %v30 = vld [vmem:[%s0 + $0x78] sm:$0xff]
  %v31 = vld [vmem:[%s0 + $0x80] sm:$0xff]
  %v32 = vld [vmem:[%s0 + $0x88] sm:$0xff]
  %v33 = vld [vmem:[%s0 + $0x90] sm:$0xff]
  %v34 = vld [vmem:[%s0 + $0x98] sm:$0xff]
  %v35 = vld [vmem:[%s0 + $0xa0] sm:$0xff]
  %v36 = vld [vmem:[%s0 + $0xa8] sm:$0xff]
  %v37 = vld [vmem:[%s0 + $0xb0] sm:$0xff]
  %v38 = vld [vmem:[%s0 + $0xb8] sm:$0xff]
  %v39 = vld [vmem:[%s0 + $0xc0] sm:$0xff]
  %v40 = vld [vmem:[%s1] sm:$0xf]
  %v41 = vld [vmem:[%s1 + $0x4] sm:$0xf]
  %v42 = vld [vmem:[%s1 + $0x8] sm:$0xf]
  %v43 = vld [vmem:[%s1 + $0xc] sm:$0xf]
  %v44 = vld [vmem:[%s1 + $0x10] sm:$0xf]
  %v45 = vld [vmem:[%s1 + $0x14] sm:$0xf]
  %v46 = vld [vmem:[%s1 + $0x18] sm:$0xf]
  %v47 = vld [vmem:[%s1 + $0x1c] sm:$0xf]
  %v48 = vld [vmem:[%s1 + $0x20] sm:$0xf]
  %v49 = vld [vmem:[%s1 + $0x24] sm:$0xf]
  %v50 = vld [vmem:[%s1 + $0x28] sm:$0xf]
  %v51 = vld [vmem:[%s1 + $0x2c] sm:$0xf]
  %v52 = vld [vmem:[%s1 + $0x30] sm:$0xf]
  %v53 = vld [vmem:[%s1 + $0x34] sm:$0xf]
  %v54 = vld [vmem:[%s1 + $0x38] sm:$0xf]
  %v55 = vld [vmem:[%s1 + $0x3c] sm:$0xf]
  %v56 = vld [vmem:[%s1 + $0x40] sm:$0xf]
  %v57 = vld [vmem:[%s1 + $0x44] sm:$0xf]
  %v58 = vld [vmem:[%s1 + $0x48] sm:$0xf]
  %v59 = vld [vmem:[%s1 + $0x4c] sm:$0xf]
  %v60 = vld [vmem:[%s1 + $0x50] sm:$0xf]
  %v61 = vld [vmem:[%s1 + $0x54] sm:$0xf]
  %v62 = vld [vmem:[%s1 + $0x58] sm:$0x3]
  %v88 = vunpack.c.l.b16 %v15
  %v89 = vunpack.c.h.b16 %v15
  %v90 = vunpack.c.l.b16 %v16
  %v91 = vunpack.c.h.b16 %v16
  %v92 = vunpack.c.l.b16 %v17
  %v93 = vunpack.c.h.b16 %v17
  %v94 = vunpack.c.l.b16 %v18
  %v95 = vunpack.c.h.b16 %v18
  %v96 = vunpack.c.l.b16 %v19
  %v97 = vunpack.c.h.b16 %v19
  %v98 = vunpack.c.l.b16 %v20
  %v99 = vunpack.c.h.b16 %v20
  %v100 = vunpack.c.l.b16 %v21
  %v101 = vunpack.c.h.b16 %v21
  %v102 = vunpack.c.l.b16 %v22
  %v103 = vunpack.c.h.b16 %v22
  %v104 = vunpack.c.l.b16 %v23
  %v105 = vunpack.c.h.b16 %v23
  %v106 = vunpack.c.l.b16 %v24
  %v107 = vunpack.c.h.b16 %v24
  %v108 = vunpack.c.l.b16 %v25
  %v109 = vunpack.c.h.b16 %v25
  %v110 = vunpack.c.l.b16 %v26
  %v111 = vunpack.c.h.b16 %v26
  %v112 = vunpack.c.l.b16 %v27
  %v113 = vunpack.c.h.b16 %v27
  %v114 = vunpack.c.l.b16 %v28
  %v115 = vunpack.c.h.b16 %v28
  %v116 = vunpack.c.l.b16 %v29
  %v117 = vunpack.c.h.b16 %v29
  %v118 = vunpack.c.l.b16 %v30
  %v119 = vunpack.c.h.b16 %v30
  %v120 = vunpack.c.l.b16 %v31
  %v121 = vunpack.c.h.b16 %v31
  %v122 = vunpack.c.l.b16 %v32
  %v123 = vunpack.c.h.b16 %v32
  %v124 = vunpack.c.l.b16 %v33
  %v125 = vunpack.c.h.b16 %v33
  %v126 = vunpack.c.l.b16 %v34
  %v127 = vunpack.c.h.b16 %v34
  %v128 = vunpack.c.l.b16 %v35
  %v129 = vunpack.c.h.b16 %v35
  %v130 = vunpack.c.l.b16 %v36
  %v131 = vunpack.c.h.b16 %v36
  %v132 = vunpack.c.l.b16 %v37
  %v133 = vunpack.c.h.b16 %v37
  %v134 = vunpack.c.l.b16 %v38
  %v135 = vunpack.c.h.b16 %v38
  %v136 = vunpack.c.l.b16 %v39
  %v137 = vunpack.c.h.b16 %v39
  %v138 = vpack.c.b16 %v90, %v88
  %v139 = vpack.c.b16 %v91, %v89
  %v140 = vpack.c.b16 %v94, %v92
  %v141 = vpack.c.b16 %v95, %v93
  %v142 = vpack.c.b16 %v98, %v96
  %v143 = vpack.c.b16 %v99, %v97
  %v144 = vpack.c.b16 %v102, %v100
  %v145 = vpack.c.b16 %v103, %v101
  %v146 = vpack.c.b16 %v106, %v104
  %v147 = vpack.c.b16 %v107, %v105
  %v148 = vpack.c.b16 %v110, %v108
  %v149 = vpack.c.b16 %v111, %v109
  %v150 = vpack.c.b16 %v114, %v112
  %v151 = vpack.c.b16 %v115, %v113
  %v152 = vpack.c.b16 %v118, %v116
  %v153 = vpack.c.b16 %v119, %v117
  %v154 = vpack.c.b16 %v122, %v120
  %v155 = vpack.c.b16 %v123, %v121
  %v156 = vpack.c.b16 %v126, %v124
  %v157 = vpack.c.b16 %v127, %v125
  %v158 = vpack.c.b16 %v130, %v128
  %v159 = vpack.c.b16 %v131, %v129
  %v160 = vpack.c.b16 %v134, %v132
  %v161 = vpack.c.b16 %v135, %v133
  %v162 = vpack.c.b16 %v136, %v136
  %v163 = vpack.c.b16 %v137, %v137
  %v200 = vunpack.c.l.b16 %v40
  %v201 = vunpack.c.l.b16 %v41
  %v202 = vunpack.c.l.b16 %v42
  %v203 = vunpack.c.l.b16 %v43
  %v204 = vunpack.c.l.b16 %v44
  %v205 = vunpack.c.l.b16 %v45
  %v206 = vunpack.c.l.b16 %v46
  %v207 = vunpack.c.l.b16 %v47
  %v208 = vunpack.c.l.b16 %v48
  %v209 = vunpack.c.l.b16 %v49
  %v210 = vunpack.c.l.b16 %v50
  %v211 = vunpack.c.l.b16 %v51
  %v212 = vunpack.c.l.b16 %v52
  %v213 = vunpack.c.l.b16 %v53
  %v214 = vunpack.c.l.b16 %v54
  %v215 = vunpack.c.l.b16 %v55
  %v216 = vunpack.c.l.b16 %v56
  %v217 = vunpack.c.l.b16 %v57
  %v218 = vunpack.c.l.b16 %v58
  %v219 = vunpack.c.l.b16 %v59
  %v220 = vunpack.c.l.b16 %v60
  %v221 = vunpack.c.l.b16 %v61
  %v222 = vunpack.c.l.b16 %v62
  %v223 = vpack.c.b16 %v201, %v200
  %v224 = vpack.c.b16 %v203, %v202
  %v225 = vpack.c.b16 %v205, %v204
  %v226 = vpack.c.b16 %v207, %v206
  %v227 = vpack.c.b16 %v209, %v208
  %v228 = vpack.c.b16 %v211, %v210
  %v229 = vpack.c.b16 %v213, %v212
  %v230 = vpack.c.b16 %v215, %v214
  %v231 = vpack.c.b16 %v217, %v216
  %v232 = vpack.c.b16 %v219, %v218
  %v233 = vpack.c.b16 %v221, %v220
  %v234 = vpack.c.b16 %v222, %v222
  %vm246 = vcmask 424960
  %v248 = vsel %vm246, %v139, 0
  %v251 = vsel %vm246, %v141, 0
  %v254 = vsel %vm246, %v143, 0
  %v257 = vsel %vm246, %v145, 0
  %v260 = vsel %vm246, %v147, 0
  %v263 = vsel %vm246, %v149, 0
  %v266 = vsel %vm246, %v151, 0
  %v269 = vsel %vm246, %v153, 0
  %v272 = vsel %vm246, %v155, 0
  %v275 = vsel %vm246, %v157, 0
  %v278 = vsel %vm246, %v159, 0
  %v281 = vsel %vm246, %v161, 0
  %v284 = vsel %vm246, %v163, 0
  %vm286 = vcmask 1041408
  %v288 = vsel %vm286, %v234, 0
  %290 = vmatprep.subr.bf16.mxu0 0
  %291 = vmatpush1.bf16.msra.mxu0 %v223
  %292 = vmatprep.subr.bf16.mxu0 0
  %293 = vmatpush1.bf16.msra.mxu0 %v224
  %294 = vmatprep.subr.bf16.mxu0 0
  %295 = vmatpush1.bf16.msra.mxu0 %v225
  %296 = vmatprep.subr.bf16.mxu0 0
  %297 = vmatpush1.bf16.msra.mxu0 %v226
  %298 = vmatprep.subr.bf16.mxu0 0
  %299 = vmatpush1.bf16.msra.mxu0 %v227
  %300 = vmatprep.subr.bf16.mxu0 0
  %301 = vmatpush1.bf16.msra.mxu0 %v228
  %302 = vmatprep.subr.bf16.mxu0 0
  %303 = vmatpush1.bf16.msra.mxu0 %v229
  %304 = vmatprep.subr.bf16.mxu0 0
  %305 = vmatpush1.bf16.msra.mxu0 %v230
  %306 = vmatprep.subr.bf16.mxu0 0
  %307 = vmatpush1.bf16.msra.mxu0 %v231
  %308 = vmatprep.subr.bf16.mxu0 0
  %309 = vmatpush1.bf16.msra.mxu0 %v232
  %310 = vmatprep.subr.bf16.mxu0 0
  %311 = vmatpush1.bf16.msra.mxu0 %v233
  %312 = vmatprep.subr.bf16.mxu0 0
  %313 = vmatpush1.bf16.msra.mxu0 %v288
  %314 = vmatprep.subr.bf16.mxu0 0
  %315 = vmatpush1.bf16.msra.mxu0 0
  %316 = vmatprep.subr.bf16.mxu0 0
  %317 = vmatpush1.bf16.msra.mxu0 0
  %318 = vmatprep.subr.bf16.mxu0 0
  %319 = vmatpush1.bf16.msra.mxu0 0
  %320 = vmatprep.subr.bf16.mxu0 0
  %321 = vmatpush1.bf16.msra.mxu0 0
  %322 = vmatprep.mubr.bf16.mxu0 %v248
  %323 = vmatmul.mubr.bf16.gmra.mrb[0].mxu0 %v138
  %v324 = vpop.f32.mrb[0].mxu0
  %v325 = vadd.f32 0.0, %v324
  %v326 = vpop.f32.mrb[0].mxu0
  %v327 = vpop.f32.mrb[0].mxu0
  %v328 = vadd.f32 0.0, %v327
  %v329 = vpop.f32.mrb[0].mxu0
  %330 = vmatprep.mubr.bf16.mxu0 %v251
  %331 = vmatmul.mubr.bf16.gmra.mrb[0].mxu0 %v140
  %v332 = vpop.f32.mrb[0].mxu0
  %v333 = vadd.f32 0.0, %v332
  %v334 = vpop.f32.mrb[0].mxu0
  %v335 = vpop.f32.mrb[0].mxu0
  %v336 = vadd.f32 0.0, %v335
  %v337 = vpop.f32.mrb[0].mxu0
  %338 = vmatprep.mubr.bf16.mxu0 %v254
  %339 = vmatmul.mubr.bf16.gmra.mrb[0].mxu0 %v142
  %v340 = vpop.f32.mrb[0].mxu0
  %v341 = vadd.f32 0.0, %v340
  %v342 = vpop.f32.mrb[0].mxu0
  %v343 = vpop.f32.mrb[0].mxu0
  %v344 = vadd.f32 0.0, %v343
  %v345 = vpop.f32.mrb[0].mxu0
  %346 = vmatprep.mubr.bf16.mxu0 %v257
  %347 = vmatmul.mubr.bf16.gmra.mrb[0].mxu0 %v144
  %v348 = vpop.f32.mrb[0].mxu0
  %v349 = vadd.f32 0.0, %v348
  %v350 = vpop.f32.mrb[0].mxu0
  %v351 = vpop.f32.mrb[0].mxu0
  %v352 = vadd.f32 0.0, %v351
  %v353 = vpop.f32.mrb[0].mxu0
  %354 = vmatprep.mubr.bf16.mxu0 %v260
  %355 = vmatmul.mubr.bf16.gmra.mrb[0].mxu0 %v146
  %v356 = vpop.f32.mrb[0].mxu0
  %v357 = vadd.f32 0.0, %v356
  %v358 = vpop.f32.mrb[0].mxu0
  %v359 = vpop.f32.mrb[0].mxu0
  %v360 = vadd.f32 0.0, %v359
  %v361 = vpop.f32.mrb[0].mxu0
  %362 = vmatprep.mubr.bf16.mxu0 %v263
  %363 = vmatmul.mubr.bf16.gmra.mrb[0].mxu0 %v148
  %v364 = vpop.f32.mrb[0].mxu0
  %v365 = vadd.f32 0.0, %v364
  %v366 = vpop.f32.mrb[0].mxu0
  %v367 = vpop.f32.mrb[0].mxu0
  %v368 = vadd.f32 0.0, %v367
  %v369 = vpop.f32.mrb[0].mxu0
  %370 = vmatprep.mubr.bf16.mxu0 %v266
  %371 = vmatmul.mubr.bf16.gmra.mrb[0].mxu0 %v150
  %v372 = vpop.f32.mrb[0].mxu0
  %v373 = vadd.f32 0.0, %v372
  %v374 = vpop.f32.mrb[0].mxu0
  %v375 = vpop.f32.mrb[0].mxu0
  %v376 = vadd.f32 0.0, %v375
  %v377 = vpop.f32.mrb[0].mxu0
  %378 = vmatprep.mubr.bf16.mxu0 %v269
  %379 = vmatmul.mubr.bf16.gmra.mrb[0].mxu0 %v152
  %v380 = vpop.f32.mrb[0].mxu0
  %v381 = vadd.f32 0.0, %v380
  %v382 = vpop.f32.mrb[0].mxu0
  %v383 = vpop.f32.mrb[0].mxu0
  %v384 = vadd.f32 0.0, %v383
  %v385 = vpop.f32.mrb[0].mxu0
  %386 = vmatprep.mubr.bf16.mxu0 %v272
  %387 = vmatmul.mubr.bf16.gmra.mrb[0].mxu0 %v154
  %v388 = vpop.f32.mrb[0].mxu0
  %v389 = vadd.f32 0.0, %v388
  %v390 = vpop.f32.mrb[0].mxu0
  %v391 = vpop.f32.mrb[0].mxu0
  %v392 = vadd.f32 0.0, %v391
  %v393 = vpop.f32.mrb[0].mxu0
  %394 = vmatprep.mubr.bf16.mxu0 %v275
  %395 = vmatmul.mubr.bf16.gmra.mrb[0].mxu0 %v156
  %v396 = vpop.f32.mrb[0].mxu0
  %v397 = vadd.f32 0.0, %v396
  %v398 = vpop.f32.mrb[0].mxu0
  %v399 = vpop.f32.mrb[0].mxu0
  %v400 = vadd.f32 0.0, %v399
  %v401 = vpop.f32.mrb[0].mxu0
  %402 = vmatprep.mubr.bf16.mxu0 %v278
  %403 = vmatmul.mubr.bf16.gmra.mrb[0].mxu0 %v158
  %v404 = vpop.f32.mrb[0].mxu0
  %v405 = vadd.f32 0.0, %v404
  %v406 = vpop.f32.mrb[0].mxu0
  %v407 = vpop.f32.mrb[0].mxu0
  %v408 = vadd.f32 0.0, %v407
  %v409 = vpop.f32.mrb[0].mxu0
  %410 = vmatprep.mubr.bf16.mxu0 %v281
  %411 = vmatmul.mubr.bf16.gmra.mrb[0].mxu0 %v160
  %v412 = vpop.f32.mrb[0].mxu0
  %v413 = vadd.f32 0.0, %v412
  %v414 = vpop.f32.mrb[0].mxu0
  %v415 = vpop.f32.mrb[0].mxu0
  %v416 = vadd.f32 0.0, %v415
  %v417 = vpop.f32.mrb[0].mxu0
  %418 = vmatprep.mubr.bf16.mxu0 %v284
  %419 = vmatmul.mubr.bf16.gmra.mrb[0].mxu0 %v162
  %v420 = vpop.f32.mrb[0].mxu0
  %v421 = vadd.f32 0.0, %v420
  %v422 = vpop.f32.mrb[0].mxu0
  %v423 = vpop.f32.mrb[0].mxu0
  %v424 = vpop.f32.mrb[0].mxu0
  %425 = vdwg.mxu0
  %s426 = scalar_lea.vmem %s0, 200
  %v427 = vld [vmem:[%s426] sm:$0xff]
  %v428 = vld [vmem:[%s426 + $0x8] sm:$0xff]
  %v429 = vld [vmem:[%s426 + $0x10] sm:$0xff]
  %v430 = vld [vmem:[%s426 + $0x18] sm:$0xff]
  %v431 = vld [vmem:[%s426 + $0x20] sm:$0xff]
  %v432 = vld [vmem:[%s426 + $0x28] sm:$0xff]
  %v433 = vld [vmem:[%s426 + $0x30] sm:$0xff]
  %v434 = vld [vmem:[%s426 + $0x38] sm:$0xff]
  %v435 = vld [vmem:[%s426 + $0x40] sm:$0xff]
  %v436 = vld [vmem:[%s426 + $0x48] sm:$0xff]
  %v437 = vld [vmem:[%s426 + $0x50] sm:$0xff]
  %v438 = vld [vmem:[%s426 + $0x58] sm:$0xff]
  %v439 = vld [vmem:[%s426 + $0x60] sm:$0xff]
  %v440 = vld [vmem:[%s426 + $0x68] sm:$0xff]
  %v441 = vld [vmem:[%s426 + $0x70] sm:$0xff]
  %v442 = vld [vmem:[%s426 + $0x78] sm:$0xff]
  %v443 = vld [vmem:[%s426 + $0x80] sm:$0xff]
  %v444 = vld [vmem:[%s426 + $0x88] sm:$0xff]
  %v445 = vld [vmem:[%s426 + $0x90] sm:$0xff]
  %v446 = vld [vmem:[%s426 + $0x98] sm:$0xff]
  %v447 = vld [vmem:[%s426 + $0xa0] sm:$0xff]
  %v448 = vld [vmem:[%s426 + $0xa8] sm:$0xff]
  %v449 = vld [vmem:[%s426 + $0xb0] sm:$0xff]
  %v450 = vld [vmem:[%s426 + $0xb8] sm:$0xff]
  %v451 = vld [vmem:[%s426 + $0xc0] sm:$0xff]
  %v477 = vunpack.c.l.b16 %v427
  %v478 = vunpack.c.h.b16 %v427
  %v479 = vunpack.c.l.b16 %v428
  %v480 = vunpack.c.h.b16 %v428
  %v481 = vunpack.c.l.b16 %v429
  %v482 = vunpack.c.h.b16 %v429
  %v483 = vunpack.c.l.b16 %v430
  %v484 = vunpack.c.h.b16 %v430
  %v485 = vunpack.c.l.b16 %v431
  %v486 = vunpack.c.h.b16 %v431
  %v487 = vunpack.c.l.b16 %v432
  %v488 = vunpack.c.h.b16 %v432
  %v489 = vunpack.c.l.b16 %v433
  %v490 = vunpack.c.h.b16 %v433
  %v491 = vunpack.c.l.b16 %v434
  %v492 = vunpack.c.h.b16 %v434
  %v493 = vunpack.c.l.b16 %v435
  %v494 = vunpack.c.h.b16 %v435
  %v495 = vunpack.c.l.b16 %v436
  %v496 = vunpack.c.h.b16 %v436
  %v497 = vunpack.c.l.b16 %v437
  %v498 = vunpack.c.h.b16 %v437
  %v499 = vunpack.c.l.b16 %v438
  %v500 = vunpack.c.h.b16 %v438
  %v501 = vunpack.c.l.b16 %v439
  %v502 = vunpack.c.h.b16 %v439
  %v503 = vunpack.c.l.b16 %v440
  %v504 = vunpack.c.h.b16 %v440
  %v505 = vunpack.c.l.b16 %v441
  %v506 = vunpack.c.h.b16 %v441
  %v507 = vunpack.c.l.b16 %v442
  %v508 = vunpack.c.h.b16 %v442
  %v509 = vunpack.c.l.b16 %v443
  %v510 = vunpack.c.h.b16 %v443
  %v511 = vunpack.c.l.b16 %v444
  %v512 = vunpack.c.h.b16 %v444
  %v513 = vunpack.c.l.b16 %v445
  %v514 = vunpack.c.h.b16 %v445
  %v515 = vunpack.c.l.b16 %v446
  %v516 = vunpack.c.h.b16 %v446
  %v517 = vunpack.c.l.b16 %v447
  %v518 = vunpack.c.h.b16 %v447
  %v519 = vunpack.c.l.b16 %v448
  %v520 = vunpack.c.h.b16 %v448
  %v521 = vunpack.c.l.b16 %v449
  %v522 = vunpack.c.h.b16 %v449
  %v523 = vunpack.c.l.b16 %v450
  %v524 = vunpack.c.h.b16 %v450
  %v525 = vunpack.c.l.b16 %v451
  %v526 = vunpack.c.h.b16 %v451
  %v527 = vpack.c.b16 %v479, %v477
  %v528 = vpack.c.b16 %v480, %v478
  %v529 = vpack.c.b16 %v483, %v481
  %v530 = vpack.c.b16 %v484, %v482
  %v531 = vpack.c.b16 %v487, %v485
  %v532 = vpack.c.b16 %v488, %v486
  %v533 = vpack.c.b16 %v491, %v489
  %v534 = vpack.c.b16 %v492, %v490
  %v535 = vpack.c.b16 %v495, %v493
  %v536 = vpack.c.b16 %v496, %v494
  %v537 = vpack.c.b16 %v499, %v497
  %v538 = vpack.c.b16 %v500, %v498
  %v539 = vpack.c.b16 %v503, %v501
  %v540 = vpack.c.b16 %v504, %v502
  %v541 = vpack.c.b16 %v507, %v505
  %v542 = vpack.c.b16 %v508, %v506
  %v543 = vpack.c.b16 %v511, %v509
  %v544 = vpack.c.b16 %v512, %v510
  %v545 = vpack.c.b16 %v515, %v513
  %v546 = vpack.c.b16 %v516, %v514
  %v547 = vpack.c.b16 %v519, %v517
  %v548 = vpack.c.b16 %v520, %v518
  %v549 = vpack.c.b16 %v523, %v521
  %v550 = vpack.c.b16 %v524, %v522
  %v551 = vpack.c.b16 %v525, %v525
  %v552 = vpack.c.b16 %v526, %v526
  %v567 = vsel %vm246, %v528, 0
  %v570 = vsel %vm246, %v530, 0
  %v573 = vsel %vm246, %v532, 0
  %v576 = vsel %vm246, %v534, 0
  %v579 = vsel %vm246, %v536, 0
  %v582 = vsel %vm246, %v538, 0
  %v585 = vsel %vm246, %v540, 0
  %v588 = vsel %vm246, %v542, 0
  %v591 = vsel %vm246, %v544, 0
  %v594 = vsel %vm246, %v546, 0
  %v597 = vsel %vm246, %v548, 0
  %v600 = vsel %vm246, %v550, 0
  %v603 = vsel %vm246, %v552, 0
  %605 = vmatprep.subr.bf16.mxu0 0
  %606 = vmatpush1.bf16.msra.mxu0 %v223
  %607 = vmatprep.subr.bf16.mxu0 0
  %608 = vmatpush1.bf16.msra.mxu0 %v224
  %609 = vmatprep.subr.bf16.mxu0 0
  %610 = vmatpush1.bf16.msra.mxu0 %v225
  %611 = vmatprep.subr.bf16.mxu0 0
  %612 = vmatpush1.bf16.msra.mxu0 %v226
  %613 = vmatprep.subr.bf16.mxu0 0
  %614 = vmatpush1.bf16.msra.mxu0 %v227
  %615 = vmatprep.subr.bf16.mxu0 0
  %616 = vmatpush1.bf16.msra.mxu0 %v228
  %617 = vmatprep.subr.bf16.mxu0 0
  %618 = vmatpush1.bf16.msra.mxu0 %v229
  %619 = vmatprep.subr.bf16.mxu0 0
  %620 = vmatpush1.bf16.msra.mxu0 %v230
  %621 = vmatprep.subr.bf16.mxu0 0
  %622 = vmatpush1.bf16.msra.mxu0 %v231
  %623 = vmatprep.subr.bf16.mxu0 0
  %624 = vmatpush1.bf16.msra.mxu0 %v232
  %625 = vmatprep.subr.bf16.mxu0 0
  %626 = vmatpush1.bf16.msra.mxu0 %v233
  %627 = vmatprep.subr.bf16.mxu0 0
  %628 = vmatpush1.bf16.msra.mxu0 %v288
  %629 = vmatprep.subr.bf16.mxu0 0
  %630 = vmatpush1.bf16.msra.mxu0 0
  %631 = vmatprep.subr.bf16.mxu0 0
  %632 = vmatpush1.bf16.msra.mxu0 0
  %633 = vmatprep.subr.bf16.mxu0 0
  %634 = vmatpush1.bf16.msra.mxu0 0
  %635 = vmatprep.subr.bf16.mxu0 0
  %636 = vmatpush1.bf16.msra.mxu0 0
  %637 = vmatprep.mubr.bf16.mxu0 %v567
  %638 = vmatmul.mubr.bf16.gmra.mrb[0].mxu0 %v527
  %v639 = vpop.f32.mrb[0].mxu0
  %v640 = vadd.f32 0.0, %v639
  %v641 = vpop.f32.mrb[0].mxu0
  %v642 = vpop.f32.mrb[0].mxu0
  %v643 = vadd.f32 0.0, %v642
  %v644 = vpop.f32.mrb[0].mxu0
  %645 = vmatprep.mubr.bf16.mxu0 %v570
  %646 = vmatmul.mubr.bf16.gmra.mrb[0].mxu0 %v529
  %v647 = vpop.f32.mrb[0].mxu0
  %v648 = vadd.f32 0.0, %v647
  %v649 = vpop.f32.mrb[0].mxu0
  %v650 = vpop.f32.mrb[0].mxu0
  %v651 = vadd.f32 0.0, %v650
  %v652 = vpop.f32.mrb[0].mxu0
  %653 = vmatprep.mubr.bf16.mxu0 %v573
  %654 = vmatmul.mubr.bf16.gmra.mrb[0].mxu0 %v531
  %v655 = vpop.f32.mrb[0].mxu0
  %v656 = vadd.f32 0.0, %v655
  %v657 = vpop.f32.mrb[0].mxu0
  %v658 = vpop.f32.mrb[0].mxu0
  %v659 = vadd.f32 0.0, %v658
  %v660 = vpop.f32.mrb[0].mxu0
  %661 = vmatprep.mubr.bf16.mxu0 %v576
  %662 = vmatmul.mubr.bf16.gmra.mrb[0].mxu0 %v533
  %v663 = vpop.f32.mrb[0].mxu0
  %v664 = vadd.f32 0.0, %v663
  %v665 = vpop.f32.mrb[0].mxu0
  %v666 = vpop.f32.mrb[0].mxu0
  %v667 = vadd.f32 0.0, %v666
  %v668 = vpop.f32.mrb[0].mxu0
  %669 = vmatprep.mubr.bf16.mxu0 %v579
  %670 = vmatmul.mubr.bf16.gmra.mrb[0].mxu0 %v535
  %v671 = vpop.f32.mrb[0].mxu0
  %v672 = vadd.f32 0.0, %v671
  %v673 = vpop.f32.mrb[0].mxu0
  %v674 = vpop.f32.mrb[0].mxu0
  %v675 = vadd.f32 0.0, %v674
  %v676 = vpop.f32.mrb[0].mxu0
  %677 = vmatprep.mubr.bf16.mxu0 %v582
  %678 = vmatmul.mubr.bf16.gmra.mrb[0].mxu0 %v537
  %v679 = vpop.f32.mrb[0].mxu0
  %v680 = vadd.f32 0.0, %v679
  %v681 = vpop.f32.mrb[0].mxu0
  %v682 = vpop.f32.mrb[0].mxu0
  %v683 = vadd.f32 0.0, %v682
  %v684 = vpop.f32.mrb[0].mxu0
  %685 = vmatprep.mubr.bf16.mxu0 %v585
  %686 = vmatmul.mubr.bf16.gmra.mrb[0].mxu0 %v539
  %v687 = vpop.f32.mrb[0].mxu0
  %v688 = vadd.f32 0.0, %v687
  %v689 = vpop.f32.mrb[0].mxu0
  %v690 = vpop.f32.mrb[0].mxu0
  %v691 = vadd.f32 0.0, %v690
  %v692 = vpop.f32.mrb[0].mxu0
  %693 = vmatprep.mubr.bf16.mxu0 %v588
  %694 = vmatmul.mubr.bf16.gmra.mrb[0].mxu0 %v541
  %v695 = vpop.f32.mrb[0].mxu0
  %v696 = vadd.f32 0.0, %v695
  %v697 = vpop.f32.mrb[0].mxu0
  %v698 = vpop.f32.mrb[0].mxu0
  %v699 = vadd.f32 0.0, %v698
  %v700 = vpop.f32.mrb[0].mxu0
  %701 = vmatprep.mubr.bf16.mxu0 %v591
  %702 = vmatmul.mubr.bf16.gmra.mrb[0].mxu0 %v543
  %v703 = vpop.f32.mrb[0].mxu0
  %v704 = vadd.f32 0.0, %v703
  %v705 = vpop.f32.mrb[0].mxu0
  %v706 = vpop.f32.mrb[0].mxu0
  %v707 = vadd.f32 0.0, %v706
  %v708 = vpop.f32.mrb[0].mxu0
  %709 = vmatprep.mubr.bf16.mxu0 %v594
  %710 = vmatmul.mubr.bf16.gmra.mrb[0].mxu0 %v545
  %v711 = vpop.f32.mrb[0].mxu0
  %v712 = vadd.f32 0.0, %v711
  %v713 = vpop.f32.mrb[0].mxu0
  %v714 = vpop.f32.mrb[0].mxu0
  %v715 = vadd.f32 0.0, %v714
  %v716 = vpop.f32.mrb[0].mxu0
  %717 = vmatprep.mubr.bf16.mxu0 %v597
  %718 = vmatmul.mubr.bf16.gmra.mrb[0].mxu0 %v547
  %v719 = vpop.f32.mrb[0].mxu0
  %v720 = vadd.f32 0.0, %v719
  %v721 = vpop.f32.mrb[0].mxu0
  %v722 = vpop.f32.mrb[0].mxu0
  %v723 = vadd.f32 0.0, %v722
  %v724 = vpop.f32.mrb[0].mxu0
  %725 = vmatprep.mubr.bf16.mxu0 %v600
  %726 = vmatmul.mubr.bf16.gmra.mrb[0].mxu0 %v549
  %v727 = vpop.f32.mrb[0].mxu0
  %v728 = vadd.f32 0.0, %v727
  %v729 = vpop.f32.mrb[0].mxu0
  %v730 = vpop.f32.mrb[0].mxu0
  %v731 = vadd.f32 0.0, %v730
  %v732 = vpop.f32.mrb[0].mxu0
  %733 = vmatprep.mubr.bf16.mxu0 %v603
  %734 = vmatmul.mubr.bf16.gmra.mrb[0].mxu0 %v551
  %v735 = vpop.f32.mrb[0].mxu0
  %v736 = vadd.f32 0.0, %v735
  %v737 = vpop.f32.mrb[0].mxu0
  %v738 = vpop.f32.mrb[0].mxu0
  %v739 = vpop.f32.mrb[0].mxu0
  %740 = vdwg.mxu0
  %v741 = vmax.f32 %v325, %v640
  %v742 = vmax.f32 %v328, %v643
  %v743 = vmax.f32 %v333, %v648
  %v744 = vmax.f32 %v336, %v651
  %v745 = vmax.f32 %v341, %v656
  %v746 = vmax.f32 %v344, %v659
  %v747 = vmax.f32 %v349, %v664
  %v748 = vmax.f32 %v352, %v667
  %v749 = vmax.f32 %v357, %v672
  %v750 = vmax.f32 %v360, %v675
  %v751 = vmax.f32 %v365, %v680
  %v752 = vmax.f32 %v368, %v683
  %v753 = vmax.f32 %v373, %v688
  %v754 = vmax.f32 %v376, %v691
  %v755 = vmax.f32 %v381, %v696
  %v756 = vmax.f32 %v384, %v699
  %v757 = vmax.f32 %v389, %v704
  %v758 = vmax.f32 %v392, %v707
  %v759 = vmax.f32 %v397, %v712
  %v760 = vmax.f32 %v400, %v715
  %v761 = vmax.f32 %v405, %v720
  %v762 = vmax.f32 %v408, %v723
  %v763 = vmax.f32 %v413, %v728
  %v764 = vmax.f32 %v416, %v731
  %v765 = vmax.f32 %v421, %v736
  %s766 = scalar_lea.vmem %s0, 400
  %v767 = vld [vmem:[%s766] sm:$0xff]
  %v768 = vld [vmem:[%s766 + $0x8] sm:$0xff]
  %v769 = vld [vmem:[%s766 + $0x10] sm:$0xff]
  %v770 = vld [vmem:[%s766 + $0x18] sm:$0xff]
  %v771 = vld [vmem:[%s766 + $0x20] sm:$0xff]
  %v772 = vld [vmem:[%s766 + $0x28] sm:$0xff]
  %v773 = vld [vmem:[%s766 + $0x30] sm:$0xff]
  %v774 = vld [vmem:[%s766 + $0x38] sm:$0xff]
  %v775 = vld [vmem:[%s766 + $0x40] sm:$0xff]
  %v776 = vld [vmem:[%s766 + $0x48] sm:$0xff]
  %v777 = vld [vmem:[%s766 + $0x50] sm:$0xff]
  %v778 = vld [vmem:[%s766 + $0x58] sm:$0xff]
  %v779 = vld [vmem:[%s766 + $0x60] sm:$0xff]
  %v780 = vld [vmem:[%s766 + $0x68] sm:$0xff]
  %v781 = vld [vmem:[%s766 + $0x70] sm:$0xff]
  %v782 = vld [vmem:[%s766 + $0x78] sm:$0xff]
  %v783 = vld [vmem:[%s766 + $0x80] sm:$0xff]
  %v784 = vld [vmem:[%s766 + $0x88] sm:$0xff]
  %v785 = vld [vmem:[%s766 + $0x90] sm:$0xff]
  %v786 = vld [vmem:[%s766 + $0x98] sm:$0xff]
  %v787 = vld [vmem:[%s766 + $0xa0] sm:$0xff]
  %v788 = vld [vmem:[%s766 + $0xa8] sm:$0xff]
  %v789 = vld [vmem:[%s766 + $0xb0] sm:$0xff]
  %v790 = vld [vmem:[%s766 + $0xb8] sm:$0xff]
  %v791 = vld [vmem:[%s766 + $0xc0] sm:$0xff]
  %v817 = vunpack.c.l.b16 %v767
  %v818 = vunpack.c.h.b16 %v767
  %v819 = vunpack.c.l.b16 %v768
  %v820 = vunpack.c.h.b16 %v768
  %v821 = vunpack.c.l.b16 %v769
  %v822 = vunpack.c.h.b16 %v769
  %v823 = vunpack.c.l.b16 %v770
  %v824 = vunpack.c.h.b16 %v770
  %v825 = vunpack.c.l.b16 %v771
  %v826 = vunpack.c.h.b16 %v771
  %v827 = vunpack.c.l.b16 %v772
  %v828 = vunpack.c.h.b16 %v772
  %v829 = vunpack.c.l.b16 %v773
  %v830 = vunpack.c.h.b16 %v773
  %v831 = vunpack.c.l.b16 %v774
  %v832 = vunpack.c.h.b16 %v774
  %v833 = vunpack.c.l.b16 %v775
  %v834 = vunpack.c.h.b16 %v775
  %v835 = vunpack.c.l.b16 %v776
  %v836 = vunpack.c.h.b16 %v776
  %v837 = vunpack.c.l.b16 %v777
  %v838 = vunpack.c.h.b16 %v777
  %v839 = vunpack.c.l.b16 %v778
  %v840 = vunpack.c.h.b16 %v778
  %v841 = vunpack.c.l.b16 %v779
  %v842 = vunpack.c.h.b16 %v779
  %v843 = vunpack.c.l.b16 %v780
  %v844 = vunpack.c.h.b16 %v780
  %v845 = vunpack.c.l.b16 %v781
  %v846 = vunpack.c.h.b16 %v781
  %v847 = vunpack.c.l.b16 %v782
  %v848 = vunpack.c.h.b16 %v782
  %v849 = vunpack.c.l.b16 %v783
  %v850 = vunpack.c.h.b16 %v783
  %v851 = vunpack.c.l.b16 %v784
  %v852 = vunpack.c.h.b16 %v784
  %v853 = vunpack.c.l.b16 %v785
  %v854 = vunpack.c.h.b16 %v785
  %v855 = vunpack.c.l.b16 %v786
  %v856 = vunpack.c.h.b16 %v786
  %v857 = vunpack.c.l.b16 %v787
  %v858 = vunpack.c.h.b16 %v787
  %v859 = vunpack.c.l.b16 %v788
  %v860 = vunpack.c.h.b16 %v788
  %v861 = vunpack.c.l.b16 %v789
  %v862 = vunpack.c.h.b16 %v789
  %v863 = vunpack.c.l.b16 %v790
  %v864 = vunpack.c.h.b16 %v790
  %v865 = vunpack.c.l.b16 %v791
  %v866 = vunpack.c.h.b16 %v791
  %v867 = vpack.c.b16 %v819, %v817
  %v868 = vpack.c.b16 %v820, %v818
  %v869 = vpack.c.b16 %v823, %v821
  %v870 = vpack.c.b16 %v824, %v822
  %v871 = vpack.c.b16 %v827, %v825
  %v872 = vpack.c.b16 %v828, %v826
  %v873 = vpack.c.b16 %v831, %v829
  %v874 = vpack.c.b16 %v832, %v830
  %v875 = vpack.c.b16 %v835, %v833
  %v876 = vpack.c.b16 %v836, %v834
  %v877 = vpack.c.b16 %v839, %v837
  %v878 = vpack.c.b16 %v840, %v838
  %v879 = vpack.c.b16 %v843, %v841
  %v880 = vpack.c.b16 %v844, %v842
  %v881 = vpack.c.b16 %v847, %v845
  %v882 = vpack.c.b16 %v848, %v846
  %v883 = vpack.c.b16 %v851, %v849
  %v884 = vpack.c.b16 %v852, %v850
  %v885 = vpack.c.b16 %v855, %v853
  %v886 = vpack.c.b16 %v856, %v854
  %v887 = vpack.c.b16 %v859, %v857
  %v888 = vpack.c.b16 %v860, %v858
  %v889 = vpack.c.b16 %v863, %v861
  %v890 = vpack.c.b16 %v864, %v862
  %v891 = vpack.c.b16 %v865, %v865
  %v892 = vpack.c.b16 %v866, %v866
  %v907 = vsel %vm246, %v868, 0
  %v910 = vsel %vm246, %v870, 0
  %v913 = vsel %vm246, %v872, 0
  %v916 = vsel %vm246, %v874, 0
  %v919 = vsel %vm246, %v876, 0
  %v922 = vsel %vm246, %v878, 0
  %v925 = vsel %vm246, %v880, 0
  %v928 = vsel %vm246, %v882, 0
  %v931 = vsel %vm246, %v884, 0
  %v934 = vsel %vm246, %v886, 0
  %v937 = vsel %vm246, %v888, 0
  %v940 = vsel %vm246, %v890, 0
  %v943 = vsel %vm246, %v892, 0
  %945 = vmatprep.subr.bf16.mxu0 0
  %946 = vmatpush1.bf16.msra.mxu0 %v223
  %947 = vmatprep.subr.bf16.mxu0 0
  %948 = vmatpush1.bf16.msra.mxu0 %v224
  %949 = vmatprep.subr.bf16.mxu0 0
  %950 = vmatpush1.bf16.msra.mxu0 %v225
  %951 = vmatprep.subr.bf16.mxu0 0
  %952 = vmatpush1.bf16.msra.mxu0 %v226
  %953 = vmatprep.subr.bf16.mxu0 0
  %954 = vmatpush1.bf16.msra.mxu0 %v227
  %955 = vmatprep.subr.bf16.mxu0 0
  %956 = vmatpush1.bf16.msra.mxu0 %v228
  %957 = vmatprep.subr.bf16.mxu0 0
  %958 = vmatpush1.bf16.msra.mxu0 %v229
  %959 = vmatprep.subr.bf16.mxu0 0
  %960 = vmatpush1.bf16.msra.mxu0 %v230
  %961 = vmatprep.subr.bf16.mxu0 0
  %962 = vmatpush1.bf16.msra.mxu0 %v231
  %963 = vmatprep.subr.bf16.mxu0 0
  %964 = vmatpush1.bf16.msra.mxu0 %v232
  %965 = vmatprep.subr.bf16.mxu0 0
  %966 = vmatpush1.bf16.msra.mxu0 %v233
  %967 = vmatprep.subr.bf16.mxu0 0
  %968 = vmatpush1.bf16.msra.mxu0 %v288
  %969 = vmatprep.subr.bf16.mxu0 0
  %970 = vmatpush1.bf16.msra.mxu0 0
  %971 = vmatprep.subr.bf16.mxu0 0
  %972 = vmatpush1.bf16.msra.mxu0 0
  %973 = vmatprep.subr.bf16.mxu0 0
  %974 = vmatpush1.bf16.msra.mxu0 0
  %975 = vmatprep.subr.bf16.mxu0 0
  %976 = vmatpush1.bf16.msra.mxu0 0
  %977 = vmatprep.mubr.bf16.mxu0 %v907
  %978 = vmatmul.mubr.bf16.gmra.mrb[0].mxu0 %v867
  %v979 = vpop.f32.mrb[0].mxu0
  %v980 = vadd.f32 0.0, %v979
  %v981 = vpop.f32.mrb[0].mxu0
  %v982 = vpop.f32.mrb[0].mxu0
  %v983 = vadd.f32 0.0, %v982
  %v984 = vpop.f32.mrb[0].mxu0
  %985 = vmatprep.mubr.bf16.mxu0 %v910
  %986 = vmatmul.mubr.bf16.gmra.mrb[0].mxu0 %v869
  %v987 = vpop.f32.mrb[0].mxu0
  %v988 = vadd.f32 0.0, %v987
  %v989 = vpop.f32.mrb[0].mxu0
  %v990 = vpop.f32.mrb[0].mxu0
  %v991 = vadd.f32 0.0, %v990
  %v992 = vpop.f32.mrb[0].mxu0
  %993 = vmatprep.mubr.bf16.mxu0 %v913
  %994 = vmatmul.mubr.bf16.gmra.mrb[0].mxu0 %v871
  %v995 = vpop.f32.mrb[0].mxu0
  %v996 = vadd.f32 0.0, %v995
  %v997 = vpop.f32.mrb[0].mxu0
  %v998 = vpop.f32.mrb[0].mxu0
  %v999 = vadd.f32 0.0, %v998
  %v1000 = vpop.f32.mrb[0].mxu0
  %1001 = vmatprep.mubr.bf16.mxu0 %v916
  %1002 = vmatmul.mubr.bf16.gmra.mrb[0].mxu0 %v873
  %v1003 = vpop.f32.mrb[0].mxu0
  %v1004 = vadd.f32 0.0, %v1003
  %v1005 = vpop.f32.mrb[0].mxu0
  %v1006 = vpop.f32.mrb[0].mxu0
  %v1007 = vadd.f32 0.0, %v1006
  %v1008 = vpop.f32.mrb[0].mxu0
  %1009 = vmatprep.mubr.bf16.mxu0 %v919
  %1010 = vmatmul.mubr.bf16.gmra.mrb[0].mxu0 %v875
  %v1011 = vpop.f32.mrb[0].mxu0
  %v1012 = vadd.f32 0.0, %v1011
  %v1013 = vpop.f32.mrb[0].mxu0
  %v1014 = vpop.f32.mrb[0].mxu0
  %v1015 = vadd.f32 0.0, %v1014
  %v1016 = vpop.f32.mrb[0].mxu0
  %1017 = vmatprep.mubr.bf16.mxu0 %v922
  %1018 = vmatmul.mubr.bf16.gmra.mrb[0].mxu0 %v877
  %v1019 = vpop.f32.mrb[0].mxu0
  %v1020 = vadd.f32 0.0, %v1019
  %v1021 = vpop.f32.mrb[0].mxu0
  %v1022 = vpop.f32.mrb[0].mxu0
  %v1023 = vadd.f32 0.0, %v1022
  %v1024 = vpop.f32.mrb[0].mxu0
  %1025 = vmatprep.mubr.bf16.mxu0 %v925
  %1026 = vmatmul.mubr.bf16.gmra.mrb[0].mxu0 %v879
  %v1027 = vpop.f32.mrb[0].mxu0
  %v1028 = vadd.f32 0.0, %v1027
  %v1029 = vpop.f32.mrb[0].mxu0
  %v1030 = vpop.f32.mrb[0].mxu0
  %v1031 = vadd.f32 0.0, %v1030
  %v1032 = vpop.f32.mrb[0].mxu0
  %1033 = vmatprep.mubr.bf16.mxu0 %v928
  %1034 = vmatmul.mubr.bf16.gmra.mrb[0].mxu0 %v881
  %v1035 = vpop.f32.mrb[0].mxu0
  %v1036 = vadd.f32 0.0, %v1035
  %v1037 = vpop.f32.mrb[0].mxu0
  %v1038 = vpop.f32.mrb[0].mxu0
  %v1039 = vadd.f32 0.0, %v1038
  %v1040 = vpop.f32.mrb[0].mxu0
  %1041 = vmatprep.mubr.bf16.mxu0 %v931
  %1042 = vmatmul.mubr.bf16.gmra.mrb[0].mxu0 %v883
  %v1043 = vpop.f32.mrb[0].mxu0
  %v1044 = vadd.f32 0.0, %v1043
  %v1045 = vpop.f32.mrb[0].mxu0
  %v1046 = vpop.f32.mrb[0].mxu0
  %v1047 = vadd.f32 0.0, %v1046
  %v1048 = vpop.f32.mrb[0].mxu0
  %1049 = vmatprep.mubr.bf16.mxu0 %v934
  %1050 = vmatmul.mubr.bf16.gmra.mrb[0].mxu0 %v885
  %v1051 = vpop.f32.mrb[0].mxu0
  %v1052 = vadd.f32 0.0, %v1051
  %v1053 = vpop.f32.mrb[0].mxu0
  %v1054 = vpop.f32.mrb[0].mxu0
  %v1055 = vadd.f32 0.0, %v1054
  %v1056 = vpop.f32.mrb[0].mxu0
  %1057 = vmatprep.mubr.bf16.mxu0 %v937
  %1058 = vmatmul.mubr.bf16.gmra.mrb[0].mxu0 %v887
  %v1059 = vpop.f32.mrb[0].mxu0
  %v1060 = vadd.f32 0.0, %v1059
  %v1061 = vpop.f32.mrb[0].mxu0
  %v1062 = vpop.f32.mrb[0].mxu0
  %v1063 = vadd.f32 0.0, %v1062
  %v1064 = vpop.f32.mrb[0].mxu0
  %1065 = vmatprep.mubr.bf16.mxu0 %v940
  %1066 = vmatmul.mubr.bf16.gmra.mrb[0].mxu0 %v889
  %v1067 = vpop.f32.mrb[0].mxu0
  %v1068 = vadd.f32 0.0, %v1067
  %v1069 = vpop.f32.mrb[0].mxu0
  %v1070 = vpop.f32.mrb[0].mxu0
  %v1071 = vadd.f32 0.0, %v1070
  %v1072 = vpop.f32.mrb[0].mxu0
  %1073 = vmatprep.mubr.bf16.mxu0 %v943
  %1074 = vmatmul.mubr.bf16.gmra.mrb[0].mxu0 %v891
  %v1075 = vpop.f32.mrb[0].mxu0
  %v1076 = vadd.f32 0.0, %v1075
  %v1077 = vpop.f32.mrb[0].mxu0
  %v1078 = vpop.f32.mrb[0].mxu0
  %v1079 = vpop.f32.mrb[0].mxu0
  %1080 = vdwg.mxu0
  %v1081 = vmax.f32 %v741, %v980
  %v1082 = vmax.f32 %v742, %v983
  %v1083 = vmax.f32 %v743, %v988
  %v1084 = vmax.f32 %v744, %v991
  %v1085 = vmax.f32 %v745, %v996
  %v1086 = vmax.f32 %v746, %v999
  %v1087 = vmax.f32 %v747, %v1004
  %v1088 = vmax.f32 %v748, %v1007
  %v1089 = vmax.f32 %v749, %v1012
  %v1090 = vmax.f32 %v750, %v1015
  %v1091 = vmax.f32 %v751, %v1020
  %v1092 = vmax.f32 %v752, %v1023
  %v1093 = vmax.f32 %v753, %v1028
  %v1094 = vmax.f32 %v754, %v1031
  %v1095 = vmax.f32 %v755, %v1036
  %v1096 = vmax.f32 %v756, %v1039
  %v1097 = vmax.f32 %v757, %v1044
  %v1098 = vmax.f32 %v758, %v1047
  %v1099 = vmax.f32 %v759, %v1052
  %v1100 = vmax.f32 %v760, %v1055
  %v1101 = vmax.f32 %v761, %v1060
  %v1102 = vmax.f32 %v762, %v1063
  %v1103 = vmax.f32 %v763, %v1068
  %v1104 = vmax.f32 %v764, %v1071
  %v1105 = vmax.f32 %v765, %v1076
  %s1106 = scalar_lea.vmem %s0, 600
  %v1107 = vld [vmem:[%s1106] sm:$0xff]
  %v1108 = vld [vmem:[%s1106 + $0x8] sm:$0xff]
  %v1109 = vld [vmem:[%s1106 + $0x10] sm:$0xff]
  %v1110 = vld [vmem:[%s1106 + $0x18] sm:$0xff]
  %v1111 = vld [vmem:[%s1106 + $0x20] sm:$0xff]
  %v1112 = vld [vmem:[%s1106 + $0x28] sm:$0xff]
  %v1113 = vld [vmem:[%s1106 + $0x30] sm:$0xff]
  %v1114 = vld [vmem:[%s1106 + $0x38] sm:$0xff]
  %v1115 = vld [vmem:[%s1106 + $0x40] sm:$0xff]
  %v1116 = vld [vmem:[%s1106 + $0x48] sm:$0xff]
  %v1117 = vld [vmem:[%s1106 + $0x50] sm:$0xff]
  %v1118 = vld [vmem:[%s1106 + $0x58] sm:$0xff]
  %v1119 = vld [vmem:[%s1106 + $0x60] sm:$0xff]
  %v1120 = vld [vmem:[%s1106 + $0x68] sm:$0xff]
  %v1121 = vld [vmem:[%s1106 + $0x70] sm:$0xff]
  %v1122 = vld [vmem:[%s1106 + $0x78] sm:$0xff]
  %v1123 = vld [vmem:[%s1106 + $0x80] sm:$0xff]
  %v1124 = vld [vmem:[%s1106 + $0x88] sm:$0xff]
  %v1125 = vld [vmem:[%s1106 + $0x90] sm:$0xff]
  %v1126 = vld [vmem:[%s1106 + $0x98] sm:$0xff]
  %v1127 = vld [vmem:[%s1106 + $0xa0] sm:$0xff]
  %v1128 = vld [vmem:[%s1106 + $0xa8] sm:$0xff]
  %v1129 = vld [vmem:[%s1106 + $0xb0] sm:$0xff]
  %v1130 = vld [vmem:[%s1106 + $0xb8] sm:$0xff]
  %v1131 = vld [vmem:[%s1106 + $0xc0] sm:$0xff]
  %v1157 = vunpack.c.l.b16 %v1107
  %v1158 = vunpack.c.h.b16 %v1107
  %v1159 = vunpack.c.l.b16 %v1108
  %v1160 = vunpack.c.h.b16 %v1108
  %v1161 = vunpack.c.l.b16 %v1109
  %v1162 = vunpack.c.h.b16 %v1109
  %v1163 = vunpack.c.l.b16 %v1110
  %v1164 = vunpack.c.h.b16 %v1110
  %v1165 = vunpack.c.l.b16 %v1111
  %v1166 = vunpack.c.h.b16 %v1111
  %v1167 = vunpack.c.l.b16 %v1112
  %v1168 = vunpack.c.h.b16 %v1112
  %v1169 = vunpack.c.l.b16 %v1113
  %v1170 = vunpack.c.h.b16 %v1113
  %v1171 = vunpack.c.l.b16 %v1114
  %v1172 = vunpack.c.h.b16 %v1114
  %v1173 = vunpack.c.l.b16 %v1115
  %v1174 = vunpack.c.h.b16 %v1115
  %v1175 = vunpack.c.l.b16 %v1116
  %v1176 = vunpack.c.h.b16 %v1116
  %v1177 = vunpack.c.l.b16 %v1117
  %v1178 = vunpack.c.h.b16 %v1117
  %v1179 = vunpack.c.l.b16 %v1118
  %v1180 = vunpack.c.h.b16 %v1118
  %v1181 = vunpack.c.l.b16 %v1119
  %v1182 = vunpack.c.h.b16 %v1119
  %v1183 = vunpack.c.l.b16 %v1120
  %v1184 = vunpack.c.h.b16 %v1120
  %v1185 = vunpack.c.l.b16 %v1121
  %v1186 = vunpack.c.h.b16 %v1121
  %v1187 = vunpack.c.l.b16 %v1122
  %v1188 = vunpack.c.h.b16 %v1122
  %v1189 = vunpack.c.l.b16 %v1123
  %v1190 = vunpack.c.h.b16 %v1123
  %v1191 = vunpack.c.l.b16 %v1124
  %v1192 = vunpack.c.h.b16 %v1124
  %v1193 = vunpack.c.l.b16 %v1125
  %v1194 = vunpack.c.h.b16 %v1125
  %v1195 = vunpack.c.l.b16 %v1126
  %v1196 = vunpack.c.h.b16 %v1126
  %v1197 = vunpack.c.l.b16 %v1127
  %v1198 = vunpack.c.h.b16 %v1127
  %v1199 = vunpack.c.l.b16 %v1128
  %v1200 = vunpack.c.h.b16 %v1128
  %v1201 = vunpack.c.l.b16 %v1129
  %v1202 = vunpack.c.h.b16 %v1129
  %v1203 = vunpack.c.l.b16 %v1130
  %v1204 = vunpack.c.h.b16 %v1130
  %v1205 = vunpack.c.l.b16 %v1131
  %v1206 = vunpack.c.h.b16 %v1131
  %v1207 = vpack.c.b16 %v1159, %v1157
  %v1208 = vpack.c.b16 %v1160, %v1158
  %v1209 = vpack.c.b16 %v1163, %v1161
  %v1210 = vpack.c.b16 %v1164, %v1162
  %v1211 = vpack.c.b16 %v1167, %v1165
  %v1212 = vpack.c.b16 %v1168, %v1166
  %v1213 = vpack.c.b16 %v1171, %v1169
  %v1214 = vpack.c.b16 %v1172, %v1170
  %v1215 = vpack.c.b16 %v1175, %v1173
  %v1216 = vpack.c.b16 %v1176, %v1174
  %v1217 = vpack.c.b16 %v1179, %v1177
  %v1218 = vpack.c.b16 %v1180, %v1178
  %v1219 = vpack.c.b16 %v1183, %v1181
  %v1220 = vpack.c.b16 %v1184, %v1182
  %v1221 = vpack.c.b16 %v1187, %v1185
  %v1222 = vpack.c.b16 %v1188, %v1186
  %v1223 = vpack.c.b16 %v1191, %v1189
  %v1224 = vpack.c.b16 %v1192, %v1190
  %v1225 = vpack.c.b16 %v1195, %v1193
  %v1226 = vpack.c.b16 %v1196, %v1194
  %v1227 = vpack.c.b16 %v1199, %v1197
  %v1228 = vpack.c.b16 %v1200, %v1198
  %v1229 = vpack.c.b16 %v1203, %v1201
  %v1230 = vpack.c.b16 %v1204, %v1202
  %v1231 = vpack.c.b16 %v1205, %v1205
  %v1232 = vpack.c.b16 %v1206, %v1206
  %v1247 = vsel %vm246, %v1208, 0
  %v1250 = vsel %vm246, %v1210, 0
  %v1253 = vsel %vm246, %v1212, 0
  %v1256 = vsel %vm246, %v1214, 0
  %v1259 = vsel %vm246, %v1216, 0
  %v1262 = vsel %vm246, %v1218, 0
  %v1265 = vsel %vm246, %v1220, 0
  %v1268 = vsel %vm246, %v1222, 0
  %v1271 = vsel %vm246, %v1224, 0
  %v1274 = vsel %vm246, %v1226, 0
  %v1277 = vsel %vm246, %v1228, 0
  %v1280 = vsel %vm246, %v1230, 0
  %v1283 = vsel %vm246, %v1232, 0
  %1285 = vmatprep.subr.bf16.mxu0 0
  %1286 = vmatpush1.bf16.msra.mxu0 %v223
  %1287 = vmatprep.subr.bf16.mxu0 0
  %1288 = vmatpush1.bf16.msra.mxu0 %v224
  %1289 = vmatprep.subr.bf16.mxu0 0
  %1290 = vmatpush1.bf16.msra.mxu0 %v225
  %1291 = vmatprep.subr.bf16.mxu0 0
  %1292 = vmatpush1.bf16.msra.mxu0 %v226
  %1293 = vmatprep.subr.bf16.mxu0 0
  %1294 = vmatpush1.bf16.msra.mxu0 %v227
  %1295 = vmatprep.subr.bf16.mxu0 0
  %1296 = vmatpush1.bf16.msra.mxu0 %v228
  %1297 = vmatprep.subr.bf16.mxu0 0
  %1298 = vmatpush1.bf16.msra.mxu0 %v229
  %1299 = vmatprep.subr.bf16.mxu0 0
  %1300 = vmatpush1.bf16.msra.mxu0 %v230
  %1301 = vmatprep.subr.bf16.mxu0 0
  %1302 = vmatpush1.bf16.msra.mxu0 %v231
  %1303 = vmatprep.subr.bf16.mxu0 0
  %1304 = vmatpush1.bf16.msra.mxu0 %v232
  %1305 = vmatprep.subr.bf16.mxu0 0
  %1306 = vmatpush1.bf16.msra.mxu0 %v233
  %1307 = vmatprep.subr.bf16.mxu0 0
  %1308 = vmatpush1.bf16.msra.mxu0 %v288
  %1309 = vmatprep.subr.bf16.mxu0 0
  %1310 = vmatpush1.bf16.msra.mxu0 0
  %1311 = vmatprep.subr.bf16.mxu0 0
  %1312 = vmatpush1.bf16.msra.mxu0 0
  %1313 = vmatprep.subr.bf16.mxu0 0
  %1314 = vmatpush1.bf16.msra.mxu0 0
  %1315 = vmatprep.subr.bf16.mxu0 0
  %1316 = vmatpush1.bf16.msra.mxu0 0
  %1317 = vmatprep.mubr.bf16.mxu0 %v1247
  %1318 = vmatmul.mubr.bf16.gmra.mrb[0].mxu0 %v1207
  %v1319 = vpop.f32.mrb[0].mxu0
  %v1320 = vadd.f32 0.0, %v1319
  %v1321 = vpop.f32.mrb[0].mxu0
  %v1322 = vpop.f32.mrb[0].mxu0
  %v1323 = vadd.f32 0.0, %v1322
  %v1324 = vpop.f32.mrb[0].mxu0
  %1325 = vmatprep.mubr.bf16.mxu0 %v1250
  %1326 = vmatmul.mubr.bf16.gmra.mrb[0].mxu0 %v1209
  %v1327 = vpop.f32.mrb[0].mxu0
  %v1328 = vadd.f32 0.0, %v1327
  %v1329 = vpop.f32.mrb[0].mxu0
  %v1330 = vpop.f32.mrb[0].mxu0
  %v1331 = vadd.f32 0.0, %v1330
  %v1332 = vpop.f32.mrb[0].mxu0
  %1333 = vmatprep.mubr.bf16.mxu0 %v1253
  %1334 = vmatmul.mubr.bf16.gmra.mrb[0].mxu0 %v1211
  %v1335 = vpop.f32.mrb[0].mxu0
  %v1336 = vadd.f32 0.0, %v1335
  %v1337 = vpop.f32.mrb[0].mxu0
  %v1338 = vpop.f32.mrb[0].mxu0
  %v1339 = vadd.f32 0.0, %v1338
  %v1340 = vpop.f32.mrb[0].mxu0
  %1341 = vmatprep.mubr.bf16.mxu0 %v1256
  %1342 = vmatmul.mubr.bf16.gmra.mrb[0].mxu0 %v1213
  %v1343 = vpop.f32.mrb[0].mxu0
  %v1344 = vadd.f32 0.0, %v1343
  %v1345 = vpop.f32.mrb[0].mxu0
  %v1346 = vpop.f32.mrb[0].mxu0
  %v1347 = vadd.f32 0.0, %v1346
  %v1348 = vpop.f32.mrb[0].mxu0
  %1349 = vmatprep.mubr.bf16.mxu0 %v1259
  %1350 = vmatmul.mubr.bf16.gmra.mrb[0].mxu0 %v1215
  %v1351 = vpop.f32.mrb[0].mxu0
  %v1352 = vadd.f32 0.0, %v1351
  %v1353 = vpop.f32.mrb[0].mxu0
  %v1354 = vpop.f32.mrb[0].mxu0
  %v1355 = vadd.f32 0.0, %v1354
  %v1356 = vpop.f32.mrb[0].mxu0
  %1357 = vmatprep.mubr.bf16.mxu0 %v1262
  %1358 = vmatmul.mubr.bf16.gmra.mrb[0].mxu0 %v1217
  %v1359 = vpop.f32.mrb[0].mxu0
  %v1360 = vadd.f32 0.0, %v1359
  %v1361 = vpop.f32.mrb[0].mxu0
  %v1362 = vpop.f32.mrb[0].mxu0
  %v1363 = vadd.f32 0.0, %v1362
  %v1364 = vpop.f32.mrb[0].mxu0
  %1365 = vmatprep.mubr.bf16.mxu0 %v1265
  %1366 = vmatmul.mubr.bf16.gmra.mrb[0].mxu0 %v1219
  %v1367 = vpop.f32.mrb[0].mxu0
  %v1368 = vadd.f32 0.0, %v1367
  %v1369 = vpop.f32.mrb[0].mxu0
  %v1370 = vpop.f32.mrb[0].mxu0
  %v1371 = vadd.f32 0.0, %v1370
  %v1372 = vpop.f32.mrb[0].mxu0
  %1373 = vmatprep.mubr.bf16.mxu0 %v1268
  %1374 = vmatmul.mubr.bf16.gmra.mrb[0].mxu0 %v1221
  %v1375 = vpop.f32.mrb[0].mxu0
  %v1376 = vadd.f32 0.0, %v1375
  %v1377 = vpop.f32.mrb[0].mxu0
  %v1378 = vpop.f32.mrb[0].mxu0
  %v1379 = vadd.f32 0.0, %v1378
  %v1380 = vpop.f32.mrb[0].mxu0
  %1381 = vmatprep.mubr.bf16.mxu0 %v1271
  %1382 = vmatmul.mubr.bf16.gmra.mrb[0].mxu0 %v1223
  %v1383 = vpop.f32.mrb[0].mxu0
  %v1384 = vadd.f32 0.0, %v1383
  %v1385 = vpop.f32.mrb[0].mxu0
  %v1386 = vpop.f32.mrb[0].mxu0
  %v1387 = vadd.f32 0.0, %v1386
  %v1388 = vpop.f32.mrb[0].mxu0
  %1389 = vmatprep.mubr.bf16.mxu0 %v1274
  %1390 = vmatmul.mubr.bf16.gmra.mrb[0].mxu0 %v1225
  %v1391 = vpop.f32.mrb[0].mxu0
  %v1392 = vadd.f32 0.0, %v1391
  %v1393 = vpop.f32.mrb[0].mxu0
  %v1394 = vpop.f32.mrb[0].mxu0
  %v1395 = vadd.f32 0.0, %v1394
  %v1396 = vpop.f32.mrb[0].mxu0
  %1397 = vmatprep.mubr.bf16.mxu0 %v1277
  %1398 = vmatmul.mubr.bf16.gmra.mrb[0].mxu0 %v1227
  %v1399 = vpop.f32.mrb[0].mxu0
  %v1400 = vadd.f32 0.0, %v1399
  %v1401 = vpop.f32.mrb[0].mxu0
  %v1402 = vpop.f32.mrb[0].mxu0
  %v1403 = vadd.f32 0.0, %v1402
  %v1404 = vpop.f32.mrb[0].mxu0
  %1405 = vmatprep.mubr.bf16.mxu0 %v1280
  %1406 = vmatmul.mubr.bf16.gmra.mrb[0].mxu0 %v1229
  %v1407 = vpop.f32.mrb[0].mxu0
  %v1408 = vadd.f32 0.0, %v1407
  %v1409 = vpop.f32.mrb[0].mxu0
  %v1410 = vpop.f32.mrb[0].mxu0
  %v1411 = vadd.f32 0.0, %v1410
  %v1412 = vpop.f32.mrb[0].mxu0
  %1413 = vmatprep.mubr.bf16.mxu0 %v1283
  %1414 = vmatmul.mubr.bf16.gmra.mrb[0].mxu0 %v1231
  %v1415 = vpop.f32.mrb[0].mxu0
  %v1416 = vadd.f32 0.0, %v1415
  %v1417 = vpop.f32.mrb[0].mxu0
  %v1418 = vpop.f32.mrb[0].mxu0
  %v1419 = vpop.f32.mrb[0].mxu0
  %1420 = vdwg.mxu0
  %v1421 = vmax.f32 %v1081, %v1320
  %v1422 = vmax.f32 %v1082, %v1323
  %v1423 = vmax.f32 %v1083, %v1328
  %v1424 = vmax.f32 %v1084, %v1331
  %v1425 = vmax.f32 %v1085, %v1336
  %v1426 = vmax.f32 %v1086, %v1339
  %v1427 = vmax.f32 %v1087, %v1344
  %v1428 = vmax.f32 %v1088, %v1347
  %v1429 = vmax.f32 %v1089, %v1352
  %v1430 = vmax.f32 %v1090, %v1355
  %v1431 = vmax.f32 %v1091, %v1360
  %v1432 = vmax.f32 %v1092, %v1363
  %v1433 = vmax.f32 %v1093, %v1368
  %v1434 = vmax.f32 %v1094, %v1371
  %v1435 = vmax.f32 %v1095, %v1376
  %v1436 = vmax.f32 %v1096, %v1379
  %v1437 = vmax.f32 %v1097, %v1384
  %v1438 = vmax.f32 %v1098, %v1387
  %v1439 = vmax.f32 %v1099, %v1392
  %v1440 = vmax.f32 %v1100, %v1395
  %v1441 = vmax.f32 %v1101, %v1400
  %v1442 = vmax.f32 %v1102, %v1403
  %v1443 = vmax.f32 %v1103, %v1408
  %v1444 = vmax.f32 %v1104, %v1411
  %v1445 = vmax.f32 %v1105, %v1416
  %v1446 = vld [vmem:[%s2] sm:$0x1]
  %v1448 = vlaneseq
  %v1449 = vshrl.u32 %v1448, 7
  %v1450 = vsub.s32 0, %v1449
  %v1451 = vrot.slane %v1446, %v1450
  %v1453 = vadd.f32 %v1421, %v1451
  %v1454 = vadd.f32 %v1422, %v1451
  %v1455 = vadd.f32 %v1423, %v1451
  %v1456 = vadd.f32 %v1424, %v1451
  %v1457 = vadd.f32 %v1425, %v1451
  %v1458 = vadd.f32 %v1426, %v1451
  %v1459 = vadd.f32 %v1427, %v1451
  %v1460 = vadd.f32 %v1428, %v1451
  %v1461 = vadd.f32 %v1429, %v1451
  %v1462 = vadd.f32 %v1430, %v1451
  %v1463 = vadd.f32 %v1431, %v1451
  %v1464 = vadd.f32 %v1432, %v1451
  %v1465 = vadd.f32 %v1433, %v1451
  %v1466 = vadd.f32 %v1434, %v1451
  %v1467 = vadd.f32 %v1435, %v1451
  %v1468 = vadd.f32 %v1436, %v1451
  %v1469 = vadd.f32 %v1437, %v1451
  %v1470 = vadd.f32 %v1438, %v1451
  %v1471 = vadd.f32 %v1439, %v1451
  %v1472 = vadd.f32 %v1440, %v1451
  %v1473 = vadd.f32 %v1441, %v1451
  %v1474 = vadd.f32 %v1442, %v1451
  %v1475 = vadd.f32 %v1443, %v1451
  %v1476 = vadd.f32 %v1444, %v1451
  %v1477 = vadd.f32 %v1445, %v1451
  %v1478 = vmax.f32 %v1453, 0.0
  %v1479 = vmax.f32 %v1454, 0.0
  %v1480 = vmax.f32 %v1455, 0.0
  %v1481 = vmax.f32 %v1456, 0.0
  %v1482 = vmax.f32 %v1457, 0.0
  %v1483 = vmax.f32 %v1458, 0.0
  %v1484 = vmax.f32 %v1459, 0.0
  %v1485 = vmax.f32 %v1460, 0.0
  %v1486 = vmax.f32 %v1461, 0.0
  %v1487 = vmax.f32 %v1462, 0.0
  %v1488 = vmax.f32 %v1463, 0.0
  %v1489 = vmax.f32 %v1464, 0.0
  %v1490 = vmax.f32 %v1465, 0.0
  %v1491 = vmax.f32 %v1466, 0.0
  %v1492 = vmax.f32 %v1467, 0.0
  %v1493 = vmax.f32 %v1468, 0.0
  %v1494 = vmax.f32 %v1469, 0.0
  %v1495 = vmax.f32 %v1470, 0.0
  %v1496 = vmax.f32 %v1471, 0.0
  %v1497 = vmax.f32 %v1472, 0.0
  %v1498 = vmax.f32 %v1473, 0.0
  %v1499 = vmax.f32 %v1474, 0.0
  %v1500 = vmax.f32 %v1475, 0.0
  %v1501 = vmax.f32 %v1476, 0.0
  %v1502 = vmax.f32 %v1477, 0.0
  %v1503 = vpack.c.bf16 %v1479, %v1478
  %v1504 = vpack.c.bf16 %v1481, %v1480
  %v1505 = vpack.c.bf16 %v1483, %v1482
  %v1506 = vpack.c.bf16 %v1485, %v1484
  %v1507 = vpack.c.bf16 %v1487, %v1486
  %v1508 = vpack.c.bf16 %v1489, %v1488
  %v1509 = vpack.c.bf16 %v1491, %v1490
  %v1510 = vpack.c.bf16 %v1493, %v1492
  %v1511 = vpack.c.bf16 %v1495, %v1494
  %v1512 = vpack.c.bf16 %v1497, %v1496
  %v1513 = vpack.c.bf16 %v1499, %v1498
  %v1514 = vpack.c.bf16 %v1501, %v1500
  %v1515 = vpack.c.bf16 %v1502, %v1502
  %v1529 = vunpack.c.l.b16 %v1503
  %v1530 = vunpack.c.h.b16 %v1503
  %v1531 = vunpack.c.l.b16 %v1504
  %v1532 = vunpack.c.h.b16 %v1504
  %v1533 = vunpack.c.l.b16 %v1505
  %v1534 = vunpack.c.h.b16 %v1505
  %v1535 = vunpack.c.l.b16 %v1506
  %v1536 = vunpack.c.h.b16 %v1506
  %v1537 = vunpack.c.l.b16 %v1507
  %v1538 = vunpack.c.h.b16 %v1507
  %v1539 = vunpack.c.l.b16 %v1508
  %v1540 = vunpack.c.h.b16 %v1508
  %v1541 = vunpack.c.l.b16 %v1509
  %v1542 = vunpack.c.h.b16 %v1509
  %v1543 = vunpack.c.l.b16 %v1510
  %v1544 = vunpack.c.h.b16 %v1510
  %v1545 = vunpack.c.l.b16 %v1511
  %v1546 = vunpack.c.h.b16 %v1511
  %v1547 = vunpack.c.l.b16 %v1512
  %v1548 = vunpack.c.h.b16 %v1512
  %v1549 = vunpack.c.l.b16 %v1513
  %v1550 = vunpack.c.h.b16 %v1513
  %v1551 = vunpack.c.l.b16 %v1514
  %v1552 = vunpack.c.h.b16 %v1514
  %v1553 = vunpack.c.l.b16 %v1515
  %v1554 = vpack.c.b16 %v1529, %v1529
  %v1555 = vpack.c.b16 %v1530, %v1530
  %v1556 = vpack.c.b16 %v1531, %v1531
  %v1557 = vpack.c.b16 %v1532, %v1532
  %v1558 = vpack.c.b16 %v1533, %v1533
  %v1559 = vpack.c.b16 %v1534, %v1534
  %v1560 = vpack.c.b16 %v1535, %v1535
  %v1561 = vpack.c.b16 %v1536, %v1536
  %v1562 = vpack.c.b16 %v1537, %v1537
  %v1563 = vpack.c.b16 %v1538, %v1538
  %v1564 = vpack.c.b16 %v1539, %v1539
  %v1565 = vpack.c.b16 %v1540, %v1540
  %v1566 = vpack.c.b16 %v1541, %v1541
  %v1567 = vpack.c.b16 %v1542, %v1542
  %v1568 = vpack.c.b16 %v1543, %v1543
  %v1569 = vpack.c.b16 %v1544, %v1544
  %v1570 = vpack.c.b16 %v1545, %v1545
  %v1571 = vpack.c.b16 %v1546, %v1546
  %v1572 = vpack.c.b16 %v1547, %v1547
  %v1573 = vpack.c.b16 %v1548, %v1548
  %v1574 = vpack.c.b16 %v1549, %v1549
  %v1575 = vpack.c.b16 %v1550, %v1550
  %v1576 = vpack.c.b16 %v1551, %v1551
  %v1577 = vpack.c.b16 %v1552, %v1552
  %v1578 = vpack.c.b16 %v1553, %v1553
  %1604 = vst [vmem:[%s3] sm:$0xf] %v1554
  %1605 = vst [vmem:[%s3 + $0x4] sm:$0xf] %v1555
  %1606 = vst [vmem:[%s3 + $0x8] sm:$0xf] %v1556
  %1607 = vst [vmem:[%s3 + $0xc] sm:$0xf] %v1557
  %1608 = vst [vmem:[%s3 + $0x10] sm:$0xf] %v1558
  %1609 = vst [vmem:[%s3 + $0x14] sm:$0xf] %v1559
  %1610 = vst [vmem:[%s3 + $0x18] sm:$0xf] %v1560
  %1611 = vst [vmem:[%s3 + $0x1c] sm:$0xf] %v1561
  %1612 = vst [vmem:[%s3 + $0x20] sm:$0xf] %v1562
  %1613 = vst [vmem:[%s3 + $0x24] sm:$0xf] %v1563
  %1614 = vst [vmem:[%s3 + $0x28] sm:$0xf] %v1564
  %1615 = vst [vmem:[%s3 + $0x2c] sm:$0xf] %v1565
  %1616 = vst [vmem:[%s3 + $0x30] sm:$0xf] %v1566
  %1617 = vst [vmem:[%s3 + $0x34] sm:$0xf] %v1567
  %1618 = vst [vmem:[%s3 + $0x38] sm:$0xf] %v1568
  %1619 = vst [vmem:[%s3 + $0x3c] sm:$0xf] %v1569
  %1620 = vst [vmem:[%s3 + $0x40] sm:$0xf] %v1570
  %1621 = vst [vmem:[%s3 + $0x44] sm:$0xf] %v1571
  %1622 = vst [vmem:[%s3 + $0x48] sm:$0xf] %v1572
  %1623 = vst [vmem:[%s3 + $0x4c] sm:$0xf] %v1573
  %1624 = vst [vmem:[%s3 + $0x50] sm:$0xf] %v1574
  %1625 = vst [vmem:[%s3 + $0x54] sm:$0xf] %v1575
  %1626 = vst [vmem:[%s3 + $0x58] sm:$0xf] %v1576
  %1627 = vst [vmem:[%s3 + $0x5c] sm:$0xf] %v1577
  %1628 = vst [vmem:[%s3 + $0x60] sm:$0xf] %v1578
  // Predicated region
  $region14: #{mynet_forward.7} parent=0 // pred_check
    _
  $region15: #{mynet_forward.7} parent=0 // pred_check_branch
    %1630 = sbr.rel (0) target = $region17
  $region16: #{mynet_forward.7} parent=0 // pred_region
    _
  $region17: #{mynet_forward.7} parent=0 // pred_fallthru
    _
  // Predicated region
  $region18: #{mynet_forward.7} parent=0 // pred_check
    _
  $region19: #{mynet_forward.7} parent=0 // pred_check_branch
    %1632 = sbr.rel (0) target = $region21
  $region20: #{mynet_forward.7} parent=0 // pred_region
    _
  $region21: #{mynet_forward.7} parent=0 // pred_fallthru
    _

// kernel: mynet_forward.8
$region0: #{mynet_forward.8}
  #allocation0 [shape = 'u32[]', space=smem, size = 0x4, offset = 0x4, fixed_abs, tag = 'smem constant byte address 0x4 - core index']
  #allocation1 [shape = 'u32[144,128]{1,0:T(1,128)}', space=vmem, size = 0x12000, scoped, tag = 'internal scratch']
  %s0 = inlined_call_operand.vmem [shape: bf16[4,32,450], index: 0, kind: input, shape index: {}]
  %s1 = inlined_call_operand.vmem [shape: bf16[450,128], index: 1, kind: input, shape index: {}]
  %s2 = inlined_call_operand.vmem [shape: f32[1,128], index: 2, kind: input, shape index: {}]
  %s3 = inlined_call_operand.vmem [shape: bf16[32,128], index: 3, kind: output, shape index: {}]
  %s4 = sld [smem:[#allocation0]]
  $region22: #{mynet_forward.8} parent=0
    _
  %s6 = ssub.s32 1, %s4
  %s7 = scalar_select 0, %s6, %s4
  // Predicated region
  $region2: #{mynet_forward.8} parent=0 // pred_check
    _
  $region3: #{mynet_forward.8} parent=0 // pred_check_branch
    %9 = sbr.rel (0) target = $region5
  $region4: #{mynet_forward.8} parent=0 // pred_region
    _
  $region5: #{mynet_forward.8} parent=0 // pred_fallthru
    _
  // Predicated region
  $region6: #{mynet_forward.8} parent=0 // pred_check
    _
  $region7: #{mynet_forward.8} parent=0 // pred_check_branch
    %11 = sbr.rel (0) target = $region9
  $region8: #{mynet_forward.8} parent=0 // pred_region
    _
  $region9: #{mynet_forward.8} parent=0 // pred_fallthru
    _
  // Predicated region
  $region10: #{mynet_forward.8} parent=0 // pred_check
    _
  $region11: #{mynet_forward.8} parent=0 // pred_check_branch
    %13 = sbr.rel (0) target = $region13
  $region12: #{mynet_forward.8} parent=0 // pred_region
    _
  $region13: #{mynet_forward.8} parent=0 // pred_fallthru
    _
  %v15 = vld [vmem:[%s0] sm:$0xff]
  %v16 = vld [vmem:[%s0 + $0x8] sm:$0xff]
  %v17 = vld [vmem:[%s0 + $0x10] sm:$0xff]
  %v18 = vld [vmem:[%s0 + $0x18] sm:$0xff]
  %v19 = vld [vmem:[%s0 + $0x20] sm:$0xff]
  %v20 = vld [vmem:[%s0 + $0x28] sm:$0xff]
  %v21 = vld [vmem:[%s0 + $0x30] sm:$0xff]
  %v22 = vld [vmem:[%s0 + $0x38] sm:$0xff]
  %v23 = vld [vmem:[%s1] sm:$0xf]
  %v24 = vld [vmem:[%s1 + $0x4] sm:$0xf]
  %v25 = vld [vmem:[%s1 + $0x8] sm:$0xf]
  %v26 = vld [vmem:[%s1 + $0xc] sm:$0xf]
  %v27 = vld [vmem:[%s1 + $0x10] sm:$0xf]
  %v28 = vld [vmem:[%s1 + $0x14] sm:$0xf]
  %v29 = vld [vmem:[%s1 + $0x18] sm:$0xf]
  %v30 = vld [vmem:[%s1 + $0x1c] sm:$0xf]
  %v31 = vld [vmem:[%s1 + $0x20] sm:$0xf]
  %v32 = vld [vmem:[%s1 + $0x24] sm:$0xf]
  %v33 = vld [vmem:[%s1 + $0x28] sm:$0xf]
  %v34 = vld [vmem:[%s1 + $0x2c] sm:$0xf]
  %v35 = vld [vmem:[%s1 + $0x30] sm:$0xf]
  %v36 = vld [vmem:[%s1 + $0x34] sm:$0xf]
  %v37 = vld [vmem:[%s1 + $0x38] sm:$0xf]
  %v38 = vld [vmem:[%s1 + $0x3c] sm:$0xf]
  %v39 = vld [vmem:[%s1 + $0x40] sm:$0xf]
  %v40 = vld [vmem:[%s1 + $0x44] sm:$0xf]
  %v41 = vld [vmem:[%s1 + $0x48] sm:$0xf]
  %v42 = vld [vmem:[%s1 + $0x4c] sm:$0xf]
  %v43 = vld [vmem:[%s1 + $0x50] sm:$0xf]
  %v44 = vld [vmem:[%s1 + $0x54] sm:$0xf]
  %v45 = vld [vmem:[%s1 + $0x58] sm:$0xf]
  %v46 = vld [vmem:[%s1 + $0x5c] sm:$0xf]
  %v47 = vld [vmem:[%s1 + $0x60] sm:$0xf]
  %v48 = vld [vmem:[%s1 + $0x64] sm:$0xf]
  %v49 = vld [vmem:[%s1 + $0x68] sm:$0xf]
  %v50 = vld [vmem:[%s1 + $0x6c] sm:$0xf]
  %v51 = vld [vmem:[%s1 + $0x70] sm:$0xf]
  %v52 = vld [vmem:[%s1 + $0x74] sm:$0xf]
  %v53 = vld [vmem:[%s1 + $0x78] sm:$0xf]
  %v54 = vld [vmem:[%s1 + $0x7c] sm:$0xf]
  %v55 = vld [vmem:[%s1 + $0x80] sm:$0xf]
  %v56 = vld [vmem:[%s1 + $0x84] sm:$0xf]
  %v57 = vld [vmem:[%s1 + $0x88] sm:$0xf]
  %v58 = vld [vmem:[%s1 + $0x8c] sm:$0xf]
  %v59 = vld [vmem:[%s1 + $0x90] sm:$0xf]
  %v60 = vld [vmem:[%s1 + $0x94] sm:$0xf]
  %v61 = vld [vmem:[%s1 + $0x98] sm:$0xf]
  %v62 = vld [vmem:[%s1 + $0x9c] sm:$0xf]
  %v63 = vld [vmem:[%s1 + $0xa0] sm:$0xf]
  %v64 = vld [vmem:[%s1 + $0xa4] sm:$0xf]
  %v65 = vld [vmem:[%s1 + $0xa8] sm:$0xf]
  %v66 = vld [vmem:[%s1 + $0xac] sm:$0xf]
  %v67 = vld [vmem:[%s1 + $0xb0] sm:$0xf]
  %v68 = vld [vmem:[%s1 + $0xb4] sm:$0xf]
  %v69 = vld [vmem:[%s1 + $0xb8] sm:$0xf]
  %v70 = vld [vmem:[%s1 + $0xbc] sm:$0xf]
  %v71 = vld [vmem:[%s1 + $0xc0] sm:$0xf]
  %v72 = vld [vmem:[%s1 + $0xc4] sm:$0xf]
  %v73 = vld [vmem:[%s1 + $0xc8] sm:$0xf]
  %v74 = vld [vmem:[%s1 + $0xcc] sm:$0xf]
  %v75 = vld [vmem:[%s1 + $0xd0] sm:$0xf]
  %v76 = vld [vmem:[%s1 + $0xd4] sm:$0xf]
  %v77 = vld [vmem:[%s1 + $0xd8] sm:$0xf]
  %v78 = vld [vmem:[%s1 + $0xdc] sm:$0xf]
  %v79 = vld [vmem:[%s1 + $0xe0] sm:$0x1]
  %v88 = vunpack.c.l.b16 %v15
  %v89 = vunpack.c.h.b16 %v15
  %v90 = vunpack.c.l.b16 %v16
  %v91 = vunpack.c.h.b16 %v16
  %v92 = vunpack.c.l.b16 %v17
  %v93 = vunpack.c.h.b16 %v17
  %v94 = vunpack.c.l.b16 %v18
  %v95 = vunpack.c.h.b16 %v18
  %v96 = vunpack.c.l.b16 %v19
  %v97 = vunpack.c.h.b16 %v19
  %v98 = vunpack.c.l.b16 %v20
  %v99 = vunpack.c.h.b16 %v20
  %v100 = vunpack.c.l.b16 %v21
  %v101 = vunpack.c.h.b16 %v21
  %v102 = vunpack.c.l.b16 %v22
  %v103 = vunpack.c.h.b16 %v22
  %v104 = vpack.c.b16 %v92, %v88
  %v105 = vpack.c.b16 %v93, %v89
  %v106 = vpack.c.b16 %v94, %v90
  %v107 = vpack.c.b16 %v95, %v91
  %v108 = vpack.c.b16 %v100, %v96
  %v109 = vpack.c.b16 %v101, %v97
  %v110 = vpack.c.b16 %v102, %v98
  %v111 = vpack.c.b16 %v103, %v99
  %v175 = vunpack.c.l.b16 %v23
  %v176 = vunpack.c.l.b16 %v24
  %v177 = vunpack.c.l.b16 %v25
  %v178 = vunpack.c.l.b16 %v26
  %v179 = vunpack.c.l.b16 %v27
  %v180 = vunpack.c.l.b16 %v28
  %v181 = vunpack.c.l.b16 %v29
  %v182 = vunpack.c.l.b16 %v30
  %v183 = vunpack.c.l.b16 %v31
  %v184 = vunpack.c.l.b16 %v32
  %v185 = vunpack.c.l.b16 %v33
  %v186 = vunpack.c.l.b16 %v34
  %v187 = vunpack.c.l.b16 %v35
  %v188 = vunpack.c.l.b16 %v36
  %v189 = vunpack.c.l.b16 %v37
  %v190 = vunpack.c.l.b16 %v38
  %v191 = vunpack.c.l.b16 %v39
  %v192 = vunpack.c.l.b16 %v40
  %v193 = vunpack.c.l.b16 %v41
  %v194 = vunpack.c.l.b16 %v42
  %v195 = vunpack.c.l.b16 %v43
  %v196 = vunpack.c.l.b16 %v44
  %v197 = vunpack.c.l.b16 %v45
  %v198 = vunpack.c.l.b16 %v46
  %v199 = vunpack.c.l.b16 %v47
  %v200 = vunpack.c.l.b16 %v48
  %v201 = vunpack.c.l.b16 %v49
  %v202 = vunpack.c.l.b16 %v50
  %v203 = vunpack.c.l.b16 %v51
  %v204 = vunpack.c.l.b16 %v52
  %v205 = vunpack.c.l.b16 %v53
  %v206 = vunpack.c.l.b16 %v54
  %v207 = vunpack.c.l.b16 %v55
  %v208 = vunpack.c.l.b16 %v56
  %v209 = vunpack.c.l.b16 %v57
  %v210 = vunpack.c.l.b16 %v58
  %v211 = vunpack.c.l.b16 %v59
  %v212 = vunpack.c.l.b16 %v60
  %v213 = vunpack.c.l.b16 %v61
  %v214 = vunpack.c.l.b16 %v62
  %v215 = vunpack.c.l.b16 %v63
  %v216 = vunpack.c.l.b16 %v64
  %v217 = vunpack.c.l.b16 %v65
  %v218 = vunpack.c.l.b16 %v66
  %v219 = vunpack.c.l.b16 %v67
  %v220 = vunpack.c.l.b16 %v68
  %v221 = vunpack.c.l.b16 %v69
  %v222 = vunpack.c.l.b16 %v70
  %v223 = vunpack.c.l.b16 %v71
  %v224 = vunpack.c.l.b16 %v72
  %v225 = vunpack.c.l.b16 %v73
  %v226 = vunpack.c.l.b16 %v74
  %v227 = vunpack.c.l.b16 %v75
  %v228 = vunpack.c.l.b16 %v76
  %v229 = vunpack.c.l.b16 %v77
  %v230 = vunpack.c.l.b16 %v78
  %v231 = vunpack.c.l.b16 %v79
  %v232 = vpack.c.b16 %v176, %v175
  %v233 = vpack.c.b16 %v178, %v177
  %v234 = vpack.c.b16 %v180, %v179
  %v235 = vpack.c.b16 %v182, %v181
  %v236 = vpack.c.b16 %v184, %v183
  %v237 = vpack.c.b16 %v186, %v185
  %v238 = vpack.c.b16 %v188, %v187
  %v239 = vpack.c.b16 %v190, %v189
  %v240 = vpack.c.b16 %v192, %v191
  %v241 = vpack.c.b16 %v194, %v193
  %v242 = vpack.c.b16 %v196, %v195
  %v243 = vpack.c.b16 %v198, %v197
  %v244 = vpack.c.b16 %v200, %v199
  %v245 = vpack.c.b16 %v202, %v201
  %v246 = vpack.c.b16 %v204, %v203
  %v247 = vpack.c.b16 %v206, %v205
  %v248 = vpack.c.b16 %v208, %v207
  %v249 = vpack.c.b16 %v210, %v209
  %v250 = vpack.c.b16 %v212, %v211
  %v251 = vpack.c.b16 %v214, %v213
  %v252 = vpack.c.b16 %v216, %v215
  %v253 = vpack.c.b16 %v218, %v217
  %v254 = vpack.c.b16 %v220, %v219
  %v255 = vpack.c.b16 %v222, %v221
  %v256 = vpack.c.b16 %v224, %v223
  %v257 = vpack.c.b16 %v226, %v225
  %v258 = vpack.c.b16 %v228, %v227
  %v259 = vpack.c.b16 %v230, %v229
  %v260 = vpack.c.b16 %v231, %v231
  %vm289 = vcmask 539648
  %v291 = vsel %vm289, %v107, 0
  %v294 = vsel %vm289, %v111, 0
  %vm296 = vcmask 1040384
  %v298 = vsel %vm296, %v260, 0
  %300 = vmatprep.subr.bf16.mxu0 0
  %301 = vmatpush1.bf16.msra.mxu0 %v232
  %302 = vmatprep.subr.bf16.mxu0 0
  %303 = vmatpush1.bf16.msra.mxu0 %v233
  %304 = vmatprep.subr.bf16.mxu0 0
  %305 = vmatpush1.bf16.msra.mxu0 %v234
  %306 = vmatprep.subr.bf16.mxu0 0
  %307 = vmatpush1.bf16.msra.mxu0 %v235
  %308 = vmatprep.subr.bf16.mxu0 0
  %309 = vmatpush1.bf16.msra.mxu0 %v236
  %310 = vmatprep.subr.bf16.mxu0 0
  %311 = vmatpush1.bf16.msra.mxu0 %v237
  %312 = vmatprep.subr.bf16.mxu0 0
  %313 = vmatpush1.bf16.msra.mxu0 %v238
  %314 = vmatprep.subr.bf16.mxu0 0
  %315 = vmatpush1.bf16.msra.mxu0 %v239
  %316 = vmatprep.subr.bf16.mxu0 0
  %317 = vmatpush1.bf16.msra.mxu0 %v240
  %318 = vmatprep.subr.bf16.mxu0 0
  %319 = vmatpush1.bf16.msra.mxu0 %v241
  %320 = vmatprep.subr.bf16.mxu0 0
  %321 = vmatpush1.bf16.msra.mxu0 %v242
  %322 = vmatprep.subr.bf16.mxu0 0
  %323 = vmatpush1.bf16.msra.mxu0 %v243
  %324 = vmatprep.subr.bf16.mxu0 0
  %325 = vmatpush1.bf16.msra.mxu0 %v244
  %326 = vmatprep.subr.bf16.mxu0 0
  %327 = vmatpush1.bf16.msra.mxu0 %v245
  %328 = vmatprep.subr.bf16.mxu0 0
  %329 = vmatpush1.bf16.msra.mxu0 %v246
  %330 = vmatprep.subr.bf16.mxu0 0
  %331 = vmatpush1.bf16.msra.mxu0 %v247
  %332 = vmatprep.mubr.bf16.mxu0 %v105
  %333 = vmatmul.mubr.bf16.gmra.mrb[0].mxu0 %v104
  %v334 = vpop.f32.mrb[0].mxu0
  %v335 = vadd.f32 0.0, %v334
  %v336 = vpop.f32.mrb[0].mxu0
  %v337 = vpop.f32.mrb[0].mxu0
  %v338 = vadd.f32 0.0, %v337
  %v339 = vpop.f32.mrb[0].mxu0
  %340 = vmatprep.mubr.bf16.mxu0 %v109
  %341 = vmatmul.mubr.bf16.gmra.mrb[0].mxu0 %v108
  %v342 = vpop.f32.mrb[0].mxu0
  %v343 = vadd.f32 0.0, %v342
  %v344 = vpop.f32.mrb[0].mxu0
  %v345 = vpop.f32.mrb[0].mxu0
  %v346 = vadd.f32 0.0, %v345
  %v347 = vpop.f32.mrb[0].mxu0
  %348 = vdwg.mxu0
  %349 = vmatprep.subr.bf16.mxu0 0
  %350 = vmatpush1.bf16.msra.mxu0 %v248
  %351 = vmatprep.subr.bf16.mxu0 0
  %352 = vmatpush1.bf16.msra.mxu0 %v249
  %353 = vmatprep.subr.bf16.mxu0 0
  %354 = vmatpush1.bf16.msra.mxu0 %v250
  %355 = vmatprep.subr.bf16.mxu0 0
  %356 = vmatpush1.bf16.msra.mxu0 %v251
  %357 = vmatprep.subr.bf16.mxu0 0
  %358 = vmatpush1.bf16.msra.mxu0 %v252
  %359 = vmatprep.subr.bf16.mxu0 0
  %360 = vmatpush1.bf16.msra.mxu0 %v253
  %361 = vmatprep.subr.bf16.mxu0 0
  %362 = vmatpush1.bf16.msra.mxu0 %v254
  %363 = vmatprep.subr.bf16.mxu0 0
  %364 = vmatpush1.bf16.msra.mxu0 %v255
  %365 = vmatprep.subr.bf16.mxu0 0
  %366 = vmatpush1.bf16.msra.mxu0 %v256
  %367 = vmatprep.subr.bf16.mxu0 0
  %368 = vmatpush1.bf16.msra.mxu0 %v257
  %369 = vmatprep.subr.bf16.mxu0 0
  %370 = vmatpush1.bf16.msra.mxu0 %v258
  %371 = vmatprep.subr.bf16.mxu0 0
  %372 = vmatpush1.bf16.msra.mxu0 %v259
  %373 = vmatprep.subr.bf16.mxu0 0
  %374 = vmatpush1.bf16.msra.mxu0 %v298
  %375 = vmatprep.subr.bf16.mxu0 0
  %376 = vmatpush1.bf16.msra.mxu0 0
  %377 = vmatprep.subr.bf16.mxu0 0
  %378 = vmatpush1.bf16.msra.mxu0 0
  %379 = vmatprep.subr.bf16.mxu0 0
  %380 = vmatpush1.bf16.msra.mxu0 0
  %381 = vmatprep.mubr.bf16.mxu0 %v291
  %382 = vmatmul.mubr.bf16.gmra.mrb[0].mxu0 %v106
  %v383 = vpop.f32.mrb[0].mxu0
  %v384 = vadd.f32 %v335, %v383
  %v385 = vpop.f32.mrb[0].mxu0
  %v386 = vpop.f32.mrb[0].mxu0
  %v387 = vadd.f32 %v338, %v386
  %v388 = vpop.f32.mrb[0].mxu0
  %389 = vmatprep.mubr.bf16.mxu0 %v294
  %390 = vmatmul.mubr.bf16.gmra.mrb[0].mxu0 %v110
  %v391 = vpop.f32.mrb[0].mxu0
  %v392 = vadd.f32 %v343, %v391
  %v393 = vpop.f32.mrb[0].mxu0
  %v394 = vpop.f32.mrb[0].mxu0
  %v395 = vadd.f32 %v346, %v394
  %v396 = vpop.f32.mrb[0].mxu0
  %397 = vdwg.mxu0
  %s398 = scalar_lea.vmem %s0, 64
  %v399 = vld [vmem:[%s398] sm:$0xff]
  %v400 = vld [vmem:[%s398 + $0x8] sm:$0xff]
  %v401 = vld [vmem:[%s398 + $0x10] sm:$0xff]
  %v402 = vld [vmem:[%s398 + $0x18] sm:$0xff]
  %v403 = vld [vmem:[%s398 + $0x20] sm:$0xff]
  %v404 = vld [vmem:[%s398 + $0x28] sm:$0xff]
  %v405 = vld [vmem:[%s398 + $0x30] sm:$0xff]
  %v406 = vld [vmem:[%s398 + $0x38] sm:$0xff]
  %v415 = vunpack.c.l.b16 %v399
  %v416 = vunpack.c.h.b16 %v399
  %v417 = vunpack.c.l.b16 %v400
  %v418 = vunpack.c.h.b16 %v400
  %v419 = vunpack.c.l.b16 %v401
  %v420 = vunpack.c.h.b16 %v401
  %v421 = vunpack.c.l.b16 %v402
  %v422 = vunpack.c.h.b16 %v402
  %v423 = vunpack.c.l.b16 %v403
  %v424 = vunpack.c.h.b16 %v403
  %v425 = vunpack.c.l.b16 %v404
  %v426 = vunpack.c.h.b16 %v404
  %v427 = vunpack.c.l.b16 %v405
  %v428 = vunpack.c.h.b16 %v405
  %v429 = vunpack.c.l.b16 %v406
  %v430 = vunpack.c.h.b16 %v406
  %v431 = vpack.c.b16 %v419, %v415
  %v432 = vpack.c.b16 %v420, %v416
  %v433 = vpack.c.b16 %v421, %v417
  %v434 = vpack.c.b16 %v422, %v418
  %v435 = vpack.c.b16 %v427, %v423
  %v436 = vpack.c.b16 %v428, %v424
  %v437 = vpack.c.b16 %v429, %v425
  %v438 = vpack.c.b16 %v430, %v426
  %v446 = vsel %vm289, %v434, 0
  %v449 = vsel %vm289, %v438, 0
  %451 = vmatprep.subr.bf16.mxu0 0
  %452 = vmatpush1.bf16.msra.mxu0 %v232
  %453 = vmatprep.subr.bf16.mxu0 0
  %454 = vmatpush1.bf16.msra.mxu0 %v233
  %455 = vmatprep.subr.bf16.mxu0 0
  %456 = vmatpush1.bf16.msra.mxu0 %v234
  %457 = vmatprep.subr.bf16.mxu0 0
  %458 = vmatpush1.bf16.msra.mxu0 %v235
  %459 = vmatprep.subr.bf16.mxu0 0
  %460 = vmatpush1.bf16.msra.mxu0 %v236
  %461 = vmatprep.subr.bf16.mxu0 0
  %462 = vmatpush1.bf16.msra.mxu0 %v237
  %463 = vmatprep.subr.bf16.mxu0 0
  %464 = vmatpush1.bf16.msra.mxu0 %v238
  %465 = vmatprep.subr.bf16.mxu0 0
  %466 = vmatpush1.bf16.msra.mxu0 %v239
  %467 = vmatprep.subr.bf16.mxu0 0
  %468 = vmatpush1.bf16.msra.mxu0 %v240
  %469 = vmatprep.subr.bf16.mxu0 0
  %470 = vmatpush1.bf16.msra.mxu0 %v241
  %471 = vmatprep.subr.bf16.mxu0 0
  %472 = vmatpush1.bf16.msra.mxu0 %v242
  %473 = vmatprep.subr.bf16.mxu0 0
  %474 = vmatpush1.bf16.msra.mxu0 %v243
  %475 = vmatprep.subr.bf16.mxu0 0
  %476 = vmatpush1.bf16.msra.mxu0 %v244
  %477 = vmatprep.subr.bf16.mxu0 0
  %478 = vmatpush1.bf16.msra.mxu0 %v245
  %479 = vmatprep.subr.bf16.mxu0 0
  %480 = vmatpush1.bf16.msra.mxu0 %v246
  %481 = vmatprep.subr.bf16.mxu0 0
  %482 = vmatpush1.bf16.msra.mxu0 %v247
  %483 = vmatprep.mubr.bf16.mxu0 %v432
  %484 = vmatmul.mubr.bf16.gmra.mrb[0].mxu0 %v431
  %v485 = vpop.f32.mrb[0].mxu0
  %v486 = vadd.f32 0.0, %v485
  %v487 = vpop.f32.mrb[0].mxu0
  %v488 = vpop.f32.mrb[0].mxu0
  %v489 = vadd.f32 0.0, %v488
  %v490 = vpop.f32.mrb[0].mxu0
  %491 = vmatprep.mubr.bf16.mxu0 %v436
  %492 = vmatmul.mubr.bf16.gmra.mrb[0].mxu0 %v435
  %v493 = vpop.f32.mrb[0].mxu0
  %v494 = vadd.f32 0.0, %v493
  %v495 = vpop.f32.mrb[0].mxu0
  %v496 = vpop.f32.mrb[0].mxu0
  %v497 = vadd.f32 0.0, %v496
  %v498 = vpop.f32.mrb[0].mxu0
  %499 = vdwg.mxu0
  %500 = vmatprep.subr.bf16.mxu0 0
  %501 = vmatpush1.bf16.msra.mxu0 %v248
  %502 = vmatprep.subr.bf16.mxu0 0
  %503 = vmatpush1.bf16.msra.mxu0 %v249
  %504 = vmatprep.subr.bf16.mxu0 0
  %505 = vmatpush1.bf16.msra.mxu0 %v250
  %506 = vmatprep.subr.bf16.mxu0 0
  %507 = vmatpush1.bf16.msra.mxu0 %v251
  %508 = vmatprep.subr.bf16.mxu0 0
  %509 = vmatpush1.bf16.msra.mxu0 %v252
  %510 = vmatprep.subr.bf16.mxu0 0
  %511 = vmatpush1.bf16.msra.mxu0 %v253
  %512 = vmatprep.subr.bf16.mxu0 0
  %513 = vmatpush1.bf16.msra.mxu0 %v254
  %514 = vmatprep.subr.bf16.mxu0 0
  %515 = vmatpush1.bf16.msra.mxu0 %v255
  %516 = vmatprep.subr.bf16.mxu0 0
  %517 = vmatpush1.bf16.msra.mxu0 %v256
  %518 = vmatprep.subr.bf16.mxu0 0
  %519 = vmatpush1.bf16.msra.mxu0 %v257
  %520 = vmatprep.subr.bf16.mxu0 0
  %521 = vmatpush1.bf16.msra.mxu0 %v258
  %522 = vmatprep.subr.bf16.mxu0 0
  %523 = vmatpush1.bf16.msra.mxu0 %v259
  %524 = vmatprep.subr.bf16.mxu0 0
  %525 = vmatpush1.bf16.msra.mxu0 %v298
  %526 = vmatprep.subr.bf16.mxu0 0
  %527 = vmatpush1.bf16.msra.mxu0 0
  %528 = vmatprep.subr.bf16.mxu0 0
  %529 = vmatpush1.bf16.msra.mxu0 0
  %530 = vmatprep.subr.bf16.mxu0 0
  %531 = vmatpush1.bf16.msra.mxu0 0
  %532 = vmatprep.mubr.bf16.mxu0 %v446
  %533 = vmatmul.mubr.bf16.gmra.mrb[0].mxu0 %v433
  %v534 = vpop.f32.mrb[0].mxu0
  %v535 = vadd.f32 %v486, %v534
  %v536 = vpop.f32.mrb[0].mxu0
  %v537 = vpop.f32.mrb[0].mxu0
  %v538 = vadd.f32 %v489, %v537
  %v539 = vpop.f32.mrb[0].mxu0
  %540 = vmatprep.mubr.bf16.mxu0 %v449
  %541 = vmatmul.mubr.bf16.gmra.mrb[0].mxu0 %v437
  %v542 = vpop.f32.mrb[0].mxu0
  %v543 = vadd.f32 %v494, %v542
  %v544 = vpop.f32.mrb[0].mxu0
  %v545 = vpop.f32.mrb[0].mxu0
  %v546 = vadd.f32 %v497, %v545
  %v547 = vpop.f32.mrb[0].mxu0
  %548 = vdwg.mxu0
  %v549 = vmax.f32 %v384, %v535
  %v550 = vmax.f32 %v387, %v538
  %v551 = vmax.f32 %v392, %v543
  %v552 = vmax.f32 %v395, %v546
  %s553 = scalar_lea.vmem %s0, 128
  %v554 = vld [vmem:[%s553] sm:$0xff]
  %v555 = vld [vmem:[%s553 + $0x8] sm:$0xff]
  %v556 = vld [vmem:[%s553 + $0x10] sm:$0xff]
  %v557 = vld [vmem:[%s553 + $0x18] sm:$0xff]
  %v558 = vld [vmem:[%s553 + $0x20] sm:$0xff]
  %v559 = vld [vmem:[%s553 + $0x28] sm:$0xff]
  %v560 = vld [vmem:[%s553 + $0x30] sm:$0xff]
  %v561 = vld [vmem:[%s553 + $0x38] sm:$0xff]
  %v570 = vunpack.c.l.b16 %v554
  %v571 = vunpack.c.h.b16 %v554
  %v572 = vunpack.c.l.b16 %v555
  %v573 = vunpack.c.h.b16 %v555
  %v574 = vunpack.c.l.b16 %v556
  %v575 = vunpack.c.h.b16 %v556
  %v576 = vunpack.c.l.b16 %v557
  %v577 = vunpack.c.h.b16 %v557
  %v578 = vunpack.c.l.b16 %v558
  %v579 = vunpack.c.h.b16 %v558
  %v580 = vunpack.c.l.b16 %v559
  %v581 = vunpack.c.h.b16 %v559
  %v582 = vunpack.c.l.b16 %v560
  %v583 = vunpack.c.h.b16 %v560
  %v584 = vunpack.c.l.b16 %v561
  %v585 = vunpack.c.h.b16 %v561
  %v586 = vpack.c.b16 %v574, %v570
  %v587 = vpack.c.b16 %v575, %v571
  %v588 = vpack.c.b16 %v576, %v572
  %v589 = vpack.c.b16 %v577, %v573
  %v590 = vpack.c.b16 %v582, %v578
  %v591 = vpack.c.b16 %v583, %v579
  %v592 = vpack.c.b16 %v584, %v580
  %v593 = vpack.c.b16 %v585, %v581
  %v601 = vsel %vm289, %v589, 0
  %v604 = vsel %vm289, %v593, 0
  %606 = vmatprep.subr.bf16.mxu0 0
  %607 = vmatpush1.bf16.msra.mxu0 %v232
  %608 = vmatprep.subr.bf16.mxu0 0
  %609 = vmatpush1.bf16.msra.mxu0 %v233
  %610 = vmatprep.subr.bf16.mxu0 0
  %611 = vmatpush1.bf16.msra.mxu0 %v234
  %612 = vmatprep.subr.bf16.mxu0 0
  %613 = vmatpush1.bf16.msra.mxu0 %v235
  %614 = vmatprep.subr.bf16.mxu0 0
  %615 = vmatpush1.bf16.msra.mxu0 %v236
  %616 = vmatprep.subr.bf16.mxu0 0
  %617 = vmatpush1.bf16.msra.mxu0 %v237
  %618 = vmatprep.subr.bf16.mxu0 0
  %619 = vmatpush1.bf16.msra.mxu0 %v238
  %620 = vmatprep.subr.bf16.mxu0 0
  %621 = vmatpush1.bf16.msra.mxu0 %v239
  %622 = vmatprep.subr.bf16.mxu0 0
  %623 = vmatpush1.bf16.msra.mxu0 %v240
  %624 = vmatprep.subr.bf16.mxu0 0
  %625 = vmatpush1.bf16.msra.mxu0 %v241
  %626 = vmatprep.subr.bf16.mxu0 0
  %627 = vmatpush1.bf16.msra.mxu0 %v242
  %628 = vmatprep.subr.bf16.mxu0 0
  %629 = vmatpush1.bf16.msra.mxu0 %v243
  %630 = vmatprep.subr.bf16.mxu0 0
  %631 = vmatpush1.bf16.msra.mxu0 %v244
  %632 = vmatprep.subr.bf16.mxu0 0
  %633 = vmatpush1.bf16.msra.mxu0 %v245
  %634 = vmatprep.subr.bf16.mxu0 0
  %635 = vmatpush1.bf16.msra.mxu0 %v246
  %636 = vmatprep.subr.bf16.mxu0 0
  %637 = vmatpush1.bf16.msra.mxu0 %v247
  %638 = vmatprep.mubr.bf16.mxu0 %v587
  %639 = vmatmul.mubr.bf16.gmra.mrb[0].mxu0 %v586
  %v640 = vpop.f32.mrb[0].mxu0
  %v641 = vadd.f32 0.0, %v640
  %v642 = vpop.f32.mrb[0].mxu0
  %v643 = vpop.f32.mrb[0].mxu0
  %v644 = vadd.f32 0.0, %v643
  %v645 = vpop.f32.mrb[0].mxu0
  %646 = vmatprep.mubr.bf16.mxu0 %v591
  %647 = vmatmul.mubr.bf16.gmra.mrb[0].mxu0 %v590
  %v648 = vpop.f32.mrb[0].mxu0
  %v649 = vadd.f32 0.0, %v648
  %v650 = vpop.f32.mrb[0].mxu0
  %v651 = vpop.f32.mrb[0].mxu0
  %v652 = vadd.f32 0.0, %v651
  %v653 = vpop.f32.mrb[0].mxu0
  %654 = vdwg.mxu0
  %655 = vmatprep.subr.bf16.mxu0 0
  %656 = vmatpush1.bf16.msra.mxu0 %v248
  %657 = vmatprep.subr.bf16.mxu0 0
  %658 = vmatpush1.bf16.msra.mxu0 %v249
  %659 = vmatprep.subr.bf16.mxu0 0
  %660 = vmatpush1.bf16.msra.mxu0 %v250
  %661 = vmatprep.subr.bf16.mxu0 0
  %662 = vmatpush1.bf16.msra.mxu0 %v251
  %663 = vmatprep.subr.bf16.mxu0 0
  %664 = vmatpush1.bf16.msra.mxu0 %v252
  %665 = vmatprep.subr.bf16.mxu0 0
  %666 = vmatpush1.bf16.msra.mxu0 %v253
  %667 = vmatprep.subr.bf16.mxu0 0
  %668 = vmatpush1.bf16.msra.mxu0 %v254
  %669 = vmatprep.subr.bf16.mxu0 0
  %670 = vmatpush1.bf16.msra.mxu0 %v255
  %671 = vmatprep.subr.bf16.mxu0 0
  %672 = vmatpush1.bf16.msra.mxu0 %v256
  %673 = vmatprep.subr.bf16.mxu0 0
  %674 = vmatpush1.bf16.msra.mxu0 %v257
  %675 = vmatprep.subr.bf16.mxu0 0
  %676 = vmatpush1.bf16.msra.mxu0 %v258
  %677 = vmatprep.subr.bf16.mxu0 0
  %678 = vmatpush1.bf16.msra.mxu0 %v259
  %679 = vmatprep.subr.bf16.mxu0 0
  %680 = vmatpush1.bf16.msra.mxu0 %v298
  %681 = vmatprep.subr.bf16.mxu0 0
  %682 = vmatpush1.bf16.msra.mxu0 0
  %683 = vmatprep.subr.bf16.mxu0 0
  %684 = vmatpush1.bf16.msra.mxu0 0
  %685 = vmatprep.subr.bf16.mxu0 0
  %686 = vmatpush1.bf16.msra.mxu0 0
  %687 = vmatprep.mubr.bf16.mxu0 %v601
  %688 = vmatmul.mubr.bf16.gmra.mrb[0].mxu0 %v588
  %v689 = vpop.f32.mrb[0].mxu0
  %v690 = vadd.f32 %v641, %v689
  %v691 = vpop.f32.mrb[0].mxu0
  %v692 = vpop.f32.mrb[0].mxu0
  %v693 = vadd.f32 %v644, %v692
  %v694 = vpop.f32.mrb[0].mxu0
  %695 = vmatprep.mubr.bf16.mxu0 %v604
  %696 = vmatmul.mubr.bf16.gmra.mrb[0].mxu0 %v592
  %v697 = vpop.f32.mrb[0].mxu0
  %v698 = vadd.f32 %v649, %v697
  %v699 = vpop.f32.mrb[0].mxu0
  %v700 = vpop.f32.mrb[0].mxu0
  %v701 = vadd.f32 %v652, %v700
  %v702 = vpop.f32.mrb[0].mxu0
  %703 = vdwg.mxu0
  %v704 = vmax.f32 %v549, %v690
  %v705 = vmax.f32 %v550, %v693
  %v706 = vmax.f32 %v551, %v698
  %v707 = vmax.f32 %v552, %v701
  %s708 = scalar_lea.vmem %s0, 192
  %v709 = vld [vmem:[%s708] sm:$0xff]
  %v710 = vld [vmem:[%s708 + $0x8] sm:$0xff]
  %v711 = vld [vmem:[%s708 + $0x10] sm:$0xff]
  %v712 = vld [vmem:[%s708 + $0x18] sm:$0xff]
  %v713 = vld [vmem:[%s708 + $0x20] sm:$0xff]
  %v714 = vld [vmem:[%s708 + $0x28] sm:$0xff]
  %v715 = vld [vmem:[%s708 + $0x30] sm:$0xff]
  %v716 = vld [vmem:[%s708 + $0x38] sm:$0xff]
  %v725 = vunpack.c.l.b16 %v709
  %v726 = vunpack.c.h.b16 %v709
  %v727 = vunpack.c.l.b16 %v710
  %v728 = vunpack.c.h.b16 %v710
  %v729 = vunpack.c.l.b16 %v711
  %v730 = vunpack.c.h.b16 %v711
  %v731 = vunpack.c.l.b16 %v712
  %v732 = vunpack.c.h.b16 %v712
  %v733 = vunpack.c.l.b16 %v713
  %v734 = vunpack.c.h.b16 %v713
  %v735 = vunpack.c.l.b16 %v714
  %v736 = vunpack.c.h.b16 %v714
  %v737 = vunpack.c.l.b16 %v715
  %v738 = vunpack.c.h.b16 %v715
  %v739 = vunpack.c.l.b16 %v716
  %v740 = vunpack.c.h.b16 %v716
  %v741 = vpack.c.b16 %v729, %v725
  %v742 = vpack.c.b16 %v730, %v726
  %v743 = vpack.c.b16 %v731, %v727
  %v744 = vpack.c.b16 %v732, %v728
  %v745 = vpack.c.b16 %v737, %v733
  %v746 = vpack.c.b16 %v738, %v734
  %v747 = vpack.c.b16 %v739, %v735
  %v748 = vpack.c.b16 %v740, %v736
  %v756 = vsel %vm289, %v744, 0
  %v759 = vsel %vm289, %v748, 0
  %761 = vmatprep.subr.bf16.mxu0 0
  %762 = vmatpush1.bf16.msra.mxu0 %v232
  %763 = vmatprep.subr.bf16.mxu0 0
  %764 = vmatpush1.bf16.msra.mxu0 %v233
  %765 = vmatprep.subr.bf16.mxu0 0
  %766 = vmatpush1.bf16.msra.mxu0 %v234
  %767 = vmatprep.subr.bf16.mxu0 0
  %768 = vmatpush1.bf16.msra.mxu0 %v235
  %769 = vmatprep.subr.bf16.mxu0 0
  %770 = vmatpush1.bf16.msra.mxu0 %v236
  %771 = vmatprep.subr.bf16.mxu0 0
  %772 = vmatpush1.bf16.msra.mxu0 %v237
  %773 = vmatprep.subr.bf16.mxu0 0
  %774 = vmatpush1.bf16.msra.mxu0 %v238
  %775 = vmatprep.subr.bf16.mxu0 0
  %776 = vmatpush1.bf16.msra.mxu0 %v239
  %777 = vmatprep.subr.bf16.mxu0 0
  %778 = vmatpush1.bf16.msra.mxu0 %v240
  %779 = vmatprep.subr.bf16.mxu0 0
  %780 = vmatpush1.bf16.msra.mxu0 %v241
  %781 = vmatprep.subr.bf16.mxu0 0
  %782 = vmatpush1.bf16.msra.mxu0 %v242
  %783 = vmatprep.subr.bf16.mxu0 0
  %784 = vmatpush1.bf16.msra.mxu0 %v243
  %785 = vmatprep.subr.bf16.mxu0 0
  %786 = vmatpush1.bf16.msra.mxu0 %v244
  %787 = vmatprep.subr.bf16.mxu0 0
  %788 = vmatpush1.bf16.msra.mxu0 %v245
  %789 = vmatprep.subr.bf16.mxu0 0
  %790 = vmatpush1.bf16.msra.mxu0 %v246
  %791 = vmatprep.subr.bf16.mxu0 0
  %792 = vmatpush1.bf16.msra.mxu0 %v247
  %793 = vmatprep.mubr.bf16.mxu0 %v742
  %794 = vmatmul.mubr.bf16.gmra.mrb[0].mxu0 %v741
  %v795 = vpop.f32.mrb[0].mxu0
  %v796 = vadd.f32 0.0, %v795
  %v797 = vpop.f32.mrb[0].mxu0
  %v798 = vpop.f32.mrb[0].mxu0
  %v799 = vadd.f32 0.0, %v798
  %v800 = vpop.f32.mrb[0].mxu0
  %801 = vmatprep.mubr.bf16.mxu0 %v746
  %802 = vmatmul.mubr.bf16.gmra.mrb[0].mxu0 %v745
  %v803 = vpop.f32.mrb[0].mxu0
  %v804 = vadd.f32 0.0, %v803
  %v805 = vpop.f32.mrb[0].mxu0
  %v806 = vpop.f32.mrb[0].mxu0
  %v807 = vadd.f32 0.0, %v806
  %v808 = vpop.f32.mrb[0].mxu0
  %809 = vdwg.mxu0
  %810 = vmatprep.subr.bf16.mxu0 0
  %811 = vmatpush1.bf16.msra.mxu0 %v248
  %812 = vmatprep.subr.bf16.mxu0 0
  %813 = vmatpush1.bf16.msra.mxu0 %v249
  %814 = vmatprep.subr.bf16.mxu0 0
  %815 = vmatpush1.bf16.msra.mxu0 %v250
  %816 = vmatprep.subr.bf16.mxu0 0
  %817 = vmatpush1.bf16.msra.mxu0 %v251
  %818 = vmatprep.subr.bf16.mxu0 0
  %819 = vmatpush1.bf16.msra.mxu0 %v252
  %820 = vmatprep.subr.bf16.mxu0 0
  %821 = vmatpush1.bf16.msra.mxu0 %v253
  %822 = vmatprep.subr.bf16.mxu0 0
  %823 = vmatpush1.bf16.msra.mxu0 %v254
  %824 = vmatprep.subr.bf16.mxu0 0
  %825 = vmatpush1.bf16.msra.mxu0 %v255
  %826 = vmatprep.subr.bf16.mxu0 0
  %827 = vmatpush1.bf16.msra.mxu0 %v256
  %828 = vmatprep.subr.bf16.mxu0 0
  %829 = vmatpush1.bf16.msra.mxu0 %v257
  %830 = vmatprep.subr.bf16.mxu0 0
  %831 = vmatpush1.bf16.msra.mxu0 %v258
  %832 = vmatprep.subr.bf16.mxu0 0
  %833 = vmatpush1.bf16.msra.mxu0 %v259
  %834 = vmatprep.subr.bf16.mxu0 0
  %835 = vmatpush1.bf16.msra.mxu0 %v298
  %836 = vmatprep.subr.bf16.mxu0 0
  %837 = vmatpush1.bf16.msra.mxu0 0
  %838 = vmatprep.subr.bf16.mxu0 0
  %839 = vmatpush1.bf16.msra.mxu0 0
  %840 = vmatprep.subr.bf16.mxu0 0
  %841 = vmatpush1.bf16.msra.mxu0 0
  %842 = vmatprep.mubr.bf16.mxu0 %v756
  %843 = vmatmul.mubr.bf16.gmra.mrb[0].mxu0 %v743
  %v844 = vpop.f32.mrb[0].mxu0
  %v845 = vadd.f32 %v796, %v844
  %v846 = vpop.f32.mrb[0].mxu0
  %v847 = vpop.f32.mrb[0].mxu0
  %v848 = vadd.f32 %v799, %v847
  %v849 = vpop.f32.mrb[0].mxu0
  %850 = vmatprep.mubr.bf16.mxu0 %v759
  %851 = vmatmul.mubr.bf16.gmra.mrb[0].mxu0 %v747
  %v852 = vpop.f32.mrb[0].mxu0
  %v853 = vadd.f32 %v804, %v852
  %v854 = vpop.f32.mrb[0].mxu0
  %v855 = vpop.f32.mrb[0].mxu0
  %v856 = vadd.f32 %v807, %v855
  %v857 = vpop.f32.mrb[0].mxu0
  %858 = vdwg.mxu0
  %v859 = vmax.f32 %v704, %v845
  %v860 = vmax.f32 %v705, %v848
  %v861 = vmax.f32 %v706, %v853
  %v862 = vmax.f32 %v707, %v856
  %v863 = vld [vmem:[%s2] sm:$0x1]
  %v865 = vlaneseq
  %v866 = vshrl.u32 %v865, 7
  %v867 = vsub.s32 0, %v866
  %v868 = vrot.slane %v863, %v867
  %v870 = vadd.f32 %v859, %v868
  %v871 = vadd.f32 %v860, %v868
  %v872 = vadd.f32 %v861, %v868
  %v873 = vadd.f32 %v862, %v868
  %v874 = vmax.f32 %v870, 0.0
  %v875 = vmax.f32 %v871, 0.0
  %v876 = vmax.f32 %v872, 0.0
  %v877 = vmax.f32 %v873, 0.0
  %v878 = vpack.c.bf16 %v875, %v874
  %v879 = vpack.c.bf16 %v877, %v876
  %v882 = vunpack.c.l.b16 %v878
  %v883 = vunpack.c.h.b16 %v878
  %v884 = vunpack.c.l.b16 %v879
  %v885 = vunpack.c.h.b16 %v879
  %v886 = vpack.c.b16 %v882, %v882
  %v887 = vpack.c.b16 %v883, %v883
  %v888 = vpack.c.b16 %v884, %v884
  %v889 = vpack.c.b16 %v885, %v885
  %894 = vst [vmem:[%s3] sm:$0xf] %v886
  %895 = vst [vmem:[%s3 + $0x4] sm:$0xf] %v887
  %896 = vst [vmem:[%s3 + $0x8] sm:$0xf] %v888
  %897 = vst [vmem:[%s3 + $0xc] sm:$0xf] %v889
  // Predicated region
  $region14: #{mynet_forward.8} parent=0 // pred_check
    _
  $region15: #{mynet_forward.8} parent=0 // pred_check_branch
    %899 = sbr.rel (0) target = $region17
  $region16: #{mynet_forward.8} parent=0 // pred_region
    _
  $region17: #{mynet_forward.8} parent=0 // pred_fallthru
    _
  // Predicated region
  $region18: #{mynet_forward.8} parent=0 // pred_check
    _
  $region19: #{mynet_forward.8} parent=0 // pred_check_branch
    %901 = sbr.rel (0) target = $region21
  $region20: #{mynet_forward.8} parent=0 // pred_region
    _
  $region21: #{mynet_forward.8} parent=0 // pred_fallthru
    _

// kernel: mynet_forward.9
$region0: #{mynet_forward.9}
  #allocation0 [shape = 'u32[]', space=smem, size = 0x4, offset = 0x4, fixed_abs, tag = 'smem constant byte address 0x4 - core index']
  #allocation1 [shape = 'u32[144,128]{1,0:T(1,128)}', space=vmem, size = 0x12000, scoped, tag = 'internal scratch']
  %s0 = inlined_call_operand.vmem [shape: bf16[8,1120], index: 0, kind: input, shape index: {}]
  %s1 = inlined_call_operand.vmem [shape: bf16[1120,128], index: 1, kind: input, shape index: {}]
  %s2 = inlined_call_operand.vmem [shape: f32[1,128], index: 2, kind: input, shape index: {}]
  %s3 = inlined_call_operand.vmem [shape: bf16[128,128], index: 3, kind: input, shape index: {}]
  %s4 = inlined_call_operand.vmem [shape: f32[1,128], index: 4, kind: input, shape index: {}]
  %s5 = inlined_call_operand.vmem [shape: bf16[128,128], index: 5, kind: input, shape index: {}]
  %s6 = inlined_call_operand.vmem [shape: f32[1,128], index: 6, kind: input, shape index: {}]
  %s7 = inlined_call_operand.vmem [shape: f32[8,128], index: 7, kind: output, shape index: {}]
  %s8 = sld [smem:[#allocation0]]
  $region38: #{mynet_forward.9} parent=0
    _
  %s10 = ssub.s32 1, %s8
  %s11 = scalar_select 0, %s10, %s8
  // Predicated region
  $region2: #{mynet_forward.9} parent=0 // pred_check
    _
  $region3: #{mynet_forward.9} parent=0 // pred_check_branch
    %13 = sbr.rel (0) target = $region5
  $region4: #{mynet_forward.9} parent=0 // pred_region
    _
  $region5: #{mynet_forward.9} parent=0 // pred_fallthru
    _
  // Predicated region
  $region6: #{mynet_forward.9} parent=0 // pred_check
    _
  $region7: #{mynet_forward.9} parent=0 // pred_check_branch
    %15 = sbr.rel (0) target = $region9
  $region8: #{mynet_forward.9} parent=0 // pred_region
    _
  $region9: #{mynet_forward.9} parent=0 // pred_fallthru
    _
  // Predicated region
  $region10: #{mynet_forward.9} parent=0 // pred_check
    _
  $region11: #{mynet_forward.9} parent=0 // pred_check_branch
    %17 = sbr.rel (0) target = $region13
  $region12: #{mynet_forward.9} parent=0 // pred_region
    _
  $region13: #{mynet_forward.9} parent=0 // pred_fallthru
    _
  // Predicated region
  $region14: #{mynet_forward.9} parent=0 // pred_check
    _
  $region15: #{mynet_forward.9} parent=0 // pred_check_branch
    %19 = sbr.rel (0) target = $region17
  $region16: #{mynet_forward.9} parent=0 // pred_region
    _
  $region17: #{mynet_forward.9} parent=0 // pred_fallthru
    _
  // Predicated region
  $region18: #{mynet_forward.9} parent=0 // pred_check
    _
  $region19: #{mynet_forward.9} parent=0 // pred_check_branch
    %21 = sbr.rel (0) target = $region21
  $region20: #{mynet_forward.9} parent=0 // pred_region
    _
  $region21: #{mynet_forward.9} parent=0 // pred_fallthru
    _
  // Predicated region
  $region22: #{mynet_forward.9} parent=0 // pred_check
    _
  $region23: #{mynet_forward.9} parent=0 // pred_check_branch
    %23 = sbr.rel (0) target = $region25
  $region24: #{mynet_forward.9} parent=0 // pred_region
    _
  $region25: #{mynet_forward.9} parent=0 // pred_fallthru
    _
  // Predicated region
  $region26: #{mynet_forward.9} parent=0 // pred_check
    _
  $region27: #{mynet_forward.9} parent=0 // pred_check_branch
    %25 = sbr.rel (0) target = $region29
  $region28: #{mynet_forward.9} parent=0 // pred_region
    _
  $region29: #{mynet_forward.9} parent=0 // pred_fallthru
    _
  %v27 = vld [vmem:[%s0] sm:$0xff]
  %v28 = vld [vmem:[%s0 + $0x8] sm:$0xff]
  %v29 = vld [vmem:[%s0 + $0x10] sm:$0xff]
  %v30 = vld [vmem:[%s0 + $0x18] sm:$0xff]
  %v31 = vld [vmem:[%s0 + $0x20] sm:$0xf]
  %v32 = vld [vmem:[%s1] sm:$0xf]
  %v33 = vld [vmem:[%s1 + $0x4] sm:$0xf]
  %v34 = vld [vmem:[%s1 + $0x8] sm:$0xf]
  %v35 = vld [vmem:[%s1 + $0xc] sm:$0xf]
  %v36 = vld [vmem:[%s1 + $0x10] sm:$0xf]
  %v37 = vld [vmem:[%s1 + $0x14] sm:$0xf]
  %v38 = vld [vmem:[%s1 + $0x18] sm:$0xf]
  %v39 = vld [vmem:[%s1 + $0x1c] sm:$0xf]
  %v40 = vld [vmem:[%s1 + $0x20] sm:$0xf]
  %v41 = vld [vmem:[%s1 + $0x24] sm:$0xf]
  %v42 = vld [vmem:[%s1 + $0x28] sm:$0xf]
  %v43 = vld [vmem:[%s1 + $0x2c] sm:$0xf]
  %v44 = vld [vmem:[%s1 + $0x30] sm:$0xf]
  %v45 = vld [vmem:[%s1 + $0x34] sm:$0xf]
  %v46 = vld [vmem:[%s1 + $0x38] sm:$0xf]
  %v47 = vld [vmem:[%s1 + $0x3c] sm:$0xf]
  %v48 = vld [vmem:[%s1 + $0x40] sm:$0xf]
  %v49 = vld [vmem:[%s1 + $0x44] sm:$0xf]
  %v50 = vld [vmem:[%s1 + $0x48] sm:$0xf]
  %v51 = vld [vmem:[%s1 + $0x4c] sm:$0xf]
  %v52 = vld [vmem:[%s1 + $0x50] sm:$0xf]
  %v53 = vld [vmem:[%s1 + $0x54] sm:$0xf]
  %v54 = vld [vmem:[%s1 + $0x58] sm:$0xf]
  %v55 = vld [vmem:[%s1 + $0x5c] sm:$0xf]
  %v56 = vld [vmem:[%s1 + $0x60] sm:$0xf]
  %v57 = vld [vmem:[%s1 + $0x64] sm:$0xf]
  %v58 = vld [vmem:[%s1 + $0x68] sm:$0xf]
  %v59 = vld [vmem:[%s1 + $0x6c] sm:$0xf]
  %v60 = vld [vmem:[%s1 + $0x70] sm:$0xf]
  %v61 = vld [vmem:[%s1 + $0x74] sm:$0xf]
  %v62 = vld [vmem:[%s1 + $0x78] sm:$0xf]
  %v63 = vld [vmem:[%s1 + $0x7c] sm:$0xf]
  %v64 = vld [vmem:[%s1 + $0x80] sm:$0xf]
  %v65 = vld [vmem:[%s1 + $0x84] sm:$0xf]
  %v66 = vld [vmem:[%s1 + $0x88] sm:$0xf]
  %v67 = vld [vmem:[%s1 + $0x8c] sm:$0xf]
  %v68 = vld [vmem:[%s1 + $0x90] sm:$0xf]
  %v69 = vld [vmem:[%s1 + $0x94] sm:$0xf]
  %v70 = vld [vmem:[%s1 + $0x98] sm:$0xf]
  %v71 = vld [vmem:[%s1 + $0x9c] sm:$0xf]
  %v72 = vld [vmem:[%s1 + $0xa0] sm:$0xf]
  %v73 = vld [vmem:[%s1 + $0xa4] sm:$0xf]
  %v74 = vld [vmem:[%s1 + $0xa8] sm:$0xf]
  %v75 = vld [vmem:[%s1 + $0xac] sm:$0xf]
  %v76 = vld [vmem:[%s1 + $0xb0] sm:$0xf]
  %v77 = vld [vmem:[%s1 + $0xb4] sm:$0xf]
  %v78 = vld [vmem:[%s1 + $0xb8] sm:$0xf]
  %v79 = vld [vmem:[%s1 + $0xbc] sm:$0xf]
  %v80 = vld [vmem:[%s1 + $0xc0] sm:$0xf]
  %v81 = vld [vmem:[%s1 + $0xc4] sm:$0xf]
  %v82 = vld [vmem:[%s1 + $0xc8] sm:$0xf]
  %v83 = vld [vmem:[%s1 + $0xcc] sm:$0xf]
  %v84 = vld [vmem:[%s1 + $0xd0] sm:$0xf]
  %v85 = vld [vmem:[%s1 + $0xd4] sm:$0xf]
  %v86 = vld [vmem:[%s1 + $0xd8] sm:$0xf]
  %v87 = vld [vmem:[%s1 + $0xdc] sm:$0xf]
  %v88 = vld [vmem:[%s1 + $0xe0] sm:$0xf]
  %v89 = vld [vmem:[%s1 + $0xe4] sm:$0xf]
  %v90 = vld [vmem:[%s1 + $0xe8] sm:$0xf]
  %v91 = vld [vmem:[%s1 + $0xec] sm:$0xf]
  %v92 = vld [vmem:[%s1 + $0xf0] sm:$0xf]
  %v93 = vld [vmem:[%s1 + $0xf4] sm:$0xf]
  %v94 = vld [vmem:[%s1 + $0xf8] sm:$0xf]
  %v95 = vld [vmem:[%s1 + $0xfc] sm:$0xf]
  %v96 = vld [vmem:[%s1 + $0x100] sm:$0xf]
  %v97 = vld [vmem:[%s1 + $0x104] sm:$0xf]
  %v98 = vld [vmem:[%s1 + $0x108] sm:$0xf]
  %v99 = vld [vmem:[%s1 + $0x10c] sm:$0xf]
  %v100 = vld [vmem:[%s1 + $0x110] sm:$0xf]
  %v101 = vld [vmem:[%s1 + $0x114] sm:$0xf]
  %v102 = vld [vmem:[%s1 + $0x118] sm:$0xf]
  %v103 = vld [vmem:[%s1 + $0x11c] sm:$0xf]
  %v104 = vld [vmem:[%s1 + $0x120] sm:$0xf]
  %v105 = vld [vmem:[%s1 + $0x124] sm:$0xf]
  %v106 = vld [vmem:[%s1 + $0x128] sm:$0xf]
  %v107 = vld [vmem:[%s1 + $0x12c] sm:$0xf]
  %v108 = vld [vmem:[%s1 + $0x130] sm:$0xf]
  %v109 = vld [vmem:[%s1 + $0x134] sm:$0xf]
  %v110 = vld [vmem:[%s1 + $0x138] sm:$0xf]
  %v111 = vld [vmem:[%s1 + $0x13c] sm:$0xf]
  %v112 = vld [vmem:[%s1 + $0x140] sm:$0xf]
  %v113 = vld [vmem:[%s1 + $0x144] sm:$0xf]
  %v114 = vld [vmem:[%s1 + $0x148] sm:$0xf]
  %v115 = vld [vmem:[%s1 + $0x14c] sm:$0xf]
  %v116 = vld [vmem:[%s1 + $0x150] sm:$0xf]
  %v117 = vld [vmem:[%s1 + $0x154] sm:$0xf]
  %v118 = vld [vmem:[%s1 + $0x158] sm:$0xf]
  %v119 = vld [vmem:[%s1 + $0x15c] sm:$0xf]
  %v120 = vld [vmem:[%s1 + $0x160] sm:$0xf]
  %v121 = vld [vmem:[%s1 + $0x164] sm:$0xf]
  %v122 = vld [vmem:[%s1 + $0x168] sm:$0xf]
  %v123 = vld [vmem:[%s1 + $0x16c] sm:$0xf]
  %v124 = vld [vmem:[%s1 + $0x170] sm:$0xf]
  %v125 = vld [vmem:[%s1 + $0x174] sm:$0xf]
  %v126 = vld [vmem:[%s1 + $0x178] sm:$0xf]
  %v127 = vld [vmem:[%s1 + $0x17c] sm:$0xf]
  %v128 = vld [vmem:[%s1 + $0x180] sm:$0xf]
  %v129 = vld [vmem:[%s1 + $0x184] sm:$0xf]
  %v130 = vld [vmem:[%s1 + $0x188] sm:$0xf]
  %v131 = vld [vmem:[%s1 + $0x18c] sm:$0xf]
  %v132 = vld [vmem:[%s1 + $0x190] sm:$0xf]
  %v133 = vld [vmem:[%s1 + $0x194] sm:$0xf]
  %v134 = vld [vmem:[%s1 + $0x198] sm:$0xf]
  %v135 = vld [vmem:[%s1 + $0x19c] sm:$0xf]
  %v136 = vld [vmem:[%s1 + $0x1a0] sm:$0xf]
  %v137 = vld [vmem:[%s1 + $0x1a4] sm:$0xf]
  %v138 = vld [vmem:[%s1 + $0x1a8] sm:$0xf]
  %v139 = vld [vmem:[%s1 + $0x1ac] sm:$0xf]
  %v140 = vld [vmem:[%s1 + $0x1b0] sm:$0xf]
  %v141 = vld [vmem:[%s1 + $0x1b4] sm:$0xf]
  %v142 = vld [vmem:[%s1 + $0x1b8] sm:$0xf]
  %v143 = vld [vmem:[%s1 + $0x1bc] sm:$0xf]
  %v144 = vld [vmem:[%s1 + $0x1c0] sm:$0xf]
  %v145 = vld [vmem:[%s1 + $0x1c4] sm:$0xf]
  %v146 = vld [vmem:[%s1 + $0x1c8] sm:$0xf]
  %v147 = vld [vmem:[%s1 + $0x1cc] sm:$0xf]
  %v148 = vld [vmem:[%s1 + $0x1d0] sm:$0xf]
  %v149 = vld [vmem:[%s1 + $0x1d4] sm:$0xf]
  %v150 = vld [vmem:[%s1 + $0x1d8] sm:$0xf]
  %v151 = vld [vmem:[%s1 + $0x1dc] sm:$0xf]
  %v152 = vld [vmem:[%s1 + $0x1e0] sm:$0xf]
  %v153 = vld [vmem:[%s1 + $0x1e4] sm:$0xf]
  %v154 = vld [vmem:[%s1 + $0x1e8] sm:$0xf]
  %v155 = vld [vmem:[%s1 + $0x1ec] sm:$0xf]
  %v156 = vld [vmem:[%s1 + $0x1f0] sm:$0xf]
  %v157 = vld [vmem:[%s1 + $0x1f4] sm:$0xf]
  %v158 = vld [vmem:[%s1 + $0x1f8] sm:$0xf]
  %v159 = vld [vmem:[%s1 + $0x1fc] sm:$0xf]
  %v160 = vld [vmem:[%s1 + $0x200] sm:$0xf]
  %v161 = vld [vmem:[%s1 + $0x204] sm:$0xf]
  %v162 = vld [vmem:[%s1 + $0x208] sm:$0xf]
  %v163 = vld [vmem:[%s1 + $0x20c] sm:$0xf]
  %v164 = vld [vmem:[%s1 + $0x210] sm:$0xf]
  %v165 = vld [vmem:[%s1 + $0x214] sm:$0xf]
  %v166 = vld [vmem:[%s1 + $0x218] sm:$0xf]
  %v167 = vld [vmem:[%s1 + $0x21c] sm:$0xf]
  %v168 = vld [vmem:[%s1 + $0x220] sm:$0xf]
  %v169 = vld [vmem:[%s1 + $0x224] sm:$0xf]
  %v170 = vld [vmem:[%s1 + $0x228] sm:$0xf]
  %v171 = vld [vmem:[%s1 + $0x22c] sm:$0xf]
  %v172 = vld [vmem:[%s2] sm:$0x1]
  %v174 = vlaneseq
  %v175 = vshrl.u32 %v174, 7
  %v176 = vsub.s32 0, %v175
  %v177 = vrot.slane %v172, %v176
  %v184 = vunpack.c.l.b16 %v27
  %v185 = vunpack.c.h.b16 %v27
  %v186 = vunpack.c.l.b16 %v28
  %v187 = vunpack.c.h.b16 %v28
  %v188 = vunpack.c.l.b16 %v29
  %v189 = vunpack.c.h.b16 %v29
  %v190 = vunpack.c.l.b16 %v30
  %v191 = vunpack.c.h.b16 %v30
  %v192 = vunpack.c.l.b16 %v31
  %v193 = vpack.c.b16 %v184, %v184
  %v194 = vpack.c.b16 %v185, %v185
  %v195 = vpack.c.b16 %v186, %v186
  %v196 = vpack.c.b16 %v187, %v187
  %v197 = vpack.c.b16 %v188, %v188
  %v198 = vpack.c.b16 %v189, %v189
  %v199 = vpack.c.b16 %v190, %v190
  %v200 = vpack.c.b16 %v191, %v191
  %v201 = vpack.c.b16 %v192, %v192
  %v350 = vunpack.c.l.b16 %v32
  %v351 = vunpack.c.l.b16 %v33
  %v352 = vunpack.c.l.b16 %v34
  %v353 = vunpack.c.l.b16 %v35
  %v354 = vunpack.c.l.b16 %v36
  %v355 = vunpack.c.l.b16 %v37
  %v356 = vunpack.c.l.b16 %v38
  %v357 = vunpack.c.l.b16 %v39
  %v358 = vunpack.c.l.b16 %v40
  %v359 = vunpack.c.l.b16 %v41
  %v360 = vunpack.c.l.b16 %v42
  %v361 = vunpack.c.l.b16 %v43
  %v362 = vunpack.c.l.b16 %v44
  %v363 = vunpack.c.l.b16 %v45
  %v364 = vunpack.c.l.b16 %v46
  %v365 = vunpack.c.l.b16 %v47
  %v366 = vunpack.c.l.b16 %v48
  %v367 = vunpack.c.l.b16 %v49
  %v368 = vunpack.c.l.b16 %v50
  %v369 = vunpack.c.l.b16 %v51
  %v370 = vunpack.c.l.b16 %v52
  %v371 = vunpack.c.l.b16 %v53
  %v372 = vunpack.c.l.b16 %v54
  %v373 = vunpack.c.l.b16 %v55
  %v374 = vunpack.c.l.b16 %v56
  %v375 = vunpack.c.l.b16 %v57
  %v376 = vunpack.c.l.b16 %v58
  %v377 = vunpack.c.l.b16 %v59
  %v378 = vunpack.c.l.b16 %v60
  %v379 = vunpack.c.l.b16 %v61
  %v380 = vunpack.c.l.b16 %v62
  %v381 = vunpack.c.l.b16 %v63
  %v382 = vunpack.c.l.b16 %v64
  %v383 = vunpack.c.l.b16 %v65
  %v384 = vunpack.c.l.b16 %v66
  %v385 = vunpack.c.l.b16 %v67
  %v386 = vunpack.c.l.b16 %v68
  %v387 = vunpack.c.l.b16 %v69
  %v388 = vunpack.c.l.b16 %v70
  %v389 = vunpack.c.l.b16 %v71
  %v390 = vunpack.c.l.b16 %v72
  %v391 = vunpack.c.l.b16 %v73
  %v392 = vunpack.c.l.b16 %v74
  %v393 = vunpack.c.l.b16 %v75
  %v394 = vunpack.c.l.b16 %v76
  %v395 = vunpack.c.l.b16 %v77
  %v396 = vunpack.c.l.b16 %v78
  %v397 = vunpack.c.l.b16 %v79
  %v398 = vunpack.c.l.b16 %v80
  %v399 = vunpack.c.l.b16 %v81
  %v400 = vunpack.c.l.b16 %v82
  %v401 = vunpack.c.l.b16 %v83
  %v402 = vunpack.c.l.b16 %v84
  %v403 = vunpack.c.l.b16 %v85
  %v404 = vunpack.c.l.b16 %v86
  %v405 = vunpack.c.l.b16 %v87
  %v406 = vunpack.c.l.b16 %v88
  %v407 = vunpack.c.l.b16 %v89
  %v408 = vunpack.c.l.b16 %v90
  %v409 = vunpack.c.l.b16 %v91
  %v410 = vunpack.c.l.b16 %v92
  %v411 = vunpack.c.l.b16 %v93
  %v412 = vunpack.c.l.b16 %v94
  %v413 = vunpack.c.l.b16 %v95
  %v414 = vunpack.c.l.b16 %v96
  %v415 = vunpack.c.l.b16 %v97
  %v416 = vunpack.c.l.b16 %v98
  %v417 = vunpack.c.l.b16 %v99
  %v418 = vunpack.c.l.b16 %v100
  %v419 = vunpack.c.l.b16 %v101
  %v420 = vunpack.c.l.b16 %v102
  %v421 = vunpack.c.l.b16 %v103
  %v422 = vunpack.c.l.b16 %v104
  %v423 = vunpack.c.l.b16 %v105
  %v424 = vunpack.c.l.b16 %v106
  %v425 = vunpack.c.l.b16 %v107
  %v426 = vunpack.c.l.b16 %v108
  %v427 = vunpack.c.l.b16 %v109
  %v428 = vunpack.c.l.b16 %v110
  %v429 = vunpack.c.l.b16 %v111
  %v430 = vunpack.c.l.b16 %v112
  %v431 = vunpack.c.l.b16 %v113
  %v432 = vunpack.c.l.b16 %v114
  %v433 = vunpack.c.l.b16 %v115
  %v434 = vunpack.c.l.b16 %v116
  %v435 = vunpack.c.l.b16 %v117
  %v436 = vunpack.c.l.b16 %v118
  %v437 = vunpack.c.l.b16 %v119
  %v438 = vunpack.c.l.b16 %v120
  %v439 = vunpack.c.l.b16 %v121
  %v440 = vunpack.c.l.b16 %v122
  %v441 = vunpack.c.l.b16 %v123
  %v442 = vunpack.c.l.b16 %v124
  %v443 = vunpack.c.l.b16 %v125
  %v444 = vunpack.c.l.b16 %v126
  %v445 = vunpack.c.l.b16 %v127
  %v446 = vunpack.c.l.b16 %v128
  %v447 = vunpack.c.l.b16 %v129
  %v448 = vunpack.c.l.b16 %v130
  %v449 = vunpack.c.l.b16 %v131
  %v450 = vunpack.c.l.b16 %v132
  %v451 = vunpack.c.l.b16 %v133
  %v452 = vunpack.c.l.b16 %v134
  %v453 = vunpack.c.l.b16 %v135
  %v454 = vunpack.c.l.b16 %v136
  %v455 = vunpack.c.l.b16 %v137
  %v456 = vunpack.c.l.b16 %v138
  %v457 = vunpack.c.l.b16 %v139
  %v458 = vunpack.c.l.b16 %v140
  %v459 = vunpack.c.l.b16 %v141
  %v460 = vunpack.c.l.b16 %v142
  %v461 = vunpack.c.l.b16 %v143
  %v462 = vunpack.c.l.b16 %v144
  %v463 = vunpack.c.l.b16 %v145
  %v464 = vunpack.c.l.b16 %v146
  %v465 = vunpack.c.l.b16 %v147
  %v466 = vunpack.c.l.b16 %v148
  %v467 = vunpack.c.l.b16 %v149
  %v468 = vunpack.c.l.b16 %v150
  %v469 = vunpack.c.l.b16 %v151
  %v470 = vunpack.c.l.b16 %v152
  %v471 = vunpack.c.l.b16 %v153
  %v472 = vunpack.c.l.b16 %v154
  %v473 = vunpack.c.l.b16 %v155
  %v474 = vunpack.c.l.b16 %v156
  %v475 = vunpack.c.l.b16 %v157
  %v476 = vunpack.c.l.b16 %v158
  %v477 = vunpack.c.l.b16 %v159
  %v478 = vunpack.c.l.b16 %v160
  %v479 = vunpack.c.l.b16 %v161
  %v480 = vunpack.c.l.b16 %v162
  %v481 = vunpack.c.l.b16 %v163
  %v482 = vunpack.c.l.b16 %v164
  %v483 = vunpack.c.l.b16 %v165
  %v484 = vunpack.c.l.b16 %v166
  %v485 = vunpack.c.l.b16 %v167
  %v486 = vunpack.c.l.b16 %v168
  %v487 = vunpack.c.l.b16 %v169
  %v488 = vunpack.c.l.b16 %v170
  %v489 = vunpack.c.l.b16 %v171
  %v490 = vpack.c.b16 %v351, %v350
  %v491 = vpack.c.b16 %v353, %v352
  %v492 = vpack.c.b16 %v355, %v354
  %v493 = vpack.c.b16 %v357, %v356
  %v494 = vpack.c.b16 %v359, %v358
  %v495 = vpack.c.b16 %v361, %v360
  %v496 = vpack.c.b16 %v363, %v362
  %v497 = vpack.c.b16 %v365, %v364
  %v498 = vpack.c.b16 %v367, %v366
  %v499 = vpack.c.b16 %v369, %v368
  %v500 = vpack.c.b16 %v371, %v370
  %v501 = vpack.c.b16 %v373, %v372
  %v502 = vpack.c.b16 %v375, %v374
  %v503 = vpack.c.b16 %v377, %v376
  %v504 = vpack.c.b16 %v379, %v378
  %v505 = vpack.c.b16 %v381, %v380
  %v506 = vpack.c.b16 %v383, %v382
  %v507 = vpack.c.b16 %v385, %v384
  %v508 = vpack.c.b16 %v387, %v386
  %v509 = vpack.c.b16 %v389, %v388
  %v510 = vpack.c.b16 %v391, %v390
  %v511 = vpack.c.b16 %v393, %v392
  %v512 = vpack.c.b16 %v395, %v394
  %v513 = vpack.c.b16 %v397, %v396
  %v514 = vpack.c.b16 %v399, %v398
  %v515 = vpack.c.b16 %v401, %v400
  %v516 = vpack.c.b16 %v403, %v402
  %v517 = vpack.c.b16 %v405, %v404
  %v518 = vpack.c.b16 %v407, %v406
  %v519 = vpack.c.b16 %v409, %v408
  %v520 = vpack.c.b16 %v411, %v410
  %v521 = vpack.c.b16 %v413, %v412
  %v522 = vpack.c.b16 %v415, %v414
  %v523 = vpack.c.b16 %v417, %v416
  %v524 = vpack.c.b16 %v419, %v418
  %v525 = vpack.c.b16 %v421, %v420
  %v526 = vpack.c.b16 %v423, %v422
  %v527 = vpack.c.b16 %v425, %v424
  %v528 = vpack.c.b16 %v427, %v426
  %v529 = vpack.c.b16 %v429, %v428
  %v530 = vpack.c.b16 %v431, %v430
  %v531 = vpack.c.b16 %v433, %v432
  %v532 = vpack.c.b16 %v435, %v434
  %v533 = vpack.c.b16 %v437, %v436
  %v534 = vpack.c.b16 %v439, %v438
  %v535 = vpack.c.b16 %v441, %v440
  %v536 = vpack.c.b16 %v443, %v442
  %v537 = vpack.c.b16 %v445, %v444
  %v538 = vpack.c.b16 %v447, %v446
  %v539 = vpack.c.b16 %v449, %v448
  %v540 = vpack.c.b16 %v451, %v450
  %v541 = vpack.c.b16 %v453, %v452
  %v542 = vpack.c.b16 %v455, %v454
  %v543 = vpack.c.b16 %v457, %v456
  %v544 = vpack.c.b16 %v459, %v458
  %v545 = vpack.c.b16 %v461, %v460
  %v546 = vpack.c.b16 %v463, %v462
  %v547 = vpack.c.b16 %v465, %v464
  %v548 = vpack.c.b16 %v467, %v466
  %v549 = vpack.c.b16 %v469, %v468
  %v550 = vpack.c.b16 %v471, %v470
  %v551 = vpack.c.b16 %v473, %v472
  %v552 = vpack.c.b16 %v475, %v474
  %v553 = vpack.c.b16 %v477, %v476
  %v554 = vpack.c.b16 %v479, %v478
  %v555 = vpack.c.b16 %v481, %v480
  %v556 = vpack.c.b16 %v483, %v482
  %v557 = vpack.c.b16 %v485, %v484
  %v558 = vpack.c.b16 %v487, %v486
  %v559 = vpack.c.b16 %v489, %v488
  %vm630 = vcmask 785408
  %v632 = vsel %vm630, %v201, 0
  %634 = vmatprep.subr.bf16.mxu0 0
  %635 = vmatpush1.bf16.msra.mxu0 %v490
  %636 = vmatprep.subr.bf16.mxu0 0
  %637 = vmatpush1.bf16.msra.mxu0 %v491
  %638 = vmatprep.subr.bf16.mxu0 0
  %639 = vmatpush1.bf16.msra.mxu0 %v492
  %640 = vmatprep.subr.bf16.mxu0 0
  %641 = vmatpush1.bf16.msra.mxu0 %v493
  %642 = vmatprep.subr.bf16.mxu0 0
  %643 = vmatpush1.bf16.msra.mxu0 %v494
  %644 = vmatprep.subr.bf16.mxu0 0
  %645 = vmatpush1.bf16.msra.mxu0 %v495
  %646 = vmatprep.subr.bf16.mxu0 0
  %647 = vmatpush1.bf16.msra.mxu0 %v496
  %648 = vmatprep.subr.bf16.mxu0 0
  %649 = vmatpush1.bf16.msra.mxu0 %v497
  %650 = vmatprep.subr.bf16.mxu0 0
  %651 = vmatpush1.bf16.msra.mxu0 %v498
  %652 = vmatprep.subr.bf16.mxu0 0
  %653 = vmatpush1.bf16.msra.mxu0 %v499
  %654 = vmatprep.subr.bf16.mxu0 0
  %655 = vmatpush1.bf16.msra.mxu0 %v500
  %656 = vmatprep.subr.bf16.mxu0 0
  %657 = vmatpush1.bf16.msra.mxu0 %v501
  %658 = vmatprep.subr.bf16.mxu0 0
  %659 = vmatpush1.bf16.msra.mxu0 %v502
  %660 = vmatprep.subr.bf16.mxu0 0
  %661 = vmatpush1.bf16.msra.mxu0 %v503
  %662 = vmatprep.subr.bf16.mxu0 0
  %663 = vmatpush1.bf16.msra.mxu0 %v504
  %664 = vmatprep.subr.bf16.mxu0 0
  %665 = vmatpush1.bf16.msra.mxu0 %v505
  %666 = vmatprep.mubr.bf16.mxu0 %v194
  %667 = vmatmul.mubr.bf16.gmra.mrb[0].mxu0 %v193
  %v668 = vpop.f32.mrb[0].mxu0
  %v669 = vadd.f32 %v177, %v668
  %v670 = vpop.f32.mrb[0].mxu0
  %v671 = vpop.f32.mrb[0].mxu0
  %v672 = vpop.f32.mrb[0].mxu0
  %673 = vdwg.mxu0
  %674 = vmatprep.subr.bf16.mxu0 0
  %675 = vmatpush1.bf16.msra.mxu0 %v506
  %676 = vmatprep.subr.bf16.mxu0 0
  %677 = vmatpush1.bf16.msra.mxu0 %v507
  %678 = vmatprep.subr.bf16.mxu0 0
  %679 = vmatpush1.bf16.msra.mxu0 %v508
  %680 = vmatprep.subr.bf16.mxu0 0
  %681 = vmatpush1.bf16.msra.mxu0 %v509
  %682 = vmatprep.subr.bf16.mxu0 0
  %683 = vmatpush1.bf16.msra.mxu0 %v510
  %684 = vmatprep.subr.bf16.mxu0 0
  %685 = vmatpush1.bf16.msra.mxu0 %v511
  %686 = vmatprep.subr.bf16.mxu0 0
  %687 = vmatpush1.bf16.msra.mxu0 %v512
  %688 = vmatprep.subr.bf16.mxu0 0
  %689 = vmatpush1.bf16.msra.mxu0 %v513
  %690 = vmatprep.subr.bf16.mxu0 0
  %691 = vmatpush1.bf16.msra.mxu0 %v514
  %692 = vmatprep.subr.bf16.mxu0 0
  %693 = vmatpush1.bf16.msra.mxu0 %v515
  %694 = vmatprep.subr.bf16.mxu0 0
  %695 = vmatpush1.bf16.msra.mxu0 %v516
  %696 = vmatprep.subr.bf16.mxu0 0
  %697 = vmatpush1.bf16.msra.mxu0 %v517
  %698 = vmatprep.subr.bf16.mxu0 0
  %699 = vmatpush1.bf16.msra.mxu0 %v518
  %700 = vmatprep.subr.bf16.mxu0 0
  %701 = vmatpush1.bf16.msra.mxu0 %v519
  %702 = vmatprep.subr.bf16.mxu0 0
  %703 = vmatpush1.bf16.msra.mxu0 %v520
  %704 = vmatprep.subr.bf16.mxu0 0
  %705 = vmatpush1.bf16.msra.mxu0 %v521
  %706 = vmatprep.mubr.bf16.mxu0 %v196
  %707 = vmatmul.mubr.bf16.gmra.mrb[0].mxu0 %v195
  %v708 = vpop.f32.mrb[0].mxu0
  %v709 = vadd.f32 %v669, %v708
  %v710 = vpop.f32.mrb[0].mxu0
  %v711 = vpop.f32.mrb[0].mxu0
  %v712 = vpop.f32.mrb[0].mxu0
  %713 = vdwg.mxu0
  %714 = vmatprep.subr.bf16.mxu0 0
  %715 = vmatpush1.bf16.msra.mxu0 %v522
  %716 = vmatprep.subr.bf16.mxu0 0
  %717 = vmatpush1.bf16.msra.mxu0 %v523
  %718 = vmatprep.subr.bf16.mxu0 0
  %719 = vmatpush1.bf16.msra.mxu0 %v524
  %720 = vmatprep.subr.bf16.mxu0 0
  %721 = vmatpush1.bf16.msra.mxu0 %v525
  %722 = vmatprep.subr.bf16.mxu0 0
  %723 = vmatpush1.bf16.msra.mxu0 %v526
  %724 = vmatprep.subr.bf16.mxu0 0
  %725 = vmatpush1.bf16.msra.mxu0 %v527
  %726 = vmatprep.subr.bf16.mxu0 0
  %727 = vmatpush1.bf16.msra.mxu0 %v528
  %728 = vmatprep.subr.bf16.mxu0 0
  %729 = vmatpush1.bf16.msra.mxu0 %v529
  %730 = vmatprep.subr.bf16.mxu0 0
  %731 = vmatpush1.bf16.msra.mxu0 %v530
  %732 = vmatprep.subr.bf16.mxu0 0
  %733 = vmatpush1.bf16.msra.mxu0 %v531
  %734 = vmatprep.subr.bf16.mxu0 0
  %735 = vmatpush1.bf16.msra.mxu0 %v532
  %736 = vmatprep.subr.bf16.mxu0 0
  %737 = vmatpush1.bf16.msra.mxu0 %v533
  %738 = vmatprep.subr.bf16.mxu0 0
  %739 = vmatpush1.bf16.msra.mxu0 %v534
  %740 = vmatprep.subr.bf16.mxu0 0
  %741 = vmatpush1.bf16.msra.mxu0 %v535
  %742 = vmatprep.subr.bf16.mxu0 0
  %743 = vmatpush1.bf16.msra.mxu0 %v536
  %744 = vmatprep.subr.bf16.mxu0 0
  %745 = vmatpush1.bf16.msra.mxu0 %v537
  %746 = vmatprep.mubr.bf16.mxu0 %v198
  %747 = vmatmul.mubr.bf16.gmra.mrb[0].mxu0 %v197
  %v748 = vpop.f32.mrb[0].mxu0
  %v749 = vadd.f32 %v709, %v748
  %v750 = vpop.f32.mrb[0].mxu0
  %v751 = vpop.f32.mrb[0].mxu0
  %v752 = vpop.f32.mrb[0].mxu0
  %753 = vdwg.mxu0
  %754 = vmatprep.subr.bf16.mxu0 0
  %755 = vmatpush1.bf16.msra.mxu0 %v538
  %756 = vmatprep.subr.bf16.mxu0 0
  %757 = vmatpush1.bf16.msra.mxu0 %v539
  %758 = vmatprep.subr.bf16.mxu0 0
  %759 = vmatpush1.bf16.msra.mxu0 %v540
  %760 = vmatprep.subr.bf16.mxu0 0
  %761 = vmatpush1.bf16.msra.mxu0 %v541
  %762 = vmatprep.subr.bf16.mxu0 0
  %763 = vmatpush1.bf16.msra.mxu0 %v542
  %764 = vmatprep.subr.bf16.mxu0 0
  %765 = vmatpush1.bf16.msra.mxu0 %v543
  %766 = vmatprep.subr.bf16.mxu0 0
  %767 = vmatpush1.bf16.msra.mxu0 %v544
  %768 = vmatprep.subr.bf16.mxu0 0
  %769 = vmatpush1.bf16.msra.mxu0 %v545
  %770 = vmatprep.subr.bf16.mxu0 0
  %771 = vmatpush1.bf16.msra.mxu0 %v546
  %772 = vmatprep.subr.bf16.mxu0 0
  %773 = vmatpush1.bf16.msra.mxu0 %v547
  %774 = vmatprep.subr.bf16.mxu0 0
  %775 = vmatpush1.bf16.msra.mxu0 %v548
  %776 = vmatprep.subr.bf16.mxu0 0
  %777 = vmatpush1.bf16.msra.mxu0 %v549
  %778 = vmatprep.subr.bf16.mxu0 0
  %779 = vmatpush1.bf16.msra.mxu0 %v550
  %780 = vmatprep.subr.bf16.mxu0 0
  %781 = vmatpush1.bf16.msra.mxu0 %v551
  %782 = vmatprep.subr.bf16.mxu0 0
  %783 = vmatpush1.bf16.msra.mxu0 %v552
  %784 = vmatprep.subr.bf16.mxu0 0
  %785 = vmatpush1.bf16.msra.mxu0 %v553
  %786 = vmatprep.mubr.bf16.mxu0 %v200
  %787 = vmatmul.mubr.bf16.gmra.mrb[0].mxu0 %v199
  %v788 = vpop.f32.mrb[0].mxu0
  %v789 = vadd.f32 %v749, %v788
  %v790 = vpop.f32.mrb[0].mxu0
  %v791 = vpop.f32.mrb[0].mxu0
  %v792 = vpop.f32.mrb[0].mxu0
  %793 = vdwg.mxu0
  %794 = vmatprep.subr.bf16.mxu0 0
  %795 = vmatpush1.bf16.msra.mxu0 %v554
  %796 = vmatprep.subr.bf16.mxu0 0
  %797 = vmatpush1.bf16.msra.mxu0 %v555
  %798 = vmatprep.subr.bf16.mxu0 0
  %799 = vmatpush1.bf16.msra.mxu0 %v556
  %800 = vmatprep.subr.bf16.mxu0 0
  %801 = vmatpush1.bf16.msra.mxu0 %v557
  %802 = vmatprep.subr.bf16.mxu0 0
  %803 = vmatpush1.bf16.msra.mxu0 %v558
  %804 = vmatprep.subr.bf16.mxu0 0
  %805 = vmatpush1.bf16.msra.mxu0 %v559
  %806 = vmatprep.subr.bf16.mxu0 0
  %807 = vmatpush1.bf16.msra.mxu0 0
  %808 = vmatprep.subr.bf16.mxu0 0
  %809 = vmatpush1.bf16.msra.mxu0 0
  %810 = vmatprep.subr.bf16.mxu0 0
  %811 = vmatpush1.bf16.msra.mxu0 0
  %812 = vmatprep.subr.bf16.mxu0 0
  %813 = vmatpush1.bf16.msra.mxu0 0
  %814 = vmatprep.subr.bf16.mxu0 0
  %815 = vmatpush1.bf16.msra.mxu0 0
  %816 = vmatprep.subr.bf16.mxu0 0
  %817 = vmatpush1.bf16.msra.mxu0 0
  %818 = vmatprep.subr.bf16.mxu0 0
  %819 = vmatpush1.bf16.msra.mxu0 0
  %820 = vmatprep.subr.bf16.mxu0 0
  %821 = vmatpush1.bf16.msra.mxu0 0
  %822 = vmatprep.subr.bf16.mxu0 0
  %823 = vmatpush1.bf16.msra.mxu0 0
  %824 = vmatprep.subr.bf16.mxu0 0
  %825 = vmatpush1.bf16.msra.mxu0 0
  %826 = vmatprep.mubr.bf16.mxu0 0
  %827 = vmatmul.mubr.bf16.gmra.mrb[0].mxu0 %v632
  %v828 = vpop.f32.mrb[0].mxu0
  %v829 = vadd.f32 %v789, %v828
  %v830 = vpop.f32.mrb[0].mxu0
  %v831 = vpop.f32.mrb[0].mxu0
  %v832 = vpop.f32.mrb[0].mxu0
  %833 = vdwg.mxu0
  %v834 = vmax.f32 %v829, 0.0
  %v835 = vpack.c.bf16 %v834, %v834
  %v836 = vld [vmem:[%s3] sm:$0xf]
  %v837 = vld [vmem:[%s3 + $0x4] sm:$0xf]
  %v838 = vld [vmem:[%s3 + $0x8] sm:$0xf]
  %v839 = vld [vmem:[%s3 + $0xc] sm:$0xf]
  %v840 = vld [vmem:[%s3 + $0x10] sm:$0xf]
  %v841 = vld [vmem:[%s3 + $0x14] sm:$0xf]
  %v842 = vld [vmem:[%s3 + $0x18] sm:$0xf]
  %v843 = vld [vmem:[%s3 + $0x1c] sm:$0xf]
  %v844 = vld [vmem:[%s3 + $0x20] sm:$0xf]
  %v845 = vld [vmem:[%s3 + $0x24] sm:$0xf]
  %v846 = vld [vmem:[%s3 + $0x28] sm:$0xf]
  %v847 = vld [vmem:[%s3 + $0x2c] sm:$0xf]
  %v848 = vld [vmem:[%s3 + $0x30] sm:$0xf]
  %v849 = vld [vmem:[%s3 + $0x34] sm:$0xf]
  %v850 = vld [vmem:[%s3 + $0x38] sm:$0xf]
  %v851 = vld [vmem:[%s3 + $0x3c] sm:$0xf]
  %v852 = vld [vmem:[%s4] sm:$0x1]
  %v854 = vlaneseq
  %v855 = vshrl.u32 %v854, 7
  %v856 = vsub.s32 0, %v855
  %v857 = vrot.slane %v852, %v856
  %v875 = vunpack.c.l.b16 %v836
  %v876 = vunpack.c.l.b16 %v837
  %v877 = vunpack.c.l.b16 %v838
  %v878 = vunpack.c.l.b16 %v839
  %v879 = vunpack.c.l.b16 %v840
  %v880 = vunpack.c.l.b16 %v841
  %v881 = vunpack.c.l.b16 %v842
  %v882 = vunpack.c.l.b16 %v843
  %v883 = vunpack.c.l.b16 %v844
  %v884 = vunpack.c.l.b16 %v845
  %v885 = vunpack.c.l.b16 %v846
  %v886 = vunpack.c.l.b16 %v847
  %v887 = vunpack.c.l.b16 %v848
  %v888 = vunpack.c.l.b16 %v849
  %v889 = vunpack.c.l.b16 %v850
  %v890 = vunpack.c.l.b16 %v851
  %v891 = vpack.c.b16 %v876, %v875
  %v892 = vpack.c.b16 %v878, %v877
  %v893 = vpack.c.b16 %v880, %v879
  %v894 = vpack.c.b16 %v882, %v881
  %v895 = vpack.c.b16 %v884, %v883
  %v896 = vpack.c.b16 %v886, %v885
  %v897 = vpack.c.b16 %v888, %v887
  %v898 = vpack.c.b16 %v890, %v889
  %907 = vmatprep.subr.bf16.mxu0 0
  %908 = vmatpush1.bf16.msra.mxu0 %v891
  %909 = vmatprep.subr.bf16.mxu0 0
  %910 = vmatpush1.bf16.msra.mxu0 %v892
  %911 = vmatprep.subr.bf16.mxu0 0
  %912 = vmatpush1.bf16.msra.mxu0 %v893
  %913 = vmatprep.subr.bf16.mxu0 0
  %914 = vmatpush1.bf16.msra.mxu0 %v894
  %915 = vmatprep.subr.bf16.mxu0 0
  %916 = vmatpush1.bf16.msra.mxu0 %v895
  %917 = vmatprep.subr.bf16.mxu0 0
  %918 = vmatpush1.bf16.msra.mxu0 %v896
  %919 = vmatprep.subr.bf16.mxu0 0
  %920 = vmatpush1.bf16.msra.mxu0 %v897
  %921 = vmatprep.subr.bf16.mxu0 0
  %922 = vmatpush1.bf16.msra.mxu0 %v898
  %923 = vmatprep.subr.bf16.mxu0 0
  %924 = vmatpush1.bf16.msra.mxu0 0
  %925 = vmatprep.subr.bf16.mxu0 0
  %926 = vmatpush1.bf16.msra.mxu0 0
  %927 = vmatprep.subr.bf16.mxu0 0
  %928 = vmatpush1.bf16.msra.mxu0 0
  %929 = vmatprep.subr.bf16.mxu0 0
  %930 = vmatpush1.bf16.msra.mxu0 0
  %931 = vmatprep.subr.bf16.mxu0 0
  %932 = vmatpush1.bf16.msra.mxu0 0
  %933 = vmatprep.subr.bf16.mxu0 0
  %934 = vmatpush1.bf16.msra.mxu0 0
  %935 = vmatprep.subr.bf16.mxu0 0
  %936 = vmatpush1.bf16.msra.mxu0 0
  %937 = vmatprep.subr.bf16.mxu0 0
  %938 = vmatpush1.bf16.msra.mxu0 0
  %939 = vmatprep.mubr.bf16.mxu0 0
  %940 = vmatmul.mubr.bf16.gmra.mrb[0].mxu0 %v835
  %v941 = vpop.f32.mrb[0].mxu0
  %v942 = vadd.f32 %v857, %v941
  %v943 = vpop.f32.mrb[0].mxu0
  %v944 = vpop.f32.mrb[0].mxu0
  %v945 = vpop.f32.mrb[0].mxu0
  %946 = vdwg.mxu0
  %v947 = vmax.f32 %v942, 0.0
  %v948 = vpack.c.bf16 %v947, %v947
  %v949 = vld [vmem:[%s5] sm:$0xf]
  %v950 = vld [vmem:[%s5 + $0x4] sm:$0xf]
  %v951 = vld [vmem:[%s5 + $0x8] sm:$0xf]
  %v952 = vld [vmem:[%s5 + $0xc] sm:$0xf]
  %v953 = vld [vmem:[%s5 + $0x10] sm:$0xf]
  %v954 = vld [vmem:[%s5 + $0x14] sm:$0xf]
  %v955 = vld [vmem:[%s5 + $0x18] sm:$0xf]
  %v956 = vld [vmem:[%s5 + $0x1c] sm:$0xf]
  %v957 = vld [vmem:[%s5 + $0x20] sm:$0xf]
  %v958 = vld [vmem:[%s5 + $0x24] sm:$0xf]
  %v959 = vld [vmem:[%s5 + $0x28] sm:$0xf]
  %v960 = vld [vmem:[%s5 + $0x2c] sm:$0xf]
  %v961 = vld [vmem:[%s5 + $0x30] sm:$0xf]
  %v962 = vld [vmem:[%s5 + $0x34] sm:$0xf]
  %v963 = vld [vmem:[%s5 + $0x38] sm:$0xf]
  %v964 = vld [vmem:[%s5 + $0x3c] sm:$0xf]
  %v965 = vld [vmem:[%s6] sm:$0x1]
  %v967 = vlaneseq
  %v968 = vshrl.u32 %v967, 7
  %v969 = vsub.s32 0, %v968
  %v970 = vrot.slane %v965, %v969
  %v988 = vunpack.c.l.b16 %v949
  %v989 = vunpack.c.l.b16 %v950
  %v990 = vunpack.c.l.b16 %v951
  %v991 = vunpack.c.l.b16 %v952
  %v992 = vunpack.c.l.b16 %v953
  %v993 = vunpack.c.l.b16 %v954
  %v994 = vunpack.c.l.b16 %v955
  %v995 = vunpack.c.l.b16 %v956
  %v996 = vunpack.c.l.b16 %v957
  %v997 = vunpack.c.l.b16 %v958
  %v998 = vunpack.c.l.b16 %v959
  %v999 = vunpack.c.l.b16 %v960
  %v1000 = vunpack.c.l.b16 %v961
  %v1001 = vunpack.c.l.b16 %v962
  %v1002 = vunpack.c.l.b16 %v963
  %v1003 = vunpack.c.l.b16 %v964
  %v1004 = vpack.c.b16 %v989, %v988
  %v1005 = vpack.c.b16 %v991, %v990
  %v1006 = vpack.c.b16 %v993, %v992
  %v1007 = vpack.c.b16 %v995, %v994
  %v1008 = vpack.c.b16 %v997, %v996
  %v1009 = vpack.c.b16 %v999, %v998
  %v1010 = vpack.c.b16 %v1001, %v1000
  %v1011 = vpack.c.b16 %v1003, %v1002
  %1020 = vmatprep.subr.bf16.mxu0 0
  %1021 = vmatpush1.bf16.msra.mxu0 %v1004
  %1022 = vmatprep.subr.bf16.mxu0 0
  %1023 = vmatpush1.bf16.msra.mxu0 %v1005
  %1024 = vmatprep.subr.bf16.mxu0 0
  %1025 = vmatpush1.bf16.msra.mxu0 %v1006
  %1026 = vmatprep.subr.bf16.mxu0 0
  %1027 = vmatpush1.bf16.msra.mxu0 %v1007
  %1028 = vmatprep.subr.bf16.mxu0 0
  %1029 = vmatpush1.bf16.msra.mxu0 %v1008
  %1030 = vmatprep.subr.bf16.mxu0 0
  %1031 = vmatpush1.bf16.msra.mxu0 %v1009
  %1032 = vmatprep.subr.bf16.mxu0 0
  %1033 = vmatpush1.bf16.msra.mxu0 %v1010
  %1034 = vmatprep.subr.bf16.mxu0 0
  %1035 = vmatpush1.bf16.msra.mxu0 %v1011
  %1036 = vmatprep.subr.bf16.mxu0 0
  %1037 = vmatpush1.bf16.msra.mxu0 0
  %1038 = vmatprep.subr.bf16.mxu0 0
  %1039 = vmatpush1.bf16.msra.mxu0 0
  %1040 = vmatprep.subr.bf16.mxu0 0
  %1041 = vmatpush1.bf16.msra.mxu0 0
  %1042 = vmatprep.subr.bf16.mxu0 0
  %1043 = vmatpush1.bf16.msra.mxu0 0
  %1044 = vmatprep.subr.bf16.mxu0 0
  %1045 = vmatpush1.bf16.msra.mxu0 0
  %1046 = vmatprep.subr.bf16.mxu0 0
  %1047 = vmatpush1.bf16.msra.mxu0 0
  %1048 = vmatprep.subr.bf16.mxu0 0
  %1049 = vmatpush1.bf16.msra.mxu0 0
  %1050 = vmatprep.subr.bf16.mxu0 0
  %1051 = vmatpush1.bf16.msra.mxu0 0
  %1052 = vmatprep.mubr.bf16.mxu0 0
  %1053 = vmatmul.mubr.bf16.gmra.mrb[0].mxu0 %v948
  %v1054 = vpop.f32.mrb[0].mxu0
  %v1055 = vadd.f32 %v970, %v1054
  %v1056 = vpop.f32.mrb[0].mxu0
  %v1057 = vpop.f32.mrb[0].mxu0
  %v1058 = vpop.f32.mrb[0].mxu0
  %1059 = vdwg.mxu0
  %1060 = vst [vmem:[%s7] sm:$0xff] %v1055
  // Predicated region
  $region30: #{mynet_forward.9} parent=0 // pred_check
    _
  $region31: #{mynet_forward.9} parent=0 // pred_check_branch
    %1062 = sbr.rel (0) target = $region33
  $region32: #{mynet_forward.9} parent=0 // pred_region
    _
  $region33: #{mynet_forward.9} parent=0 // pred_fallthru
    _
  // Predicated region
  $region34: #{mynet_forward.9} parent=0 // pred_check
    _
  $region35: #{mynet_forward.9} parent=0 // pred_check_branch
    %1064 = sbr.rel (0) target = $region37
  $region36: #{mynet_forward.9} parent=0 // pred_region
    _
  $region37: #{mynet_forward.9} parent=0 // pred_fallthru
    _

</llo_original>
